<compile_context>
chip_gen: v5e
topology: v5e:2x2
jax: 0.10.0
libtpu: 0.0.40
codegen_flags: <defaults>
</compile_context>

<pallas_src>
import jax
import jax.numpy as jnp
import numpy as np
from jax.experimental import pallas as pl
from jax.experimental.pallas import tpu as pltpu

N, C_IN, H, W = 2, 4, 16, 16
K5, PAD = 5, 2
C5 = 64          # branch5x5 stage-1 width
C_B1 = 128       # branch1x1 width
C_OUT = 256      # block output width


# ------------------------------ Pallas kernel ------------------------------
def inception_resnet_b(x_nchw, kparams):
    """x_nchw: (N, C_in, H, W) float32.  kparams: output of kernel_params()."""
    n, c, h, w = x_nchw.shape
    hw = h * w
    x = jnp.transpose(x_nchw, (0, 2, 3, 1)).astype(jnp.float32).reshape(n, hw, c)

    def _kernel(x_ref, w1_ref, b1_ref, w5_ref, b5_ref, wr_ref, bf_ref,
                out_ref, pad_ref, col_ref):
        xm = x_ref[0]                                         # (HW, C_in)

        # --- one fused 1x1 matmul: [branch1x1 | shortcut | branch5x5 stage1] -
        fused = (jnp.dot(xm, w1_ref[...], preferred_element_type=jnp.float32)
                 + b1_ref[...])                               # (HW, 448)
        b1 = jnp.maximum(fused[:, 0:C_B1], 0.0)               # (HW, 128) BN+ReLU folded
        sc = fused[:, C_B1:C_B1 + C_OUT]                      # (HW, 256) already * sf
        t = jnp.maximum(fused[:, C_B1 + C_OUT:], 0.0)         # (HW, 64)  BN+ReLU folded

        # --- 5x5 conv (pad 2): zero halo ring, store interior, im2col, matmul
        zrow = jnp.zeros((PAD, w + 2 * PAD, C5), jnp.float32)
        pad_ref[0:PAD, :, :] = zrow
        pad_ref[PAD + h:PAD + h + PAD, :, :] = zrow
        zcol = jnp.zeros((h, PAD, C5), jnp.float32)
        pad_ref[PAD:PAD + h, 0:PAD, :] = zcol
        pad_ref[PAD:PAD + h, PAD + w:PAD + w + PAD, :] = zcol
        pad_ref[PAD:PAD + h, PAD:PAD + w, :] = t.reshape(h, w, C5)

        for tap in range(K5 * K5):                            # build (HW, 1600)
            ky, kx = tap // K5, tap % K5
            col_ref[:, tap * C5:(tap + 1) * C5] = (
                pad_ref[ky:ky + h, kx:kx + w, :].reshape(hw, C5))

        b5 = (jnp.dot(col_ref[...], w5_ref[...],
                      preferred_element_type=jnp.float32) + b5_ref[...])
        b5 = jnp.maximum(b5, 0.0)                             # (HW, 128)

        # --- reduction1x1 (0.1 & final BN folded) + shortcut + final bias ----
        residual = jnp.concatenate([b1, b5], axis=-1)         # (HW, 256)
        out = (jnp.dot(residual, wr_ref[...],
                       preferred_element_type=jnp.float32) + sc + bf_ref[...])
        out_ref[0] = jnp.maximum(out, 0.0).astype(out_ref.dtype)

    in_specs = [pl.BlockSpec((1, hw, c), lambda i: (i, 0, 0))]
    for p_ in kparams:   # weights are grid-resident (constant index maps)
        in_specs.append(pl.BlockSpec(p_.shape, lambda i, nd=p_.ndim: (0,) * nd))

    out = pl.pallas_call(
        _kernel,
        out_shape=jax.ShapeDtypeStruct((n, hw, C_OUT), jnp.float32),
        grid_spec=pltpu.PrefetchScalarGridSpec(
            num_scalar_prefetch=0,
            grid=(n,),
            in_specs=in_specs,
            out_specs=pl.BlockSpec((1, hw, C_OUT), lambda i: (i, 0, 0)),
            scratch_shapes=[
                pltpu.VMEM((h + 2 * PAD, w + 2 * PAD, C5), jnp.float32),
                pltpu.VMEM((hw, K5 * K5 * C5), jnp.float32),
            ]),
        compiler_params=pltpu.CompilerParams(
            dimension_semantics=("parallel",)),
    )(x, *kparams)
    return jnp.transpose(out.reshape(n, h, w, C_OUT), (0, 3, 1, 2))


# -------------------- parameter construction (deterministic) --------------------
def make_params(key):
    keys = iter(jax.random.split(key, 64))

    def nrm(shape, s=0.1):
        return jax.random.normal(next(keys), shape, jnp.float32) * s

    p = {}
    # branch1x1: BasicConv2d(C_IN, 128, 1)
    p["w_b1"] = nrm((128, C_IN, 1, 1)); p["b_b1"] = nrm((128,))
    p["g_b1"] = 1.0 + nrm((128,)); p["be_b1"] = nrm((128,))
    p["m_b1"] = nrm((128,)); p["v_b1"] = 1.0 + jnp.abs(nrm((128,)))
    # branch5x5[0]: BasicConv2d(C_IN, 64, 1)
    p["w_5a"] = nrm((64, C_IN, 1, 1)); p["b_5a"] = nrm((64,))
    p["g_5a"] = 1.0 + nrm((64,)); p["be_5a"] = nrm((64,))
    p["m_5a"] = nrm((64,)); p["v_5a"] = 1.0 + jnp.abs(nrm((64,)))
    # branch5x5[1]: BasicConv2d(64, 128, 5x5, pad 2)
    p["w_5b"] = nrm((128, 64, 5, 5)); p["b_5b"] = nrm((128,))
    p["g_5b"] = 1.0 + nrm((128,)); p["be_5b"] = nrm((128,))
    p["m_5b"] = nrm((128,)); p["v_5b"] = 1.0 + jnp.abs(nrm((128,)))
    # reduction1x1: Conv2d(256, 256, 1)
    p["w_rd"] = nrm((256, 256, 1, 1)); p["b_rd"] = nrm((256,))
    # shortcut: Conv2d(C_IN, 256, 1)
    p["w_sc"] = nrm((256, C_IN, 1, 1)); p["b_sc"] = nrm((256,))
    # final BatchNorm2d(256)
    p["g_f"] = 1.0 + nrm((256,)); p["be_f"] = nrm((256,))
    p["m_f"] = nrm((256,)); p["v_f"] = 1.0 + jnp.abs(nrm((256,)))
    return p


def _bn_fold(g, be, m, v, eps):
    scale = g / jnp.sqrt(v + eps)
    return scale, be - m * scale


def kernel_params(p):
    """Fold BN / 0.1 / final-BN scales into weights; pack into 6 arrays."""
    s_b1, o_b1 = _bn_fold(p["g_b1"], p["be_b1"], p["m_b1"], p["v_b1"], 1e-3)
    s_5a, o_5a = _bn_fold(p["g_5a"], p["be_5a"], p["m_5a"], p["v_5a"], 1e-3)
    s_5b, o_5b = _bn_fold(p["g_5b"], p["be_5b"], p["m_5b"], p["v_5b"], 1e-3)
    s_f, o_f = _bn_fold(p["g_f"], p["be_f"], p["m_f"], p["v_f"], 1e-5)

    # Fused 1x1 weight, lane order [branch1x1(128) | shortcut(256) | 5x5a(64)]
    w_b1 = p["w_b1"][:, :, 0, 0].T * s_b1[None, :]            # (C_in, 128)
    b_b1 = p["b_b1"] * s_b1 + o_b1
    w_5a = p["w_5a"][:, :, 0, 0].T * s_5a[None, :]            # (C_in, 64)
    b_5a = p["b_5a"] * s_5a + o_5a
    w_sc = p["w_sc"][:, :, 0, 0].T * s_f[None, :]             # (C_in, 256), final BN folded
    b_sc = p["b_sc"] * s_f
    w_fused = jnp.concatenate([w_b1, w_sc, w_5a], axis=1)     # (C_in, 448)
    b_fused = jnp.concatenate([b_b1, b_sc, b_5a])[None, :]    # (1, 448)

    # 5x5 conv as im2col weight: row = (ky*5+kx)*64 + cin, col = cout
    w_5b = jnp.transpose(p["w_5b"], (2, 3, 1, 0)).reshape(K5 * K5 * C5, 128)
    w_5b = w_5b * s_5b[None, :]
    b_5b = (p["b_5b"] * s_5b + o_5b)[None, :]                 # (1, 128)

    # reduction1x1 with 0.1 residual scale and final BN scale folded in
    w_rd = p["w_rd"][:, :, 0, 0].T * (0.1 * s_f)[None, :]     # (256, 256)
    b_fin = (p["b_rd"] * 0.1 * s_f + o_f)[None, :]            # (1, 256)

    return (w_fused, b_fused, w_5b, b_5b, w_rd, b_fin)


# -------------------- pure-JAX reference (NCHW, like PyTorch) --------------------
def ref_forward(x, p):
    def conv(x, w, b, pad=0):
        y = jax.lax.conv_general_dilated(
            x, w, (1, 1), [(pad, pad), (pad, pad)],
            dimension_numbers=("NCHW", "OIHW", "NCHW"))
        return y + b[None, :, None, None]

    def bn(x, g, be, m, v, eps):
        return ((x - m[None, :, None, None])
                / jnp.sqrt(v[None, :, None, None] + eps)
                * g[None, :, None, None] + be[None, :, None, None])

    b1 = jax.nn.relu(bn(conv(x, p["w_b1"], p["b_b1"]),
                        p["g_b1"], p["be_b1"], p["m_b1"], p["v_b1"], 1e-3))
    t = jax.nn.relu(bn(conv(x, p["w_5a"], p["b_5a"]),
                       p["g_5a"], p["be_5a"], p["m_5a"], p["v_5a"], 1e-3))
    b5 = jax.nn.relu(bn(conv(t, p["w_5b"], p["b_5b"], pad=PAD),
                        p["g_5b"], p["be_5b"], p["m_5b"], p["v_5b"], 1e-3))
    residual = jnp.concatenate([b1, b5], axis=1)
    red = conv(residual, p["w_rd"], p["b_rd"]) * 0.1
    sc = conv(x, p["w_sc"], p["b_sc"])
    return jax.nn.relu(bn(red + sc, p["g_f"], p["be_f"], p["m_f"], p["v_f"], 1e-5))


if __name__ == "__main__":
    root = jax.random.PRNGKey(0)
    pkey, xkey = jax.random.split(root)

    p = make_params(pkey)
    kp = kernel_params(p)
    x = jax.random.normal(xkey, (N, C_IN, H, W), jnp.float32)

    out = inception_resnet_b(x, kp)
    out = jax.block_until_ready(out)

    ref = jax.block_until_ready(ref_forward(x, p))
    np.testing.assert_allclose(np.asarray(out), np.asarray(ref),
                               rtol=2e-3, atol=2e-3)
    print("KERNEL_OK")
</pallas_src>

<mosaic_0001>
module attributes {stable_mosaic.version = 11 : i64} {
  func.func @_kernel(%arg0: i32, %arg1: memref<1x256x4xf32, #tpu.memory_space<vmem>>, %arg2: memref<4x448xf32, #tpu.memory_space<vmem>>, %arg3: memref<1x448xf32, #tpu.memory_space<vmem>>, %arg4: memref<1600x128xf32, #tpu.memory_space<vmem>>, %arg5: memref<1x128xf32, #tpu.memory_space<vmem>>, %arg6: memref<256x256xf32, #tpu.memory_space<vmem>>, %arg7: memref<1x256xf32, #tpu.memory_space<vmem>>, %arg8: memref<1x256x256xf32, #tpu.memory_space<vmem>>, %arg9: memref<20x20x64xf32, #tpu.memory_space<vmem>>, %arg10: memref<256x1600xf32, #tpu.memory_space<vmem>>) attributes {dimension_semantics = [#tpu.dimension_semantics<parallel>], iteration_bounds = array<i64: 2>, scalar_prefetch = 0 : i64, scratch_operands = 2 : i64, tpu.core_type = #tpu.core_type<tc>, window_params = [{transform_indices = @transform_0, window_bounds = array<i64: 1, 256, 4>}, {pipeline_mode = #tpu.pipeline_mode<synchronous>, transform_indices = @transform_1, window_bounds = array<i64: 4, 448>}, {pipeline_mode = #tpu.pipeline_mode<synchronous>, transform_indices = @transform_2, window_bounds = array<i64: 1, 448>}, {pipeline_mode = #tpu.pipeline_mode<synchronous>, transform_indices = @transform_3, window_bounds = array<i64: 1600, 128>}, {pipeline_mode = #tpu.pipeline_mode<synchronous>, transform_indices = @transform_4, window_bounds = array<i64: 1, 128>}, {pipeline_mode = #tpu.pipeline_mode<synchronous>, transform_indices = @transform_5, window_bounds = array<i64: 256, 256>}, {pipeline_mode = #tpu.pipeline_mode<synchronous>, transform_indices = @transform_6, window_bounds = array<i64: 1, 256>}, {transform_indices = @transform_7, window_bounds = array<i64: 1, 256, 256>}]} {
    %c0 = arith.constant 0 : index
    %c0_0 = arith.constant 0 : index
    %c0_1 = arith.constant 0 : index
    %0 = vector.load %arg1[%c0, %c0_0, %c0_1] : memref<1x256x4xf32, #tpu.memory_space<vmem>>, vector<1x256x4xf32>
    %1 = vector.shape_cast %0 : vector<1x256x4xf32> to vector<256x4xf32>
    %c0_2 = arith.constant 0 : index
    %c0_3 = arith.constant 0 : index
    %2 = vector.load %arg2[%c0_2, %c0_3] : memref<4x448xf32, #tpu.memory_space<vmem>>, vector<4x448xf32>
    %cst = arith.constant dense<0.000000e+00> : vector<256x448xf32>
    %3 = tpu.matmul %1, %2, %cst {dimension_numbers = #tpu.dot_dimension_numbers<[1], [0], [0], [1], [0, 0, 1, 1], [], []>} : vector<256x4xf32>, vector<4x448xf32>, vector<256x448xf32> -> vector<256x448xf32>
    %c0_4 = arith.constant 0 : index
    %c0_5 = arith.constant 0 : index
    %4 = vector.load %arg3[%c0_4, %c0_5] : memref<1x448xf32, #tpu.memory_space<vmem>>, vector<1x448xf32>
    %5 = vector.broadcast %4 : vector<1x448xf32> to vector<256x448xf32>
    %6 = arith.addf %3, %5 : vector<256x448xf32>
    %7 = vector.extract_strided_slice %6 {offsets = [0, 0], sizes = [256, 128], strides = [1, 1]} : vector<256x448xf32> to vector<256x128xf32>
    %cst_6 = arith.constant 0.000000e+00 : f32
    %8 = vector.broadcast %cst_6 : f32 to vector<256x128xf32>
    %9 = arith.maximumf %7, %8 : vector<256x128xf32>
    %10 = vector.extract_strided_slice %6 {offsets = [0, 128], sizes = [256, 256], strides = [1, 1]} : vector<256x448xf32> to vector<256x256xf32>
    %11 = vector.extract_strided_slice %6 {offsets = [0, 384], sizes = [256, 64], strides = [1, 1]} : vector<256x448xf32> to vector<256x64xf32>
    %cst_7 = arith.constant 0.000000e+00 : f32
    %12 = vector.broadcast %cst_7 : f32 to vector<256x64xf32>
    %13 = arith.maximumf %11, %12 : vector<256x64xf32>
    %cst_8 = arith.constant 0.000000e+00 : f32
    %14 = vector.broadcast %cst_8 : f32 to vector<2x20x64xf32>
    %c0_9 = arith.constant 0 : index
    %c0_10 = arith.constant 0 : index
    %c0_11 = arith.constant 0 : index
    %15 = vector.load %arg9[%c0_9, %c0_10, %c0_11] : memref<20x20x64xf32, #tpu.memory_space<vmem>>, vector<2x20x64xf32>
    tpu.vector_store %arg9[%c0_9, %c0_10, %c0_11], %14 {strides = array<i32>} : memref<20x20x64xf32, #tpu.memory_space<vmem>>, vector<2x20x64xf32>,
    %c18 = arith.constant 18 : index
    %c0_12 = arith.constant 0 : index
    %c0_13 = arith.constant 0 : index
    %16 = vector.load %arg9[%c18, %c0_12, %c0_13] : memref<20x20x64xf32, #tpu.memory_space<vmem>>, vector<2x20x64xf32>
    tpu.vector_store %arg9[%c18, %c0_12, %c0_13], %14 {strides = array<i32>} : memref<20x20x64xf32, #tpu.memory_space<vmem>>, vector<2x20x64xf32>,
    %cst_14 = arith.constant 0.000000e+00 : f32
    %17 = vector.broadcast %cst_14 : f32 to vector<16x2x64xf32>
    %c2 = arith.constant 2 : index
    %c0_15 = arith.constant 0 : index
    %c0_16 = arith.constant 0 : index
    %18 = vector.load %arg9[%c2, %c0_15, %c0_16] : memref<20x20x64xf32, #tpu.memory_space<vmem>>, vector<16x2x64xf32>
    tpu.vector_store %arg9[%c2, %c0_15, %c0_16], %17 {strides = array<i32>} : memref<20x20x64xf32, #tpu.memory_space<vmem>>, vector<16x2x64xf32>,
    %c2_17 = arith.constant 2 : index
    %c18_18 = arith.constant 18 : index
    %c0_19 = arith.constant 0 : index
    %19 = vector.load %arg9[%c2_17, %c18_18, %c0_19] : memref<20x20x64xf32, #tpu.memory_space<vmem>>, vector<16x2x64xf32>
    tpu.vector_store %arg9[%c2_17, %c18_18, %c0_19], %17 {strides = array<i32>} : memref<20x20x64xf32, #tpu.memory_space<vmem>>, vector<16x2x64xf32>,
    %20 = vector.shape_cast %13 : vector<256x64xf32> to vector<16x16x64xf32>
    %c2_20 = arith.constant 2 : index
    %c2_21 = arith.constant 2 : index
    %c0_22 = arith.constant 0 : index
    %21 = vector.load %arg9[%c2_20, %c2_21, %c0_22] : memref<20x20x64xf32, #tpu.memory_space<vmem>>, vector<16x16x64xf32>
    tpu.vector_store %arg9[%c2_20, %c2_21, %c0_22], %20 {strides = array<i32>} : memref<20x20x64xf32, #tpu.memory_space<vmem>>, vector<16x16x64xf32>,
    %c0_23 = arith.constant 0 : index
    %c0_24 = arith.constant 0 : index
    %c0_25 = arith.constant 0 : index
    %22 = vector.load %arg9[%c0_23, %c0_24, %c0_25] : memref<20x20x64xf32, #tpu.memory_space<vmem>>, vector<16x16x64xf32>
    %23 = vector.shape_cast %22 : vector<16x16x64xf32> to vector<256x64xf32>
    %c0_26 = arith.constant 0 : index
    %c0_27 = arith.constant 0 : index
    %24 = vector.load %arg10[%c0_26, %c0_27] : memref<256x1600xf32, #tpu.memory_space<vmem>>, vector<256x64xf32>
    tpu.vector_store %arg10[%c0_26, %c0_27], %23 {strides = array<i32>} : memref<256x1600xf32, #tpu.memory_space<vmem>>, vector<256x64xf32>,
    %c0_28 = arith.constant 0 : index
    %c1 = arith.constant 1 : index
    %c0_29 = arith.constant 0 : index
    %25 = vector.load %arg9[%c0_28, %c1, %c0_29] : memref<20x20x64xf32, #tpu.memory_space<vmem>>, vector<16x16x64xf32>
    %26 = vector.shape_cast %25 : vector<16x16x64xf32> to vector<256x64xf32>
    %c0_30 = arith.constant 0 : index
    %c64 = arith.constant 64 : index
    %27 = vector.load %arg10[%c0_30, %c64] : memref<256x1600xf32, #tpu.memory_space<vmem>>, vector<256x64xf32>
    tpu.vector_store %arg10[%c0_30, %c64], %26 {strides = array<i32>} : memref<256x1600xf32, #tpu.memory_space<vmem>>, vector<256x64xf32>,
    %c0_31 = arith.constant 0 : index
    %c2_32 = arith.constant 2 : index
    %c0_33 = arith.constant 0 : index
    %28 = vector.load %arg9[%c0_31, %c2_32, %c0_33] : memref<20x20x64xf32, #tpu.memory_space<vmem>>, vector<16x16x64xf32>
    %29 = vector.shape_cast %28 : vector<16x16x64xf32> to vector<256x64xf32>
    %c0_34 = arith.constant 0 : index
    %c128 = arith.constant 128 : index
    %30 = vector.load %arg10[%c0_34, %c128] : memref<256x1600xf32, #tpu.memory_space<vmem>>, vector<256x64xf32>
    tpu.vector_store %arg10[%c0_34, %c128], %29 {strides = array<i32>} : memref<256x1600xf32, #tpu.memory_space<vmem>>, vector<256x64xf32>,
    %c0_35 = arith.constant 0 : index
    %c3 = arith.constant 3 : index
    %c0_36 = arith.constant 0 : index
    %31 = vector.load %arg9[%c0_35, %c3, %c0_36] : memref<20x20x64xf32, #tpu.memory_space<vmem>>, vector<16x16x64xf32>
    %32 = vector.shape_cast %31 : vector<16x16x64xf32> to vector<256x64xf32>
    %c0_37 = arith.constant 0 : index
    %c192 = arith.constant 192 : index
    %33 = vector.load %arg10[%c0_37, %c192] : memref<256x1600xf32, #tpu.memory_space<vmem>>, vector<256x64xf32>
    tpu.vector_store %arg10[%c0_37, %c192], %32 {strides = array<i32>} : memref<256x1600xf32, #tpu.memory_space<vmem>>, vector<256x64xf32>,
    %c0_38 = arith.constant 0 : index
    %c4 = arith.constant 4 : index
    %c0_39 = arith.constant 0 : index
    %34 = vector.load %arg9[%c0_38, %c4, %c0_39] : memref<20x20x64xf32, #tpu.memory_space<vmem>>, vector<16x16x64xf32>
    %35 = vector.shape_cast %34 : vector<16x16x64xf32> to vector<256x64xf32>
    %c0_40 = arith.constant 0 : index
    %c256 = arith.constant 256 : index
    %36 = vector.load %arg10[%c0_40, %c256] : memref<256x1600xf32, #tpu.memory_space<vmem>>, vector<256x64xf32>
    tpu.vector_store %arg10[%c0_40, %c256], %35 {strides = array<i32>} : memref<256x1600xf32, #tpu.memory_space<vmem>>, vector<256x64xf32>,
    %c1_41 = arith.constant 1 : index
    %c0_42 = arith.constant 0 : index
    %c0_43 = arith.constant 0 : index
    %37 = vector.load %arg9[%c1_41, %c0_42, %c0_43] : memref<20x20x64xf32, #tpu.memory_space<vmem>>, vector<16x16x64xf32>
    %38 = vector.shape_cast %37 : vector<16x16x64xf32> to vector<256x64xf32>
    %c0_44 = arith.constant 0 : index
    %c320 = arith.constant 320 : index
    %39 = vector.load %arg10[%c0_44, %c320] : memref<256x1600xf32, #tpu.memory_space<vmem>>, vector<256x64xf32>
    tpu.vector_store %arg10[%c0_44, %c320], %38 {strides = array<i32>} : memref<256x1600xf32, #tpu.memory_space<vmem>>, vector<256x64xf32>,
    %c1_45 = arith.constant 1 : index
    %c1_46 = arith.constant 1 : index
    %c0_47 = arith.constant 0 : index
    %40 = vector.load %arg9[%c1_45, %c1_46, %c0_47] : memref<20x20x64xf32, #tpu.memory_space<vmem>>, vector<16x16x64xf32>
    %41 = vector.shape_cast %40 : vector<16x16x64xf32> to vector<256x64xf32>
    %c0_48 = arith.constant 0 : index
    %c384 = arith.constant 384 : index
    %42 = vector.load %arg10[%c0_48, %c384] : memref<256x1600xf32, #tpu.memory_space<vmem>>, vector<256x64xf32>
    tpu.vector_store %arg10[%c0_48, %c384], %41 {strides = array<i32>} : memref<256x1600xf32, #tpu.memory_space<vmem>>, vector<256x64xf32>,
    %c1_49 = arith.constant 1 : index
    %c2_50 = arith.constant 2 : index
    %c0_51 = arith.constant 0 : index
    %43 = vector.load %arg9[%c1_49, %c2_50, %c0_51] : memref<20x20x64xf32, #tpu.memory_space<vmem>>, vector<16x16x64xf32>
    %44 = vector.shape_cast %43 : vector<16x16x64xf32> to vector<256x64xf32>
    %c0_52 = arith.constant 0 : index
    %c448 = arith.constant 448 : index
    %45 = vector.load %arg10[%c0_52, %c448] : memref<256x1600xf32, #tpu.memory_space<vmem>>, vector<256x64xf32>
    tpu.vector_store %arg10[%c0_52, %c448], %44 {strides = array<i32>} : memref<256x1600xf32, #tpu.memory_space<vmem>>, vector<256x64xf32>,
    %c1_53 = arith.constant 1 : index
    %c3_54 = arith.constant 3 : index
    %c0_55 = arith.constant 0 : index
    %46 = vector.load %arg9[%c1_53, %c3_54, %c0_55] : memref<20x20x64xf32, #tpu.memory_space<vmem>>, vector<16x16x64xf32>
    %47 = vector.shape_cast %46 : vector<16x16x64xf32> to vector<256x64xf32>
    %c0_56 = arith.constant 0 : index
    %c512 = arith.constant 512 : index
    %48 = vector.load %arg10[%c0_56, %c512] : memref<256x1600xf32, #tpu.memory_space<vmem>>, vector<256x64xf32>
    tpu.vector_store %arg10[%c0_56, %c512], %47 {strides = array<i32>} : memref<256x1600xf32, #tpu.memory_space<vmem>>, vector<256x64xf32>,
    %c1_57 = arith.constant 1 : index
    %c4_58 = arith.constant 4 : index
    %c0_59 = arith.constant 0 : index
    %49 = vector.load %arg9[%c1_57, %c4_58, %c0_59] : memref<20x20x64xf32, #tpu.memory_space<vmem>>, vector<16x16x64xf32>
    %50 = vector.shape_cast %49 : vector<16x16x64xf32> to vector<256x64xf32>
    %c0_60 = arith.constant 0 : index
    %c576 = arith.constant 576 : index
    %51 = vector.load %arg10[%c0_60, %c576] : memref<256x1600xf32, #tpu.memory_space<vmem>>, vector<256x64xf32>
    tpu.vector_store %arg10[%c0_60, %c576], %50 {strides = array<i32>} : memref<256x1600xf32, #tpu.memory_space<vmem>>, vector<256x64xf32>,
    %c2_61 = arith.constant 2 : index
    %c0_62 = arith.constant 0 : index
    %c0_63 = arith.constant 0 : index
    %52 = vector.load %arg9[%c2_61, %c0_62, %c0_63] : memref<20x20x64xf32, #tpu.memory_space<vmem>>, vector<16x16x64xf32>
    %53 = vector.shape_cast %52 : vector<16x16x64xf32> to vector<256x64xf32>
    %c0_64 = arith.constant 0 : index
    %c640 = arith.constant 640 : index
    %54 = vector.load %arg10[%c0_64, %c640] : memref<256x1600xf32, #tpu.memory_space<vmem>>, vector<256x64xf32>
    tpu.vector_store %arg10[%c0_64, %c640], %53 {strides = array<i32>} : memref<256x1600xf32, #tpu.memory_space<vmem>>, vector<256x64xf32>,
    %c2_65 = arith.constant 2 : index
    %c1_66 = arith.constant 1 : index
    %c0_67 = arith.constant 0 : index
    %55 = vector.load %arg9[%c2_65, %c1_66, %c0_67] : memref<20x20x64xf32, #tpu.memory_space<vmem>>, vector<16x16x64xf32>
    %56 = vector.shape_cast %55 : vector<16x16x64xf32> to vector<256x64xf32>
    %c0_68 = arith.constant 0 : index
    %c704 = arith.constant 704 : index
    %57 = vector.load %arg10[%c0_68, %c704] : memref<256x1600xf32, #tpu.memory_space<vmem>>, vector<256x64xf32>
    tpu.vector_store %arg10[%c0_68, %c704], %56 {strides = array<i32>} : memref<256x1600xf32, #tpu.memory_space<vmem>>, vector<256x64xf32>,
    %c2_69 = arith.constant 2 : index
    %c2_70 = arith.constant 2 : index
    %c0_71 = arith.constant 0 : index
    %58 = vector.load %arg9[%c2_69, %c2_70, %c0_71] : memref<20x20x64xf32, #tpu.memory_space<vmem>>, vector<16x16x64xf32>
    %59 = vector.shape_cast %58 : vector<16x16x64xf32> to vector<256x64xf32>
    %c0_72 = arith.constant 0 : index
    %c768 = arith.constant 768 : index
    %60 = vector.load %arg10[%c0_72, %c768] : memref<256x1600xf32, #tpu.memory_space<vmem>>, vector<256x64xf32>
    tpu.vector_store %arg10[%c0_72, %c768], %59 {strides = array<i32>} : memref<256x1600xf32, #tpu.memory_space<vmem>>, vector<256x64xf32>,
    %c2_73 = arith.constant 2 : index
    %c3_74 = arith.constant 3 : index
    %c0_75 = arith.constant 0 : index
    %61 = vector.load %arg9[%c2_73, %c3_74, %c0_75] : memref<20x20x64xf32, #tpu.memory_space<vmem>>, vector<16x16x64xf32>
    %62 = vector.shape_cast %61 : vector<16x16x64xf32> to vector<256x64xf32>
    %c0_76 = arith.constant 0 : index
    %c832 = arith.constant 832 : index
    %63 = vector.load %arg10[%c0_76, %c832] : memref<256x1600xf32, #tpu.memory_space<vmem>>, vector<256x64xf32>
    tpu.vector_store %arg10[%c0_76, %c832], %62 {strides = array<i32>} : memref<256x1600xf32, #tpu.memory_space<vmem>>, vector<256x64xf32>,
    %c2_77 = arith.constant 2 : index
    %c4_78 = arith.constant 4 : index
    %c0_79 = arith.constant 0 : index
    %64 = vector.load %arg9[%c2_77, %c4_78, %c0_79] : memref<20x20x64xf32, #tpu.memory_space<vmem>>, vector<16x16x64xf32>
    %65 = vector.shape_cast %64 : vector<16x16x64xf32> to vector<256x64xf32>
    %c0_80 = arith.constant 0 : index
    %c896 = arith.constant 896 : index
    %66 = vector.load %arg10[%c0_80, %c896] : memref<256x1600xf32, #tpu.memory_space<vmem>>, vector<256x64xf32>
    tpu.vector_store %arg10[%c0_80, %c896], %65 {strides = array<i32>} : memref<256x1600xf32, #tpu.memory_space<vmem>>, vector<256x64xf32>,
    %c3_81 = arith.constant 3 : index
    %c0_82 = arith.constant 0 : index
    %c0_83 = arith.constant 0 : index
    %67 = vector.load %arg9[%c3_81, %c0_82, %c0_83] : memref<20x20x64xf32, #tpu.memory_space<vmem>>, vector<16x16x64xf32>
    %68 = vector.shape_cast %67 : vector<16x16x64xf32> to vector<256x64xf32>
    %c0_84 = arith.constant 0 : index
    %c960 = arith.constant 960 : index
    %69 = vector.load %arg10[%c0_84, %c960] : memref<256x1600xf32, #tpu.memory_space<vmem>>, vector<256x64xf32>
    tpu.vector_store %arg10[%c0_84, %c960], %68 {strides = array<i32>} : memref<256x1600xf32, #tpu.memory_space<vmem>>, vector<256x64xf32>,
    %c3_85 = arith.constant 3 : index
    %c1_86 = arith.constant 1 : index
    %c0_87 = arith.constant 0 : index
    %70 = vector.load %arg9[%c3_85, %c1_86, %c0_87] : memref<20x20x64xf32, #tpu.memory_space<vmem>>, vector<16x16x64xf32>
    %71 = vector.shape_cast %70 : vector<16x16x64xf32> to vector<256x64xf32>
    %c0_88 = arith.constant 0 : index
    %c1024 = arith.constant 1024 : index
    %72 = vector.load %arg10[%c0_88, %c1024] : memref<256x1600xf32, #tpu.memory_space<vmem>>, vector<256x64xf32>
    tpu.vector_store %arg10[%c0_88, %c1024], %71 {strides = array<i32>} : memref<256x1600xf32, #tpu.memory_space<vmem>>, vector<256x64xf32>,
    %c3_89 = arith.constant 3 : index
    %c2_90 = arith.constant 2 : index
    %c0_91 = arith.constant 0 : index
    %73 = vector.load %arg9[%c3_89, %c2_90, %c0_91] : memref<20x20x64xf32, #tpu.memory_space<vmem>>, vector<16x16x64xf32>
    %74 = vector.shape_cast %73 : vector<16x16x64xf32> to vector<256x64xf32>
    %c0_92 = arith.constant 0 : index
    %c1088 = arith.constant 1088 : index
    %75 = vector.load %arg10[%c0_92, %c1088] : memref<256x1600xf32, #tpu.memory_space<vmem>>, vector<256x64xf32>
    tpu.vector_store %arg10[%c0_92, %c1088], %74 {strides = array<i32>} : memref<256x1600xf32, #tpu.memory_space<vmem>>, vector<256x64xf32>,
    %c3_93 = arith.constant 3 : index
    %c3_94 = arith.constant 3 : index
    %c0_95 = arith.constant 0 : index
    %76 = vector.load %arg9[%c3_93, %c3_94, %c0_95] : memref<20x20x64xf32, #tpu.memory_space<vmem>>, vector<16x16x64xf32>
    %77 = vector.shape_cast %76 : vector<16x16x64xf32> to vector<256x64xf32>
    %c0_96 = arith.constant 0 : index
    %c1152 = arith.constant 1152 : index
    %78 = vector.load %arg10[%c0_96, %c1152] : memref<256x1600xf32, #tpu.memory_space<vmem>>, vector<256x64xf32>
    tpu.vector_store %arg10[%c0_96, %c1152], %77 {strides = array<i32>} : memref<256x1600xf32, #tpu.memory_space<vmem>>, vector<256x64xf32>,
    %c3_97 = arith.constant 3 : index
    %c4_98 = arith.constant 4 : index
    %c0_99 = arith.constant 0 : index
    %79 = vector.load %arg9[%c3_97, %c4_98, %c0_99] : memref<20x20x64xf32, #tpu.memory_space<vmem>>, vector<16x16x64xf32>
    %80 = vector.shape_cast %79 : vector<16x16x64xf32> to vector<256x64xf32>
    %c0_100 = arith.constant 0 : index
    %c1216 = arith.constant 1216 : index
    %81 = vector.load %arg10[%c0_100, %c1216] : memref<256x1600xf32, #tpu.memory_space<vmem>>, vector<256x64xf32>
    tpu.vector_store %arg10[%c0_100, %c1216], %80 {strides = array<i32>} : memref<256x1600xf32, #tpu.memory_space<vmem>>, vector<256x64xf32>,
    %c4_101 = arith.constant 4 : index
    %c0_102 = arith.constant 0 : index
    %c0_103 = arith.constant 0 : index
    %82 = vector.load %arg9[%c4_101, %c0_102, %c0_103] : memref<20x20x64xf32, #tpu.memory_space<vmem>>, vector<16x16x64xf32>
    %83 = vector.shape_cast %82 : vector<16x16x64xf32> to vector<256x64xf32>
    %c0_104 = arith.constant 0 : index
    %c1280 = arith.constant 1280 : index
    %84 = vector.load %arg10[%c0_104, %c1280] : memref<256x1600xf32, #tpu.memory_space<vmem>>, vector<256x64xf32>
    tpu.vector_store %arg10[%c0_104, %c1280], %83 {strides = array<i32>} : memref<256x1600xf32, #tpu.memory_space<vmem>>, vector<256x64xf32>,
    %c4_105 = arith.constant 4 : index
    %c1_106 = arith.constant 1 : index
    %c0_107 = arith.constant 0 : index
    %85 = vector.load %arg9[%c4_105, %c1_106, %c0_107] : memref<20x20x64xf32, #tpu.memory_space<vmem>>, vector<16x16x64xf32>
    %86 = vector.shape_cast %85 : vector<16x16x64xf32> to vector<256x64xf32>
    %c0_108 = arith.constant 0 : index
    %c1344 = arith.constant 1344 : index
    %87 = vector.load %arg10[%c0_108, %c1344] : memref<256x1600xf32, #tpu.memory_space<vmem>>, vector<256x64xf32>
    tpu.vector_store %arg10[%c0_108, %c1344], %86 {strides = array<i32>} : memref<256x1600xf32, #tpu.memory_space<vmem>>, vector<256x64xf32>,
    %c4_109 = arith.constant 4 : index
    %c2_110 = arith.constant 2 : index
    %c0_111 = arith.constant 0 : index
    %88 = vector.load %arg9[%c4_109, %c2_110, %c0_111] : memref<20x20x64xf32, #tpu.memory_space<vmem>>, vector<16x16x64xf32>
    %89 = vector.shape_cast %88 : vector<16x16x64xf32> to vector<256x64xf32>
    %c0_112 = arith.constant 0 : index
    %c1408 = arith.constant 1408 : index
    %90 = vector.load %arg10[%c0_112, %c1408] : memref<256x1600xf32, #tpu.memory_space<vmem>>, vector<256x64xf32>
    tpu.vector_store %arg10[%c0_112, %c1408], %89 {strides = array<i32>} : memref<256x1600xf32, #tpu.memory_space<vmem>>, vector<256x64xf32>,
    %c4_113 = arith.constant 4 : index
    %c3_114 = arith.constant 3 : index
    %c0_115 = arith.constant 0 : index
    %91 = vector.load %arg9[%c4_113, %c3_114, %c0_115] : memref<20x20x64xf32, #tpu.memory_space<vmem>>, vector<16x16x64xf32>
    %92 = vector.shape_cast %91 : vector<16x16x64xf32> to vector<256x64xf32>
    %c0_116 = arith.constant 0 : index
    %c1472 = arith.constant 1472 : index
    %93 = vector.load %arg10[%c0_116, %c1472] : memref<256x1600xf32, #tpu.memory_space<vmem>>, vector<256x64xf32>
    tpu.vector_store %arg10[%c0_116, %c1472], %92 {strides = array<i32>} : memref<256x1600xf32, #tpu.memory_space<vmem>>, vector<256x64xf32>,
    %c4_117 = arith.constant 4 : index
    %c4_118 = arith.constant 4 : index
    %c0_119 = arith.constant 0 : index
    %94 = vector.load %arg9[%c4_117, %c4_118, %c0_119] : memref<20x20x64xf32, #tpu.memory_space<vmem>>, vector<16x16x64xf32>
    %95 = vector.shape_cast %94 : vector<16x16x64xf32> to vector<256x64xf32>
    %c0_120 = arith.constant 0 : index
    %c1536 = arith.constant 1536 : index
    %96 = vector.load %arg10[%c0_120, %c1536] : memref<256x1600xf32, #tpu.memory_space<vmem>>, vector<256x64xf32>
    tpu.vector_store %arg10[%c0_120, %c1536], %95 {strides = array<i32>} : memref<256x1600xf32, #tpu.memory_space<vmem>>, vector<256x64xf32>,
    %c0_121 = arith.constant 0 : index
    %c0_122 = arith.constant 0 : index
    %97 = vector.load %arg10[%c0_121, %c0_122] : memref<256x1600xf32, #tpu.memory_space<vmem>>, vector<256x1600xf32>
    %c0_123 = arith.constant 0 : index
    %c0_124 = arith.constant 0 : index
    %98 = vector.load %arg4[%c0_123, %c0_124] : memref<1600x128xf32, #tpu.memory_space<vmem>>, vector<1600x128xf32>
    %cst_125 = arith.constant dense<0.000000e+00> : vector<256x128xf32>
    %99 = tpu.matmul %97, %98, %cst_125 {dimension_numbers = #tpu.dot_dimension_numbers<[1], [0], [0], [1], [0, 0, 1, 1], [], []>} : vector<256x1600xf32>, vector<1600x128xf32>, vector<256x128xf32> -> vector<256x128xf32>
    %c0_126 = arith.constant 0 : index
    %c0_127 = arith.constant 0 : index
    %100 = vector.load %arg5[%c0_126, %c0_127] : memref<1x128xf32, #tpu.memory_space<vmem>>, vector<1x128xf32>
    %101 = vector.broadcast %100 : vector<1x128xf32> to vector<256x128xf32>
    %102 = arith.addf %99, %101 : vector<256x128xf32>
    %cst_128 = arith.constant 0.000000e+00 : f32
    %103 = vector.broadcast %cst_128 : f32 to vector<256x128xf32>
    %104 = arith.maximumf %102, %103 : vector<256x128xf32>
    %105 = tpu.concatenate %9, %104 in 1 : vector<256x128xf32>, vector<256x128xf32> -> vector<256x256xf32>
    %c0_129 = arith.constant 0 : index
    %c0_130 = arith.constant 0 : index
    %106 = vector.load %arg6[%c0_129, %c0_130] : memref<256x256xf32, #tpu.memory_space<vmem>>, vector<256x256xf32>
    %cst_131 = arith.constant dense<0.000000e+00> : vector<256x256xf32>
    %107 = tpu.matmul %105, %106, %cst_131 {dimension_numbers = #tpu.dot_dimension_numbers<[1], [0], [0], [1], [0, 0, 1, 1], [], []>} : vector<256x256xf32>, vector<256x256xf32>, vector<256x256xf32> -> vector<256x256xf32>
    %108 = arith.addf %107, %10 : vector<256x256xf32>
    %c0_132 = arith.constant 0 : index
    %c0_133 = arith.constant 0 : index
    %109 = vector.load %arg7[%c0_132, %c0_133] : memref<1x256xf32, #tpu.memory_space<vmem>>, vector<1x256xf32>
    %110 = vector.broadcast %109 : vector<1x256xf32> to vector<256x256xf32>
    %111 = arith.addf %108, %110 : vector<256x256xf32>
    %cst_134 = arith.constant 0.000000e+00 : f32
    %112 = vector.broadcast %cst_134 : f32 to vector<256x256xf32>
    %113 = arith.maximumf %111, %112 : vector<256x256xf32>
    %c0_135 = arith.constant 0 : index
    %c0_136 = arith.constant 0 : index
    %c0_137 = arith.constant 0 : index
    %114 = vector.load %arg8[%c0_135, %c0_136, %c0_137] : memref<1x256x256xf32, #tpu.memory_space<vmem>>, vector<1x256x256xf32>
    %115 = vector.shape_cast %114 : vector<1x256x256xf32> to vector<256x256xf32>
    %116 = vector.shape_cast %113 : vector<256x256xf32> to vector<1x256x256xf32>
    tpu.vector_store %arg8[%c0_135, %c0_136, %c0_137], %116 {strides = array<i32>} : memref<1x256x256xf32, #tpu.memory_space<vmem>>, vector<1x256x256xf32>,
    return
  }
  func.func @transform_0(%arg0: i32) -> (i32, i32, i32) {
    %c0_i32 = arith.constant 0 : i32
    %c0_i32_0 = arith.constant 0 : i32
    %c0_i32_1 = arith.constant 0 : i32
    return %arg0, %c0_i32, %c0_i32_0 : i32, i32, i32
  }
  func.func @transform_1(%arg0: i32) -> (i32, i32) {
    %c0_i32 = arith.constant 0 : i32
    %c0_i32_0 = arith.constant 0 : i32
    %c0_i32_1 = arith.constant 0 : i32
    return %c0_i32, %c0_i32_0 : i32, i32
  }
  func.func @transform_2(%arg0: i32) -> (i32, i32) {
    %c0_i32 = arith.constant 0 : i32
    %c0_i32_0 = arith.constant 0 : i32
    %c0_i32_1 = arith.constant 0 : i32
    return %c0_i32, %c0_i32_0 : i32, i32
  }
  func.func @transform_3(%arg0: i32) -> (i32, i32) {
    %c0_i32 = arith.constant 0 : i32
    %c0_i32_0 = arith.constant 0 : i32
    %c0_i32_1 = arith.constant 0 : i32
    return %c0_i32, %c0_i32_0 : i32, i32
  }
  func.func @transform_4(%arg0: i32) -> (i32, i32) {
    %c0_i32 = arith.constant 0 : i32
    %c0_i32_0 = arith.constant 0 : i32
    %c0_i32_1 = arith.constant 0 : i32
    return %c0_i32, %c0_i32_0 : i32, i32
  }
  func.func @transform_5(%arg0: i32) -> (i32, i32) {
    %c0_i32 = arith.constant 0 : i32
    %c0_i32_0 = arith.constant 0 : i32
    %c0_i32_1 = arith.constant 0 : i32
    return %c0_i32, %c0_i32_0 : i32, i32
  }
  func.func @transform_6(%arg0: i32) -> (i32, i32) {
    %c0_i32 = arith.constant 0 : i32
    %c0_i32_0 = arith.constant 0 : i32
    %c0_i32_1 = arith.constant 0 : i32
    return %c0_i32, %c0_i32_0 : i32, i32
  }
  func.func @transform_7(%arg0: i32) -> (i32, i32, i32) {
    %c0_i32 = arith.constant 0 : i32
    %c0_i32_0 = arith.constant 0 : i32
    %c0_i32_1 = arith.constant 0 : i32
    return %arg0, %c0_i32, %c0_i32_0 : i32, i32, i32
  }
}

</mosaic_0001>

<llo_original>
// kernel: tpu_custom_call.1
$region0: #{tpu_custom_call.1}
  #allocation0 [shape = 'u32[]', space=smem, size = 0x4, offset = 0x4, fixed_abs, tag = 'smem constant byte address 0x4 - core index']
  #allocation1 [shape = 'u32[72,128]{1,0:T(1,128)}', space=vmem, size = 0x9000, scoped, tag = 'internal scratch']
  #allocation2 [shape = 'f32[20,20,64]{2,1,0:T(8,128)}', space=vmem, size = 0x3c000, scoped, tag = 'scratch operand']
  #allocation3 [shape = 'f32[256,1600]{1,0:T(8,128)}', space=vmem, size = 0x1a0000, scoped, tag = 'scratch operand']
  %s0 = inlined_call_operand.vmem [shape: f32[2,256,4], index: 0, kind: input, shape index: {}]
  %s1 = inlined_call_operand.vmem [shape: f32[4,448], index: 1, kind: input, shape index: {}]
  %s2 = inlined_call_operand.vmem [shape: f32[1,448], index: 2, kind: input, shape index: {}]
  %s3 = inlined_call_operand.hbm [shape: f32[1600,128], index: 3, kind: input, shape index: {}]
  %s4 = inlined_call_operand.hbm [shape: f32[1,128], index: 4, kind: input, shape index: {}]
  %s5 = inlined_call_operand.vmem [shape: f32[256,256], index: 5, kind: input, shape index: {}]
  %s6 = inlined_call_operand.hbm [shape: f32[1,256], index: 6, kind: input, shape index: {}]
  %s7 = inlined_call_operand.hbm [shape: f32[2,256,256], index: 7, kind: output, shape index: {}]
  %s8 = sld [smem:[#allocation0]]
  $region73: #{tpu_custom_call.1} parent=0
    _
  %s10 = ssub.s32 1, %s8
  %s11 = scalar_select 0, %s10, %s8
  $region1: #{tpu_custom_call.1} parent=0
    #allocation4 [shape = 'u8[819200]{0}', space=vmem, size = 0xc8000, scoped, tag = 'input window, operand 3, single buffered']
    #allocation5 [shape = 's32[2]{0}', space=sflag, size = 0x8, scoped, tag = 'scoped memory for tpu_custom_call.1']
    #allocation6 [shape = 's32[2]{0}', space=sflag, size = 0x8, scoped, tag = 'scoped memory for tpu_custom_call.1']
    #allocation7 [shape = 'u8[512]{0}', space=vmem, size = 0x400, scoped, tag = 'input window, operand 4, single buffered']
    #allocation8 [shape = 's32[1]{0}', space=sflag, size = 0x4, scoped, tag = 'scoped memory for tpu_custom_call.1']
    #allocation9 [shape = 'u8[1024]{0}', space=vmem, size = 0x400, scoped, tag = 'input window, operand 6, single buffered']
    #allocation10 [shape = 'u8[524288]{0}', space=vmem, size = 0x80000, scoped, tag = 'output window, operand 0']
    %12 = vsyncpa [#allocation5], 0
    %13 = vsyncpa [#allocation8], 0
    %14 = vsyncpa [#allocation6], 0
    %s15 = scalar_lea.sflag [#allocation6], 1
    %16 = vsyncpa %s15, 0
    loop: start=0, step=1, limit=4
    $region2: #{tpu_custom_call.1} parent=1 // loop_pre_header
      _
    $region3: #{tpu_custom_call.1} parent=1 // loop_header
      %s18 = sphi 0, %s22
      %p19 = scmp.ge.s32.totalorder %s18, 4
      %s28 = sphi 0, %s30
      %s31 = sphi 0, %s28
      %s32 = sphi 0, %s31
      %s48 = sphi 0, %s32
      %s52 = sphi 0, %s52
      %s54 = sphi 0, %s52
      %s55 = sphi 0, %s54
      %s69 = sphi 0, %s55
      %s73 = sphi 0, %s73
      %s75 = sphi 0, %s73
      %s76 = sphi 0, %s75
      %s90 = sphi 0, %s76
      %s94 = sphi 0, %s94
      %s96 = sphi 0, %s94
      %s97 = sphi 0, %s96
      %s111 = sphi 0, %s97
      %s115 = sphi 0, %s115
      %s117 = sphi 0, %s115
      %s118 = sphi 0, %s117
      %s132 = sphi 0, %s118
      %s136 = sphi 0, %s136
      %s138 = sphi 0, %s136
      %s139 = sphi 0, %s138
      %s153 = sphi 0, %s139
      %s157 = sphi 0, %s157
      %s159 = sphi 0, %s157
      %s160 = sphi 0, %s159
      %s174 = sphi 0, %s160
      %s180 = sphi 0, %s182
      %s183 = sphi 0, %s180
      %s184 = sphi 0, %s183
      %s200 = sphi 0, %s184
    $region4: #{tpu_custom_call.1} parent=1 // loop_header_branch
      %21 = sbr.rel (%p19) target = $region8
    $region5: #{tpu_custom_call.1} parent=1 // loop_body
      %s23 = ssub.s32 %s18, 1
      %s24 = ssub.s32 %s18, 2
      %s25 = sadd.s32 %s18, 1
      %s26 = ssub.s32 %s18, %s25
      %p27 = scmp.eq.s32.totalorder %s26, 0
      %s29 = sadd.s32 %s28, 1
      %s30 = scalar_select %p27, %s28, %s29
      %p33 = pneg %p27
      %p34 = scmp.eq.s32.totalorder %s18, 1
      %p35 = por %p33, %p34
      %p36 = scmp.ne.s32.totalorder %s28, %s31
      %p37 = scmp.eq.s32.totalorder %s18, 0
      %p38 = por %p36, %p37
      %p39 = scmp.ne.s32.totalorder %s28, %s31
      %p40 = scmp.eq.s32.totalorder %s23, 1
      %p41 = por %p39, %p40
      %p42 = scmp.ne.s32.totalorder %s31, %s32
      %p43 = scmp.eq.s32.totalorder %s23, 0
      %p44 = por %p42, %p43
      %p45 = scmp.ne.s32.totalorder %s31, %s32
      %p46 = scmp.eq.s32.totalorder %s24, 1
      %p47 = por %p45, %p46
      %p49 = scmp.ne.s32.totalorder %s32, %s48
      %p50 = scmp.eq.s32.totalorder %s24, 0
      %p51 = por %p49, %p50
      %s53 = sadd.s32 %s52, 1
      %p56 = scmp.eq.s32.totalorder %s18, 1
      %p57 = scmp.ne.s32.totalorder %s52, %s54
      %p58 = scmp.eq.s32.totalorder %s18, 0
      %p59 = por %p57, %p58
      %p60 = scmp.ne.s32.totalorder %s52, %s54
      %p61 = scmp.eq.s32.totalorder %s23, 1
      %p62 = por %p60, %p61
      %p63 = scmp.ne.s32.totalorder %s54, %s55
      %p64 = scmp.eq.s32.totalorder %s23, 0
      %p65 = por %p63, %p64
      %p66 = scmp.ne.s32.totalorder %s54, %s55
      %p67 = scmp.eq.s32.totalorder %s24, 1
      %p68 = por %p66, %p67
      %p70 = scmp.ne.s32.totalorder %s55, %s69
      %p71 = scmp.eq.s32.totalorder %s24, 0
      %p72 = por %p70, %p71
      %s74 = sadd.s32 %s73, 1
      %p77 = scmp.eq.s32.totalorder %s18, 1
      %p78 = scmp.ne.s32.totalorder %s73, %s75
      %p79 = scmp.eq.s32.totalorder %s18, 0
      %p80 = por %p78, %p79
      %p81 = scmp.ne.s32.totalorder %s73, %s75
      %p82 = scmp.eq.s32.totalorder %s23, 1
      %p83 = por %p81, %p82
      %p84 = scmp.ne.s32.totalorder %s75, %s76
      %p85 = scmp.eq.s32.totalorder %s23, 0
      %p86 = por %p84, %p85
      %p87 = scmp.ne.s32.totalorder %s75, %s76
      %p88 = scmp.eq.s32.totalorder %s24, 1
      %p89 = por %p87, %p88
      %p91 = scmp.ne.s32.totalorder %s76, %s90
      %p92 = scmp.eq.s32.totalorder %s24, 0
      %p93 = por %p91, %p92
      %s95 = sadd.s32 %s94, 1
      %p98 = scmp.eq.s32.totalorder %s18, 1
      %p99 = scmp.ne.s32.totalorder %s94, %s96
      %p100 = scmp.eq.s32.totalorder %s18, 0
      %p101 = por %p99, %p100
      %p102 = scmp.ne.s32.totalorder %s94, %s96
      %p103 = scmp.eq.s32.totalorder %s23, 1
      %p104 = por %p102, %p103
      %p105 = scmp.ne.s32.totalorder %s96, %s97
      %p106 = scmp.eq.s32.totalorder %s23, 0
      %p107 = por %p105, %p106
      %p108 = scmp.ne.s32.totalorder %s96, %s97
      %p109 = scmp.eq.s32.totalorder %s24, 1
      %p110 = por %p108, %p109
      %p112 = scmp.ne.s32.totalorder %s97, %s111
      %p113 = scmp.eq.s32.totalorder %s24, 0
      %p114 = por %p112, %p113
      %s116 = sadd.s32 %s115, 1
      %p119 = scmp.eq.s32.totalorder %s18, 1
      %p120 = scmp.ne.s32.totalorder %s115, %s117
      %p121 = scmp.eq.s32.totalorder %s18, 0
      %p122 = por %p120, %p121
      %p123 = scmp.ne.s32.totalorder %s115, %s117
      %p124 = scmp.eq.s32.totalorder %s23, 1
      %p125 = por %p123, %p124
      %p126 = scmp.ne.s32.totalorder %s117, %s118
      %p127 = scmp.eq.s32.totalorder %s23, 0
      %p128 = por %p126, %p127
      %p129 = scmp.ne.s32.totalorder %s117, %s118
      %p130 = scmp.eq.s32.totalorder %s24, 1
      %p131 = por %p129, %p130
      %p133 = scmp.ne.s32.totalorder %s118, %s132
      %p134 = scmp.eq.s32.totalorder %s24, 0
      %p135 = por %p133, %p134
      %s137 = sadd.s32 %s136, 1
      %p140 = scmp.eq.s32.totalorder %s18, 1
      %p141 = scmp.ne.s32.totalorder %s136, %s138
      %p142 = scmp.eq.s32.totalorder %s18, 0
      %p143 = por %p141, %p142
      %p144 = scmp.ne.s32.totalorder %s136, %s138
      %p145 = scmp.eq.s32.totalorder %s23, 1
      %p146 = por %p144, %p145
      %p147 = scmp.ne.s32.totalorder %s138, %s139
      %p148 = scmp.eq.s32.totalorder %s23, 0
      %p149 = por %p147, %p148
      %p150 = scmp.ne.s32.totalorder %s138, %s139
      %p151 = scmp.eq.s32.totalorder %s24, 1
      %p152 = por %p150, %p151
      %p154 = scmp.ne.s32.totalorder %s139, %s153
      %p155 = scmp.eq.s32.totalorder %s24, 0
      %p156 = por %p154, %p155
      %s158 = sadd.s32 %s157, 1
      %p161 = scmp.eq.s32.totalorder %s18, 1
      %p162 = scmp.ne.s32.totalorder %s157, %s159
      %p163 = scmp.eq.s32.totalorder %s18, 0
      %p164 = por %p162, %p163
      %p165 = scmp.ne.s32.totalorder %s157, %s159
      %p166 = scmp.eq.s32.totalorder %s23, 1
      %p167 = por %p165, %p166
      %p168 = scmp.ne.s32.totalorder %s159, %s160
      %p169 = scmp.eq.s32.totalorder %s23, 0
      %p170 = por %p168, %p169
      %p171 = scmp.ne.s32.totalorder %s159, %s160
      %p172 = scmp.eq.s32.totalorder %s24, 1
      %p173 = por %p171, %p172
      %p175 = scmp.ne.s32.totalorder %s160, %s174
      %p176 = scmp.eq.s32.totalorder %s24, 0
      %p177 = por %p175, %p176
      %s178 = ssub.s32 %s18, %s25
      %p179 = scmp.eq.s32.totalorder %s178, 0
      %s181 = sadd.s32 %s180, 1
      %s182 = scalar_select %p179, %s180, %s181
      %p185 = pneg %p179
      %p186 = scmp.eq.s32.totalorder %s18, 1
      %p187 = por %p185, %p186
      %p188 = scmp.ne.s32.totalorder %s180, %s183
      %p189 = scmp.eq.s32.totalorder %s18, 0
      %p190 = por %p188, %p189
      %p191 = scmp.ne.s32.totalorder %s180, %s183
      %p192 = scmp.eq.s32.totalorder %s23, 1
      %p193 = por %p191, %p192
      %p194 = scmp.ne.s32.totalorder %s183, %s184
      %p195 = scmp.eq.s32.totalorder %s23, 0
      %p196 = por %p194, %p195
      %p197 = scmp.ne.s32.totalorder %s183, %s184
      %p198 = scmp.eq.s32.totalorder %s24, 1
      %p199 = por %p197, %p198
      %p201 = scmp.ne.s32.totalorder %s184, %s200
      %p202 = scmp.eq.s32.totalorder %s24, 0
      %p203 = por %p201, %p202
      %p204 = scmp.le.s32.totalorder 1, %s18
      %p205 = scmp.lt.s32.totalorder %s18, 3
      %p206 = pnand %p204, %p205
      %p207 = pneg %p206
      // Predicated region
      $region9: #{tpu_custom_call.1} parent=5 // pred_check
        _
      $region10: #{tpu_custom_call.1} parent=5 // pred_check_branch
        %209 = sbr.rel (%p206) target = $region12
      $region11: #{tpu_custom_call.1} parent=5 // pred_region
        %s210 = ssub.s32 %s18, 1
        // Predicated region
        $region13: #{tpu_custom_call.1} parent=11 // pred_check
          %p211 = pneg %p65
        $region14: #{tpu_custom_call.1} parent=11 // pred_check_branch
          %213 = sbr.rel (%p211) target = $region16
        $region15: #{tpu_custom_call.1} parent=11 // pred_region
          _
        $region16: #{tpu_custom_call.1} parent=11 // pred_fallthru
          _
        // Predicated region
        $region17: #{tpu_custom_call.1} parent=11 // pred_check
          %p214 = pneg %p86
        $region18: #{tpu_custom_call.1} parent=11 // pred_check_branch
          %216 = sbr.rel (%p214) target = $region20
        $region19: #{tpu_custom_call.1} parent=11 // pred_region
          _
        $region20: #{tpu_custom_call.1} parent=11 // pred_fallthru
          _
        // Predicated region
        $region21: #{tpu_custom_call.1} parent=11 // pred_check
          %p217 = pneg %p107
        $region22: #{tpu_custom_call.1} parent=11 // pred_check_branch
          %219 = sbr.rel (%p217) target = $region24
        $region23: #{tpu_custom_call.1} parent=11 // pred_region
          %221 = vsyncadd [#allocation5], 0
          %s222 = sshll.u32 %s3, 4
          %s223 = int_to_ptr.hbm [resolvable:$true] %s222
          %s224 = sshll.u32 [#allocation4], 4
          %s225 = int_to_ptr.vmem [resolvable:$true] %s224
          %230 = dma.hbm_to_vmem [thread:$0]  %s223, 25600, %s225, [#allocation5], 128, 128, 8
        $region24: #{tpu_custom_call.1} parent=11 // pred_fallthru
          _
        // Predicated region
        $region25: #{tpu_custom_call.1} parent=11 // pred_check
          %p231 = pneg %p128
        $region26: #{tpu_custom_call.1} parent=11 // pred_check_branch
          %233 = sbr.rel (%p231) target = $region28
        $region27: #{tpu_custom_call.1} parent=11 // pred_region
          %235 = vsyncadd [#allocation8], 0
          %s237 = sshll.u32 %s4, 4
          %s238 = int_to_ptr.hbm [resolvable:$true] %s237
          %s239 = sshll.u32 [#allocation7], 4
          %s240 = int_to_ptr.vmem [resolvable:$true] %s239
          %242 = dma.hbm_to_vmem [thread:$0]  %s238, 16, %s240, [#allocation8]
        $region28: #{tpu_custom_call.1} parent=11 // pred_fallthru
          _
        // Predicated region
        $region29: #{tpu_custom_call.1} parent=11 // pred_check
          %p243 = pneg %p149
        $region30: #{tpu_custom_call.1} parent=11 // pred_check_branch
          %245 = sbr.rel (%p243) target = $region32
        $region31: #{tpu_custom_call.1} parent=11 // pred_region
          _
        $region32: #{tpu_custom_call.1} parent=11 // pred_fallthru
          _
        // Predicated region
        $region33: #{tpu_custom_call.1} parent=11 // pred_check
          %p246 = pneg %p170
        $region34: #{tpu_custom_call.1} parent=11 // pred_check_branch
          %248 = sbr.rel (%p246) target = $region36
        $region35: #{tpu_custom_call.1} parent=11 // pred_region
          %250 = vsyncadd [#allocation8], 0
          %s252 = sshll.u32 %s6, 4
          %s253 = int_to_ptr.hbm [resolvable:$true] %s252
          %s254 = sshll.u32 [#allocation9], 4
          %s255 = int_to_ptr.vmem [resolvable:$true] %s254
          %257 = dma.hbm_to_vmem [thread:$0]  %s253, 32, %s255, [#allocation8]
        $region36: #{tpu_custom_call.1} parent=11 // pred_fallthru
          _
      $region12: #{tpu_custom_call.1} parent=5 // pred_fallthru
        _
      %p258 = scmp.lt.s32.totalorder %s18, 2
      // Predicated region
      $region37: #{tpu_custom_call.1} parent=5 // pred_check
        %p259 = pneg %p258
      $region38: #{tpu_custom_call.1} parent=5 // pred_check_branch
        %261 = sbr.rel (%p259) target = $region40
      $region39: #{tpu_custom_call.1} parent=5 // pred_region
        // Predicated region
        $region41: #{tpu_custom_call.1} parent=39 // pred_check
          %p262 = pneg %p38
        $region42: #{tpu_custom_call.1} parent=39 // pred_check_branch
          %264 = sbr.rel (%p262) target = $region44
        $region43: #{tpu_custom_call.1} parent=39 // pred_region
          %p265 = scmp.lt.s32.totalorder %s18, 1
          %s266 = scalar_select %p265, %s18, 1
          %s267 = smul.addr %s266, 32
          %s268 = smul.addr %s267, 8
          %s269 = scalar_lea.vmem %s0, %s268
        $region44: #{tpu_custom_call.1} parent=39 // pred_fallthru
          _
      $region40: #{tpu_custom_call.1} parent=5 // pred_fallthru
        _
      %p270 = scmp.le.s32.totalorder 1, %s18
      %p271 = scmp.lt.s32.totalorder %s18, 3
      %p272 = pnand %p270, %p271
      %p273 = pneg %p272
      // Predicated region
      $region45: #{tpu_custom_call.1} parent=5 // pred_check
        _
      $region46: #{tpu_custom_call.1} parent=5 // pred_check_branch
        %275 = sbr.rel (%p272) target = $region48
      $region47: #{tpu_custom_call.1} parent=5 // pred_region
        %s276 = ssub.s32 %s18, 1
        // Predicated region
        $region49: #{tpu_custom_call.1} parent=47 // pred_check
          %p277 = pneg %p107
        $region50: #{tpu_custom_call.1} parent=47 // pred_check_branch
          %279 = sbr.rel (%p277) target = $region52
        $region51: #{tpu_custom_call.1} parent=47 // pred_region
          %281 = dma.done [#allocation5], 25600
        $region52: #{tpu_custom_call.1} parent=47 // pred_fallthru
          _
        // Predicated region
        $region53: #{tpu_custom_call.1} parent=47 // pred_check
          %p282 = pneg %p128
        $region54: #{tpu_custom_call.1} parent=47 // pred_check_branch
          %284 = sbr.rel (%p282) target = $region56
        $region55: #{tpu_custom_call.1} parent=47 // pred_region
          %286 = dma.done [#allocation8], 16
        $region56: #{tpu_custom_call.1} parent=47 // pred_fallthru
          _
        // Predicated region
        $region57: #{tpu_custom_call.1} parent=47 // pred_check
          %p287 = pneg %p170
        $region58: #{tpu_custom_call.1} parent=47 // pred_check_branch
          %289 = sbr.rel (%p287) target = $region60
        $region59: #{tpu_custom_call.1} parent=47 // pred_region
          %291 = dma.done [#allocation8], 32
        $region60: #{tpu_custom_call.1} parent=47 // pred_fallthru
          _
        %p292 = scmp.lt.s32.totalorder %s23, 1
        %s293 = scalar_select %p292, %s23, 1
        %s294 = smul.addr %s293, 32
        %s295 = smul.addr %s294, 8
        %s296 = scalar_lea.vmem %s0, %s295
        %p297 = pneg %p44
        %p298 = pneg %p41
        %p299 = pneg %p65
        %p300 = pneg %p62
        %p301 = pneg %p86
        %p302 = pneg %p83
        %p303 = pneg %p107
        %p304 = pneg %p104
        %p305 = pneg %p128
        %p306 = pneg %p125
        %p307 = pneg %p149
        %p308 = pneg %p146
        %p309 = pneg %p170
        %p310 = pneg %p167
        %p311 = pneg %p196
        %p312 = pneg %p193
        %s313 = sand.u32 %s183, 1
        %s314 = scalar_lea.sflag [#allocation6], %s313
        %s315 = sand.u32 %s183, 1
        %s316 = smul.addr %s315, 512
        %s317 = scalar_lea.vmem [#allocation10], %s316
        %p318 = scmp.lt.s32.totalorder %s23, 1
        %s319 = scalar_select %p318, %s23, 1
        %s320 = smul.addr %s319, 32
        %s321 = smul.addr %s320, 8
        %s322 = scalar_lea.vmem %s0, %s321
        %v323 = vld [vmem:[%s322] sm:$0xff]
        %v324 = vld [vmem:[%s322 + $0x8] sm:$0xff]
        %v325 = vld [vmem:[%s322 + $0x10] sm:$0xff]
        %v326 = vld [vmem:[%s322 + $0x18] sm:$0xff]
        %v327 = vld [vmem:[%s322 + $0x20] sm:$0xff]
        %v328 = vld [vmem:[%s322 + $0x28] sm:$0xff]
        %v329 = vld [vmem:[%s322 + $0x30] sm:$0xff]
        %v330 = vld [vmem:[%s322 + $0x38] sm:$0xff]
        %v331 = vld [vmem:[%s322 + $0x40] sm:$0xff]
        %v332 = vld [vmem:[%s322 + $0x48] sm:$0xff]
        %v333 = vld [vmem:[%s322 + $0x50] sm:$0xff]
        %v334 = vld [vmem:[%s322 + $0x58] sm:$0xff]
        %v335 = vld [vmem:[%s322 + $0x60] sm:$0xff]
        %v336 = vld [vmem:[%s322 + $0x68] sm:$0xff]
        %v337 = vld [vmem:[%s322 + $0x70] sm:$0xff]
        %v338 = vld [vmem:[%s322 + $0x78] sm:$0xff]
        %v339 = vld [vmem:[%s322 + $0x80] sm:$0xff]
        %v340 = vld [vmem:[%s322 + $0x88] sm:$0xff]
        %v341 = vld [vmem:[%s322 + $0x90] sm:$0xff]
        %v342 = vld [vmem:[%s322 + $0x98] sm:$0xff]
        %v343 = vld [vmem:[%s322 + $0xa0] sm:$0xff]
        %v344 = vld [vmem:[%s322 + $0xa8] sm:$0xff]
        %v345 = vld [vmem:[%s322 + $0xb0] sm:$0xff]
        %v346 = vld [vmem:[%s322 + $0xb8] sm:$0xff]
        %v347 = vld [vmem:[%s322 + $0xc0] sm:$0xff]
        %v348 = vld [vmem:[%s322 + $0xc8] sm:$0xff]
        %v349 = vld [vmem:[%s322 + $0xd0] sm:$0xff]
        %v350 = vld [vmem:[%s322 + $0xd8] sm:$0xff]
        %v351 = vld [vmem:[%s322 + $0xe0] sm:$0xff]
        %v352 = vld [vmem:[%s322 + $0xe8] sm:$0xff]
        %v353 = vld [vmem:[%s322 + $0xf0] sm:$0xff]
        %v354 = vld [vmem:[%s322 + $0xf8] sm:$0xff]
        %v355 = vld [vmem:[%s1] sm:$0xff]
        %v356 = vld [vmem:[%s1 + $0x8] sm:$0xff]
        %v357 = vld [vmem:[%s2] sm:$0xf]
        %v359 = vperm.slane %v357, 0
        %v360 = vperm.slane %v357, 1
        %v361 = vperm.slane %v357, 2
        %v362 = vperm.slane %v357, 3
        %369 = vst [vmem:[#allocation1] ss:$2 sm:$0xff] %v355
        %s370 = scalar_lea.vmem [#allocation1], 16
        %371 = vst [vmem:[%s370] ss:$2 sm:$0xff] %v356
        %v372 = vld.sshfl [vmem:[#allocation1] sm:$0xff pattern:$0x75316420]
        %v373 = vld.sshfl [vmem:[#allocation1 + $0x8] sm:$0xff pattern:$0x75316420]
        %v374 = vld.sshfl [vmem:[#allocation1 + $0x10] sm:$0xff pattern:$0x75316420]
        %v375 = vld.sshfl [vmem:[#allocation1 + $0x18] sm:$0xff pattern:$0x75316420]
        %vm376 = vcmask 31744
        %v378 = vsel %vm376, %v323, 0
        %v381 = vsel %vm376, %v324, 0
        %v384 = vsel %vm376, %v325, 0
        %v387 = vsel %vm376, %v326, 0
        %v390 = vsel %vm376, %v327, 0
        %v393 = vsel %vm376, %v328, 0
        %v396 = vsel %vm376, %v329, 0
        %v399 = vsel %vm376, %v330, 0
        %v402 = vsel %vm376, %v331, 0
        %v405 = vsel %vm376, %v332, 0
        %v408 = vsel %vm376, %v333, 0
        %v411 = vsel %vm376, %v334, 0
        %v414 = vsel %vm376, %v335, 0
        %v417 = vsel %vm376, %v336, 0
        %v420 = vsel %vm376, %v337, 0
        %v423 = vsel %vm376, %v338, 0
        %v426 = vsel %vm376, %v339, 0
        %v429 = vsel %vm376, %v340, 0
        %v432 = vsel %vm376, %v341, 0
        %v435 = vsel %vm376, %v342, 0
        %v438 = vsel %vm376, %v343, 0
        %v441 = vsel %vm376, %v344, 0
        %v444 = vsel %vm376, %v345, 0
        %v447 = vsel %vm376, %v346, 0
        %v450 = vsel %vm376, %v347, 0
        %v453 = vsel %vm376, %v348, 0
        %v456 = vsel %vm376, %v349, 0
        %v459 = vsel %vm376, %v350, 0
        %v462 = vsel %vm376, %v351, 0
        %v465 = vsel %vm376, %v352, 0
        %v468 = vsel %vm376, %v353, 0
        %v471 = vsel %vm376, %v354, 0
        %vm473 = vcmask 1043456
        %v474 = vsel %vm473, %v372, 0
        %v476 = vsel %vm473, %v373, 0
        %v478 = vsel %vm473, %v374, 0
        %v480 = vsel %vm473, %v375, 0
        %482 = vmatpush.msra.mxu0 0.0
        %483 = vmatpush.msra.mxu0 0.0
        %484 = vmatpush.msra.mxu0 0.0
        %485 = vmatpush.msra.mxu0 0.0
        %486 = vmatpush.msra.mxu0 0.0
        %487 = vmatpush.msra.mxu0 0.0
        %488 = vmatpush.msra.mxu0 0.0
        %489 = vmatpush.msra.mxu0 0.0
        %490 = vmatpush.msra.mxu0 0.0
        %491 = vmatpush.msra.mxu0 0.0
        %492 = vmatpush.msra.mxu0 0.0
        %493 = vmatpush.msra.mxu0 0.0
        %494 = vmatpush.msra.mxu0 0.0
        %495 = vmatpush.msra.mxu0 0.0
        %496 = vmatpush.msra.mxu0 0.0
        %497 = vmatpush.msra.mxu0 %v474
        %498 = vmatmul.f32.gmra.mxu0 %v378
        %v499 = vpop.f32.mrf.mxu0
        %v500 = vadd.f32 %v359, %v499
        %501 = vmatmul.f32.gmra.mxu0 %v381
        %v502 = vpop.f32.mrf.mxu0
        %v503 = vadd.f32 %v359, %v502
        %504 = vmatmul.f32.gmra.mxu0 %v384
        %v505 = vpop.f32.mrf.mxu0
        %v506 = vadd.f32 %v359, %v505
        %507 = vmatmul.f32.gmra.mxu0 %v387
        %v508 = vpop.f32.mrf.mxu0
        %v509 = vadd.f32 %v359, %v508
        %510 = vmatmul.f32.gmra.mxu0 %v390
        %v511 = vpop.f32.mrf.mxu0
        %v512 = vadd.f32 %v359, %v511
        %513 = vmatmul.f32.gmra.mxu0 %v393
        %v514 = vpop.f32.mrf.mxu0
        %v515 = vadd.f32 %v359, %v514
        %516 = vmatmul.f32.gmra.mxu0 %v396
        %v517 = vpop.f32.mrf.mxu0
        %v518 = vadd.f32 %v359, %v517
        %519 = vmatmul.f32.gmra.mxu0 %v399
        %v520 = vpop.f32.mrf.mxu0
        %v521 = vadd.f32 %v359, %v520
        %522 = vmatmul.f32.gmra.mxu0 %v402
        %v523 = vpop.f32.mrf.mxu0
        %v524 = vadd.f32 %v359, %v523
        %525 = vmatmul.f32.gmra.mxu0 %v405
        %v526 = vpop.f32.mrf.mxu0
        %v527 = vadd.f32 %v359, %v526
        %528 = vmatmul.f32.gmra.mxu0 %v408
        %v529 = vpop.f32.mrf.mxu0
        %v530 = vadd.f32 %v359, %v529
        %531 = vmatmul.f32.gmra.mxu0 %v411
        %v532 = vpop.f32.mrf.mxu0
        %v533 = vadd.f32 %v359, %v532
        %534 = vmatmul.f32.gmra.mxu0 %v414
        %v535 = vpop.f32.mrf.mxu0
        %v536 = vadd.f32 %v359, %v535
        %537 = vmatmul.f32.gmra.mxu0 %v417
        %v538 = vpop.f32.mrf.mxu0
        %v539 = vadd.f32 %v359, %v538
        %540 = vmatmul.f32.gmra.mxu0 %v420
        %v541 = vpop.f32.mrf.mxu0
        %v542 = vadd.f32 %v359, %v541
        %543 = vmatmul.f32.gmra.mxu0 %v423
        %v544 = vpop.f32.mrf.mxu0
        %v545 = vadd.f32 %v359, %v544
        %546 = vmatmul.f32.gmra.mxu0 %v426
        %v547 = vpop.f32.mrf.mxu0
        %v548 = vadd.f32 %v359, %v547
        %549 = vmatmul.f32.gmra.mxu0 %v429
        %v550 = vpop.f32.mrf.mxu0
        %v551 = vadd.f32 %v359, %v550
        %552 = vmatmul.f32.gmra.mxu0 %v432
        %v553 = vpop.f32.mrf.mxu0
        %v554 = vadd.f32 %v359, %v553
        %555 = vmatmul.f32.gmra.mxu0 %v435
        %v556 = vpop.f32.mrf.mxu0
        %v557 = vadd.f32 %v359, %v556
        %558 = vmatmul.f32.gmra.mxu0 %v438
        %v559 = vpop.f32.mrf.mxu0
        %v560 = vadd.f32 %v359, %v559
        %561 = vmatmul.f32.gmra.mxu0 %v441
        %v562 = vpop.f32.mrf.mxu0
        %v563 = vadd.f32 %v359, %v562
        %564 = vmatmul.f32.gmra.mxu0 %v444
        %v565 = vpop.f32.mrf.mxu0
        %v566 = vadd.f32 %v359, %v565
        %567 = vmatmul.f32.gmra.mxu0 %v447
        %v568 = vpop.f32.mrf.mxu0
        %v569 = vadd.f32 %v359, %v568
        %570 = vmatmul.f32.gmra.mxu0 %v450
        %v571 = vpop.f32.mrf.mxu0
        %v572 = vadd.f32 %v359, %v571
        %573 = vmatmul.f32.gmra.mxu0 %v453
        %v574 = vpop.f32.mrf.mxu0
        %v575 = vadd.f32 %v359, %v574
        %576 = vmatmul.f32.gmra.mxu0 %v456
        %v577 = vpop.f32.mrf.mxu0
        %v578 = vadd.f32 %v359, %v577
        %579 = vmatmul.f32.gmra.mxu0 %v459
        %v580 = vpop.f32.mrf.mxu0
        %v581 = vadd.f32 %v359, %v580
        %582 = vmatmul.f32.gmra.mxu0 %v462
        %v583 = vpop.f32.mrf.mxu0
        %v584 = vadd.f32 %v359, %v583
        %585 = vmatmul.f32.gmra.mxu0 %v465
        %v586 = vpop.f32.mrf.mxu0
        %v587 = vadd.f32 %v359, %v586
        %588 = vmatmul.f32.gmra.mxu0 %v468
        %v589 = vpop.f32.mrf.mxu0
        %v590 = vadd.f32 %v359, %v589
        %591 = vmatmul.f32.gmra.mxu0 %v471
        %v592 = vpop.f32.mrf.mxu0
        %v593 = vadd.f32 %v359, %v592
        %594 = vdwg.mxu0
        %595 = vmatpush.msra.mxu0 0.0
        %596 = vmatpush.msra.mxu0 0.0
        %597 = vmatpush.msra.mxu0 0.0
        %598 = vmatpush.msra.mxu0 0.0
        %599 = vmatpush.msra.mxu0 0.0
        %600 = vmatpush.msra.mxu0 0.0
        %601 = vmatpush.msra.mxu0 0.0
        %602 = vmatpush.msra.mxu0 0.0
        %603 = vmatpush.msra.mxu0 0.0
        %604 = vmatpush.msra.mxu0 0.0
        %605 = vmatpush.msra.mxu0 0.0
        %606 = vmatpush.msra.mxu0 0.0
        %607 = vmatpush.msra.mxu0 0.0
        %608 = vmatpush.msra.mxu0 0.0
        %609 = vmatpush.msra.mxu0 0.0
        %610 = vmatpush.msra.mxu0 %v476
        %611 = vmatmul.f32.gmra.mxu0 %v378
        %v612 = vpop.f32.mrf.mxu0
        %v613 = vadd.f32 %v360, %v612
        %614 = vmatmul.f32.gmra.mxu0 %v381
        %v615 = vpop.f32.mrf.mxu0
        %v616 = vadd.f32 %v360, %v615
        %617 = vmatmul.f32.gmra.mxu0 %v384
        %v618 = vpop.f32.mrf.mxu0
        %v619 = vadd.f32 %v360, %v618
        %620 = vmatmul.f32.gmra.mxu0 %v387
        %v621 = vpop.f32.mrf.mxu0
        %v622 = vadd.f32 %v360, %v621
        %623 = vmatmul.f32.gmra.mxu0 %v390
        %v624 = vpop.f32.mrf.mxu0
        %v625 = vadd.f32 %v360, %v624
        %626 = vmatmul.f32.gmra.mxu0 %v393
        %v627 = vpop.f32.mrf.mxu0
        %v628 = vadd.f32 %v360, %v627
        %629 = vmatmul.f32.gmra.mxu0 %v396
        %v630 = vpop.f32.mrf.mxu0
        %v631 = vadd.f32 %v360, %v630
        %632 = vmatmul.f32.gmra.mxu0 %v399
        %v633 = vpop.f32.mrf.mxu0
        %v634 = vadd.f32 %v360, %v633
        %635 = vmatmul.f32.gmra.mxu0 %v402
        %v636 = vpop.f32.mrf.mxu0
        %v637 = vadd.f32 %v360, %v636
        %638 = vmatmul.f32.gmra.mxu0 %v405
        %v639 = vpop.f32.mrf.mxu0
        %v640 = vadd.f32 %v360, %v639
        %641 = vmatmul.f32.gmra.mxu0 %v408
        %v642 = vpop.f32.mrf.mxu0
        %v643 = vadd.f32 %v360, %v642
        %644 = vmatmul.f32.gmra.mxu0 %v411
        %v645 = vpop.f32.mrf.mxu0
        %v646 = vadd.f32 %v360, %v645
        %647 = vmatmul.f32.gmra.mxu0 %v414
        %v648 = vpop.f32.mrf.mxu0
        %v649 = vadd.f32 %v360, %v648
        %650 = vmatmul.f32.gmra.mxu0 %v417
        %v651 = vpop.f32.mrf.mxu0
        %v652 = vadd.f32 %v360, %v651
        %653 = vmatmul.f32.gmra.mxu0 %v420
        %v654 = vpop.f32.mrf.mxu0
        %v655 = vadd.f32 %v360, %v654
        %656 = vmatmul.f32.gmra.mxu0 %v423
        %v657 = vpop.f32.mrf.mxu0
        %v658 = vadd.f32 %v360, %v657
        %659 = vmatmul.f32.gmra.mxu0 %v426
        %v660 = vpop.f32.mrf.mxu0
        %v661 = vadd.f32 %v360, %v660
        %662 = vmatmul.f32.gmra.mxu0 %v429
        %v663 = vpop.f32.mrf.mxu0
        %v664 = vadd.f32 %v360, %v663
        %665 = vmatmul.f32.gmra.mxu0 %v432
        %v666 = vpop.f32.mrf.mxu0
        %v667 = vadd.f32 %v360, %v666
        %668 = vmatmul.f32.gmra.mxu0 %v435
        %v669 = vpop.f32.mrf.mxu0
        %v670 = vadd.f32 %v360, %v669
        %671 = vmatmul.f32.gmra.mxu0 %v438
        %v672 = vpop.f32.mrf.mxu0
        %v673 = vadd.f32 %v360, %v672
        %674 = vmatmul.f32.gmra.mxu0 %v441
        %v675 = vpop.f32.mrf.mxu0
        %v676 = vadd.f32 %v360, %v675
        %677 = vmatmul.f32.gmra.mxu0 %v444
        %v678 = vpop.f32.mrf.mxu0
        %v679 = vadd.f32 %v360, %v678
        %680 = vmatmul.f32.gmra.mxu0 %v447
        %v681 = vpop.f32.mrf.mxu0
        %v682 = vadd.f32 %v360, %v681
        %683 = vmatmul.f32.gmra.mxu0 %v450
        %v684 = vpop.f32.mrf.mxu0
        %v685 = vadd.f32 %v360, %v684
        %686 = vmatmul.f32.gmra.mxu0 %v453
        %v687 = vpop.f32.mrf.mxu0
        %v688 = vadd.f32 %v360, %v687
        %689 = vmatmul.f32.gmra.mxu0 %v456
        %v690 = vpop.f32.mrf.mxu0
        %v691 = vadd.f32 %v360, %v690
        %692 = vmatmul.f32.gmra.mxu0 %v459
        %v693 = vpop.f32.mrf.mxu0
        %v694 = vadd.f32 %v360, %v693
        %695 = vmatmul.f32.gmra.mxu0 %v462
        %v696 = vpop.f32.mrf.mxu0
        %v697 = vadd.f32 %v360, %v696
        %698 = vmatmul.f32.gmra.mxu0 %v465
        %v699 = vpop.f32.mrf.mxu0
        %v700 = vadd.f32 %v360, %v699
        %701 = vmatmul.f32.gmra.mxu0 %v468
        %v702 = vpop.f32.mrf.mxu0
        %v703 = vadd.f32 %v360, %v702
        %704 = vmatmul.f32.gmra.mxu0 %v471
        %v705 = vpop.f32.mrf.mxu0
        %v706 = vadd.f32 %v360, %v705
        %707 = vdwg.mxu0
        %708 = vmatpush.msra.mxu0 0.0
        %709 = vmatpush.msra.mxu0 0.0
        %710 = vmatpush.msra.mxu0 0.0
        %711 = vmatpush.msra.mxu0 0.0
        %712 = vmatpush.msra.mxu0 0.0
        %713 = vmatpush.msra.mxu0 0.0
        %714 = vmatpush.msra.mxu0 0.0
        %715 = vmatpush.msra.mxu0 0.0
        %716 = vmatpush.msra.mxu0 0.0
        %717 = vmatpush.msra.mxu0 0.0
        %718 = vmatpush.msra.mxu0 0.0
        %719 = vmatpush.msra.mxu0 0.0
        %720 = vmatpush.msra.mxu0 0.0
        %721 = vmatpush.msra.mxu0 0.0
        %722 = vmatpush.msra.mxu0 0.0
        %723 = vmatpush.msra.mxu0 %v478
        %724 = vmatmul.f32.gmra.mxu0 %v378
        %v725 = vpop.f32.mrf.mxu0
        %v726 = vadd.f32 %v361, %v725
        %727 = vmatmul.f32.gmra.mxu0 %v381
        %v728 = vpop.f32.mrf.mxu0
        %v729 = vadd.f32 %v361, %v728
        %730 = vmatmul.f32.gmra.mxu0 %v384
        %v731 = vpop.f32.mrf.mxu0
        %v732 = vadd.f32 %v361, %v731
        %733 = vmatmul.f32.gmra.mxu0 %v387
        %v734 = vpop.f32.mrf.mxu0
        %v735 = vadd.f32 %v361, %v734
        %736 = vmatmul.f32.gmra.mxu0 %v390
        %v737 = vpop.f32.mrf.mxu0
        %v738 = vadd.f32 %v361, %v737
        %739 = vmatmul.f32.gmra.mxu0 %v393
        %v740 = vpop.f32.mrf.mxu0
        %v741 = vadd.f32 %v361, %v740
        %742 = vmatmul.f32.gmra.mxu0 %v396
        %v743 = vpop.f32.mrf.mxu0
        %v744 = vadd.f32 %v361, %v743
        %745 = vmatmul.f32.gmra.mxu0 %v399
        %v746 = vpop.f32.mrf.mxu0
        %v747 = vadd.f32 %v361, %v746
        %748 = vmatmul.f32.gmra.mxu0 %v402
        %v749 = vpop.f32.mrf.mxu0
        %v750 = vadd.f32 %v361, %v749
        %751 = vmatmul.f32.gmra.mxu0 %v405
        %v752 = vpop.f32.mrf.mxu0
        %v753 = vadd.f32 %v361, %v752
        %754 = vmatmul.f32.gmra.mxu0 %v408
        %v755 = vpop.f32.mrf.mxu0
        %v756 = vadd.f32 %v361, %v755
        %757 = vmatmul.f32.gmra.mxu0 %v411
        %v758 = vpop.f32.mrf.mxu0
        %v759 = vadd.f32 %v361, %v758
        %760 = vmatmul.f32.gmra.mxu0 %v414
        %v761 = vpop.f32.mrf.mxu0
        %v762 = vadd.f32 %v361, %v761
        %763 = vmatmul.f32.gmra.mxu0 %v417
        %v764 = vpop.f32.mrf.mxu0
        %v765 = vadd.f32 %v361, %v764
        %766 = vmatmul.f32.gmra.mxu0 %v420
        %v767 = vpop.f32.mrf.mxu0
        %v768 = vadd.f32 %v361, %v767
        %769 = vmatmul.f32.gmra.mxu0 %v423
        %v770 = vpop.f32.mrf.mxu0
        %v771 = vadd.f32 %v361, %v770
        %772 = vmatmul.f32.gmra.mxu0 %v426
        %v773 = vpop.f32.mrf.mxu0
        %v774 = vadd.f32 %v361, %v773
        %775 = vmatmul.f32.gmra.mxu0 %v429
        %v776 = vpop.f32.mrf.mxu0
        %v777 = vadd.f32 %v361, %v776
        %778 = vmatmul.f32.gmra.mxu0 %v432
        %v779 = vpop.f32.mrf.mxu0
        %v780 = vadd.f32 %v361, %v779
        %781 = vmatmul.f32.gmra.mxu0 %v435
        %v782 = vpop.f32.mrf.mxu0
        %v783 = vadd.f32 %v361, %v782
        %784 = vmatmul.f32.gmra.mxu0 %v438
        %v785 = vpop.f32.mrf.mxu0
        %v786 = vadd.f32 %v361, %v785
        %787 = vmatmul.f32.gmra.mxu0 %v441
        %v788 = vpop.f32.mrf.mxu0
        %v789 = vadd.f32 %v361, %v788
        %790 = vmatmul.f32.gmra.mxu0 %v444
        %v791 = vpop.f32.mrf.mxu0
        %v792 = vadd.f32 %v361, %v791
        %793 = vmatmul.f32.gmra.mxu0 %v447
        %v794 = vpop.f32.mrf.mxu0
        %v795 = vadd.f32 %v361, %v794
        %796 = vmatmul.f32.gmra.mxu0 %v450
        %v797 = vpop.f32.mrf.mxu0
        %v798 = vadd.f32 %v361, %v797
        %799 = vmatmul.f32.gmra.mxu0 %v453
        %v800 = vpop.f32.mrf.mxu0
        %v801 = vadd.f32 %v361, %v800
        %802 = vmatmul.f32.gmra.mxu0 %v456
        %v803 = vpop.f32.mrf.mxu0
        %v804 = vadd.f32 %v361, %v803
        %805 = vmatmul.f32.gmra.mxu0 %v459
        %v806 = vpop.f32.mrf.mxu0
        %v807 = vadd.f32 %v361, %v806
        %808 = vmatmul.f32.gmra.mxu0 %v462
        %v809 = vpop.f32.mrf.mxu0
        %v810 = vadd.f32 %v361, %v809
        %811 = vmatmul.f32.gmra.mxu0 %v465
        %v812 = vpop.f32.mrf.mxu0
        %v813 = vadd.f32 %v361, %v812
        %814 = vmatmul.f32.gmra.mxu0 %v468
        %v815 = vpop.f32.mrf.mxu0
        %v816 = vadd.f32 %v361, %v815
        %817 = vmatmul.f32.gmra.mxu0 %v471
        %v818 = vpop.f32.mrf.mxu0
        %v819 = vadd.f32 %v361, %v818
        %820 = vdwg.mxu0
        %821 = vmatpush.msra.mxu0 0.0
        %822 = vmatpush.msra.mxu0 0.0
        %823 = vmatpush.msra.mxu0 0.0
        %824 = vmatpush.msra.mxu0 0.0
        %825 = vmatpush.msra.mxu0 0.0
        %826 = vmatpush.msra.mxu0 0.0
        %827 = vmatpush.msra.mxu0 0.0
        %828 = vmatpush.msra.mxu0 0.0
        %829 = vmatpush.msra.mxu0 0.0
        %830 = vmatpush.msra.mxu0 0.0
        %831 = vmatpush.msra.mxu0 0.0
        %832 = vmatpush.msra.mxu0 0.0
        %833 = vmatpush.msra.mxu0 0.0
        %834 = vmatpush.msra.mxu0 0.0
        %835 = vmatpush.msra.mxu0 0.0
        %836 = vmatpush.msra.mxu0 %v480
        %837 = vmatmul.f32.gmra.mxu0 %v378
        %v838 = vpop.f32.mrf.mxu0
        %v839 = vadd.f32 %v362, %v838
        %840 = vmatmul.f32.gmra.mxu0 %v381
        %v841 = vpop.f32.mrf.mxu0
        %v842 = vadd.f32 %v362, %v841
        %843 = vmatmul.f32.gmra.mxu0 %v384
        %v844 = vpop.f32.mrf.mxu0
        %v845 = vadd.f32 %v362, %v844
        %846 = vmatmul.f32.gmra.mxu0 %v387
        %v847 = vpop.f32.mrf.mxu0
        %v848 = vadd.f32 %v362, %v847
        %849 = vmatmul.f32.gmra.mxu0 %v390
        %v850 = vpop.f32.mrf.mxu0
        %v851 = vadd.f32 %v362, %v850
        %852 = vmatmul.f32.gmra.mxu0 %v393
        %v853 = vpop.f32.mrf.mxu0
        %v854 = vadd.f32 %v362, %v853
        %855 = vmatmul.f32.gmra.mxu0 %v396
        %v856 = vpop.f32.mrf.mxu0
        %v857 = vadd.f32 %v362, %v856
        %858 = vmatmul.f32.gmra.mxu0 %v399
        %v859 = vpop.f32.mrf.mxu0
        %v860 = vadd.f32 %v362, %v859
        %861 = vmatmul.f32.gmra.mxu0 %v402
        %v862 = vpop.f32.mrf.mxu0
        %v863 = vadd.f32 %v362, %v862
        %864 = vmatmul.f32.gmra.mxu0 %v405
        %v865 = vpop.f32.mrf.mxu0
        %v866 = vadd.f32 %v362, %v865
        %867 = vmatmul.f32.gmra.mxu0 %v408
        %v868 = vpop.f32.mrf.mxu0
        %v869 = vadd.f32 %v362, %v868
        %870 = vmatmul.f32.gmra.mxu0 %v411
        %v871 = vpop.f32.mrf.mxu0
        %v872 = vadd.f32 %v362, %v871
        %873 = vmatmul.f32.gmra.mxu0 %v414
        %v874 = vpop.f32.mrf.mxu0
        %v875 = vadd.f32 %v362, %v874
        %876 = vmatmul.f32.gmra.mxu0 %v417
        %v877 = vpop.f32.mrf.mxu0
        %v878 = vadd.f32 %v362, %v877
        %879 = vmatmul.f32.gmra.mxu0 %v420
        %v880 = vpop.f32.mrf.mxu0
        %v881 = vadd.f32 %v362, %v880
        %882 = vmatmul.f32.gmra.mxu0 %v423
        %v883 = vpop.f32.mrf.mxu0
        %v884 = vadd.f32 %v362, %v883
        %885 = vmatmul.f32.gmra.mxu0 %v426
        %v886 = vpop.f32.mrf.mxu0
        %v887 = vadd.f32 %v362, %v886
        %888 = vmatmul.f32.gmra.mxu0 %v429
        %v889 = vpop.f32.mrf.mxu0
        %v890 = vadd.f32 %v362, %v889
        %891 = vmatmul.f32.gmra.mxu0 %v432
        %v892 = vpop.f32.mrf.mxu0
        %v893 = vadd.f32 %v362, %v892
        %894 = vmatmul.f32.gmra.mxu0 %v435
        %v895 = vpop.f32.mrf.mxu0
        %v896 = vadd.f32 %v362, %v895
        %897 = vmatmul.f32.gmra.mxu0 %v438
        %v898 = vpop.f32.mrf.mxu0
        %v899 = vadd.f32 %v362, %v898
        %900 = vmatmul.f32.gmra.mxu0 %v441
        %v901 = vpop.f32.mrf.mxu0
        %v902 = vadd.f32 %v362, %v901
        %903 = vmatmul.f32.gmra.mxu0 %v444
        %v904 = vpop.f32.mrf.mxu0
        %v905 = vadd.f32 %v362, %v904
        %906 = vmatmul.f32.gmra.mxu0 %v447
        %v907 = vpop.f32.mrf.mxu0
        %v908 = vadd.f32 %v362, %v907
        %909 = vmatmul.f32.gmra.mxu0 %v450
        %v910 = vpop.f32.mrf.mxu0
        %v911 = vadd.f32 %v362, %v910
        %912 = vmatmul.f32.gmra.mxu0 %v453
        %v913 = vpop.f32.mrf.mxu0
        %v914 = vadd.f32 %v362, %v913
        %915 = vmatmul.f32.gmra.mxu0 %v456
        %v916 = vpop.f32.mrf.mxu0
        %v917 = vadd.f32 %v362, %v916
        %918 = vmatmul.f32.gmra.mxu0 %v459
        %v919 = vpop.f32.mrf.mxu0
        %v920 = vadd.f32 %v362, %v919
        %921 = vmatmul.f32.gmra.mxu0 %v462
        %v922 = vpop.f32.mrf.mxu0
        %v923 = vadd.f32 %v362, %v922
        %924 = vmatmul.f32.gmra.mxu0 %v465
        %v925 = vpop.f32.mrf.mxu0
        %v926 = vadd.f32 %v362, %v925
        %927 = vmatmul.f32.gmra.mxu0 %v468
        %v928 = vpop.f32.mrf.mxu0
        %v929 = vadd.f32 %v362, %v928
        %930 = vmatmul.f32.gmra.mxu0 %v471
        %v931 = vpop.f32.mrf.mxu0
        %v932 = vadd.f32 %v362, %v931
        %933 = vdwg.mxu0
        %v934 = vmax.f32 %v500, 0.0
        %v935 = vmax.f32 %v503, 0.0
        %v936 = vmax.f32 %v506, 0.0
        %v937 = vmax.f32 %v509, 0.0
        %v938 = vmax.f32 %v512, 0.0
        %v939 = vmax.f32 %v515, 0.0
        %v940 = vmax.f32 %v518, 0.0
        %v941 = vmax.f32 %v521, 0.0
        %v942 = vmax.f32 %v524, 0.0
        %v943 = vmax.f32 %v527, 0.0
        %v944 = vmax.f32 %v530, 0.0
        %v945 = vmax.f32 %v533, 0.0
        %v946 = vmax.f32 %v536, 0.0
        %v947 = vmax.f32 %v539, 0.0
        %v948 = vmax.f32 %v542, 0.0
        %v949 = vmax.f32 %v545, 0.0
        %v950 = vmax.f32 %v548, 0.0
        %v951 = vmax.f32 %v551, 0.0
        %v952 = vmax.f32 %v554, 0.0
        %v953 = vmax.f32 %v557, 0.0
        %v954 = vmax.f32 %v560, 0.0
        %v955 = vmax.f32 %v563, 0.0
        %v956 = vmax.f32 %v566, 0.0
        %v957 = vmax.f32 %v569, 0.0
        %v958 = vmax.f32 %v572, 0.0
        %v959 = vmax.f32 %v575, 0.0
        %v960 = vmax.f32 %v578, 0.0
        %v961 = vmax.f32 %v581, 0.0
        %v962 = vmax.f32 %v584, 0.0
        %v963 = vmax.f32 %v587, 0.0
        %v964 = vmax.f32 %v590, 0.0
        %v965 = vmax.f32 %v593, 0.0
        %v966 = vmax.f32 %v839, 0.0
        %v967 = vmax.f32 %v842, 0.0
        %v968 = vmax.f32 %v845, 0.0
        %v969 = vmax.f32 %v848, 0.0
        %v970 = vmax.f32 %v851, 0.0
        %v971 = vmax.f32 %v854, 0.0
        %v972 = vmax.f32 %v857, 0.0
        %v973 = vmax.f32 %v860, 0.0
        %v974 = vmax.f32 %v863, 0.0
        %v975 = vmax.f32 %v866, 0.0
        %v976 = vmax.f32 %v869, 0.0
        %v977 = vmax.f32 %v872, 0.0
        %v978 = vmax.f32 %v875, 0.0
        %v979 = vmax.f32 %v878, 0.0
        %v980 = vmax.f32 %v881, 0.0
        %v981 = vmax.f32 %v884, 0.0
        %v982 = vmax.f32 %v887, 0.0
        %v983 = vmax.f32 %v890, 0.0
        %v984 = vmax.f32 %v893, 0.0
        %v985 = vmax.f32 %v896, 0.0
        %v986 = vmax.f32 %v899, 0.0
        %v987 = vmax.f32 %v902, 0.0
        %v988 = vmax.f32 %v905, 0.0
        %v989 = vmax.f32 %v908, 0.0
        %v990 = vmax.f32 %v911, 0.0
        %v991 = vmax.f32 %v914, 0.0
        %v992 = vmax.f32 %v917, 0.0
        %v993 = vmax.f32 %v920, 0.0
        %v994 = vmax.f32 %v923, 0.0
        %v995 = vmax.f32 %v926, 0.0
        %v996 = vmax.f32 %v929, 0.0
        %v997 = vmax.f32 %v932, 0.0
        %vm998 = vcmask 523264
        %999 = vst.msk [vmem:[#allocation2] sm:$0xff] %vm998, 0.0
        %1000 = vst.msk [vmem:[#allocation2 + $0x8] sm:$0xff] %vm998, 0.0
        %vm1001 = vcmask 519168
        %1002 = vst.msk [vmem:[#allocation2 + $0x10] sm:$0xf] %vm1001, 0.0
        %1003 = vst.msk [vmem:[#allocation2 + $0x18] sm:$0xff] %vm998, 0.0
        %1004 = vst.msk [vmem:[#allocation2 + $0x20] sm:$0xff] %vm998, 0.0
        %1005 = vst.msk [vmem:[#allocation2 + $0x28] sm:$0xf] %vm1001, 0.0
        %s1006 = scalar_lea.vmem [#allocation2], 432
        %1007 = vst.msk [vmem:[%s1006] sm:$0xff] %vm998, 0.0
        %1008 = vst.msk [vmem:[%s1006 + $0x8] sm:$0xff] %vm998, 0.0
        %1009 = vst.msk [vmem:[%s1006 + $0x10] sm:$0xf] %vm1001, 0.0
        %1010 = vst.msk [vmem:[%s1006 + $0x18] sm:$0xff] %vm998, 0.0
        %1011 = vst.msk [vmem:[%s1006 + $0x20] sm:$0xff] %vm998, 0.0
        %1012 = vst.msk [vmem:[%s1006 + $0x28] sm:$0xf] %vm1001, 0.0
        %s1013 = scalar_lea.vmem [#allocation2], 48
        %vm1014 = vcmask 517120
        %1015 = vst.msk [vmem:[%s1013] sm:$0x3] %vm1014, 0.0
        %1016 = vst.msk [vmem:[%s1013 + $0x18] sm:$0x3] %vm1014, 0.0
        %1017 = vst.msk [vmem:[%s1013 + $0x30] sm:$0x3] %vm1014, 0.0
        %1018 = vst.msk [vmem:[%s1013 + $0x48] sm:$0x3] %vm1014, 0.0
        %1019 = vst.msk [vmem:[%s1013 + $0x60] sm:$0x3] %vm1014, 0.0
        %1020 = vst.msk [vmem:[%s1013 + $0x78] sm:$0x3] %vm1014, 0.0
        %1021 = vst.msk [vmem:[%s1013 + $0x90] sm:$0x3] %vm1014, 0.0
        %1022 = vst.msk [vmem:[%s1013 + $0xa8] sm:$0x3] %vm1014, 0.0
        %1023 = vst.msk [vmem:[%s1013 + $0xc0] sm:$0x3] %vm1014, 0.0
        %1024 = vst.msk [vmem:[%s1013 + $0xd8] sm:$0x3] %vm1014, 0.0
        %1025 = vst.msk [vmem:[%s1013 + $0xf0] sm:$0x3] %vm1014, 0.0
        %1026 = vst.msk [vmem:[%s1013 + $0x108] sm:$0x3] %vm1014, 0.0
        %1027 = vst.msk [vmem:[%s1013 + $0x120] sm:$0x3] %vm1014, 0.0
        %1028 = vst.msk [vmem:[%s1013 + $0x138] sm:$0x3] %vm1014, 0.0
        %1029 = vst.msk [vmem:[%s1013 + $0x150] sm:$0x3] %vm1014, 0.0
        %1030 = vst.msk [vmem:[%s1013 + $0x168] sm:$0x3] %vm1014, 0.0
        %1031 = vst.msk [vmem:[%s1013 + $0x12] sm:$0x3] %vm1014, 0.0
        %1032 = vst.msk [vmem:[%s1013 + $0x2a] sm:$0x3] %vm1014, 0.0
        %1033 = vst.msk [vmem:[%s1013 + $0x42] sm:$0x3] %vm1014, 0.0
        %1034 = vst.msk [vmem:[%s1013 + $0x5a] sm:$0x3] %vm1014, 0.0
        %1035 = vst.msk [vmem:[%s1013 + $0x72] sm:$0x3] %vm1014, 0.0
        %1036 = vst.msk [vmem:[%s1013 + $0x8a] sm:$0x3] %vm1014, 0.0
        %1037 = vst.msk [vmem:[%s1013 + $0xa2] sm:$0x3] %vm1014, 0.0
        %1038 = vst.msk [vmem:[%s1013 + $0xba] sm:$0x3] %vm1014, 0.0
        %1039 = vst.msk [vmem:[%s1013 + $0xd2] sm:$0x3] %vm1014, 0.0
        %1040 = vst.msk [vmem:[%s1013 + $0xea] sm:$0x3] %vm1014, 0.0
        %1041 = vst.msk [vmem:[%s1013 + $0x102] sm:$0x3] %vm1014, 0.0
        %1042 = vst.msk [vmem:[%s1013 + $0x11a] sm:$0x3] %vm1014, 0.0
        %1043 = vst.msk [vmem:[%s1013 + $0x132] sm:$0x3] %vm1014, 0.0
        %1044 = vst.msk [vmem:[%s1013 + $0x14a] sm:$0x3] %vm1014, 0.0
        %1045 = vst.msk [vmem:[%s1013 + $0x162] sm:$0x3] %vm1014, 0.0
        %1046 = vst.msk [vmem:[%s1013 + $0x17a] sm:$0x3] %vm1014, 0.0
        %1047 = vst.msk [vmem:[%s1013 + $0x2] sm:$0xff] %vm998, %v966
        %1048 = vst.msk [vmem:[%s1013 + $0xa] sm:$0xff] %vm998, %v967
        %1049 = vst.msk [vmem:[%s1013 + $0x1a] sm:$0xff] %vm998, %v968
        %1050 = vst.msk [vmem:[%s1013 + $0x22] sm:$0xff] %vm998, %v969
        %1051 = vst.msk [vmem:[%s1013 + $0x32] sm:$0xff] %vm998, %v970
        %1052 = vst.msk [vmem:[%s1013 + $0x3a] sm:$0xff] %vm998, %v971
        %1053 = vst.msk [vmem:[%s1013 + $0x4a] sm:$0xff] %vm998, %v972
        %1054 = vst.msk [vmem:[%s1013 + $0x52] sm:$0xff] %vm998, %v973
        %1055 = vst.msk [vmem:[%s1013 + $0x62] sm:$0xff] %vm998, %v974
        %1056 = vst.msk [vmem:[%s1013 + $0x6a] sm:$0xff] %vm998, %v975
        %1057 = vst.msk [vmem:[%s1013 + $0x7a] sm:$0xff] %vm998, %v976
        %1058 = vst.msk [vmem:[%s1013 + $0x82] sm:$0xff] %vm998, %v977
        %1059 = vst.msk [vmem:[%s1013 + $0x92] sm:$0xff] %vm998, %v978
        %1060 = vst.msk [vmem:[%s1013 + $0x9a] sm:$0xff] %vm998, %v979
        %1061 = vst.msk [vmem:[%s1013 + $0xaa] sm:$0xff] %vm998, %v980
        %1062 = vst.msk [vmem:[%s1013 + $0xb2] sm:$0xff] %vm998, %v981
        %1063 = vst.msk [vmem:[%s1013 + $0xc2] sm:$0xff] %vm998, %v982
        %1064 = vst.msk [vmem:[%s1013 + $0xca] sm:$0xff] %vm998, %v983
        %1065 = vst.msk [vmem:[%s1013 + $0xda] sm:$0xff] %vm998, %v984
        %1066 = vst.msk [vmem:[%s1013 + $0xe2] sm:$0xff] %vm998, %v985
        %1067 = vst.msk [vmem:[%s1013 + $0xf2] sm:$0xff] %vm998, %v986
        %1068 = vst.msk [vmem:[%s1013 + $0xfa] sm:$0xff] %vm998, %v987
        %1069 = vst.msk [vmem:[%s1013 + $0x10a] sm:$0xff] %vm998, %v988
        %1070 = vst.msk [vmem:[%s1013 + $0x112] sm:$0xff] %vm998, %v989
        %1071 = vst.msk [vmem:[%s1013 + $0x122] sm:$0xff] %vm998, %v990
        %1072 = vst.msk [vmem:[%s1013 + $0x12a] sm:$0xff] %vm998, %v991
        %1073 = vst.msk [vmem:[%s1013 + $0x13a] sm:$0xff] %vm998, %v992
        %1074 = vst.msk [vmem:[%s1013 + $0x142] sm:$0xff] %vm998, %v993
        %1075 = vst.msk [vmem:[%s1013 + $0x152] sm:$0xff] %vm998, %v994
        %1076 = vst.msk [vmem:[%s1013 + $0x15a] sm:$0xff] %vm998, %v995
        %1077 = vst.msk [vmem:[%s1013 + $0x16a] sm:$0xff] %vm998, %v996
        %1078 = vst.msk [vmem:[%s1013 + $0x172] sm:$0xff] %vm998, %v997
        %v1079 = vld [vmem:[#allocation2] sm:$0xff]
        %v1080 = vld [vmem:[#allocation2 + $0x8] sm:$0xff]
        %v1081 = vld [vmem:[#allocation2 + $0x18] sm:$0xff]
        %v1082 = vld [vmem:[#allocation2 + $0x20] sm:$0xff]
        %v1083 = vld [vmem:[#allocation2 + $0x30] sm:$0xff]
        %v1084 = vld [vmem:[#allocation2 + $0x38] sm:$0xff]
        %v1085 = vld [vmem:[#allocation2 + $0x48] sm:$0xff]
        %v1086 = vld [vmem:[#allocation2 + $0x50] sm:$0xff]
        %v1087 = vld [vmem:[#allocation2 + $0x60] sm:$0xff]
        %v1088 = vld [vmem:[#allocation2 + $0x68] sm:$0xff]
        %v1089 = vld [vmem:[#allocation2 + $0x78] sm:$0xff]
        %v1090 = vld [vmem:[#allocation2 + $0x80] sm:$0xff]
        %v1091 = vld [vmem:[#allocation2 + $0x90] sm:$0xff]
        %v1092 = vld [vmem:[#allocation2 + $0x98] sm:$0xff]
        %v1093 = vld [vmem:[#allocation2 + $0xa8] sm:$0xff]
        %v1094 = vld [vmem:[#allocation2 + $0xb0] sm:$0xff]
        %v1095 = vld [vmem:[#allocation2 + $0xc0] sm:$0xff]
        %v1096 = vld [vmem:[#allocation2 + $0xc8] sm:$0xff]
        %v1097 = vld [vmem:[#allocation2 + $0xd8] sm:$0xff]
        %v1098 = vld [vmem:[#allocation2 + $0xe0] sm:$0xff]
        %v1099 = vld [vmem:[#allocation2 + $0xf0] sm:$0xff]
        %v1100 = vld [vmem:[#allocation2 + $0xf8] sm:$0xff]
        %v1101 = vld [vmem:[#allocation2 + $0x108] sm:$0xff]
        %v1102 = vld [vmem:[#allocation2 + $0x110] sm:$0xff]
        %v1103 = vld [vmem:[#allocation2 + $0x120] sm:$0xff]
        %v1104 = vld [vmem:[#allocation2 + $0x128] sm:$0xff]
        %v1105 = vld [vmem:[#allocation2 + $0x138] sm:$0xff]
        %v1106 = vld [vmem:[#allocation2 + $0x140] sm:$0xff]
        %v1107 = vld [vmem:[#allocation2 + $0x150] sm:$0xff]
        %v1108 = vld [vmem:[#allocation2 + $0x158] sm:$0xff]
        %v1109 = vld [vmem:[#allocation2 + $0x168] sm:$0xff]
        %v1110 = vld [vmem:[#allocation2 + $0x170] sm:$0xff]
        %1111 = vst.msk [vmem:[#allocation3] sm:$0xff] %vm998, %v1079
        %1112 = vst.msk [vmem:[#allocation3 + $0x68] sm:$0xff] %vm998, %v1080
        %1113 = vst.msk [vmem:[#allocation3 + $0xd0] sm:$0xff] %vm998, %v1081
        %1114 = vst.msk [vmem:[#allocation3 + $0x138] sm:$0xff] %vm998, %v1082
        %1115 = vst.msk [vmem:[#allocation3 + $0x1a0] sm:$0xff] %vm998, %v1083
        %1116 = vst.msk [vmem:[#allocation3 + $0x208] sm:$0xff] %vm998, %v1084
        %1117 = vst.msk [vmem:[#allocation3 + $0x270] sm:$0xff] %vm998, %v1085
        %1118 = vst.msk [vmem:[#allocation3 + $0x2d8] sm:$0xff] %vm998, %v1086
        %1119 = vst.msk [vmem:[#allocation3 + $0x340] sm:$0xff] %vm998, %v1087
        %1120 = vst.msk [vmem:[#allocation3 + $0x3a8] sm:$0xff] %vm998, %v1088
        %1121 = vst.msk [vmem:[#allocation3 + $0x410] sm:$0xff] %vm998, %v1089
        %1122 = vst.msk [vmem:[#allocation3 + $0x478] sm:$0xff] %vm998, %v1090
        %1123 = vst.msk [vmem:[#allocation3 + $0x4e0] sm:$0xff] %vm998, %v1091
        %1124 = vst.msk [vmem:[#allocation3 + $0x548] sm:$0xff] %vm998, %v1092
        %1125 = vst.msk [vmem:[#allocation3 + $0x5b0] sm:$0xff] %vm998, %v1093
        %1126 = vst.msk [vmem:[#allocation3 + $0x618] sm:$0xff] %vm998, %v1094
        %1127 = vst.msk [vmem:[#allocation3 + $0x680] sm:$0xff] %vm998, %v1095
        %1128 = vst.msk [vmem:[#allocation3 + $0x6e8] sm:$0xff] %vm998, %v1096
        %1129 = vst.msk [vmem:[#allocation3 + $0x750] sm:$0xff] %vm998, %v1097
        %1130 = vst.msk [vmem:[#allocation3 + $0x7b8] sm:$0xff] %vm998, %v1098
        %1131 = vst.msk [vmem:[#allocation3 + $0x820] sm:$0xff] %vm998, %v1099
        %1132 = vst.msk [vmem:[#allocation3 + $0x888] sm:$0xff] %vm998, %v1100
        %1133 = vst.msk [vmem:[#allocation3 + $0x8f0] sm:$0xff] %vm998, %v1101
        %1134 = vst.msk [vmem:[#allocation3 + $0x958] sm:$0xff] %vm998, %v1102
        %1135 = vst.msk [vmem:[#allocation3 + $0x9c0] sm:$0xff] %vm998, %v1103
        %1136 = vst.msk [vmem:[#allocation3 + $0xa28] sm:$0xff] %vm998, %v1104
        %1137 = vst.msk [vmem:[#allocation3 + $0xa90] sm:$0xff] %vm998, %v1105
        %1138 = vst.msk [vmem:[#allocation3 + $0xaf8] sm:$0xff] %vm998, %v1106
        %1139 = vst.msk [vmem:[#allocation3 + $0xb60] sm:$0xff] %vm998, %v1107
        %1140 = vst.msk [vmem:[#allocation3 + $0xbc8] sm:$0xff] %vm998, %v1108
        %1141 = vst.msk [vmem:[#allocation3 + $0xc30] sm:$0xff] %vm998, %v1109
        %1142 = vst.msk [vmem:[#allocation3 + $0xc98] sm:$0xff] %vm998, %v1110
        %v1143 = vld [vmem:[#allocation2 + $0x1] sm:$0xff]
        %v1144 = vld [vmem:[#allocation2 + $0x9] sm:$0xff]
        %v1145 = vld [vmem:[#allocation2 + $0x19] sm:$0xff]
        %v1146 = vld [vmem:[#allocation2 + $0x21] sm:$0xff]
        %v1147 = vld [vmem:[#allocation2 + $0x31] sm:$0xff]
        %v1148 = vld [vmem:[#allocation2 + $0x39] sm:$0xff]
        %v1149 = vld [vmem:[#allocation2 + $0x49] sm:$0xff]
        %v1150 = vld [vmem:[#allocation2 + $0x51] sm:$0xff]
        %v1151 = vld [vmem:[#allocation2 + $0x61] sm:$0xff]
        %v1152 = vld [vmem:[#allocation2 + $0x69] sm:$0xff]
        %v1153 = vld [vmem:[#allocation2 + $0x79] sm:$0xff]
        %v1154 = vld [vmem:[#allocation2 + $0x81] sm:$0xff]
        %v1155 = vld [vmem:[#allocation2 + $0x91] sm:$0xff]
        %v1156 = vld [vmem:[#allocation2 + $0x99] sm:$0xff]
        %v1157 = vld [vmem:[#allocation2 + $0xa9] sm:$0xff]
        %v1158 = vld [vmem:[#allocation2 + $0xb1] sm:$0xff]
        %v1159 = vld [vmem:[#allocation2 + $0xc1] sm:$0xff]
        %v1160 = vld [vmem:[#allocation2 + $0xc9] sm:$0xff]
        %v1161 = vld [vmem:[#allocation2 + $0xd9] sm:$0xff]
        %v1162 = vld [vmem:[#allocation2 + $0xe1] sm:$0xff]
        %v1163 = vld [vmem:[#allocation2 + $0xf1] sm:$0xff]
        %v1164 = vld [vmem:[#allocation2 + $0xf9] sm:$0xff]
        %v1165 = vld [vmem:[#allocation2 + $0x109] sm:$0xff]
        %v1166 = vld [vmem:[#allocation2 + $0x111] sm:$0xff]
        %v1167 = vld [vmem:[#allocation2 + $0x121] sm:$0xff]
        %v1168 = vld [vmem:[#allocation2 + $0x129] sm:$0xff]
        %v1169 = vld [vmem:[#allocation2 + $0x139] sm:$0xff]
        %v1170 = vld [vmem:[#allocation2 + $0x141] sm:$0xff]
        %v1171 = vld [vmem:[#allocation2 + $0x151] sm:$0xff]
        %v1172 = vld [vmem:[#allocation2 + $0x159] sm:$0xff]
        %v1173 = vld [vmem:[#allocation2 + $0x169] sm:$0xff]
        %v1174 = vld [vmem:[#allocation2 + $0x171] sm:$0xff]
        %1207 = vrot.lane.b32.xlu0 %v1143, 64
        %v1208 = vpop.permute.xlu0 %1207
        %1209 = vrot.lane.b32.xlu0 %v1144, 64
        %v1210 = vpop.permute.xlu0 %1209
        %1211 = vrot.lane.b32.xlu0 %v1145, 64
        %v1212 = vpop.permute.xlu0 %1211
        %1213 = vrot.lane.b32.xlu0 %v1146, 64
        %v1214 = vpop.permute.xlu0 %1213
        %1215 = vrot.lane.b32.xlu0 %v1147, 64
        %v1216 = vpop.permute.xlu0 %1215
        %1217 = vrot.lane.b32.xlu0 %v1148, 64
        %v1218 = vpop.permute.xlu0 %1217
        %1219 = vrot.lane.b32.xlu0 %v1149, 64
        %v1220 = vpop.permute.xlu0 %1219
        %1221 = vrot.lane.b32.xlu0 %v1150, 64
        %v1222 = vpop.permute.xlu0 %1221
        %1223 = vrot.lane.b32.xlu0 %v1151, 64
        %v1224 = vpop.permute.xlu0 %1223
        %1225 = vrot.lane.b32.xlu0 %v1152, 64
        %v1226 = vpop.permute.xlu0 %1225
        %1227 = vrot.lane.b32.xlu0 %v1153, 64
        %v1228 = vpop.permute.xlu0 %1227
        %1229 = vrot.lane.b32.xlu0 %v1154, 64
        %v1230 = vpop.permute.xlu0 %1229
        %1231 = vrot.lane.b32.xlu0 %v1155, 64
        %v1232 = vpop.permute.xlu0 %1231
        %1233 = vrot.lane.b32.xlu0 %v1156, 64
        %v1234 = vpop.permute.xlu0 %1233
        %1235 = vrot.lane.b32.xlu0 %v1157, 64
        %v1236 = vpop.permute.xlu0 %1235
        %1237 = vrot.lane.b32.xlu0 %v1158, 64
        %v1238 = vpop.permute.xlu0 %1237
        %1239 = vrot.lane.b32.xlu0 %v1159, 64
        %v1240 = vpop.permute.xlu0 %1239
        %1241 = vrot.lane.b32.xlu0 %v1160, 64
        %v1242 = vpop.permute.xlu0 %1241
        %1243 = vrot.lane.b32.xlu0 %v1161, 64
        %v1244 = vpop.permute.xlu0 %1243
        %1245 = vrot.lane.b32.xlu0 %v1162, 64
        %v1246 = vpop.permute.xlu0 %1245
        %1247 = vrot.lane.b32.xlu0 %v1163, 64
        %v1248 = vpop.permute.xlu0 %1247
        %1249 = vrot.lane.b32.xlu0 %v1164, 64
        %v1250 = vpop.permute.xlu0 %1249
        %1251 = vrot.lane.b32.xlu0 %v1165, 64
        %v1252 = vpop.permute.xlu0 %1251
        %1253 = vrot.lane.b32.xlu0 %v1166, 64
        %v1254 = vpop.permute.xlu0 %1253
        %1255 = vrot.lane.b32.xlu0 %v1167, 64
        %v1256 = vpop.permute.xlu0 %1255
        %1257 = vrot.lane.b32.xlu0 %v1168, 64
        %v1258 = vpop.permute.xlu0 %1257
        %1259 = vrot.lane.b32.xlu0 %v1169, 64
        %v1260 = vpop.permute.xlu0 %1259
        %1261 = vrot.lane.b32.xlu0 %v1170, 64
        %v1262 = vpop.permute.xlu0 %1261
        %1263 = vrot.lane.b32.xlu0 %v1171, 64
        %v1264 = vpop.permute.xlu0 %1263
        %1265 = vrot.lane.b32.xlu0 %v1172, 64
        %v1266 = vpop.permute.xlu0 %1265
        %1267 = vrot.lane.b32.xlu0 %v1173, 64
        %v1268 = vpop.permute.xlu0 %1267
        %1269 = vrot.lane.b32.xlu0 %v1174, 64
        %v1270 = vpop.permute.xlu0 %1269
        %vm1303 = vcmask 1048064
        %1304 = vst.msk [vmem:[#allocation3] sm:$0xff] %vm1303, %v1208
        %1305 = vst.msk [vmem:[#allocation3 + $0x68] sm:$0xff] %vm1303, %v1210
        %1306 = vst.msk [vmem:[#allocation3 + $0xd0] sm:$0xff] %vm1303, %v1212
        %1307 = vst.msk [vmem:[#allocation3 + $0x138] sm:$0xff] %vm1303, %v1214
        %1308 = vst.msk [vmem:[#allocation3 + $0x1a0] sm:$0xff] %vm1303, %v1216
        %1309 = vst.msk [vmem:[#allocation3 + $0x208] sm:$0xff] %vm1303, %v1218
        %1310 = vst.msk [vmem:[#allocation3 + $0x270] sm:$0xff] %vm1303, %v1220
        %1311 = vst.msk [vmem:[#allocation3 + $0x2d8] sm:$0xff] %vm1303, %v1222
        %1312 = vst.msk [vmem:[#allocation3 + $0x340] sm:$0xff] %vm1303, %v1224
        %1313 = vst.msk [vmem:[#allocation3 + $0x3a8] sm:$0xff] %vm1303, %v1226
        %1314 = vst.msk [vmem:[#allocation3 + $0x410] sm:$0xff] %vm1303, %v1228
        %1315 = vst.msk [vmem:[#allocation3 + $0x478] sm:$0xff] %vm1303, %v1230
        %1316 = vst.msk [vmem:[#allocation3 + $0x4e0] sm:$0xff] %vm1303, %v1232
        %1317 = vst.msk [vmem:[#allocation3 + $0x548] sm:$0xff] %vm1303, %v1234
        %1318 = vst.msk [vmem:[#allocation3 + $0x5b0] sm:$0xff] %vm1303, %v1236
        %1319 = vst.msk [vmem:[#allocation3 + $0x618] sm:$0xff] %vm1303, %v1238
        %1320 = vst.msk [vmem:[#allocation3 + $0x680] sm:$0xff] %vm1303, %v1240
        %1321 = vst.msk [vmem:[#allocation3 + $0x6e8] sm:$0xff] %vm1303, %v1242
        %1322 = vst.msk [vmem:[#allocation3 + $0x750] sm:$0xff] %vm1303, %v1244
        %1323 = vst.msk [vmem:[#allocation3 + $0x7b8] sm:$0xff] %vm1303, %v1246
        %1324 = vst.msk [vmem:[#allocation3 + $0x820] sm:$0xff] %vm1303, %v1248
        %1325 = vst.msk [vmem:[#allocation3 + $0x888] sm:$0xff] %vm1303, %v1250
        %1326 = vst.msk [vmem:[#allocation3 + $0x8f0] sm:$0xff] %vm1303, %v1252
        %1327 = vst.msk [vmem:[#allocation3 + $0x958] sm:$0xff] %vm1303, %v1254
        %1328 = vst.msk [vmem:[#allocation3 + $0x9c0] sm:$0xff] %vm1303, %v1256
        %1329 = vst.msk [vmem:[#allocation3 + $0xa28] sm:$0xff] %vm1303, %v1258
        %1330 = vst.msk [vmem:[#allocation3 + $0xa90] sm:$0xff] %vm1303, %v1260
        %1331 = vst.msk [vmem:[#allocation3 + $0xaf8] sm:$0xff] %vm1303, %v1262
        %1332 = vst.msk [vmem:[#allocation3 + $0xb60] sm:$0xff] %vm1303, %v1264
        %1333 = vst.msk [vmem:[#allocation3 + $0xbc8] sm:$0xff] %vm1303, %v1266
        %1334 = vst.msk [vmem:[#allocation3 + $0xc30] sm:$0xff] %vm1303, %v1268
        %1335 = vst.msk [vmem:[#allocation3 + $0xc98] sm:$0xff] %vm1303, %v1270
        %v1336 = vld [vmem:[#allocation2 + $0x2] sm:$0xff]
        %v1337 = vld [vmem:[#allocation2 + $0xa] sm:$0xff]
        %v1338 = vld [vmem:[#allocation2 + $0x1a] sm:$0xff]
        %v1339 = vld [vmem:[#allocation2 + $0x22] sm:$0xff]
        %v1340 = vld [vmem:[#allocation2 + $0x32] sm:$0xff]
        %v1341 = vld [vmem:[#allocation2 + $0x3a] sm:$0xff]
        %v1342 = vld [vmem:[#allocation2 + $0x4a] sm:$0xff]
        %v1343 = vld [vmem:[#allocation2 + $0x52] sm:$0xff]
        %v1344 = vld [vmem:[#allocation2 + $0x62] sm:$0xff]
        %v1345 = vld [vmem:[#allocation2 + $0x6a] sm:$0xff]
        %v1346 = vld [vmem:[#allocation2 + $0x7a] sm:$0xff]
        %v1347 = vld [vmem:[#allocation2 + $0x82] sm:$0xff]
        %v1348 = vld [vmem:[#allocation2 + $0x92] sm:$0xff]
        %v1349 = vld [vmem:[#allocation2 + $0x9a] sm:$0xff]
        %v1350 = vld [vmem:[#allocation2 + $0xaa] sm:$0xff]
        %v1351 = vld [vmem:[#allocation2 + $0xb2] sm:$0xff]
        %v1352 = vld [vmem:[#allocation2 + $0xc2] sm:$0xff]
        %v1353 = vld [vmem:[#allocation2 + $0xca] sm:$0xff]
        %v1354 = vld [vmem:[#allocation2 + $0xda] sm:$0xff]
        %v1355 = vld [vmem:[#allocation2 + $0xe2] sm:$0xff]
        %v1356 = vld [vmem:[#allocation2 + $0xf2] sm:$0xff]
        %v1357 = vld [vmem:[#allocation2 + $0xfa] sm:$0xff]
        %v1358 = vld [vmem:[#allocation2 + $0x10a] sm:$0xff]
        %v1359 = vld [vmem:[#allocation2 + $0x112] sm:$0xff]
        %v1360 = vld [vmem:[#allocation2 + $0x122] sm:$0xff]
        %v1361 = vld [vmem:[#allocation2 + $0x12a] sm:$0xff]
        %v1362 = vld [vmem:[#allocation2 + $0x13a] sm:$0xff]
        %v1363 = vld [vmem:[#allocation2 + $0x142] sm:$0xff]
        %v1364 = vld [vmem:[#allocation2 + $0x152] sm:$0xff]
        %v1365 = vld [vmem:[#allocation2 + $0x15a] sm:$0xff]
        %v1366 = vld [vmem:[#allocation2 + $0x16a] sm:$0xff]
        %v1367 = vld [vmem:[#allocation2 + $0x172] sm:$0xff]
        %1368 = vst.msk [vmem:[#allocation3 + $0x8] sm:$0xff] %vm998, %v1336
        %1369 = vst.msk [vmem:[#allocation3 + $0x70] sm:$0xff] %vm998, %v1337
        %1370 = vst.msk [vmem:[#allocation3 + $0xd8] sm:$0xff] %vm998, %v1338
        %1371 = vst.msk [vmem:[#allocation3 + $0x140] sm:$0xff] %vm998, %v1339
        %1372 = vst.msk [vmem:[#allocation3 + $0x1a8] sm:$0xff] %vm998, %v1340
        %1373 = vst.msk [vmem:[#allocation3 + $0x210] sm:$0xff] %vm998, %v1341
        %1374 = vst.msk [vmem:[#allocation3 + $0x278] sm:$0xff] %vm998, %v1342
        %1375 = vst.msk [vmem:[#allocation3 + $0x2e0] sm:$0xff] %vm998, %v1343
        %1376 = vst.msk [vmem:[#allocation3 + $0x348] sm:$0xff] %vm998, %v1344
        %1377 = vst.msk [vmem:[#allocation3 + $0x3b0] sm:$0xff] %vm998, %v1345
        %1378 = vst.msk [vmem:[#allocation3 + $0x418] sm:$0xff] %vm998, %v1346
        %1379 = vst.msk [vmem:[#allocation3 + $0x480] sm:$0xff] %vm998, %v1347
        %1380 = vst.msk [vmem:[#allocation3 + $0x4e8] sm:$0xff] %vm998, %v1348
        %1381 = vst.msk [vmem:[#allocation3 + $0x550] sm:$0xff] %vm998, %v1349
        %1382 = vst.msk [vmem:[#allocation3 + $0x5b8] sm:$0xff] %vm998, %v1350
        %1383 = vst.msk [vmem:[#allocation3 + $0x620] sm:$0xff] %vm998, %v1351
        %1384 = vst.msk [vmem:[#allocation3 + $0x688] sm:$0xff] %vm998, %v1352
        %1385 = vst.msk [vmem:[#allocation3 + $0x6f0] sm:$0xff] %vm998, %v1353
        %1386 = vst.msk [vmem:[#allocation3 + $0x758] sm:$0xff] %vm998, %v1354
        %1387 = vst.msk [vmem:[#allocation3 + $0x7c0] sm:$0xff] %vm998, %v1355
        %1388 = vst.msk [vmem:[#allocation3 + $0x828] sm:$0xff] %vm998, %v1356
        %1389 = vst.msk [vmem:[#allocation3 + $0x890] sm:$0xff] %vm998, %v1357
        %1390 = vst.msk [vmem:[#allocation3 + $0x8f8] sm:$0xff] %vm998, %v1358
        %1391 = vst.msk [vmem:[#allocation3 + $0x960] sm:$0xff] %vm998, %v1359
        %1392 = vst.msk [vmem:[#allocation3 + $0x9c8] sm:$0xff] %vm998, %v1360
        %1393 = vst.msk [vmem:[#allocation3 + $0xa30] sm:$0xff] %vm998, %v1361
        %1394 = vst.msk [vmem:[#allocation3 + $0xa98] sm:$0xff] %vm998, %v1362
        %1395 = vst.msk [vmem:[#allocation3 + $0xb00] sm:$0xff] %vm998, %v1363
        %1396 = vst.msk [vmem:[#allocation3 + $0xb68] sm:$0xff] %vm998, %v1364
        %1397 = vst.msk [vmem:[#allocation3 + $0xbd0] sm:$0xff] %vm998, %v1365
        %1398 = vst.msk [vmem:[#allocation3 + $0xc38] sm:$0xff] %vm998, %v1366
        %1399 = vst.msk [vmem:[#allocation3 + $0xca0] sm:$0xff] %vm998, %v1367
        %v1400 = vld [vmem:[#allocation2 + $0x3] sm:$0xff]
        %v1401 = vld [vmem:[#allocation2 + $0xb] sm:$0xff]
        %v1402 = vld [vmem:[#allocation2 + $0x1b] sm:$0xff]
        %v1403 = vld [vmem:[#allocation2 + $0x23] sm:$0xff]
        %v1404 = vld [vmem:[#allocation2 + $0x33] sm:$0xff]
        %v1405 = vld [vmem:[#allocation2 + $0x3b] sm:$0xff]
        %v1406 = vld [vmem:[#allocation2 + $0x4b] sm:$0xff]
        %v1407 = vld [vmem:[#allocation2 + $0x53] sm:$0xff]
        %v1408 = vld [vmem:[#allocation2 + $0x63] sm:$0xff]
        %v1409 = vld [vmem:[#allocation2 + $0x6b] sm:$0xff]
        %v1410 = vld [vmem:[#allocation2 + $0x7b] sm:$0xff]
        %v1411 = vld [vmem:[#allocation2 + $0x83] sm:$0xff]
        %v1412 = vld [vmem:[#allocation2 + $0x93] sm:$0xff]
        %v1413 = vld [vmem:[#allocation2 + $0x9b] sm:$0xff]
        %v1414 = vld [vmem:[#allocation2 + $0xab] sm:$0xff]
        %v1415 = vld [vmem:[#allocation2 + $0xb3] sm:$0xff]
        %v1416 = vld [vmem:[#allocation2 + $0xc3] sm:$0xff]
        %v1417 = vld [vmem:[#allocation2 + $0xcb] sm:$0xff]
        %v1418 = vld [vmem:[#allocation2 + $0xdb] sm:$0xff]
        %v1419 = vld [vmem:[#allocation2 + $0xe3] sm:$0xff]
        %v1420 = vld [vmem:[#allocation2 + $0xf3] sm:$0xff]
        %v1421 = vld [vmem:[#allocation2 + $0xfb] sm:$0xff]
        %v1422 = vld [vmem:[#allocation2 + $0x10b] sm:$0xff]
        %v1423 = vld [vmem:[#allocation2 + $0x113] sm:$0xff]
        %v1424 = vld [vmem:[#allocation2 + $0x123] sm:$0xff]
        %v1425 = vld [vmem:[#allocation2 + $0x12b] sm:$0xff]
        %v1426 = vld [vmem:[#allocation2 + $0x13b] sm:$0xff]
        %v1427 = vld [vmem:[#allocation2 + $0x143] sm:$0xff]
        %v1428 = vld [vmem:[#allocation2 + $0x153] sm:$0xff]
        %v1429 = vld [vmem:[#allocation2 + $0x15b] sm:$0xff]
        %v1430 = vld [vmem:[#allocation2 + $0x16b] sm:$0xff]
        %v1431 = vld [vmem:[#allocation2 + $0x173] sm:$0xff]
        %1464 = vrot.lane.b32.xlu0 %v1400, 64
        %v1465 = vpop.permute.xlu0 %1464
        %1466 = vrot.lane.b32.xlu0 %v1401, 64
        %v1467 = vpop.permute.xlu0 %1466
        %1468 = vrot.lane.b32.xlu0 %v1402, 64
        %v1469 = vpop.permute.xlu0 %1468
        %1470 = vrot.lane.b32.xlu0 %v1403, 64
        %v1471 = vpop.permute.xlu0 %1470
        %1472 = vrot.lane.b32.xlu0 %v1404, 64
        %v1473 = vpop.permute.xlu0 %1472
        %1474 = vrot.lane.b32.xlu0 %v1405, 64
        %v1475 = vpop.permute.xlu0 %1474
        %1476 = vrot.lane.b32.xlu0 %v1406, 64
        %v1477 = vpop.permute.xlu0 %1476
        %1478 = vrot.lane.b32.xlu0 %v1407, 64
        %v1479 = vpop.permute.xlu0 %1478
        %1480 = vrot.lane.b32.xlu0 %v1408, 64
        %v1481 = vpop.permute.xlu0 %1480
        %1482 = vrot.lane.b32.xlu0 %v1409, 64
        %v1483 = vpop.permute.xlu0 %1482
        %1484 = vrot.lane.b32.xlu0 %v1410, 64
        %v1485 = vpop.permute.xlu0 %1484
        %1486 = vrot.lane.b32.xlu0 %v1411, 64
        %v1487 = vpop.permute.xlu0 %1486
        %1488 = vrot.lane.b32.xlu0 %v1412, 64
        %v1489 = vpop.permute.xlu0 %1488
        %1490 = vrot.lane.b32.xlu0 %v1413, 64
        %v1491 = vpop.permute.xlu0 %1490
        %1492 = vrot.lane.b32.xlu0 %v1414, 64
        %v1493 = vpop.permute.xlu0 %1492
        %1494 = vrot.lane.b32.xlu0 %v1415, 64
        %v1495 = vpop.permute.xlu0 %1494
        %1496 = vrot.lane.b32.xlu0 %v1416, 64
        %v1497 = vpop.permute.xlu0 %1496
        %1498 = vrot.lane.b32.xlu0 %v1417, 64
        %v1499 = vpop.permute.xlu0 %1498
        %1500 = vrot.lane.b32.xlu0 %v1418, 64
        %v1501 = vpop.permute.xlu0 %1500
        %1502 = vrot.lane.b32.xlu0 %v1419, 64
        %v1503 = vpop.permute.xlu0 %1502
        %1504 = vrot.lane.b32.xlu0 %v1420, 64
        %v1505 = vpop.permute.xlu0 %1504
        %1506 = vrot.lane.b32.xlu0 %v1421, 64
        %v1507 = vpop.permute.xlu0 %1506
        %1508 = vrot.lane.b32.xlu0 %v1422, 64
        %v1509 = vpop.permute.xlu0 %1508
        %1510 = vrot.lane.b32.xlu0 %v1423, 64
        %v1511 = vpop.permute.xlu0 %1510
        %1512 = vrot.lane.b32.xlu0 %v1424, 64
        %v1513 = vpop.permute.xlu0 %1512
        %1514 = vrot.lane.b32.xlu0 %v1425, 64
        %v1515 = vpop.permute.xlu0 %1514
        %1516 = vrot.lane.b32.xlu0 %v1426, 64
        %v1517 = vpop.permute.xlu0 %1516
        %1518 = vrot.lane.b32.xlu0 %v1427, 64
        %v1519 = vpop.permute.xlu0 %1518
        %1520 = vrot.lane.b32.xlu0 %v1428, 64
        %v1521 = vpop.permute.xlu0 %1520
        %1522 = vrot.lane.b32.xlu0 %v1429, 64
        %v1523 = vpop.permute.xlu0 %1522
        %1524 = vrot.lane.b32.xlu0 %v1430, 64
        %v1525 = vpop.permute.xlu0 %1524
        %1526 = vrot.lane.b32.xlu0 %v1431, 64
        %v1527 = vpop.permute.xlu0 %1526
        %1560 = vst.msk [vmem:[#allocation3 + $0x8] sm:$0xff] %vm1303, %v1465
        %1561 = vst.msk [vmem:[#allocation3 + $0x70] sm:$0xff] %vm1303, %v1467
        %1562 = vst.msk [vmem:[#allocation3 + $0xd8] sm:$0xff] %vm1303, %v1469
        %1563 = vst.msk [vmem:[#allocation3 + $0x140] sm:$0xff] %vm1303, %v1471
        %1564 = vst.msk [vmem:[#allocation3 + $0x1a8] sm:$0xff] %vm1303, %v1473
        %1565 = vst.msk [vmem:[#allocation3 + $0x210] sm:$0xff] %vm1303, %v1475
        %1566 = vst.msk [vmem:[#allocation3 + $0x278] sm:$0xff] %vm1303, %v1477
        %1567 = vst.msk [vmem:[#allocation3 + $0x2e0] sm:$0xff] %vm1303, %v1479
        %1568 = vst.msk [vmem:[#allocation3 + $0x348] sm:$0xff] %vm1303, %v1481
        %1569 = vst.msk [vmem:[#allocation3 + $0x3b0] sm:$0xff] %vm1303, %v1483
        %1570 = vst.msk [vmem:[#allocation3 + $0x418] sm:$0xff] %vm1303, %v1485
        %1571 = vst.msk [vmem:[#allocation3 + $0x480] sm:$0xff] %vm1303, %v1487
        %1572 = vst.msk [vmem:[#allocation3 + $0x4e8] sm:$0xff] %vm1303, %v1489
        %1573 = vst.msk [vmem:[#allocation3 + $0x550] sm:$0xff] %vm1303, %v1491
        %1574 = vst.msk [vmem:[#allocation3 + $0x5b8] sm:$0xff] %vm1303, %v1493
        %1575 = vst.msk [vmem:[#allocation3 + $0x620] sm:$0xff] %vm1303, %v1495
        %1576 = vst.msk [vmem:[#allocation3 + $0x688] sm:$0xff] %vm1303, %v1497
        %1577 = vst.msk [vmem:[#allocation3 + $0x6f0] sm:$0xff] %vm1303, %v1499
        %1578 = vst.msk [vmem:[#allocation3 + $0x758] sm:$0xff] %vm1303, %v1501
        %1579 = vst.msk [vmem:[#allocation3 + $0x7c0] sm:$0xff] %vm1303, %v1503
        %1580 = vst.msk [vmem:[#allocation3 + $0x828] sm:$0xff] %vm1303, %v1505
        %1581 = vst.msk [vmem:[#allocation3 + $0x890] sm:$0xff] %vm1303, %v1507
        %1582 = vst.msk [vmem:[#allocation3 + $0x8f8] sm:$0xff] %vm1303, %v1509
        %1583 = vst.msk [vmem:[#allocation3 + $0x960] sm:$0xff] %vm1303, %v1511
        %1584 = vst.msk [vmem:[#allocation3 + $0x9c8] sm:$0xff] %vm1303, %v1513
        %1585 = vst.msk [vmem:[#allocation3 + $0xa30] sm:$0xff] %vm1303, %v1515
        %1586 = vst.msk [vmem:[#allocation3 + $0xa98] sm:$0xff] %vm1303, %v1517
        %1587 = vst.msk [vmem:[#allocation3 + $0xb00] sm:$0xff] %vm1303, %v1519
        %1588 = vst.msk [vmem:[#allocation3 + $0xb68] sm:$0xff] %vm1303, %v1521
        %1589 = vst.msk [vmem:[#allocation3 + $0xbd0] sm:$0xff] %vm1303, %v1523
        %1590 = vst.msk [vmem:[#allocation3 + $0xc38] sm:$0xff] %vm1303, %v1525
        %1591 = vst.msk [vmem:[#allocation3 + $0xca0] sm:$0xff] %vm1303, %v1527
        %v1592 = vld [vmem:[#allocation2 + $0x4] sm:$0xff]
        %v1593 = vld [vmem:[#allocation2 + $0xc] sm:$0xff]
        %v1594 = vld [vmem:[#allocation2 + $0x1c] sm:$0xff]
        %v1595 = vld [vmem:[#allocation2 + $0x24] sm:$0xff]
        %v1596 = vld [vmem:[#allocation2 + $0x34] sm:$0xff]
        %v1597 = vld [vmem:[#allocation2 + $0x3c] sm:$0xff]
        %v1598 = vld [vmem:[#allocation2 + $0x4c] sm:$0xff]
        %v1599 = vld [vmem:[#allocation2 + $0x54] sm:$0xff]
        %v1600 = vld [vmem:[#allocation2 + $0x64] sm:$0xff]
        %v1601 = vld [vmem:[#allocation2 + $0x6c] sm:$0xff]
        %v1602 = vld [vmem:[#allocation2 + $0x7c] sm:$0xff]
        %v1603 = vld [vmem:[#allocation2 + $0x84] sm:$0xff]
        %v1604 = vld [vmem:[#allocation2 + $0x94] sm:$0xff]
        %v1605 = vld [vmem:[#allocation2 + $0x9c] sm:$0xff]
        %v1606 = vld [vmem:[#allocation2 + $0xac] sm:$0xff]
        %v1607 = vld [vmem:[#allocation2 + $0xb4] sm:$0xff]
        %v1608 = vld [vmem:[#allocation2 + $0xc4] sm:$0xff]
        %v1609 = vld [vmem:[#allocation2 + $0xcc] sm:$0xff]
        %v1610 = vld [vmem:[#allocation2 + $0xdc] sm:$0xff]
        %v1611 = vld [vmem:[#allocation2 + $0xe4] sm:$0xff]
        %v1612 = vld [vmem:[#allocation2 + $0xf4] sm:$0xff]
        %v1613 = vld [vmem:[#allocation2 + $0xfc] sm:$0xff]
        %v1614 = vld [vmem:[#allocation2 + $0x10c] sm:$0xff]
        %v1615 = vld [vmem:[#allocation2 + $0x114] sm:$0xff]
        %v1616 = vld [vmem:[#allocation2 + $0x124] sm:$0xff]
        %v1617 = vld [vmem:[#allocation2 + $0x12c] sm:$0xff]
        %v1618 = vld [vmem:[#allocation2 + $0x13c] sm:$0xff]
        %v1619 = vld [vmem:[#allocation2 + $0x144] sm:$0xff]
        %v1620 = vld [vmem:[#allocation2 + $0x154] sm:$0xff]
        %v1621 = vld [vmem:[#allocation2 + $0x15c] sm:$0xff]
        %v1622 = vld [vmem:[#allocation2 + $0x16c] sm:$0xff]
        %v1623 = vld [vmem:[#allocation2 + $0x174] sm:$0xff]
        %1624 = vst.msk [vmem:[#allocation3 + $0x10] sm:$0xff] %vm998, %v1592
        %1625 = vst.msk [vmem:[#allocation3 + $0x78] sm:$0xff] %vm998, %v1593
        %1626 = vst.msk [vmem:[#allocation3 + $0xe0] sm:$0xff] %vm998, %v1594
        %1627 = vst.msk [vmem:[#allocation3 + $0x148] sm:$0xff] %vm998, %v1595
        %1628 = vst.msk [vmem:[#allocation3 + $0x1b0] sm:$0xff] %vm998, %v1596
        %1629 = vst.msk [vmem:[#allocation3 + $0x218] sm:$0xff] %vm998, %v1597
        %1630 = vst.msk [vmem:[#allocation3 + $0x280] sm:$0xff] %vm998, %v1598
        %1631 = vst.msk [vmem:[#allocation3 + $0x2e8] sm:$0xff] %vm998, %v1599
        %1632 = vst.msk [vmem:[#allocation3 + $0x350] sm:$0xff] %vm998, %v1600
        %1633 = vst.msk [vmem:[#allocation3 + $0x3b8] sm:$0xff] %vm998, %v1601
        %1634 = vst.msk [vmem:[#allocation3 + $0x420] sm:$0xff] %vm998, %v1602
        %1635 = vst.msk [vmem:[#allocation3 + $0x488] sm:$0xff] %vm998, %v1603
        %1636 = vst.msk [vmem:[#allocation3 + $0x4f0] sm:$0xff] %vm998, %v1604
        %1637 = vst.msk [vmem:[#allocation3 + $0x558] sm:$0xff] %vm998, %v1605
        %1638 = vst.msk [vmem:[#allocation3 + $0x5c0] sm:$0xff] %vm998, %v1606
        %1639 = vst.msk [vmem:[#allocation3 + $0x628] sm:$0xff] %vm998, %v1607
        %1640 = vst.msk [vmem:[#allocation3 + $0x690] sm:$0xff] %vm998, %v1608
        %1641 = vst.msk [vmem:[#allocation3 + $0x6f8] sm:$0xff] %vm998, %v1609
        %1642 = vst.msk [vmem:[#allocation3 + $0x760] sm:$0xff] %vm998, %v1610
        %1643 = vst.msk [vmem:[#allocation3 + $0x7c8] sm:$0xff] %vm998, %v1611
        %1644 = vst.msk [vmem:[#allocation3 + $0x830] sm:$0xff] %vm998, %v1612
        %1645 = vst.msk [vmem:[#allocation3 + $0x898] sm:$0xff] %vm998, %v1613
        %1646 = vst.msk [vmem:[#allocation3 + $0x900] sm:$0xff] %vm998, %v1614
        %1647 = vst.msk [vmem:[#allocation3 + $0x968] sm:$0xff] %vm998, %v1615
        %1648 = vst.msk [vmem:[#allocation3 + $0x9d0] sm:$0xff] %vm998, %v1616
        %1649 = vst.msk [vmem:[#allocation3 + $0xa38] sm:$0xff] %vm998, %v1617
        %1650 = vst.msk [vmem:[#allocation3 + $0xaa0] sm:$0xff] %vm998, %v1618
        %1651 = vst.msk [vmem:[#allocation3 + $0xb08] sm:$0xff] %vm998, %v1619
        %1652 = vst.msk [vmem:[#allocation3 + $0xb70] sm:$0xff] %vm998, %v1620
        %1653 = vst.msk [vmem:[#allocation3 + $0xbd8] sm:$0xff] %vm998, %v1621
        %1654 = vst.msk [vmem:[#allocation3 + $0xc40] sm:$0xff] %vm998, %v1622
        %1655 = vst.msk [vmem:[#allocation3 + $0xca8] sm:$0xff] %vm998, %v1623
        %s1656 = scalar_lea.vmem [#allocation2], 24
        %v1657 = vld [vmem:[%s1656] sm:$0xff]
        %v1658 = vld [vmem:[%s1656 + $0x8] sm:$0xff]
        %v1659 = vld [vmem:[%s1656 + $0x18] sm:$0xff]
        %v1660 = vld [vmem:[%s1656 + $0x20] sm:$0xff]
        %v1661 = vld [vmem:[%s1656 + $0x30] sm:$0xff]
        %v1662 = vld [vmem:[%s1656 + $0x38] sm:$0xff]
        %v1663 = vld [vmem:[%s1656 + $0x48] sm:$0xff]
        %v1664 = vld [vmem:[%s1656 + $0x50] sm:$0xff]
        %v1665 = vld [vmem:[%s1656 + $0x60] sm:$0xff]
        %v1666 = vld [vmem:[%s1656 + $0x68] sm:$0xff]
        %v1667 = vld [vmem:[%s1656 + $0x78] sm:$0xff]
        %v1668 = vld [vmem:[%s1656 + $0x80] sm:$0xff]
        %v1669 = vld [vmem:[%s1656 + $0x90] sm:$0xff]
        %v1670 = vld [vmem:[%s1656 + $0x98] sm:$0xff]
        %v1671 = vld [vmem:[%s1656 + $0xa8] sm:$0xff]
        %v1672 = vld [vmem:[%s1656 + $0xb0] sm:$0xff]
        %v1673 = vld [vmem:[%s1656 + $0xc0] sm:$0xff]
        %v1674 = vld [vmem:[%s1656 + $0xc8] sm:$0xff]
        %v1675 = vld [vmem:[%s1656 + $0xd8] sm:$0xff]
        %v1676 = vld [vmem:[%s1656 + $0xe0] sm:$0xff]
        %v1677 = vld [vmem:[%s1656 + $0xf0] sm:$0xff]
        %v1678 = vld [vmem:[%s1656 + $0xf8] sm:$0xff]
        %v1679 = vld [vmem:[%s1656 + $0x108] sm:$0xff]
        %v1680 = vld [vmem:[%s1656 + $0x110] sm:$0xff]
        %v1681 = vld [vmem:[%s1656 + $0x120] sm:$0xff]
        %v1682 = vld [vmem:[%s1656 + $0x128] sm:$0xff]
        %v1683 = vld [vmem:[%s1656 + $0x138] sm:$0xff]
        %v1684 = vld [vmem:[%s1656 + $0x140] sm:$0xff]
        %v1685 = vld [vmem:[%s1656 + $0x150] sm:$0xff]
        %v1686 = vld [vmem:[%s1656 + $0x158] sm:$0xff]
        %v1687 = vld [vmem:[%s1656 + $0x168] sm:$0xff]
        %v1688 = vld [vmem:[%s1656 + $0x170] sm:$0xff]
        %1721 = vrot.lane.b32.xlu0 %v1657, 64
        %v1722 = vpop.permute.xlu0 %1721
        %1723 = vrot.lane.b32.xlu0 %v1658, 64
        %v1724 = vpop.permute.xlu0 %1723
        %1725 = vrot.lane.b32.xlu0 %v1659, 64
        %v1726 = vpop.permute.xlu0 %1725
        %1727 = vrot.lane.b32.xlu0 %v1660, 64
        %v1728 = vpop.permute.xlu0 %1727
        %1729 = vrot.lane.b32.xlu0 %v1661, 64
        %v1730 = vpop.permute.xlu0 %1729
        %1731 = vrot.lane.b32.xlu0 %v1662, 64
        %v1732 = vpop.permute.xlu0 %1731
        %1733 = vrot.lane.b32.xlu0 %v1663, 64
        %v1734 = vpop.permute.xlu0 %1733
        %1735 = vrot.lane.b32.xlu0 %v1664, 64
        %v1736 = vpop.permute.xlu0 %1735
        %1737 = vrot.lane.b32.xlu0 %v1665, 64
        %v1738 = vpop.permute.xlu0 %1737
        %1739 = vrot.lane.b32.xlu0 %v1666, 64
        %v1740 = vpop.permute.xlu0 %1739
        %1741 = vrot.lane.b32.xlu0 %v1667, 64
        %v1742 = vpop.permute.xlu0 %1741
        %1743 = vrot.lane.b32.xlu0 %v1668, 64
        %v1744 = vpop.permute.xlu0 %1743
        %1745 = vrot.lane.b32.xlu0 %v1669, 64
        %v1746 = vpop.permute.xlu0 %1745
        %1747 = vrot.lane.b32.xlu0 %v1670, 64
        %v1748 = vpop.permute.xlu0 %1747
        %1749 = vrot.lane.b32.xlu0 %v1671, 64
        %v1750 = vpop.permute.xlu0 %1749
        %1751 = vrot.lane.b32.xlu0 %v1672, 64
        %v1752 = vpop.permute.xlu0 %1751
        %1753 = vrot.lane.b32.xlu0 %v1673, 64
        %v1754 = vpop.permute.xlu0 %1753
        %1755 = vrot.lane.b32.xlu0 %v1674, 64
        %v1756 = vpop.permute.xlu0 %1755
        %1757 = vrot.lane.b32.xlu0 %v1675, 64
        %v1758 = vpop.permute.xlu0 %1757
        %1759 = vrot.lane.b32.xlu0 %v1676, 64
        %v1760 = vpop.permute.xlu0 %1759
        %1761 = vrot.lane.b32.xlu0 %v1677, 64
        %v1762 = vpop.permute.xlu0 %1761
        %1763 = vrot.lane.b32.xlu0 %v1678, 64
        %v1764 = vpop.permute.xlu0 %1763
        %1765 = vrot.lane.b32.xlu0 %v1679, 64
        %v1766 = vpop.permute.xlu0 %1765
        %1767 = vrot.lane.b32.xlu0 %v1680, 64
        %v1768 = vpop.permute.xlu0 %1767
        %1769 = vrot.lane.b32.xlu0 %v1681, 64
        %v1770 = vpop.permute.xlu0 %1769
        %1771 = vrot.lane.b32.xlu0 %v1682, 64
        %v1772 = vpop.permute.xlu0 %1771
        %1773 = vrot.lane.b32.xlu0 %v1683, 64
        %v1774 = vpop.permute.xlu0 %1773
        %1775 = vrot.lane.b32.xlu0 %v1684, 64
        %v1776 = vpop.permute.xlu0 %1775
        %1777 = vrot.lane.b32.xlu0 %v1685, 64
        %v1778 = vpop.permute.xlu0 %1777
        %1779 = vrot.lane.b32.xlu0 %v1686, 64
        %v1780 = vpop.permute.xlu0 %1779
        %1781 = vrot.lane.b32.xlu0 %v1687, 64
        %v1782 = vpop.permute.xlu0 %1781
        %1783 = vrot.lane.b32.xlu0 %v1688, 64
        %v1784 = vpop.permute.xlu0 %1783
        %1817 = vst.msk [vmem:[#allocation3 + $0x10] sm:$0xff] %vm1303, %v1722
        %1818 = vst.msk [vmem:[#allocation3 + $0x78] sm:$0xff] %vm1303, %v1724
        %1819 = vst.msk [vmem:[#allocation3 + $0xe0] sm:$0xff] %vm1303, %v1726
        %1820 = vst.msk [vmem:[#allocation3 + $0x148] sm:$0xff] %vm1303, %v1728
        %1821 = vst.msk [vmem:[#allocation3 + $0x1b0] sm:$0xff] %vm1303, %v1730
        %1822 = vst.msk [vmem:[#allocation3 + $0x218] sm:$0xff] %vm1303, %v1732
        %1823 = vst.msk [vmem:[#allocation3 + $0x280] sm:$0xff] %vm1303, %v1734
        %1824 = vst.msk [vmem:[#allocation3 + $0x2e8] sm:$0xff] %vm1303, %v1736
        %1825 = vst.msk [vmem:[#allocation3 + $0x350] sm:$0xff] %vm1303, %v1738
        %1826 = vst.msk [vmem:[#allocation3 + $0x3b8] sm:$0xff] %vm1303, %v1740
        %1827 = vst.msk [vmem:[#allocation3 + $0x420] sm:$0xff] %vm1303, %v1742
        %1828 = vst.msk [vmem:[#allocation3 + $0x488] sm:$0xff] %vm1303, %v1744
        %1829 = vst.msk [vmem:[#allocation3 + $0x4f0] sm:$0xff] %vm1303, %v1746
        %1830 = vst.msk [vmem:[#allocation3 + $0x558] sm:$0xff] %vm1303, %v1748
        %1831 = vst.msk [vmem:[#allocation3 + $0x5c0] sm:$0xff] %vm1303, %v1750
        %1832 = vst.msk [vmem:[#allocation3 + $0x628] sm:$0xff] %vm1303, %v1752
        %1833 = vst.msk [vmem:[#allocation3 + $0x690] sm:$0xff] %vm1303, %v1754
        %1834 = vst.msk [vmem:[#allocation3 + $0x6f8] sm:$0xff] %vm1303, %v1756
        %1835 = vst.msk [vmem:[#allocation3 + $0x760] sm:$0xff] %vm1303, %v1758
        %1836 = vst.msk [vmem:[#allocation3 + $0x7c8] sm:$0xff] %vm1303, %v1760
        %1837 = vst.msk [vmem:[#allocation3 + $0x830] sm:$0xff] %vm1303, %v1762
        %1838 = vst.msk [vmem:[#allocation3 + $0x898] sm:$0xff] %vm1303, %v1764
        %1839 = vst.msk [vmem:[#allocation3 + $0x900] sm:$0xff] %vm1303, %v1766
        %1840 = vst.msk [vmem:[#allocation3 + $0x968] sm:$0xff] %vm1303, %v1768
        %1841 = vst.msk [vmem:[#allocation3 + $0x9d0] sm:$0xff] %vm1303, %v1770
        %1842 = vst.msk [vmem:[#allocation3 + $0xa38] sm:$0xff] %vm1303, %v1772
        %1843 = vst.msk [vmem:[#allocation3 + $0xaa0] sm:$0xff] %vm1303, %v1774
        %1844 = vst.msk [vmem:[#allocation3 + $0xb08] sm:$0xff] %vm1303, %v1776
        %1845 = vst.msk [vmem:[#allocation3 + $0xb70] sm:$0xff] %vm1303, %v1778
        %1846 = vst.msk [vmem:[#allocation3 + $0xbd8] sm:$0xff] %vm1303, %v1780
        %1847 = vst.msk [vmem:[#allocation3 + $0xc40] sm:$0xff] %vm1303, %v1782
        %1848 = vst.msk [vmem:[#allocation3 + $0xca8] sm:$0xff] %vm1303, %v1784
        %v1849 = vld [vmem:[%s1656 + $0x1] sm:$0xff]
        %v1850 = vld [vmem:[%s1656 + $0x9] sm:$0xff]
        %v1851 = vld [vmem:[%s1656 + $0x19] sm:$0xff]
        %v1852 = vld [vmem:[%s1656 + $0x21] sm:$0xff]
        %v1853 = vld [vmem:[%s1656 + $0x31] sm:$0xff]
        %v1854 = vld [vmem:[%s1656 + $0x39] sm:$0xff]
        %v1855 = vld [vmem:[%s1656 + $0x49] sm:$0xff]
        %v1856 = vld [vmem:[%s1656 + $0x51] sm:$0xff]
        %v1857 = vld [vmem:[%s1656 + $0x61] sm:$0xff]
        %v1858 = vld [vmem:[%s1656 + $0x69] sm:$0xff]
        %v1859 = vld [vmem:[%s1656 + $0x79] sm:$0xff]
        %v1860 = vld [vmem:[%s1656 + $0x81] sm:$0xff]
        %v1861 = vld [vmem:[%s1656 + $0x91] sm:$0xff]
        %v1862 = vld [vmem:[%s1656 + $0x99] sm:$0xff]
        %v1863 = vld [vmem:[%s1656 + $0xa9] sm:$0xff]
        %v1864 = vld [vmem:[%s1656 + $0xb1] sm:$0xff]
        %v1865 = vld [vmem:[%s1656 + $0xc1] sm:$0xff]
        %v1866 = vld [vmem:[%s1656 + $0xc9] sm:$0xff]
        %v1867 = vld [vmem:[%s1656 + $0xd9] sm:$0xff]
        %v1868 = vld [vmem:[%s1656 + $0xe1] sm:$0xff]
        %v1869 = vld [vmem:[%s1656 + $0xf1] sm:$0xff]
        %v1870 = vld [vmem:[%s1656 + $0xf9] sm:$0xff]
        %v1871 = vld [vmem:[%s1656 + $0x109] sm:$0xff]
        %v1872 = vld [vmem:[%s1656 + $0x111] sm:$0xff]
        %v1873 = vld [vmem:[%s1656 + $0x121] sm:$0xff]
        %v1874 = vld [vmem:[%s1656 + $0x129] sm:$0xff]
        %v1875 = vld [vmem:[%s1656 + $0x139] sm:$0xff]
        %v1876 = vld [vmem:[%s1656 + $0x141] sm:$0xff]
        %v1877 = vld [vmem:[%s1656 + $0x151] sm:$0xff]
        %v1878 = vld [vmem:[%s1656 + $0x159] sm:$0xff]
        %v1879 = vld [vmem:[%s1656 + $0x169] sm:$0xff]
        %v1880 = vld [vmem:[%s1656 + $0x171] sm:$0xff]
        %1881 = vst.msk [vmem:[#allocation3 + $0x18] sm:$0xff] %vm998, %v1849
        %1882 = vst.msk [vmem:[#allocation3 + $0x80] sm:$0xff] %vm998, %v1850
        %1883 = vst.msk [vmem:[#allocation3 + $0xe8] sm:$0xff] %vm998, %v1851
        %1884 = vst.msk [vmem:[#allocation3 + $0x150] sm:$0xff] %vm998, %v1852
        %1885 = vst.msk [vmem:[#allocation3 + $0x1b8] sm:$0xff] %vm998, %v1853
        %1886 = vst.msk [vmem:[#allocation3 + $0x220] sm:$0xff] %vm998, %v1854
        %1887 = vst.msk [vmem:[#allocation3 + $0x288] sm:$0xff] %vm998, %v1855
        %1888 = vst.msk [vmem:[#allocation3 + $0x2f0] sm:$0xff] %vm998, %v1856
        %1889 = vst.msk [vmem:[#allocation3 + $0x358] sm:$0xff] %vm998, %v1857
        %1890 = vst.msk [vmem:[#allocation3 + $0x3c0] sm:$0xff] %vm998, %v1858
        %1891 = vst.msk [vmem:[#allocation3 + $0x428] sm:$0xff] %vm998, %v1859
        %1892 = vst.msk [vmem:[#allocation3 + $0x490] sm:$0xff] %vm998, %v1860
        %1893 = vst.msk [vmem:[#allocation3 + $0x4f8] sm:$0xff] %vm998, %v1861
        %1894 = vst.msk [vmem:[#allocation3 + $0x560] sm:$0xff] %vm998, %v1862
        %1895 = vst.msk [vmem:[#allocation3 + $0x5c8] sm:$0xff] %vm998, %v1863
        %1896 = vst.msk [vmem:[#allocation3 + $0x630] sm:$0xff] %vm998, %v1864
        %1897 = vst.msk [vmem:[#allocation3 + $0x698] sm:$0xff] %vm998, %v1865
        %1898 = vst.msk [vmem:[#allocation3 + $0x700] sm:$0xff] %vm998, %v1866
        %1899 = vst.msk [vmem:[#allocation3 + $0x768] sm:$0xff] %vm998, %v1867
        %1900 = vst.msk [vmem:[#allocation3 + $0x7d0] sm:$0xff] %vm998, %v1868
        %1901 = vst.msk [vmem:[#allocation3 + $0x838] sm:$0xff] %vm998, %v1869
        %1902 = vst.msk [vmem:[#allocation3 + $0x8a0] sm:$0xff] %vm998, %v1870
        %1903 = vst.msk [vmem:[#allocation3 + $0x908] sm:$0xff] %vm998, %v1871
        %1904 = vst.msk [vmem:[#allocation3 + $0x970] sm:$0xff] %vm998, %v1872
        %1905 = vst.msk [vmem:[#allocation3 + $0x9d8] sm:$0xff] %vm998, %v1873
        %1906 = vst.msk [vmem:[#allocation3 + $0xa40] sm:$0xff] %vm998, %v1874
        %1907 = vst.msk [vmem:[#allocation3 + $0xaa8] sm:$0xff] %vm998, %v1875
        %1908 = vst.msk [vmem:[#allocation3 + $0xb10] sm:$0xff] %vm998, %v1876
        %1909 = vst.msk [vmem:[#allocation3 + $0xb78] sm:$0xff] %vm998, %v1877
        %1910 = vst.msk [vmem:[#allocation3 + $0xbe0] sm:$0xff] %vm998, %v1878
        %1911 = vst.msk [vmem:[#allocation3 + $0xc48] sm:$0xff] %vm998, %v1879
        %1912 = vst.msk [vmem:[#allocation3 + $0xcb0] sm:$0xff] %vm998, %v1880
        %v1913 = vld [vmem:[%s1656 + $0x2] sm:$0xff]
        %v1914 = vld [vmem:[%s1656 + $0xa] sm:$0xff]
        %v1915 = vld [vmem:[%s1656 + $0x1a] sm:$0xff]
        %v1916 = vld [vmem:[%s1656 + $0x22] sm:$0xff]
        %v1917 = vld [vmem:[%s1656 + $0x32] sm:$0xff]
        %v1918 = vld [vmem:[%s1656 + $0x3a] sm:$0xff]
        %v1919 = vld [vmem:[%s1656 + $0x4a] sm:$0xff]
        %v1920 = vld [vmem:[%s1656 + $0x52] sm:$0xff]
        %v1921 = vld [vmem:[%s1656 + $0x62] sm:$0xff]
        %v1922 = vld [vmem:[%s1656 + $0x6a] sm:$0xff]
        %v1923 = vld [vmem:[%s1656 + $0x7a] sm:$0xff]
        %v1924 = vld [vmem:[%s1656 + $0x82] sm:$0xff]
        %v1925 = vld [vmem:[%s1656 + $0x92] sm:$0xff]
        %v1926 = vld [vmem:[%s1656 + $0x9a] sm:$0xff]
        %v1927 = vld [vmem:[%s1656 + $0xaa] sm:$0xff]
        %v1928 = vld [vmem:[%s1656 + $0xb2] sm:$0xff]
        %v1929 = vld [vmem:[%s1656 + $0xc2] sm:$0xff]
        %v1930 = vld [vmem:[%s1656 + $0xca] sm:$0xff]
        %v1931 = vld [vmem:[%s1656 + $0xda] sm:$0xff]
        %v1932 = vld [vmem:[%s1656 + $0xe2] sm:$0xff]
        %v1933 = vld [vmem:[%s1656 + $0xf2] sm:$0xff]
        %v1934 = vld [vmem:[%s1656 + $0xfa] sm:$0xff]
        %v1935 = vld [vmem:[%s1656 + $0x10a] sm:$0xff]
        %v1936 = vld [vmem:[%s1656 + $0x112] sm:$0xff]
        %v1937 = vld [vmem:[%s1656 + $0x122] sm:$0xff]
        %v1938 = vld [vmem:[%s1656 + $0x12a] sm:$0xff]
        %v1939 = vld [vmem:[%s1656 + $0x13a] sm:$0xff]
        %v1940 = vld [vmem:[%s1656 + $0x142] sm:$0xff]
        %v1941 = vld [vmem:[%s1656 + $0x152] sm:$0xff]
        %v1942 = vld [vmem:[%s1656 + $0x15a] sm:$0xff]
        %v1943 = vld [vmem:[%s1656 + $0x16a] sm:$0xff]
        %v1944 = vld [vmem:[%s1656 + $0x172] sm:$0xff]
        %1977 = vrot.lane.b32.xlu0 %v1913, 64
        %v1978 = vpop.permute.xlu0 %1977
        %1979 = vrot.lane.b32.xlu0 %v1914, 64
        %v1980 = vpop.permute.xlu0 %1979
        %1981 = vrot.lane.b32.xlu0 %v1915, 64
        %v1982 = vpop.permute.xlu0 %1981
        %1983 = vrot.lane.b32.xlu0 %v1916, 64
        %v1984 = vpop.permute.xlu0 %1983
        %1985 = vrot.lane.b32.xlu0 %v1917, 64
        %v1986 = vpop.permute.xlu0 %1985
        %1987 = vrot.lane.b32.xlu0 %v1918, 64
        %v1988 = vpop.permute.xlu0 %1987
        %1989 = vrot.lane.b32.xlu0 %v1919, 64
        %v1990 = vpop.permute.xlu0 %1989
        %1991 = vrot.lane.b32.xlu0 %v1920, 64
        %v1992 = vpop.permute.xlu0 %1991
        %1993 = vrot.lane.b32.xlu0 %v1921, 64
        %v1994 = vpop.permute.xlu0 %1993
        %1995 = vrot.lane.b32.xlu0 %v1922, 64
        %v1996 = vpop.permute.xlu0 %1995
        %1997 = vrot.lane.b32.xlu0 %v1923, 64
        %v1998 = vpop.permute.xlu0 %1997
        %1999 = vrot.lane.b32.xlu0 %v1924, 64
        %v2000 = vpop.permute.xlu0 %1999
        %2001 = vrot.lane.b32.xlu0 %v1925, 64
        %v2002 = vpop.permute.xlu0 %2001
        %2003 = vrot.lane.b32.xlu0 %v1926, 64
        %v2004 = vpop.permute.xlu0 %2003
        %2005 = vrot.lane.b32.xlu0 %v1927, 64
        %v2006 = vpop.permute.xlu0 %2005
        %2007 = vrot.lane.b32.xlu0 %v1928, 64
        %v2008 = vpop.permute.xlu0 %2007
        %2009 = vrot.lane.b32.xlu0 %v1929, 64
        %v2010 = vpop.permute.xlu0 %2009
        %2011 = vrot.lane.b32.xlu0 %v1930, 64
        %v2012 = vpop.permute.xlu0 %2011
        %2013 = vrot.lane.b32.xlu0 %v1931, 64
        %v2014 = vpop.permute.xlu0 %2013
        %2015 = vrot.lane.b32.xlu0 %v1932, 64
        %v2016 = vpop.permute.xlu0 %2015
        %2017 = vrot.lane.b32.xlu0 %v1933, 64
        %v2018 = vpop.permute.xlu0 %2017
        %2019 = vrot.lane.b32.xlu0 %v1934, 64
        %v2020 = vpop.permute.xlu0 %2019
        %2021 = vrot.lane.b32.xlu0 %v1935, 64
        %v2022 = vpop.permute.xlu0 %2021
        %2023 = vrot.lane.b32.xlu0 %v1936, 64
        %v2024 = vpop.permute.xlu0 %2023
        %2025 = vrot.lane.b32.xlu0 %v1937, 64
        %v2026 = vpop.permute.xlu0 %2025
        %2027 = vrot.lane.b32.xlu0 %v1938, 64
        %v2028 = vpop.permute.xlu0 %2027
        %2029 = vrot.lane.b32.xlu0 %v1939, 64
        %v2030 = vpop.permute.xlu0 %2029
        %2031 = vrot.lane.b32.xlu0 %v1940, 64
        %v2032 = vpop.permute.xlu0 %2031
        %2033 = vrot.lane.b32.xlu0 %v1941, 64
        %v2034 = vpop.permute.xlu0 %2033
        %2035 = vrot.lane.b32.xlu0 %v1942, 64
        %v2036 = vpop.permute.xlu0 %2035
        %2037 = vrot.lane.b32.xlu0 %v1943, 64
        %v2038 = vpop.permute.xlu0 %2037
        %2039 = vrot.lane.b32.xlu0 %v1944, 64
        %v2040 = vpop.permute.xlu0 %2039
        %2073 = vst.msk [vmem:[#allocation3 + $0x18] sm:$0xff] %vm1303, %v1978
        %2074 = vst.msk [vmem:[#allocation3 + $0x80] sm:$0xff] %vm1303, %v1980
        %2075 = vst.msk [vmem:[#allocation3 + $0xe8] sm:$0xff] %vm1303, %v1982
        %2076 = vst.msk [vmem:[#allocation3 + $0x150] sm:$0xff] %vm1303, %v1984
        %2077 = vst.msk [vmem:[#allocation3 + $0x1b8] sm:$0xff] %vm1303, %v1986
        %2078 = vst.msk [vmem:[#allocation3 + $0x220] sm:$0xff] %vm1303, %v1988
        %2079 = vst.msk [vmem:[#allocation3 + $0x288] sm:$0xff] %vm1303, %v1990
        %2080 = vst.msk [vmem:[#allocation3 + $0x2f0] sm:$0xff] %vm1303, %v1992
        %2081 = vst.msk [vmem:[#allocation3 + $0x358] sm:$0xff] %vm1303, %v1994
        %2082 = vst.msk [vmem:[#allocation3 + $0x3c0] sm:$0xff] %vm1303, %v1996
        %2083 = vst.msk [vmem:[#allocation3 + $0x428] sm:$0xff] %vm1303, %v1998
        %2084 = vst.msk [vmem:[#allocation3 + $0x490] sm:$0xff] %vm1303, %v2000
        %2085 = vst.msk [vmem:[#allocation3 + $0x4f8] sm:$0xff] %vm1303, %v2002
        %2086 = vst.msk [vmem:[#allocation3 + $0x560] sm:$0xff] %vm1303, %v2004
        %2087 = vst.msk [vmem:[#allocation3 + $0x5c8] sm:$0xff] %vm1303, %v2006
        %2088 = vst.msk [vmem:[#allocation3 + $0x630] sm:$0xff] %vm1303, %v2008
        %2089 = vst.msk [vmem:[#allocation3 + $0x698] sm:$0xff] %vm1303, %v2010
        %2090 = vst.msk [vmem:[#allocation3 + $0x700] sm:$0xff] %vm1303, %v2012
        %2091 = vst.msk [vmem:[#allocation3 + $0x768] sm:$0xff] %vm1303, %v2014
        %2092 = vst.msk [vmem:[#allocation3 + $0x7d0] sm:$0xff] %vm1303, %v2016
        %2093 = vst.msk [vmem:[#allocation3 + $0x838] sm:$0xff] %vm1303, %v2018
        %2094 = vst.msk [vmem:[#allocation3 + $0x8a0] sm:$0xff] %vm1303, %v2020
        %2095 = vst.msk [vmem:[#allocation3 + $0x908] sm:$0xff] %vm1303, %v2022
        %2096 = vst.msk [vmem:[#allocation3 + $0x970] sm:$0xff] %vm1303, %v2024
        %2097 = vst.msk [vmem:[#allocation3 + $0x9d8] sm:$0xff] %vm1303, %v2026
        %2098 = vst.msk [vmem:[#allocation3 + $0xa40] sm:$0xff] %vm1303, %v2028
        %2099 = vst.msk [vmem:[#allocation3 + $0xaa8] sm:$0xff] %vm1303, %v2030
        %2100 = vst.msk [vmem:[#allocation3 + $0xb10] sm:$0xff] %vm1303, %v2032
        %2101 = vst.msk [vmem:[#allocation3 + $0xb78] sm:$0xff] %vm1303, %v2034
        %2102 = vst.msk [vmem:[#allocation3 + $0xbe0] sm:$0xff] %vm1303, %v2036
        %2103 = vst.msk [vmem:[#allocation3 + $0xc48] sm:$0xff] %vm1303, %v2038
        %2104 = vst.msk [vmem:[#allocation3 + $0xcb0] sm:$0xff] %vm1303, %v2040
        %v2105 = vld [vmem:[%s1656 + $0x3] sm:$0xff]
        %v2106 = vld [vmem:[%s1656 + $0xb] sm:$0xff]
        %v2107 = vld [vmem:[%s1656 + $0x1b] sm:$0xff]
        %v2108 = vld [vmem:[%s1656 + $0x23] sm:$0xff]
        %v2109 = vld [vmem:[%s1656 + $0x33] sm:$0xff]
        %v2110 = vld [vmem:[%s1656 + $0x3b] sm:$0xff]
        %v2111 = vld [vmem:[%s1656 + $0x4b] sm:$0xff]
        %v2112 = vld [vmem:[%s1656 + $0x53] sm:$0xff]
        %v2113 = vld [vmem:[%s1656 + $0x63] sm:$0xff]
        %v2114 = vld [vmem:[%s1656 + $0x6b] sm:$0xff]
        %v2115 = vld [vmem:[%s1656 + $0x7b] sm:$0xff]
        %v2116 = vld [vmem:[%s1656 + $0x83] sm:$0xff]
        %v2117 = vld [vmem:[%s1656 + $0x93] sm:$0xff]
        %v2118 = vld [vmem:[%s1656 + $0x9b] sm:$0xff]
        %v2119 = vld [vmem:[%s1656 + $0xab] sm:$0xff]
        %v2120 = vld [vmem:[%s1656 + $0xb3] sm:$0xff]
        %v2121 = vld [vmem:[%s1656 + $0xc3] sm:$0xff]
        %v2122 = vld [vmem:[%s1656 + $0xcb] sm:$0xff]
        %v2123 = vld [vmem:[%s1656 + $0xdb] sm:$0xff]
        %v2124 = vld [vmem:[%s1656 + $0xe3] sm:$0xff]
        %v2125 = vld [vmem:[%s1656 + $0xf3] sm:$0xff]
        %v2126 = vld [vmem:[%s1656 + $0xfb] sm:$0xff]
        %v2127 = vld [vmem:[%s1656 + $0x10b] sm:$0xff]
        %v2128 = vld [vmem:[%s1656 + $0x113] sm:$0xff]
        %v2129 = vld [vmem:[%s1656 + $0x123] sm:$0xff]
        %v2130 = vld [vmem:[%s1656 + $0x12b] sm:$0xff]
        %v2131 = vld [vmem:[%s1656 + $0x13b] sm:$0xff]
        %v2132 = vld [vmem:[%s1656 + $0x143] sm:$0xff]
        %v2133 = vld [vmem:[%s1656 + $0x153] sm:$0xff]
        %v2134 = vld [vmem:[%s1656 + $0x15b] sm:$0xff]
        %v2135 = vld [vmem:[%s1656 + $0x16b] sm:$0xff]
        %v2136 = vld [vmem:[%s1656 + $0x173] sm:$0xff]
        %2137 = vst.msk [vmem:[#allocation3 + $0x20] sm:$0xff] %vm998, %v2105
        %2138 = vst.msk [vmem:[#allocation3 + $0x88] sm:$0xff] %vm998, %v2106
        %2139 = vst.msk [vmem:[#allocation3 + $0xf0] sm:$0xff] %vm998, %v2107
        %2140 = vst.msk [vmem:[#allocation3 + $0x158] sm:$0xff] %vm998, %v2108
        %2141 = vst.msk [vmem:[#allocation3 + $0x1c0] sm:$0xff] %vm998, %v2109
        %2142 = vst.msk [vmem:[#allocation3 + $0x228] sm:$0xff] %vm998, %v2110
        %2143 = vst.msk [vmem:[#allocation3 + $0x290] sm:$0xff] %vm998, %v2111
        %2144 = vst.msk [vmem:[#allocation3 + $0x2f8] sm:$0xff] %vm998, %v2112
        %2145 = vst.msk [vmem:[#allocation3 + $0x360] sm:$0xff] %vm998, %v2113
        %2146 = vst.msk [vmem:[#allocation3 + $0x3c8] sm:$0xff] %vm998, %v2114
        %2147 = vst.msk [vmem:[#allocation3 + $0x430] sm:$0xff] %vm998, %v2115
        %2148 = vst.msk [vmem:[#allocation3 + $0x498] sm:$0xff] %vm998, %v2116
        %2149 = vst.msk [vmem:[#allocation3 + $0x500] sm:$0xff] %vm998, %v2117
        %2150 = vst.msk [vmem:[#allocation3 + $0x568] sm:$0xff] %vm998, %v2118
        %2151 = vst.msk [vmem:[#allocation3 + $0x5d0] sm:$0xff] %vm998, %v2119
        %2152 = vst.msk [vmem:[#allocation3 + $0x638] sm:$0xff] %vm998, %v2120
        %2153 = vst.msk [vmem:[#allocation3 + $0x6a0] sm:$0xff] %vm998, %v2121
        %2154 = vst.msk [vmem:[#allocation3 + $0x708] sm:$0xff] %vm998, %v2122
        %2155 = vst.msk [vmem:[#allocation3 + $0x770] sm:$0xff] %vm998, %v2123
        %2156 = vst.msk [vmem:[#allocation3 + $0x7d8] sm:$0xff] %vm998, %v2124
        %2157 = vst.msk [vmem:[#allocation3 + $0x840] sm:$0xff] %vm998, %v2125
        %2158 = vst.msk [vmem:[#allocation3 + $0x8a8] sm:$0xff] %vm998, %v2126
        %2159 = vst.msk [vmem:[#allocation3 + $0x910] sm:$0xff] %vm998, %v2127
        %2160 = vst.msk [vmem:[#allocation3 + $0x978] sm:$0xff] %vm998, %v2128
        %2161 = vst.msk [vmem:[#allocation3 + $0x9e0] sm:$0xff] %vm998, %v2129
        %2162 = vst.msk [vmem:[#allocation3 + $0xa48] sm:$0xff] %vm998, %v2130
        %2163 = vst.msk [vmem:[#allocation3 + $0xab0] sm:$0xff] %vm998, %v2131
        %2164 = vst.msk [vmem:[#allocation3 + $0xb18] sm:$0xff] %vm998, %v2132
        %2165 = vst.msk [vmem:[#allocation3 + $0xb80] sm:$0xff] %vm998, %v2133
        %2166 = vst.msk [vmem:[#allocation3 + $0xbe8] sm:$0xff] %vm998, %v2134
        %2167 = vst.msk [vmem:[#allocation3 + $0xc50] sm:$0xff] %vm998, %v2135
        %2168 = vst.msk [vmem:[#allocation3 + $0xcb8] sm:$0xff] %vm998, %v2136
        %v2169 = vld [vmem:[%s1656 + $0x4] sm:$0xff]
        %v2170 = vld [vmem:[%s1656 + $0xc] sm:$0xff]
        %v2171 = vld [vmem:[%s1656 + $0x1c] sm:$0xff]
        %v2172 = vld [vmem:[%s1656 + $0x24] sm:$0xff]
        %v2173 = vld [vmem:[%s1656 + $0x34] sm:$0xff]
        %v2174 = vld [vmem:[%s1656 + $0x3c] sm:$0xff]
        %v2175 = vld [vmem:[%s1656 + $0x4c] sm:$0xff]
        %v2176 = vld [vmem:[%s1656 + $0x54] sm:$0xff]
        %v2177 = vld [vmem:[%s1656 + $0x64] sm:$0xff]
        %v2178 = vld [vmem:[%s1656 + $0x6c] sm:$0xff]
        %v2179 = vld [vmem:[%s1656 + $0x7c] sm:$0xff]
        %v2180 = vld [vmem:[%s1656 + $0x84] sm:$0xff]
        %v2181 = vld [vmem:[%s1656 + $0x94] sm:$0xff]
        %v2182 = vld [vmem:[%s1656 + $0x9c] sm:$0xff]
        %v2183 = vld [vmem:[%s1656 + $0xac] sm:$0xff]
        %v2184 = vld [vmem:[%s1656 + $0xb4] sm:$0xff]
        %v2185 = vld [vmem:[%s1656 + $0xc4] sm:$0xff]
        %v2186 = vld [vmem:[%s1656 + $0xcc] sm:$0xff]
        %v2187 = vld [vmem:[%s1656 + $0xdc] sm:$0xff]
        %v2188 = vld [vmem:[%s1656 + $0xe4] sm:$0xff]
        %v2189 = vld [vmem:[%s1656 + $0xf4] sm:$0xff]
        %v2190 = vld [vmem:[%s1656 + $0xfc] sm:$0xff]
        %v2191 = vld [vmem:[%s1656 + $0x10c] sm:$0xff]
        %v2192 = vld [vmem:[%s1656 + $0x114] sm:$0xff]
        %v2193 = vld [vmem:[%s1656 + $0x124] sm:$0xff]
        %v2194 = vld [vmem:[%s1656 + $0x12c] sm:$0xff]
        %v2195 = vld [vmem:[%s1656 + $0x13c] sm:$0xff]
        %v2196 = vld [vmem:[%s1656 + $0x144] sm:$0xff]
        %v2197 = vld [vmem:[%s1656 + $0x154] sm:$0xff]
        %v2198 = vld [vmem:[%s1656 + $0x15c] sm:$0xff]
        %v2199 = vld [vmem:[%s1656 + $0x16c] sm:$0xff]
        %v2200 = vld [vmem:[%s1656 + $0x174] sm:$0xff]
        %2233 = vrot.lane.b32.xlu0 %v2169, 64
        %v2234 = vpop.permute.xlu0 %2233
        %2235 = vrot.lane.b32.xlu0 %v2170, 64
        %v2236 = vpop.permute.xlu0 %2235
        %2237 = vrot.lane.b32.xlu0 %v2171, 64
        %v2238 = vpop.permute.xlu0 %2237
        %2239 = vrot.lane.b32.xlu0 %v2172, 64
        %v2240 = vpop.permute.xlu0 %2239
        %2241 = vrot.lane.b32.xlu0 %v2173, 64
        %v2242 = vpop.permute.xlu0 %2241
        %2243 = vrot.lane.b32.xlu0 %v2174, 64
        %v2244 = vpop.permute.xlu0 %2243
        %2245 = vrot.lane.b32.xlu0 %v2175, 64
        %v2246 = vpop.permute.xlu0 %2245
        %2247 = vrot.lane.b32.xlu0 %v2176, 64
        %v2248 = vpop.permute.xlu0 %2247
        %2249 = vrot.lane.b32.xlu0 %v2177, 64
        %v2250 = vpop.permute.xlu0 %2249
        %2251 = vrot.lane.b32.xlu0 %v2178, 64
        %v2252 = vpop.permute.xlu0 %2251
        %2253 = vrot.lane.b32.xlu0 %v2179, 64
        %v2254 = vpop.permute.xlu0 %2253
        %2255 = vrot.lane.b32.xlu0 %v2180, 64
        %v2256 = vpop.permute.xlu0 %2255
        %2257 = vrot.lane.b32.xlu0 %v2181, 64
        %v2258 = vpop.permute.xlu0 %2257
        %2259 = vrot.lane.b32.xlu0 %v2182, 64
        %v2260 = vpop.permute.xlu0 %2259
        %2261 = vrot.lane.b32.xlu0 %v2183, 64
        %v2262 = vpop.permute.xlu0 %2261
        %2263 = vrot.lane.b32.xlu0 %v2184, 64
        %v2264 = vpop.permute.xlu0 %2263
        %2265 = vrot.lane.b32.xlu0 %v2185, 64
        %v2266 = vpop.permute.xlu0 %2265
        %2267 = vrot.lane.b32.xlu0 %v2186, 64
        %v2268 = vpop.permute.xlu0 %2267
        %2269 = vrot.lane.b32.xlu0 %v2187, 64
        %v2270 = vpop.permute.xlu0 %2269
        %2271 = vrot.lane.b32.xlu0 %v2188, 64
        %v2272 = vpop.permute.xlu0 %2271
        %2273 = vrot.lane.b32.xlu0 %v2189, 64
        %v2274 = vpop.permute.xlu0 %2273
        %2275 = vrot.lane.b32.xlu0 %v2190, 64
        %v2276 = vpop.permute.xlu0 %2275
        %2277 = vrot.lane.b32.xlu0 %v2191, 64
        %v2278 = vpop.permute.xlu0 %2277
        %2279 = vrot.lane.b32.xlu0 %v2192, 64
        %v2280 = vpop.permute.xlu0 %2279
        %2281 = vrot.lane.b32.xlu0 %v2193, 64
        %v2282 = vpop.permute.xlu0 %2281
        %2283 = vrot.lane.b32.xlu0 %v2194, 64
        %v2284 = vpop.permute.xlu0 %2283
        %2285 = vrot.lane.b32.xlu0 %v2195, 64
        %v2286 = vpop.permute.xlu0 %2285
        %2287 = vrot.lane.b32.xlu0 %v2196, 64
        %v2288 = vpop.permute.xlu0 %2287
        %2289 = vrot.lane.b32.xlu0 %v2197, 64
        %v2290 = vpop.permute.xlu0 %2289
        %2291 = vrot.lane.b32.xlu0 %v2198, 64
        %v2292 = vpop.permute.xlu0 %2291
        %2293 = vrot.lane.b32.xlu0 %v2199, 64
        %v2294 = vpop.permute.xlu0 %2293
        %2295 = vrot.lane.b32.xlu0 %v2200, 64
        %v2296 = vpop.permute.xlu0 %2295
        %2329 = vst.msk [vmem:[#allocation3 + $0x20] sm:$0xff] %vm1303, %v2234
        %2330 = vst.msk [vmem:[#allocation3 + $0x88] sm:$0xff] %vm1303, %v2236
        %2331 = vst.msk [vmem:[#allocation3 + $0xf0] sm:$0xff] %vm1303, %v2238
        %2332 = vst.msk [vmem:[#allocation3 + $0x158] sm:$0xff] %vm1303, %v2240
        %2333 = vst.msk [vmem:[#allocation3 + $0x1c0] sm:$0xff] %vm1303, %v2242
        %2334 = vst.msk [vmem:[#allocation3 + $0x228] sm:$0xff] %vm1303, %v2244
        %2335 = vst.msk [vmem:[#allocation3 + $0x290] sm:$0xff] %vm1303, %v2246
        %2336 = vst.msk [vmem:[#allocation3 + $0x2f8] sm:$0xff] %vm1303, %v2248
        %2337 = vst.msk [vmem:[#allocation3 + $0x360] sm:$0xff] %vm1303, %v2250
        %2338 = vst.msk [vmem:[#allocation3 + $0x3c8] sm:$0xff] %vm1303, %v2252
        %2339 = vst.msk [vmem:[#allocation3 + $0x430] sm:$0xff] %vm1303, %v2254
        %2340 = vst.msk [vmem:[#allocation3 + $0x498] sm:$0xff] %vm1303, %v2256
        %2341 = vst.msk [vmem:[#allocation3 + $0x500] sm:$0xff] %vm1303, %v2258
        %2342 = vst.msk [vmem:[#allocation3 + $0x568] sm:$0xff] %vm1303, %v2260
        %2343 = vst.msk [vmem:[#allocation3 + $0x5d0] sm:$0xff] %vm1303, %v2262
        %2344 = vst.msk [vmem:[#allocation3 + $0x638] sm:$0xff] %vm1303, %v2264
        %2345 = vst.msk [vmem:[#allocation3 + $0x6a0] sm:$0xff] %vm1303, %v2266
        %2346 = vst.msk [vmem:[#allocation3 + $0x708] sm:$0xff] %vm1303, %v2268
        %2347 = vst.msk [vmem:[#allocation3 + $0x770] sm:$0xff] %vm1303, %v2270
        %2348 = vst.msk [vmem:[#allocation3 + $0x7d8] sm:$0xff] %vm1303, %v2272
        %2349 = vst.msk [vmem:[#allocation3 + $0x840] sm:$0xff] %vm1303, %v2274
        %2350 = vst.msk [vmem:[#allocation3 + $0x8a8] sm:$0xff] %vm1303, %v2276
        %2351 = vst.msk [vmem:[#allocation3 + $0x910] sm:$0xff] %vm1303, %v2278
        %2352 = vst.msk [vmem:[#allocation3 + $0x978] sm:$0xff] %vm1303, %v2280
        %2353 = vst.msk [vmem:[#allocation3 + $0x9e0] sm:$0xff] %vm1303, %v2282
        %2354 = vst.msk [vmem:[#allocation3 + $0xa48] sm:$0xff] %vm1303, %v2284
        %2355 = vst.msk [vmem:[#allocation3 + $0xab0] sm:$0xff] %vm1303, %v2286
        %2356 = vst.msk [vmem:[#allocation3 + $0xb18] sm:$0xff] %vm1303, %v2288
        %2357 = vst.msk [vmem:[#allocation3 + $0xb80] sm:$0xff] %vm1303, %v2290
        %2358 = vst.msk [vmem:[#allocation3 + $0xbe8] sm:$0xff] %vm1303, %v2292
        %2359 = vst.msk [vmem:[#allocation3 + $0xc50] sm:$0xff] %vm1303, %v2294
        %2360 = vst.msk [vmem:[#allocation3 + $0xcb8] sm:$0xff] %vm1303, %v2296
        %v2361 = vld [vmem:[%s1013] sm:$0xff]
        %v2362 = vld [vmem:[%s1013 + $0x8] sm:$0xff]
        %v2363 = vld [vmem:[%s1013 + $0x18] sm:$0xff]
        %v2364 = vld [vmem:[%s1013 + $0x20] sm:$0xff]
        %v2365 = vld [vmem:[%s1013 + $0x30] sm:$0xff]
        %v2366 = vld [vmem:[%s1013 + $0x38] sm:$0xff]
        %v2367 = vld [vmem:[%s1013 + $0x48] sm:$0xff]
        %v2368 = vld [vmem:[%s1013 + $0x50] sm:$0xff]
        %v2369 = vld [vmem:[%s1013 + $0x60] sm:$0xff]
        %v2370 = vld [vmem:[%s1013 + $0x68] sm:$0xff]
        %v2371 = vld [vmem:[%s1013 + $0x78] sm:$0xff]
        %v2372 = vld [vmem:[%s1013 + $0x80] sm:$0xff]
        %v2373 = vld [vmem:[%s1013 + $0x90] sm:$0xff]
        %v2374 = vld [vmem:[%s1013 + $0x98] sm:$0xff]
        %v2375 = vld [vmem:[%s1013 + $0xa8] sm:$0xff]
        %v2376 = vld [vmem:[%s1013 + $0xb0] sm:$0xff]
        %v2377 = vld [vmem:[%s1013 + $0xc0] sm:$0xff]
        %v2378 = vld [vmem:[%s1013 + $0xc8] sm:$0xff]
        %v2379 = vld [vmem:[%s1013 + $0xd8] sm:$0xff]
        %v2380 = vld [vmem:[%s1013 + $0xe0] sm:$0xff]
        %v2381 = vld [vmem:[%s1013 + $0xf0] sm:$0xff]
        %v2382 = vld [vmem:[%s1013 + $0xf8] sm:$0xff]
        %v2383 = vld [vmem:[%s1013 + $0x108] sm:$0xff]
        %v2384 = vld [vmem:[%s1013 + $0x110] sm:$0xff]
        %v2385 = vld [vmem:[%s1013 + $0x120] sm:$0xff]
        %v2386 = vld [vmem:[%s1013 + $0x128] sm:$0xff]
        %v2387 = vld [vmem:[%s1013 + $0x138] sm:$0xff]
        %v2388 = vld [vmem:[%s1013 + $0x140] sm:$0xff]
        %v2389 = vld [vmem:[%s1013 + $0x150] sm:$0xff]
        %v2390 = vld [vmem:[%s1013 + $0x158] sm:$0xff]
        %v2391 = vld [vmem:[%s1013 + $0x168] sm:$0xff]
        %v2392 = vld [vmem:[%s1013 + $0x170] sm:$0xff]
        %2393 = vst.msk [vmem:[#allocation3 + $0x28] sm:$0xff] %vm998, %v2361
        %2394 = vst.msk [vmem:[#allocation3 + $0x90] sm:$0xff] %vm998, %v2362
        %2395 = vst.msk [vmem:[#allocation3 + $0xf8] sm:$0xff] %vm998, %v2363
        %2396 = vst.msk [vmem:[#allocation3 + $0x160] sm:$0xff] %vm998, %v2364
        %2397 = vst.msk [vmem:[#allocation3 + $0x1c8] sm:$0xff] %vm998, %v2365
        %2398 = vst.msk [vmem:[#allocation3 + $0x230] sm:$0xff] %vm998, %v2366
        %2399 = vst.msk [vmem:[#allocation3 + $0x298] sm:$0xff] %vm998, %v2367
        %2400 = vst.msk [vmem:[#allocation3 + $0x300] sm:$0xff] %vm998, %v2368
        %2401 = vst.msk [vmem:[#allocation3 + $0x368] sm:$0xff] %vm998, %v2369
        %2402 = vst.msk [vmem:[#allocation3 + $0x3d0] sm:$0xff] %vm998, %v2370
        %2403 = vst.msk [vmem:[#allocation3 + $0x438] sm:$0xff] %vm998, %v2371
        %2404 = vst.msk [vmem:[#allocation3 + $0x4a0] sm:$0xff] %vm998, %v2372
        %2405 = vst.msk [vmem:[#allocation3 + $0x508] sm:$0xff] %vm998, %v2373
        %2406 = vst.msk [vmem:[#allocation3 + $0x570] sm:$0xff] %vm998, %v2374
        %2407 = vst.msk [vmem:[#allocation3 + $0x5d8] sm:$0xff] %vm998, %v2375
        %2408 = vst.msk [vmem:[#allocation3 + $0x640] sm:$0xff] %vm998, %v2376
        %2409 = vst.msk [vmem:[#allocation3 + $0x6a8] sm:$0xff] %vm998, %v2377
        %2410 = vst.msk [vmem:[#allocation3 + $0x710] sm:$0xff] %vm998, %v2378
        %2411 = vst.msk [vmem:[#allocation3 + $0x778] sm:$0xff] %vm998, %v2379
        %2412 = vst.msk [vmem:[#allocation3 + $0x7e0] sm:$0xff] %vm998, %v2380
        %2413 = vst.msk [vmem:[#allocation3 + $0x848] sm:$0xff] %vm998, %v2381
        %2414 = vst.msk [vmem:[#allocation3 + $0x8b0] sm:$0xff] %vm998, %v2382
        %2415 = vst.msk [vmem:[#allocation3 + $0x918] sm:$0xff] %vm998, %v2383
        %2416 = vst.msk [vmem:[#allocation3 + $0x980] sm:$0xff] %vm998, %v2384
        %2417 = vst.msk [vmem:[#allocation3 + $0x9e8] sm:$0xff] %vm998, %v2385
        %2418 = vst.msk [vmem:[#allocation3 + $0xa50] sm:$0xff] %vm998, %v2386
        %2419 = vst.msk [vmem:[#allocation3 + $0xab8] sm:$0xff] %vm998, %v2387
        %2420 = vst.msk [vmem:[#allocation3 + $0xb20] sm:$0xff] %vm998, %v2388
        %2421 = vst.msk [vmem:[#allocation3 + $0xb88] sm:$0xff] %vm998, %v2389
        %2422 = vst.msk [vmem:[#allocation3 + $0xbf0] sm:$0xff] %vm998, %v2390
        %2423 = vst.msk [vmem:[#allocation3 + $0xc58] sm:$0xff] %vm998, %v2391
        %2424 = vst.msk [vmem:[#allocation3 + $0xcc0] sm:$0xff] %vm998, %v2392
        %v2425 = vld [vmem:[%s1013 + $0x1] sm:$0xff]
        %v2426 = vld [vmem:[%s1013 + $0x9] sm:$0xff]
        %v2427 = vld [vmem:[%s1013 + $0x19] sm:$0xff]
        %v2428 = vld [vmem:[%s1013 + $0x21] sm:$0xff]
        %v2429 = vld [vmem:[%s1013 + $0x31] sm:$0xff]
        %v2430 = vld [vmem:[%s1013 + $0x39] sm:$0xff]
        %v2431 = vld [vmem:[%s1013 + $0x49] sm:$0xff]
        %v2432 = vld [vmem:[%s1013 + $0x51] sm:$0xff]
        %v2433 = vld [vmem:[%s1013 + $0x61] sm:$0xff]
        %v2434 = vld [vmem:[%s1013 + $0x69] sm:$0xff]
        %v2435 = vld [vmem:[%s1013 + $0x79] sm:$0xff]
        %v2436 = vld [vmem:[%s1013 + $0x81] sm:$0xff]
        %v2437 = vld [vmem:[%s1013 + $0x91] sm:$0xff]
        %v2438 = vld [vmem:[%s1013 + $0x99] sm:$0xff]
        %v2439 = vld [vmem:[%s1013 + $0xa9] sm:$0xff]
        %v2440 = vld [vmem:[%s1013 + $0xb1] sm:$0xff]
        %v2441 = vld [vmem:[%s1013 + $0xc1] sm:$0xff]
        %v2442 = vld [vmem:[%s1013 + $0xc9] sm:$0xff]
        %v2443 = vld [vmem:[%s1013 + $0xd9] sm:$0xff]
        %v2444 = vld [vmem:[%s1013 + $0xe1] sm:$0xff]
        %v2445 = vld [vmem:[%s1013 + $0xf1] sm:$0xff]
        %v2446 = vld [vmem:[%s1013 + $0xf9] sm:$0xff]
        %v2447 = vld [vmem:[%s1013 + $0x109] sm:$0xff]
        %v2448 = vld [vmem:[%s1013 + $0x111] sm:$0xff]
        %v2449 = vld [vmem:[%s1013 + $0x121] sm:$0xff]
        %v2450 = vld [vmem:[%s1013 + $0x129] sm:$0xff]
        %v2451 = vld [vmem:[%s1013 + $0x139] sm:$0xff]
        %v2452 = vld [vmem:[%s1013 + $0x141] sm:$0xff]
        %v2453 = vld [vmem:[%s1013 + $0x151] sm:$0xff]
        %v2454 = vld [vmem:[%s1013 + $0x159] sm:$0xff]
        %v2455 = vld [vmem:[%s1013 + $0x169] sm:$0xff]
        %v2456 = vld [vmem:[%s1013 + $0x171] sm:$0xff]
        %2489 = vrot.lane.b32.xlu0 %v2425, 64
        %v2490 = vpop.permute.xlu0 %2489
        %2491 = vrot.lane.b32.xlu0 %v2426, 64
        %v2492 = vpop.permute.xlu0 %2491
        %2493 = vrot.lane.b32.xlu0 %v2427, 64
        %v2494 = vpop.permute.xlu0 %2493
        %2495 = vrot.lane.b32.xlu0 %v2428, 64
        %v2496 = vpop.permute.xlu0 %2495
        %2497 = vrot.lane.b32.xlu0 %v2429, 64
        %v2498 = vpop.permute.xlu0 %2497
        %2499 = vrot.lane.b32.xlu0 %v2430, 64
        %v2500 = vpop.permute.xlu0 %2499
        %2501 = vrot.lane.b32.xlu0 %v2431, 64
        %v2502 = vpop.permute.xlu0 %2501
        %2503 = vrot.lane.b32.xlu0 %v2432, 64
        %v2504 = vpop.permute.xlu0 %2503
        %2505 = vrot.lane.b32.xlu0 %v2433, 64
        %v2506 = vpop.permute.xlu0 %2505
        %2507 = vrot.lane.b32.xlu0 %v2434, 64
        %v2508 = vpop.permute.xlu0 %2507
        %2509 = vrot.lane.b32.xlu0 %v2435, 64
        %v2510 = vpop.permute.xlu0 %2509
        %2511 = vrot.lane.b32.xlu0 %v2436, 64
        %v2512 = vpop.permute.xlu0 %2511
        %2513 = vrot.lane.b32.xlu0 %v2437, 64
        %v2514 = vpop.permute.xlu0 %2513
        %2515 = vrot.lane.b32.xlu0 %v2438, 64
        %v2516 = vpop.permute.xlu0 %2515
        %2517 = vrot.lane.b32.xlu0 %v2439, 64
        %v2518 = vpop.permute.xlu0 %2517
        %2519 = vrot.lane.b32.xlu0 %v2440, 64
        %v2520 = vpop.permute.xlu0 %2519
        %2521 = vrot.lane.b32.xlu0 %v2441, 64
        %v2522 = vpop.permute.xlu0 %2521
        %2523 = vrot.lane.b32.xlu0 %v2442, 64
        %v2524 = vpop.permute.xlu0 %2523
        %2525 = vrot.lane.b32.xlu0 %v2443, 64
        %v2526 = vpop.permute.xlu0 %2525
        %2527 = vrot.lane.b32.xlu0 %v2444, 64
        %v2528 = vpop.permute.xlu0 %2527
        %2529 = vrot.lane.b32.xlu0 %v2445, 64
        %v2530 = vpop.permute.xlu0 %2529
        %2531 = vrot.lane.b32.xlu0 %v2446, 64
        %v2532 = vpop.permute.xlu0 %2531
        %2533 = vrot.lane.b32.xlu0 %v2447, 64
        %v2534 = vpop.permute.xlu0 %2533
        %2535 = vrot.lane.b32.xlu0 %v2448, 64
        %v2536 = vpop.permute.xlu0 %2535
        %2537 = vrot.lane.b32.xlu0 %v2449, 64
        %v2538 = vpop.permute.xlu0 %2537
        %2539 = vrot.lane.b32.xlu0 %v2450, 64
        %v2540 = vpop.permute.xlu0 %2539
        %2541 = vrot.lane.b32.xlu0 %v2451, 64
        %v2542 = vpop.permute.xlu0 %2541
        %2543 = vrot.lane.b32.xlu0 %v2452, 64
        %v2544 = vpop.permute.xlu0 %2543
        %2545 = vrot.lane.b32.xlu0 %v2453, 64
        %v2546 = vpop.permute.xlu0 %2545
        %2547 = vrot.lane.b32.xlu0 %v2454, 64
        %v2548 = vpop.permute.xlu0 %2547
        %2549 = vrot.lane.b32.xlu0 %v2455, 64
        %v2550 = vpop.permute.xlu0 %2549
        %2551 = vrot.lane.b32.xlu0 %v2456, 64
        %v2552 = vpop.permute.xlu0 %2551
        %2585 = vst.msk [vmem:[#allocation3 + $0x28] sm:$0xff] %vm1303, %v2490
        %2586 = vst.msk [vmem:[#allocation3 + $0x90] sm:$0xff] %vm1303, %v2492
        %2587 = vst.msk [vmem:[#allocation3 + $0xf8] sm:$0xff] %vm1303, %v2494
        %2588 = vst.msk [vmem:[#allocation3 + $0x160] sm:$0xff] %vm1303, %v2496
        %2589 = vst.msk [vmem:[#allocation3 + $0x1c8] sm:$0xff] %vm1303, %v2498
        %2590 = vst.msk [vmem:[#allocation3 + $0x230] sm:$0xff] %vm1303, %v2500
        %2591 = vst.msk [vmem:[#allocation3 + $0x298] sm:$0xff] %vm1303, %v2502
        %2592 = vst.msk [vmem:[#allocation3 + $0x300] sm:$0xff] %vm1303, %v2504
        %2593 = vst.msk [vmem:[#allocation3 + $0x368] sm:$0xff] %vm1303, %v2506
        %2594 = vst.msk [vmem:[#allocation3 + $0x3d0] sm:$0xff] %vm1303, %v2508
        %2595 = vst.msk [vmem:[#allocation3 + $0x438] sm:$0xff] %vm1303, %v2510
        %2596 = vst.msk [vmem:[#allocation3 + $0x4a0] sm:$0xff] %vm1303, %v2512
        %2597 = vst.msk [vmem:[#allocation3 + $0x508] sm:$0xff] %vm1303, %v2514
        %2598 = vst.msk [vmem:[#allocation3 + $0x570] sm:$0xff] %vm1303, %v2516
        %2599 = vst.msk [vmem:[#allocation3 + $0x5d8] sm:$0xff] %vm1303, %v2518
        %2600 = vst.msk [vmem:[#allocation3 + $0x640] sm:$0xff] %vm1303, %v2520
        %2601 = vst.msk [vmem:[#allocation3 + $0x6a8] sm:$0xff] %vm1303, %v2522
        %2602 = vst.msk [vmem:[#allocation3 + $0x710] sm:$0xff] %vm1303, %v2524
        %2603 = vst.msk [vmem:[#allocation3 + $0x778] sm:$0xff] %vm1303, %v2526
        %2604 = vst.msk [vmem:[#allocation3 + $0x7e0] sm:$0xff] %vm1303, %v2528
        %2605 = vst.msk [vmem:[#allocation3 + $0x848] sm:$0xff] %vm1303, %v2530
        %2606 = vst.msk [vmem:[#allocation3 + $0x8b0] sm:$0xff] %vm1303, %v2532
        %2607 = vst.msk [vmem:[#allocation3 + $0x918] sm:$0xff] %vm1303, %v2534
        %2608 = vst.msk [vmem:[#allocation3 + $0x980] sm:$0xff] %vm1303, %v2536
        %2609 = vst.msk [vmem:[#allocation3 + $0x9e8] sm:$0xff] %vm1303, %v2538
        %2610 = vst.msk [vmem:[#allocation3 + $0xa50] sm:$0xff] %vm1303, %v2540
        %2611 = vst.msk [vmem:[#allocation3 + $0xab8] sm:$0xff] %vm1303, %v2542
        %2612 = vst.msk [vmem:[#allocation3 + $0xb20] sm:$0xff] %vm1303, %v2544
        %2613 = vst.msk [vmem:[#allocation3 + $0xb88] sm:$0xff] %vm1303, %v2546
        %2614 = vst.msk [vmem:[#allocation3 + $0xbf0] sm:$0xff] %vm1303, %v2548
        %2615 = vst.msk [vmem:[#allocation3 + $0xc58] sm:$0xff] %vm1303, %v2550
        %2616 = vst.msk [vmem:[#allocation3 + $0xcc0] sm:$0xff] %vm1303, %v2552
        %v2617 = vld [vmem:[%s1013 + $0x2] sm:$0xff]
        %v2618 = vld [vmem:[%s1013 + $0xa] sm:$0xff]
        %v2619 = vld [vmem:[%s1013 + $0x1a] sm:$0xff]
        %v2620 = vld [vmem:[%s1013 + $0x22] sm:$0xff]
        %v2621 = vld [vmem:[%s1013 + $0x32] sm:$0xff]
        %v2622 = vld [vmem:[%s1013 + $0x3a] sm:$0xff]
        %v2623 = vld [vmem:[%s1013 + $0x4a] sm:$0xff]
        %v2624 = vld [vmem:[%s1013 + $0x52] sm:$0xff]
        %v2625 = vld [vmem:[%s1013 + $0x62] sm:$0xff]
        %v2626 = vld [vmem:[%s1013 + $0x6a] sm:$0xff]
        %v2627 = vld [vmem:[%s1013 + $0x7a] sm:$0xff]
        %v2628 = vld [vmem:[%s1013 + $0x82] sm:$0xff]
        %v2629 = vld [vmem:[%s1013 + $0x92] sm:$0xff]
        %v2630 = vld [vmem:[%s1013 + $0x9a] sm:$0xff]
        %v2631 = vld [vmem:[%s1013 + $0xaa] sm:$0xff]
        %v2632 = vld [vmem:[%s1013 + $0xb2] sm:$0xff]
        %v2633 = vld [vmem:[%s1013 + $0xc2] sm:$0xff]
        %v2634 = vld [vmem:[%s1013 + $0xca] sm:$0xff]
        %v2635 = vld [vmem:[%s1013 + $0xda] sm:$0xff]
        %v2636 = vld [vmem:[%s1013 + $0xe2] sm:$0xff]
        %v2637 = vld [vmem:[%s1013 + $0xf2] sm:$0xff]
        %v2638 = vld [vmem:[%s1013 + $0xfa] sm:$0xff]
        %v2639 = vld [vmem:[%s1013 + $0x10a] sm:$0xff]
        %v2640 = vld [vmem:[%s1013 + $0x112] sm:$0xff]
        %v2641 = vld [vmem:[%s1013 + $0x122] sm:$0xff]
        %v2642 = vld [vmem:[%s1013 + $0x12a] sm:$0xff]
        %v2643 = vld [vmem:[%s1013 + $0x13a] sm:$0xff]
        %v2644 = vld [vmem:[%s1013 + $0x142] sm:$0xff]
        %v2645 = vld [vmem:[%s1013 + $0x152] sm:$0xff]
        %v2646 = vld [vmem:[%s1013 + $0x15a] sm:$0xff]
        %v2647 = vld [vmem:[%s1013 + $0x16a] sm:$0xff]
        %v2648 = vld [vmem:[%s1013 + $0x172] sm:$0xff]
        %2649 = vst.msk [vmem:[#allocation3 + $0x30] sm:$0xff] %vm998, %v2617
        %2650 = vst.msk [vmem:[#allocation3 + $0x98] sm:$0xff] %vm998, %v2618
        %2651 = vst.msk [vmem:[#allocation3 + $0x100] sm:$0xff] %vm998, %v2619
        %2652 = vst.msk [vmem:[#allocation3 + $0x168] sm:$0xff] %vm998, %v2620
        %2653 = vst.msk [vmem:[#allocation3 + $0x1d0] sm:$0xff] %vm998, %v2621
        %2654 = vst.msk [vmem:[#allocation3 + $0x238] sm:$0xff] %vm998, %v2622
        %2655 = vst.msk [vmem:[#allocation3 + $0x2a0] sm:$0xff] %vm998, %v2623
        %2656 = vst.msk [vmem:[#allocation3 + $0x308] sm:$0xff] %vm998, %v2624
        %2657 = vst.msk [vmem:[#allocation3 + $0x370] sm:$0xff] %vm998, %v2625
        %2658 = vst.msk [vmem:[#allocation3 + $0x3d8] sm:$0xff] %vm998, %v2626
        %2659 = vst.msk [vmem:[#allocation3 + $0x440] sm:$0xff] %vm998, %v2627
        %2660 = vst.msk [vmem:[#allocation3 + $0x4a8] sm:$0xff] %vm998, %v2628
        %2661 = vst.msk [vmem:[#allocation3 + $0x510] sm:$0xff] %vm998, %v2629
        %2662 = vst.msk [vmem:[#allocation3 + $0x578] sm:$0xff] %vm998, %v2630
        %2663 = vst.msk [vmem:[#allocation3 + $0x5e0] sm:$0xff] %vm998, %v2631
        %2664 = vst.msk [vmem:[#allocation3 + $0x648] sm:$0xff] %vm998, %v2632
        %2665 = vst.msk [vmem:[#allocation3 + $0x6b0] sm:$0xff] %vm998, %v2633
        %2666 = vst.msk [vmem:[#allocation3 + $0x718] sm:$0xff] %vm998, %v2634
        %2667 = vst.msk [vmem:[#allocation3 + $0x780] sm:$0xff] %vm998, %v2635
        %2668 = vst.msk [vmem:[#allocation3 + $0x7e8] sm:$0xff] %vm998, %v2636
        %2669 = vst.msk [vmem:[#allocation3 + $0x850] sm:$0xff] %vm998, %v2637
        %2670 = vst.msk [vmem:[#allocation3 + $0x8b8] sm:$0xff] %vm998, %v2638
        %2671 = vst.msk [vmem:[#allocation3 + $0x920] sm:$0xff] %vm998, %v2639
        %2672 = vst.msk [vmem:[#allocation3 + $0x988] sm:$0xff] %vm998, %v2640
        %2673 = vst.msk [vmem:[#allocation3 + $0x9f0] sm:$0xff] %vm998, %v2641
        %2674 = vst.msk [vmem:[#allocation3 + $0xa58] sm:$0xff] %vm998, %v2642
        %2675 = vst.msk [vmem:[#allocation3 + $0xac0] sm:$0xff] %vm998, %v2643
        %2676 = vst.msk [vmem:[#allocation3 + $0xb28] sm:$0xff] %vm998, %v2644
        %2677 = vst.msk [vmem:[#allocation3 + $0xb90] sm:$0xff] %vm998, %v2645
        %2678 = vst.msk [vmem:[#allocation3 + $0xbf8] sm:$0xff] %vm998, %v2646
        %2679 = vst.msk [vmem:[#allocation3 + $0xc60] sm:$0xff] %vm998, %v2647
        %2680 = vst.msk [vmem:[#allocation3 + $0xcc8] sm:$0xff] %vm998, %v2648
        %v2681 = vld [vmem:[%s1013 + $0x3] sm:$0xff]
        %v2682 = vld [vmem:[%s1013 + $0xb] sm:$0xff]
        %v2683 = vld [vmem:[%s1013 + $0x1b] sm:$0xff]
        %v2684 = vld [vmem:[%s1013 + $0x23] sm:$0xff]
        %v2685 = vld [vmem:[%s1013 + $0x33] sm:$0xff]
        %v2686 = vld [vmem:[%s1013 + $0x3b] sm:$0xff]
        %v2687 = vld [vmem:[%s1013 + $0x4b] sm:$0xff]
        %v2688 = vld [vmem:[%s1013 + $0x53] sm:$0xff]
        %v2689 = vld [vmem:[%s1013 + $0x63] sm:$0xff]
        %v2690 = vld [vmem:[%s1013 + $0x6b] sm:$0xff]
        %v2691 = vld [vmem:[%s1013 + $0x7b] sm:$0xff]
        %v2692 = vld [vmem:[%s1013 + $0x83] sm:$0xff]
        %v2693 = vld [vmem:[%s1013 + $0x93] sm:$0xff]
        %v2694 = vld [vmem:[%s1013 + $0x9b] sm:$0xff]
        %v2695 = vld [vmem:[%s1013 + $0xab] sm:$0xff]
        %v2696 = vld [vmem:[%s1013 + $0xb3] sm:$0xff]
        %v2697 = vld [vmem:[%s1013 + $0xc3] sm:$0xff]
        %v2698 = vld [vmem:[%s1013 + $0xcb] sm:$0xff]
        %v2699 = vld [vmem:[%s1013 + $0xdb] sm:$0xff]
        %v2700 = vld [vmem:[%s1013 + $0xe3] sm:$0xff]
        %v2701 = vld [vmem:[%s1013 + $0xf3] sm:$0xff]
        %v2702 = vld [vmem:[%s1013 + $0xfb] sm:$0xff]
        %v2703 = vld [vmem:[%s1013 + $0x10b] sm:$0xff]
        %v2704 = vld [vmem:[%s1013 + $0x113] sm:$0xff]
        %v2705 = vld [vmem:[%s1013 + $0x123] sm:$0xff]
        %v2706 = vld [vmem:[%s1013 + $0x12b] sm:$0xff]
        %v2707 = vld [vmem:[%s1013 + $0x13b] sm:$0xff]
        %v2708 = vld [vmem:[%s1013 + $0x143] sm:$0xff]
        %v2709 = vld [vmem:[%s1013 + $0x153] sm:$0xff]
        %v2710 = vld [vmem:[%s1013 + $0x15b] sm:$0xff]
        %v2711 = vld [vmem:[%s1013 + $0x16b] sm:$0xff]
        %v2712 = vld [vmem:[%s1013 + $0x173] sm:$0xff]
        %2745 = vrot.lane.b32.xlu0 %v2681, 64
        %v2746 = vpop.permute.xlu0 %2745
        %2747 = vrot.lane.b32.xlu0 %v2682, 64
        %v2748 = vpop.permute.xlu0 %2747
        %2749 = vrot.lane.b32.xlu0 %v2683, 64
        %v2750 = vpop.permute.xlu0 %2749
        %2751 = vrot.lane.b32.xlu0 %v2684, 64
        %v2752 = vpop.permute.xlu0 %2751
        %2753 = vrot.lane.b32.xlu0 %v2685, 64
        %v2754 = vpop.permute.xlu0 %2753
        %2755 = vrot.lane.b32.xlu0 %v2686, 64
        %v2756 = vpop.permute.xlu0 %2755
        %2757 = vrot.lane.b32.xlu0 %v2687, 64
        %v2758 = vpop.permute.xlu0 %2757
        %2759 = vrot.lane.b32.xlu0 %v2688, 64
        %v2760 = vpop.permute.xlu0 %2759
        %2761 = vrot.lane.b32.xlu0 %v2689, 64
        %v2762 = vpop.permute.xlu0 %2761
        %2763 = vrot.lane.b32.xlu0 %v2690, 64
        %v2764 = vpop.permute.xlu0 %2763
        %2765 = vrot.lane.b32.xlu0 %v2691, 64
        %v2766 = vpop.permute.xlu0 %2765
        %2767 = vrot.lane.b32.xlu0 %v2692, 64
        %v2768 = vpop.permute.xlu0 %2767
        %2769 = vrot.lane.b32.xlu0 %v2693, 64
        %v2770 = vpop.permute.xlu0 %2769
        %2771 = vrot.lane.b32.xlu0 %v2694, 64
        %v2772 = vpop.permute.xlu0 %2771
        %2773 = vrot.lane.b32.xlu0 %v2695, 64
        %v2774 = vpop.permute.xlu0 %2773
        %2775 = vrot.lane.b32.xlu0 %v2696, 64
        %v2776 = vpop.permute.xlu0 %2775
        %2777 = vrot.lane.b32.xlu0 %v2697, 64
        %v2778 = vpop.permute.xlu0 %2777
        %2779 = vrot.lane.b32.xlu0 %v2698, 64
        %v2780 = vpop.permute.xlu0 %2779
        %2781 = vrot.lane.b32.xlu0 %v2699, 64
        %v2782 = vpop.permute.xlu0 %2781
        %2783 = vrot.lane.b32.xlu0 %v2700, 64
        %v2784 = vpop.permute.xlu0 %2783
        %2785 = vrot.lane.b32.xlu0 %v2701, 64
        %v2786 = vpop.permute.xlu0 %2785
        %2787 = vrot.lane.b32.xlu0 %v2702, 64
        %v2788 = vpop.permute.xlu0 %2787
        %2789 = vrot.lane.b32.xlu0 %v2703, 64
        %v2790 = vpop.permute.xlu0 %2789
        %2791 = vrot.lane.b32.xlu0 %v2704, 64
        %v2792 = vpop.permute.xlu0 %2791
        %2793 = vrot.lane.b32.xlu0 %v2705, 64
        %v2794 = vpop.permute.xlu0 %2793
        %2795 = vrot.lane.b32.xlu0 %v2706, 64
        %v2796 = vpop.permute.xlu0 %2795
        %2797 = vrot.lane.b32.xlu0 %v2707, 64
        %v2798 = vpop.permute.xlu0 %2797
        %2799 = vrot.lane.b32.xlu0 %v2708, 64
        %v2800 = vpop.permute.xlu0 %2799
        %2801 = vrot.lane.b32.xlu0 %v2709, 64
        %v2802 = vpop.permute.xlu0 %2801
        %2803 = vrot.lane.b32.xlu0 %v2710, 64
        %v2804 = vpop.permute.xlu0 %2803
        %2805 = vrot.lane.b32.xlu0 %v2711, 64
        %v2806 = vpop.permute.xlu0 %2805
        %2807 = vrot.lane.b32.xlu0 %v2712, 64
        %v2808 = vpop.permute.xlu0 %2807
        %2841 = vst.msk [vmem:[#allocation3 + $0x30] sm:$0xff] %vm1303, %v2746
        %2842 = vst.msk [vmem:[#allocation3 + $0x98] sm:$0xff] %vm1303, %v2748
        %2843 = vst.msk [vmem:[#allocation3 + $0x100] sm:$0xff] %vm1303, %v2750
        %2844 = vst.msk [vmem:[#allocation3 + $0x168] sm:$0xff] %vm1303, %v2752
        %2845 = vst.msk [vmem:[#allocation3 + $0x1d0] sm:$0xff] %vm1303, %v2754
        %2846 = vst.msk [vmem:[#allocation3 + $0x238] sm:$0xff] %vm1303, %v2756
        %2847 = vst.msk [vmem:[#allocation3 + $0x2a0] sm:$0xff] %vm1303, %v2758
        %2848 = vst.msk [vmem:[#allocation3 + $0x308] sm:$0xff] %vm1303, %v2760
        %2849 = vst.msk [vmem:[#allocation3 + $0x370] sm:$0xff] %vm1303, %v2762
        %2850 = vst.msk [vmem:[#allocation3 + $0x3d8] sm:$0xff] %vm1303, %v2764
        %2851 = vst.msk [vmem:[#allocation3 + $0x440] sm:$0xff] %vm1303, %v2766
        %2852 = vst.msk [vmem:[#allocation3 + $0x4a8] sm:$0xff] %vm1303, %v2768
        %2853 = vst.msk [vmem:[#allocation3 + $0x510] sm:$0xff] %vm1303, %v2770
        %2854 = vst.msk [vmem:[#allocation3 + $0x578] sm:$0xff] %vm1303, %v2772
        %2855 = vst.msk [vmem:[#allocation3 + $0x5e0] sm:$0xff] %vm1303, %v2774
        %2856 = vst.msk [vmem:[#allocation3 + $0x648] sm:$0xff] %vm1303, %v2776
        %2857 = vst.msk [vmem:[#allocation3 + $0x6b0] sm:$0xff] %vm1303, %v2778
        %2858 = vst.msk [vmem:[#allocation3 + $0x718] sm:$0xff] %vm1303, %v2780
        %2859 = vst.msk [vmem:[#allocation3 + $0x780] sm:$0xff] %vm1303, %v2782
        %2860 = vst.msk [vmem:[#allocation3 + $0x7e8] sm:$0xff] %vm1303, %v2784
        %2861 = vst.msk [vmem:[#allocation3 + $0x850] sm:$0xff] %vm1303, %v2786
        %2862 = vst.msk [vmem:[#allocation3 + $0x8b8] sm:$0xff] %vm1303, %v2788
        %2863 = vst.msk [vmem:[#allocation3 + $0x920] sm:$0xff] %vm1303, %v2790
        %2864 = vst.msk [vmem:[#allocation3 + $0x988] sm:$0xff] %vm1303, %v2792
        %2865 = vst.msk [vmem:[#allocation3 + $0x9f0] sm:$0xff] %vm1303, %v2794
        %2866 = vst.msk [vmem:[#allocation3 + $0xa58] sm:$0xff] %vm1303, %v2796
        %2867 = vst.msk [vmem:[#allocation3 + $0xac0] sm:$0xff] %vm1303, %v2798
        %2868 = vst.msk [vmem:[#allocation3 + $0xb28] sm:$0xff] %vm1303, %v2800
        %2869 = vst.msk [vmem:[#allocation3 + $0xb90] sm:$0xff] %vm1303, %v2802
        %2870 = vst.msk [vmem:[#allocation3 + $0xbf8] sm:$0xff] %vm1303, %v2804
        %2871 = vst.msk [vmem:[#allocation3 + $0xc60] sm:$0xff] %vm1303, %v2806
        %2872 = vst.msk [vmem:[#allocation3 + $0xcc8] sm:$0xff] %vm1303, %v2808
        %v2873 = vld [vmem:[%s1013 + $0x4] sm:$0xff]
        %v2874 = vld [vmem:[%s1013 + $0xc] sm:$0xff]
        %v2875 = vld [vmem:[%s1013 + $0x1c] sm:$0xff]
        %v2876 = vld [vmem:[%s1013 + $0x24] sm:$0xff]
        %v2877 = vld [vmem:[%s1013 + $0x34] sm:$0xff]
        %v2878 = vld [vmem:[%s1013 + $0x3c] sm:$0xff]
        %v2879 = vld [vmem:[%s1013 + $0x4c] sm:$0xff]
        %v2880 = vld [vmem:[%s1013 + $0x54] sm:$0xff]
        %v2881 = vld [vmem:[%s1013 + $0x64] sm:$0xff]
        %v2882 = vld [vmem:[%s1013 + $0x6c] sm:$0xff]
        %v2883 = vld [vmem:[%s1013 + $0x7c] sm:$0xff]
        %v2884 = vld [vmem:[%s1013 + $0x84] sm:$0xff]
        %v2885 = vld [vmem:[%s1013 + $0x94] sm:$0xff]
        %v2886 = vld [vmem:[%s1013 + $0x9c] sm:$0xff]
        %v2887 = vld [vmem:[%s1013 + $0xac] sm:$0xff]
        %v2888 = vld [vmem:[%s1013 + $0xb4] sm:$0xff]
        %v2889 = vld [vmem:[%s1013 + $0xc4] sm:$0xff]
        %v2890 = vld [vmem:[%s1013 + $0xcc] sm:$0xff]
        %v2891 = vld [vmem:[%s1013 + $0xdc] sm:$0xff]
        %v2892 = vld [vmem:[%s1013 + $0xe4] sm:$0xff]
        %v2893 = vld [vmem:[%s1013 + $0xf4] sm:$0xff]
        %v2894 = vld [vmem:[%s1013 + $0xfc] sm:$0xff]
        %v2895 = vld [vmem:[%s1013 + $0x10c] sm:$0xff]
        %v2896 = vld [vmem:[%s1013 + $0x114] sm:$0xff]
        %v2897 = vld [vmem:[%s1013 + $0x124] sm:$0xff]
        %v2898 = vld [vmem:[%s1013 + $0x12c] sm:$0xff]
        %v2899 = vld [vmem:[%s1013 + $0x13c] sm:$0xff]
        %v2900 = vld [vmem:[%s1013 + $0x144] sm:$0xff]
        %v2901 = vld [vmem:[%s1013 + $0x154] sm:$0xff]
        %v2902 = vld [vmem:[%s1013 + $0x15c] sm:$0xff]
        %v2903 = vld [vmem:[%s1013 + $0x16c] sm:$0xff]
        %v2904 = vld [vmem:[%s1013 + $0x174] sm:$0xff]
        %2905 = vst.msk [vmem:[#allocation3 + $0x38] sm:$0xff] %vm998, %v2873
        %2906 = vst.msk [vmem:[#allocation3 + $0xa0] sm:$0xff] %vm998, %v2874
        %2907 = vst.msk [vmem:[#allocation3 + $0x108] sm:$0xff] %vm998, %v2875
        %2908 = vst.msk [vmem:[#allocation3 + $0x170] sm:$0xff] %vm998, %v2876
        %2909 = vst.msk [vmem:[#allocation3 + $0x1d8] sm:$0xff] %vm998, %v2877
        %2910 = vst.msk [vmem:[#allocation3 + $0x240] sm:$0xff] %vm998, %v2878
        %2911 = vst.msk [vmem:[#allocation3 + $0x2a8] sm:$0xff] %vm998, %v2879
        %2912 = vst.msk [vmem:[#allocation3 + $0x310] sm:$0xff] %vm998, %v2880
        %2913 = vst.msk [vmem:[#allocation3 + $0x378] sm:$0xff] %vm998, %v2881
        %2914 = vst.msk [vmem:[#allocation3 + $0x3e0] sm:$0xff] %vm998, %v2882
        %2915 = vst.msk [vmem:[#allocation3 + $0x448] sm:$0xff] %vm998, %v2883
        %2916 = vst.msk [vmem:[#allocation3 + $0x4b0] sm:$0xff] %vm998, %v2884
        %2917 = vst.msk [vmem:[#allocation3 + $0x518] sm:$0xff] %vm998, %v2885
        %2918 = vst.msk [vmem:[#allocation3 + $0x580] sm:$0xff] %vm998, %v2886
        %2919 = vst.msk [vmem:[#allocation3 + $0x5e8] sm:$0xff] %vm998, %v2887
        %2920 = vst.msk [vmem:[#allocation3 + $0x650] sm:$0xff] %vm998, %v2888
        %2921 = vst.msk [vmem:[#allocation3 + $0x6b8] sm:$0xff] %vm998, %v2889
        %2922 = vst.msk [vmem:[#allocation3 + $0x720] sm:$0xff] %vm998, %v2890
        %2923 = vst.msk [vmem:[#allocation3 + $0x788] sm:$0xff] %vm998, %v2891
        %2924 = vst.msk [vmem:[#allocation3 + $0x7f0] sm:$0xff] %vm998, %v2892
        %2925 = vst.msk [vmem:[#allocation3 + $0x858] sm:$0xff] %vm998, %v2893
        %2926 = vst.msk [vmem:[#allocation3 + $0x8c0] sm:$0xff] %vm998, %v2894
        %2927 = vst.msk [vmem:[#allocation3 + $0x928] sm:$0xff] %vm998, %v2895
        %2928 = vst.msk [vmem:[#allocation3 + $0x990] sm:$0xff] %vm998, %v2896
        %2929 = vst.msk [vmem:[#allocation3 + $0x9f8] sm:$0xff] %vm998, %v2897
        %2930 = vst.msk [vmem:[#allocation3 + $0xa60] sm:$0xff] %vm998, %v2898
        %2931 = vst.msk [vmem:[#allocation3 + $0xac8] sm:$0xff] %vm998, %v2899
        %2932 = vst.msk [vmem:[#allocation3 + $0xb30] sm:$0xff] %vm998, %v2900
        %2933 = vst.msk [vmem:[#allocation3 + $0xb98] sm:$0xff] %vm998, %v2901
        %2934 = vst.msk [vmem:[#allocation3 + $0xc00] sm:$0xff] %vm998, %v2902
        %2935 = vst.msk [vmem:[#allocation3 + $0xc68] sm:$0xff] %vm998, %v2903
        %2936 = vst.msk [vmem:[#allocation3 + $0xcd0] sm:$0xff] %vm998, %v2904
        %s2937 = scalar_lea.vmem [#allocation2], 72
        %v2938 = vld [vmem:[%s2937] sm:$0xff]
        %v2939 = vld [vmem:[%s2937 + $0x8] sm:$0xff]
        %v2940 = vld [vmem:[%s2937 + $0x18] sm:$0xff]
        %v2941 = vld [vmem:[%s2937 + $0x20] sm:$0xff]
        %v2942 = vld [vmem:[%s2937 + $0x30] sm:$0xff]
        %v2943 = vld [vmem:[%s2937 + $0x38] sm:$0xff]
        %v2944 = vld [vmem:[%s2937 + $0x48] sm:$0xff]
        %v2945 = vld [vmem:[%s2937 + $0x50] sm:$0xff]
        %v2946 = vld [vmem:[%s2937 + $0x60] sm:$0xff]
        %v2947 = vld [vmem:[%s2937 + $0x68] sm:$0xff]
        %v2948 = vld [vmem:[%s2937 + $0x78] sm:$0xff]
        %v2949 = vld [vmem:[%s2937 + $0x80] sm:$0xff]
        %v2950 = vld [vmem:[%s2937 + $0x90] sm:$0xff]
        %v2951 = vld [vmem:[%s2937 + $0x98] sm:$0xff]
        %v2952 = vld [vmem:[%s2937 + $0xa8] sm:$0xff]
        %v2953 = vld [vmem:[%s2937 + $0xb0] sm:$0xff]
        %v2954 = vld [vmem:[%s2937 + $0xc0] sm:$0xff]
        %v2955 = vld [vmem:[%s2937 + $0xc8] sm:$0xff]
        %v2956 = vld [vmem:[%s2937 + $0xd8] sm:$0xff]
        %v2957 = vld [vmem:[%s2937 + $0xe0] sm:$0xff]
        %v2958 = vld [vmem:[%s2937 + $0xf0] sm:$0xff]
        %v2959 = vld [vmem:[%s2937 + $0xf8] sm:$0xff]
        %v2960 = vld [vmem:[%s2937 + $0x108] sm:$0xff]
        %v2961 = vld [vmem:[%s2937 + $0x110] sm:$0xff]
        %v2962 = vld [vmem:[%s2937 + $0x120] sm:$0xff]
        %v2963 = vld [vmem:[%s2937 + $0x128] sm:$0xff]
        %v2964 = vld [vmem:[%s2937 + $0x138] sm:$0xff]
        %v2965 = vld [vmem:[%s2937 + $0x140] sm:$0xff]
        %v2966 = vld [vmem:[%s2937 + $0x150] sm:$0xff]
        %v2967 = vld [vmem:[%s2937 + $0x158] sm:$0xff]
        %v2968 = vld [vmem:[%s2937 + $0x168] sm:$0xff]
        %v2969 = vld [vmem:[%s2937 + $0x170] sm:$0xff]
        %3002 = vrot.lane.b32.xlu0 %v2938, 64
        %v3003 = vpop.permute.xlu0 %3002
        %3004 = vrot.lane.b32.xlu0 %v2939, 64
        %v3005 = vpop.permute.xlu0 %3004
        %3006 = vrot.lane.b32.xlu0 %v2940, 64
        %v3007 = vpop.permute.xlu0 %3006
        %3008 = vrot.lane.b32.xlu0 %v2941, 64
        %v3009 = vpop.permute.xlu0 %3008
        %3010 = vrot.lane.b32.xlu0 %v2942, 64
        %v3011 = vpop.permute.xlu0 %3010
        %3012 = vrot.lane.b32.xlu0 %v2943, 64
        %v3013 = vpop.permute.xlu0 %3012
        %3014 = vrot.lane.b32.xlu0 %v2944, 64
        %v3015 = vpop.permute.xlu0 %3014
        %3016 = vrot.lane.b32.xlu0 %v2945, 64
        %v3017 = vpop.permute.xlu0 %3016
        %3018 = vrot.lane.b32.xlu0 %v2946, 64
        %v3019 = vpop.permute.xlu0 %3018
        %3020 = vrot.lane.b32.xlu0 %v2947, 64
        %v3021 = vpop.permute.xlu0 %3020
        %3022 = vrot.lane.b32.xlu0 %v2948, 64
        %v3023 = vpop.permute.xlu0 %3022
        %3024 = vrot.lane.b32.xlu0 %v2949, 64
        %v3025 = vpop.permute.xlu0 %3024
        %3026 = vrot.lane.b32.xlu0 %v2950, 64
        %v3027 = vpop.permute.xlu0 %3026
        %3028 = vrot.lane.b32.xlu0 %v2951, 64
        %v3029 = vpop.permute.xlu0 %3028
        %3030 = vrot.lane.b32.xlu0 %v2952, 64
        %v3031 = vpop.permute.xlu0 %3030
        %3032 = vrot.lane.b32.xlu0 %v2953, 64
        %v3033 = vpop.permute.xlu0 %3032
        %3034 = vrot.lane.b32.xlu0 %v2954, 64
        %v3035 = vpop.permute.xlu0 %3034
        %3036 = vrot.lane.b32.xlu0 %v2955, 64
        %v3037 = vpop.permute.xlu0 %3036
        %3038 = vrot.lane.b32.xlu0 %v2956, 64
        %v3039 = vpop.permute.xlu0 %3038
        %3040 = vrot.lane.b32.xlu0 %v2957, 64
        %v3041 = vpop.permute.xlu0 %3040
        %3042 = vrot.lane.b32.xlu0 %v2958, 64
        %v3043 = vpop.permute.xlu0 %3042
        %3044 = vrot.lane.b32.xlu0 %v2959, 64
        %v3045 = vpop.permute.xlu0 %3044
        %3046 = vrot.lane.b32.xlu0 %v2960, 64
        %v3047 = vpop.permute.xlu0 %3046
        %3048 = vrot.lane.b32.xlu0 %v2961, 64
        %v3049 = vpop.permute.xlu0 %3048
        %3050 = vrot.lane.b32.xlu0 %v2962, 64
        %v3051 = vpop.permute.xlu0 %3050
        %3052 = vrot.lane.b32.xlu0 %v2963, 64
        %v3053 = vpop.permute.xlu0 %3052
        %3054 = vrot.lane.b32.xlu0 %v2964, 64
        %v3055 = vpop.permute.xlu0 %3054
        %3056 = vrot.lane.b32.xlu0 %v2965, 64
        %v3057 = vpop.permute.xlu0 %3056
        %3058 = vrot.lane.b32.xlu0 %v2966, 64
        %v3059 = vpop.permute.xlu0 %3058
        %3060 = vrot.lane.b32.xlu0 %v2967, 64
        %v3061 = vpop.permute.xlu0 %3060
        %3062 = vrot.lane.b32.xlu0 %v2968, 64
        %v3063 = vpop.permute.xlu0 %3062
        %3064 = vrot.lane.b32.xlu0 %v2969, 64
        %v3065 = vpop.permute.xlu0 %3064
        %3098 = vst.msk [vmem:[#allocation3 + $0x38] sm:$0xff] %vm1303, %v3003
        %3099 = vst.msk [vmem:[#allocation3 + $0xa0] sm:$0xff] %vm1303, %v3005
        %3100 = vst.msk [vmem:[#allocation3 + $0x108] sm:$0xff] %vm1303, %v3007
        %3101 = vst.msk [vmem:[#allocation3 + $0x170] sm:$0xff] %vm1303, %v3009
        %3102 = vst.msk [vmem:[#allocation3 + $0x1d8] sm:$0xff] %vm1303, %v3011
        %3103 = vst.msk [vmem:[#allocation3 + $0x240] sm:$0xff] %vm1303, %v3013
        %3104 = vst.msk [vmem:[#allocation3 + $0x2a8] sm:$0xff] %vm1303, %v3015
        %3105 = vst.msk [vmem:[#allocation3 + $0x310] sm:$0xff] %vm1303, %v3017
        %3106 = vst.msk [vmem:[#allocation3 + $0x378] sm:$0xff] %vm1303, %v3019
        %3107 = vst.msk [vmem:[#allocation3 + $0x3e0] sm:$0xff] %vm1303, %v3021
        %3108 = vst.msk [vmem:[#allocation3 + $0x448] sm:$0xff] %vm1303, %v3023
        %3109 = vst.msk [vmem:[#allocation3 + $0x4b0] sm:$0xff] %vm1303, %v3025
        %3110 = vst.msk [vmem:[#allocation3 + $0x518] sm:$0xff] %vm1303, %v3027
        %3111 = vst.msk [vmem:[#allocation3 + $0x580] sm:$0xff] %vm1303, %v3029
        %3112 = vst.msk [vmem:[#allocation3 + $0x5e8] sm:$0xff] %vm1303, %v3031
        %3113 = vst.msk [vmem:[#allocation3 + $0x650] sm:$0xff] %vm1303, %v3033
        %3114 = vst.msk [vmem:[#allocation3 + $0x6b8] sm:$0xff] %vm1303, %v3035
        %3115 = vst.msk [vmem:[#allocation3 + $0x720] sm:$0xff] %vm1303, %v3037
        %3116 = vst.msk [vmem:[#allocation3 + $0x788] sm:$0xff] %vm1303, %v3039
        %3117 = vst.msk [vmem:[#allocation3 + $0x7f0] sm:$0xff] %vm1303, %v3041
        %3118 = vst.msk [vmem:[#allocation3 + $0x858] sm:$0xff] %vm1303, %v3043
        %3119 = vst.msk [vmem:[#allocation3 + $0x8c0] sm:$0xff] %vm1303, %v3045
        %3120 = vst.msk [vmem:[#allocation3 + $0x928] sm:$0xff] %vm1303, %v3047
        %3121 = vst.msk [vmem:[#allocation3 + $0x990] sm:$0xff] %vm1303, %v3049
        %3122 = vst.msk [vmem:[#allocation3 + $0x9f8] sm:$0xff] %vm1303, %v3051
        %3123 = vst.msk [vmem:[#allocation3 + $0xa60] sm:$0xff] %vm1303, %v3053
        %3124 = vst.msk [vmem:[#allocation3 + $0xac8] sm:$0xff] %vm1303, %v3055
        %3125 = vst.msk [vmem:[#allocation3 + $0xb30] sm:$0xff] %vm1303, %v3057
        %3126 = vst.msk [vmem:[#allocation3 + $0xb98] sm:$0xff] %vm1303, %v3059
        %3127 = vst.msk [vmem:[#allocation3 + $0xc00] sm:$0xff] %vm1303, %v3061
        %3128 = vst.msk [vmem:[#allocation3 + $0xc68] sm:$0xff] %vm1303, %v3063
        %3129 = vst.msk [vmem:[#allocation3 + $0xcd0] sm:$0xff] %vm1303, %v3065
        %v3130 = vld [vmem:[%s2937 + $0x1] sm:$0xff]
        %v3131 = vld [vmem:[%s2937 + $0x9] sm:$0xff]
        %v3132 = vld [vmem:[%s2937 + $0x19] sm:$0xff]
        %v3133 = vld [vmem:[%s2937 + $0x21] sm:$0xff]
        %v3134 = vld [vmem:[%s2937 + $0x31] sm:$0xff]
        %v3135 = vld [vmem:[%s2937 + $0x39] sm:$0xff]
        %v3136 = vld [vmem:[%s2937 + $0x49] sm:$0xff]
        %v3137 = vld [vmem:[%s2937 + $0x51] sm:$0xff]
        %v3138 = vld [vmem:[%s2937 + $0x61] sm:$0xff]
        %v3139 = vld [vmem:[%s2937 + $0x69] sm:$0xff]
        %v3140 = vld [vmem:[%s2937 + $0x79] sm:$0xff]
        %v3141 = vld [vmem:[%s2937 + $0x81] sm:$0xff]
        %v3142 = vld [vmem:[%s2937 + $0x91] sm:$0xff]
        %v3143 = vld [vmem:[%s2937 + $0x99] sm:$0xff]
        %v3144 = vld [vmem:[%s2937 + $0xa9] sm:$0xff]
        %v3145 = vld [vmem:[%s2937 + $0xb1] sm:$0xff]
        %v3146 = vld [vmem:[%s2937 + $0xc1] sm:$0xff]
        %v3147 = vld [vmem:[%s2937 + $0xc9] sm:$0xff]
        %v3148 = vld [vmem:[%s2937 + $0xd9] sm:$0xff]
        %v3149 = vld [vmem:[%s2937 + $0xe1] sm:$0xff]
        %v3150 = vld [vmem:[%s2937 + $0xf1] sm:$0xff]
        %v3151 = vld [vmem:[%s2937 + $0xf9] sm:$0xff]
        %v3152 = vld [vmem:[%s2937 + $0x109] sm:$0xff]
        %v3153 = vld [vmem:[%s2937 + $0x111] sm:$0xff]
        %v3154 = vld [vmem:[%s2937 + $0x121] sm:$0xff]
        %v3155 = vld [vmem:[%s2937 + $0x129] sm:$0xff]
        %v3156 = vld [vmem:[%s2937 + $0x139] sm:$0xff]
        %v3157 = vld [vmem:[%s2937 + $0x141] sm:$0xff]
        %v3158 = vld [vmem:[%s2937 + $0x151] sm:$0xff]
        %v3159 = vld [vmem:[%s2937 + $0x159] sm:$0xff]
        %v3160 = vld [vmem:[%s2937 + $0x169] sm:$0xff]
        %v3161 = vld [vmem:[%s2937 + $0x171] sm:$0xff]
        %3162 = vst.msk [vmem:[#allocation3 + $0x40] sm:$0xff] %vm998, %v3130
        %3163 = vst.msk [vmem:[#allocation3 + $0xa8] sm:$0xff] %vm998, %v3131
        %3164 = vst.msk [vmem:[#allocation3 + $0x110] sm:$0xff] %vm998, %v3132
        %3165 = vst.msk [vmem:[#allocation3 + $0x178] sm:$0xff] %vm998, %v3133
        %3166 = vst.msk [vmem:[#allocation3 + $0x1e0] sm:$0xff] %vm998, %v3134
        %3167 = vst.msk [vmem:[#allocation3 + $0x248] sm:$0xff] %vm998, %v3135
        %3168 = vst.msk [vmem:[#allocation3 + $0x2b0] sm:$0xff] %vm998, %v3136
        %3169 = vst.msk [vmem:[#allocation3 + $0x318] sm:$0xff] %vm998, %v3137
        %3170 = vst.msk [vmem:[#allocation3 + $0x380] sm:$0xff] %vm998, %v3138
        %3171 = vst.msk [vmem:[#allocation3 + $0x3e8] sm:$0xff] %vm998, %v3139
        %3172 = vst.msk [vmem:[#allocation3 + $0x450] sm:$0xff] %vm998, %v3140
        %3173 = vst.msk [vmem:[#allocation3 + $0x4b8] sm:$0xff] %vm998, %v3141
        %3174 = vst.msk [vmem:[#allocation3 + $0x520] sm:$0xff] %vm998, %v3142
        %3175 = vst.msk [vmem:[#allocation3 + $0x588] sm:$0xff] %vm998, %v3143
        %3176 = vst.msk [vmem:[#allocation3 + $0x5f0] sm:$0xff] %vm998, %v3144
        %3177 = vst.msk [vmem:[#allocation3 + $0x658] sm:$0xff] %vm998, %v3145
        %3178 = vst.msk [vmem:[#allocation3 + $0x6c0] sm:$0xff] %vm998, %v3146
        %3179 = vst.msk [vmem:[#allocation3 + $0x728] sm:$0xff] %vm998, %v3147
        %3180 = vst.msk [vmem:[#allocation3 + $0x790] sm:$0xff] %vm998, %v3148
        %3181 = vst.msk [vmem:[#allocation3 + $0x7f8] sm:$0xff] %vm998, %v3149
        %3182 = vst.msk [vmem:[#allocation3 + $0x860] sm:$0xff] %vm998, %v3150
        %3183 = vst.msk [vmem:[#allocation3 + $0x8c8] sm:$0xff] %vm998, %v3151
        %3184 = vst.msk [vmem:[#allocation3 + $0x930] sm:$0xff] %vm998, %v3152
        %3185 = vst.msk [vmem:[#allocation3 + $0x998] sm:$0xff] %vm998, %v3153
        %3186 = vst.msk [vmem:[#allocation3 + $0xa00] sm:$0xff] %vm998, %v3154
        %3187 = vst.msk [vmem:[#allocation3 + $0xa68] sm:$0xff] %vm998, %v3155
        %3188 = vst.msk [vmem:[#allocation3 + $0xad0] sm:$0xff] %vm998, %v3156
        %3189 = vst.msk [vmem:[#allocation3 + $0xb38] sm:$0xff] %vm998, %v3157
        %3190 = vst.msk [vmem:[#allocation3 + $0xba0] sm:$0xff] %vm998, %v3158
        %3191 = vst.msk [vmem:[#allocation3 + $0xc08] sm:$0xff] %vm998, %v3159
        %3192 = vst.msk [vmem:[#allocation3 + $0xc70] sm:$0xff] %vm998, %v3160
        %3193 = vst.msk [vmem:[#allocation3 + $0xcd8] sm:$0xff] %vm998, %v3161
        %v3194 = vld [vmem:[%s2937 + $0x2] sm:$0xff]
        %v3195 = vld [vmem:[%s2937 + $0xa] sm:$0xff]
        %v3196 = vld [vmem:[%s2937 + $0x1a] sm:$0xff]
        %v3197 = vld [vmem:[%s2937 + $0x22] sm:$0xff]
        %v3198 = vld [vmem:[%s2937 + $0x32] sm:$0xff]
        %v3199 = vld [vmem:[%s2937 + $0x3a] sm:$0xff]
        %v3200 = vld [vmem:[%s2937 + $0x4a] sm:$0xff]
        %v3201 = vld [vmem:[%s2937 + $0x52] sm:$0xff]
        %v3202 = vld [vmem:[%s2937 + $0x62] sm:$0xff]
        %v3203 = vld [vmem:[%s2937 + $0x6a] sm:$0xff]
        %v3204 = vld [vmem:[%s2937 + $0x7a] sm:$0xff]
        %v3205 = vld [vmem:[%s2937 + $0x82] sm:$0xff]
        %v3206 = vld [vmem:[%s2937 + $0x92] sm:$0xff]
        %v3207 = vld [vmem:[%s2937 + $0x9a] sm:$0xff]
        %v3208 = vld [vmem:[%s2937 + $0xaa] sm:$0xff]
        %v3209 = vld [vmem:[%s2937 + $0xb2] sm:$0xff]
        %v3210 = vld [vmem:[%s2937 + $0xc2] sm:$0xff]
        %v3211 = vld [vmem:[%s2937 + $0xca] sm:$0xff]
        %v3212 = vld [vmem:[%s2937 + $0xda] sm:$0xff]
        %v3213 = vld [vmem:[%s2937 + $0xe2] sm:$0xff]
        %v3214 = vld [vmem:[%s2937 + $0xf2] sm:$0xff]
        %v3215 = vld [vmem:[%s2937 + $0xfa] sm:$0xff]
        %v3216 = vld [vmem:[%s2937 + $0x10a] sm:$0xff]
        %v3217 = vld [vmem:[%s2937 + $0x112] sm:$0xff]
        %v3218 = vld [vmem:[%s2937 + $0x122] sm:$0xff]
        %v3219 = vld [vmem:[%s2937 + $0x12a] sm:$0xff]
        %v3220 = vld [vmem:[%s2937 + $0x13a] sm:$0xff]
        %v3221 = vld [vmem:[%s2937 + $0x142] sm:$0xff]
        %v3222 = vld [vmem:[%s2937 + $0x152] sm:$0xff]
        %v3223 = vld [vmem:[%s2937 + $0x15a] sm:$0xff]
        %v3224 = vld [vmem:[%s2937 + $0x16a] sm:$0xff]
        %v3225 = vld [vmem:[%s2937 + $0x172] sm:$0xff]
        %3258 = vrot.lane.b32.xlu0 %v3194, 64
        %v3259 = vpop.permute.xlu0 %3258
        %3260 = vrot.lane.b32.xlu0 %v3195, 64
        %v3261 = vpop.permute.xlu0 %3260
        %3262 = vrot.lane.b32.xlu0 %v3196, 64
        %v3263 = vpop.permute.xlu0 %3262
        %3264 = vrot.lane.b32.xlu0 %v3197, 64
        %v3265 = vpop.permute.xlu0 %3264
        %3266 = vrot.lane.b32.xlu0 %v3198, 64
        %v3267 = vpop.permute.xlu0 %3266
        %3268 = vrot.lane.b32.xlu0 %v3199, 64
        %v3269 = vpop.permute.xlu0 %3268
        %3270 = vrot.lane.b32.xlu0 %v3200, 64
        %v3271 = vpop.permute.xlu0 %3270
        %3272 = vrot.lane.b32.xlu0 %v3201, 64
        %v3273 = vpop.permute.xlu0 %3272
        %3274 = vrot.lane.b32.xlu0 %v3202, 64
        %v3275 = vpop.permute.xlu0 %3274
        %3276 = vrot.lane.b32.xlu0 %v3203, 64
        %v3277 = vpop.permute.xlu0 %3276
        %3278 = vrot.lane.b32.xlu0 %v3204, 64
        %v3279 = vpop.permute.xlu0 %3278
        %3280 = vrot.lane.b32.xlu0 %v3205, 64
        %v3281 = vpop.permute.xlu0 %3280
        %3282 = vrot.lane.b32.xlu0 %v3206, 64
        %v3283 = vpop.permute.xlu0 %3282
        %3284 = vrot.lane.b32.xlu0 %v3207, 64
        %v3285 = vpop.permute.xlu0 %3284
        %3286 = vrot.lane.b32.xlu0 %v3208, 64
        %v3287 = vpop.permute.xlu0 %3286
        %3288 = vrot.lane.b32.xlu0 %v3209, 64
        %v3289 = vpop.permute.xlu0 %3288
        %3290 = vrot.lane.b32.xlu0 %v3210, 64
        %v3291 = vpop.permute.xlu0 %3290
        %3292 = vrot.lane.b32.xlu0 %v3211, 64
        %v3293 = vpop.permute.xlu0 %3292
        %3294 = vrot.lane.b32.xlu0 %v3212, 64
        %v3295 = vpop.permute.xlu0 %3294
        %3296 = vrot.lane.b32.xlu0 %v3213, 64
        %v3297 = vpop.permute.xlu0 %3296
        %3298 = vrot.lane.b32.xlu0 %v3214, 64
        %v3299 = vpop.permute.xlu0 %3298
        %3300 = vrot.lane.b32.xlu0 %v3215, 64
        %v3301 = vpop.permute.xlu0 %3300
        %3302 = vrot.lane.b32.xlu0 %v3216, 64
        %v3303 = vpop.permute.xlu0 %3302
        %3304 = vrot.lane.b32.xlu0 %v3217, 64
        %v3305 = vpop.permute.xlu0 %3304
        %3306 = vrot.lane.b32.xlu0 %v3218, 64
        %v3307 = vpop.permute.xlu0 %3306
        %3308 = vrot.lane.b32.xlu0 %v3219, 64
        %v3309 = vpop.permute.xlu0 %3308
        %3310 = vrot.lane.b32.xlu0 %v3220, 64
        %v3311 = vpop.permute.xlu0 %3310
        %3312 = vrot.lane.b32.xlu0 %v3221, 64
        %v3313 = vpop.permute.xlu0 %3312
        %3314 = vrot.lane.b32.xlu0 %v3222, 64
        %v3315 = vpop.permute.xlu0 %3314
        %3316 = vrot.lane.b32.xlu0 %v3223, 64
        %v3317 = vpop.permute.xlu0 %3316
        %3318 = vrot.lane.b32.xlu0 %v3224, 64
        %v3319 = vpop.permute.xlu0 %3318
        %3320 = vrot.lane.b32.xlu0 %v3225, 64
        %v3321 = vpop.permute.xlu0 %3320
        %3354 = vst.msk [vmem:[#allocation3 + $0x40] sm:$0xff] %vm1303, %v3259
        %3355 = vst.msk [vmem:[#allocation3 + $0xa8] sm:$0xff] %vm1303, %v3261
        %3356 = vst.msk [vmem:[#allocation3 + $0x110] sm:$0xff] %vm1303, %v3263
        %3357 = vst.msk [vmem:[#allocation3 + $0x178] sm:$0xff] %vm1303, %v3265
        %3358 = vst.msk [vmem:[#allocation3 + $0x1e0] sm:$0xff] %vm1303, %v3267
        %3359 = vst.msk [vmem:[#allocation3 + $0x248] sm:$0xff] %vm1303, %v3269
        %3360 = vst.msk [vmem:[#allocation3 + $0x2b0] sm:$0xff] %vm1303, %v3271
        %3361 = vst.msk [vmem:[#allocation3 + $0x318] sm:$0xff] %vm1303, %v3273
        %3362 = vst.msk [vmem:[#allocation3 + $0x380] sm:$0xff] %vm1303, %v3275
        %3363 = vst.msk [vmem:[#allocation3 + $0x3e8] sm:$0xff] %vm1303, %v3277
        %3364 = vst.msk [vmem:[#allocation3 + $0x450] sm:$0xff] %vm1303, %v3279
        %3365 = vst.msk [vmem:[#allocation3 + $0x4b8] sm:$0xff] %vm1303, %v3281
        %3366 = vst.msk [vmem:[#allocation3 + $0x520] sm:$0xff] %vm1303, %v3283
        %3367 = vst.msk [vmem:[#allocation3 + $0x588] sm:$0xff] %vm1303, %v3285
        %3368 = vst.msk [vmem:[#allocation3 + $0x5f0] sm:$0xff] %vm1303, %v3287
        %3369 = vst.msk [vmem:[#allocation3 + $0x658] sm:$0xff] %vm1303, %v3289
        %3370 = vst.msk [vmem:[#allocation3 + $0x6c0] sm:$0xff] %vm1303, %v3291
        %3371 = vst.msk [vmem:[#allocation3 + $0x728] sm:$0xff] %vm1303, %v3293
        %3372 = vst.msk [vmem:[#allocation3 + $0x790] sm:$0xff] %vm1303, %v3295
        %3373 = vst.msk [vmem:[#allocation3 + $0x7f8] sm:$0xff] %vm1303, %v3297
        %3374 = vst.msk [vmem:[#allocation3 + $0x860] sm:$0xff] %vm1303, %v3299
        %3375 = vst.msk [vmem:[#allocation3 + $0x8c8] sm:$0xff] %vm1303, %v3301
        %3376 = vst.msk [vmem:[#allocation3 + $0x930] sm:$0xff] %vm1303, %v3303
        %3377 = vst.msk [vmem:[#allocation3 + $0x998] sm:$0xff] %vm1303, %v3305
        %3378 = vst.msk [vmem:[#allocation3 + $0xa00] sm:$0xff] %vm1303, %v3307
        %3379 = vst.msk [vmem:[#allocation3 + $0xa68] sm:$0xff] %vm1303, %v3309
        %3380 = vst.msk [vmem:[#allocation3 + $0xad0] sm:$0xff] %vm1303, %v3311
        %3381 = vst.msk [vmem:[#allocation3 + $0xb38] sm:$0xff] %vm1303, %v3313
        %3382 = vst.msk [vmem:[#allocation3 + $0xba0] sm:$0xff] %vm1303, %v3315
        %3383 = vst.msk [vmem:[#allocation3 + $0xc08] sm:$0xff] %vm1303, %v3317
        %3384 = vst.msk [vmem:[#allocation3 + $0xc70] sm:$0xff] %vm1303, %v3319
        %3385 = vst.msk [vmem:[#allocation3 + $0xcd8] sm:$0xff] %vm1303, %v3321
        %v3386 = vld [vmem:[%s2937 + $0x3] sm:$0xff]
        %v3387 = vld [vmem:[%s2937 + $0xb] sm:$0xff]
        %v3388 = vld [vmem:[%s2937 + $0x1b] sm:$0xff]
        %v3389 = vld [vmem:[%s2937 + $0x23] sm:$0xff]
        %v3390 = vld [vmem:[%s2937 + $0x33] sm:$0xff]
        %v3391 = vld [vmem:[%s2937 + $0x3b] sm:$0xff]
        %v3392 = vld [vmem:[%s2937 + $0x4b] sm:$0xff]
        %v3393 = vld [vmem:[%s2937 + $0x53] sm:$0xff]
        %v3394 = vld [vmem:[%s2937 + $0x63] sm:$0xff]
        %v3395 = vld [vmem:[%s2937 + $0x6b] sm:$0xff]
        %v3396 = vld [vmem:[%s2937 + $0x7b] sm:$0xff]
        %v3397 = vld [vmem:[%s2937 + $0x83] sm:$0xff]
        %v3398 = vld [vmem:[%s2937 + $0x93] sm:$0xff]
        %v3399 = vld [vmem:[%s2937 + $0x9b] sm:$0xff]
        %v3400 = vld [vmem:[%s2937 + $0xab] sm:$0xff]
        %v3401 = vld [vmem:[%s2937 + $0xb3] sm:$0xff]
        %v3402 = vld [vmem:[%s2937 + $0xc3] sm:$0xff]
        %v3403 = vld [vmem:[%s2937 + $0xcb] sm:$0xff]
        %v3404 = vld [vmem:[%s2937 + $0xdb] sm:$0xff]
        %v3405 = vld [vmem:[%s2937 + $0xe3] sm:$0xff]
        %v3406 = vld [vmem:[%s2937 + $0xf3] sm:$0xff]
        %v3407 = vld [vmem:[%s2937 + $0xfb] sm:$0xff]
        %v3408 = vld [vmem:[%s2937 + $0x10b] sm:$0xff]
        %v3409 = vld [vmem:[%s2937 + $0x113] sm:$0xff]
        %v3410 = vld [vmem:[%s2937 + $0x123] sm:$0xff]
        %v3411 = vld [vmem:[%s2937 + $0x12b] sm:$0xff]
        %v3412 = vld [vmem:[%s2937 + $0x13b] sm:$0xff]
        %v3413 = vld [vmem:[%s2937 + $0x143] sm:$0xff]
        %v3414 = vld [vmem:[%s2937 + $0x153] sm:$0xff]
        %v3415 = vld [vmem:[%s2937 + $0x15b] sm:$0xff]
        %v3416 = vld [vmem:[%s2937 + $0x16b] sm:$0xff]
        %v3417 = vld [vmem:[%s2937 + $0x173] sm:$0xff]
        %3418 = vst.msk [vmem:[#allocation3 + $0x48] sm:$0xff] %vm998, %v3386
        %3419 = vst.msk [vmem:[#allocation3 + $0xb0] sm:$0xff] %vm998, %v3387
        %3420 = vst.msk [vmem:[#allocation3 + $0x118] sm:$0xff] %vm998, %v3388
        %3421 = vst.msk [vmem:[#allocation3 + $0x180] sm:$0xff] %vm998, %v3389
        %3422 = vst.msk [vmem:[#allocation3 + $0x1e8] sm:$0xff] %vm998, %v3390
        %3423 = vst.msk [vmem:[#allocation3 + $0x250] sm:$0xff] %vm998, %v3391
        %3424 = vst.msk [vmem:[#allocation3 + $0x2b8] sm:$0xff] %vm998, %v3392
        %3425 = vst.msk [vmem:[#allocation3 + $0x320] sm:$0xff] %vm998, %v3393
        %3426 = vst.msk [vmem:[#allocation3 + $0x388] sm:$0xff] %vm998, %v3394
        %3427 = vst.msk [vmem:[#allocation3 + $0x3f0] sm:$0xff] %vm998, %v3395
        %3428 = vst.msk [vmem:[#allocation3 + $0x458] sm:$0xff] %vm998, %v3396
        %3429 = vst.msk [vmem:[#allocation3 + $0x4c0] sm:$0xff] %vm998, %v3397
        %3430 = vst.msk [vmem:[#allocation3 + $0x528] sm:$0xff] %vm998, %v3398
        %3431 = vst.msk [vmem:[#allocation3 + $0x590] sm:$0xff] %vm998, %v3399
        %3432 = vst.msk [vmem:[#allocation3 + $0x5f8] sm:$0xff] %vm998, %v3400
        %3433 = vst.msk [vmem:[#allocation3 + $0x660] sm:$0xff] %vm998, %v3401
        %3434 = vst.msk [vmem:[#allocation3 + $0x6c8] sm:$0xff] %vm998, %v3402
        %3435 = vst.msk [vmem:[#allocation3 + $0x730] sm:$0xff] %vm998, %v3403
        %3436 = vst.msk [vmem:[#allocation3 + $0x798] sm:$0xff] %vm998, %v3404
        %3437 = vst.msk [vmem:[#allocation3 + $0x800] sm:$0xff] %vm998, %v3405
        %3438 = vst.msk [vmem:[#allocation3 + $0x868] sm:$0xff] %vm998, %v3406
        %3439 = vst.msk [vmem:[#allocation3 + $0x8d0] sm:$0xff] %vm998, %v3407
        %3440 = vst.msk [vmem:[#allocation3 + $0x938] sm:$0xff] %vm998, %v3408
        %3441 = vst.msk [vmem:[#allocation3 + $0x9a0] sm:$0xff] %vm998, %v3409
        %3442 = vst.msk [vmem:[#allocation3 + $0xa08] sm:$0xff] %vm998, %v3410
        %3443 = vst.msk [vmem:[#allocation3 + $0xa70] sm:$0xff] %vm998, %v3411
        %3444 = vst.msk [vmem:[#allocation3 + $0xad8] sm:$0xff] %vm998, %v3412
        %3445 = vst.msk [vmem:[#allocation3 + $0xb40] sm:$0xff] %vm998, %v3413
        %3446 = vst.msk [vmem:[#allocation3 + $0xba8] sm:$0xff] %vm998, %v3414
        %3447 = vst.msk [vmem:[#allocation3 + $0xc10] sm:$0xff] %vm998, %v3415
        %3448 = vst.msk [vmem:[#allocation3 + $0xc78] sm:$0xff] %vm998, %v3416
        %3449 = vst.msk [vmem:[#allocation3 + $0xce0] sm:$0xff] %vm998, %v3417
        %v3450 = vld [vmem:[%s2937 + $0x4] sm:$0xff]
        %v3451 = vld [vmem:[%s2937 + $0xc] sm:$0xff]
        %v3452 = vld [vmem:[%s2937 + $0x1c] sm:$0xff]
        %v3453 = vld [vmem:[%s2937 + $0x24] sm:$0xff]
        %v3454 = vld [vmem:[%s2937 + $0x34] sm:$0xff]
        %v3455 = vld [vmem:[%s2937 + $0x3c] sm:$0xff]
        %v3456 = vld [vmem:[%s2937 + $0x4c] sm:$0xff]
        %v3457 = vld [vmem:[%s2937 + $0x54] sm:$0xff]
        %v3458 = vld [vmem:[%s2937 + $0x64] sm:$0xff]
        %v3459 = vld [vmem:[%s2937 + $0x6c] sm:$0xff]
        %v3460 = vld [vmem:[%s2937 + $0x7c] sm:$0xff]
        %v3461 = vld [vmem:[%s2937 + $0x84] sm:$0xff]
        %v3462 = vld [vmem:[%s2937 + $0x94] sm:$0xff]
        %v3463 = vld [vmem:[%s2937 + $0x9c] sm:$0xff]
        %v3464 = vld [vmem:[%s2937 + $0xac] sm:$0xff]
        %v3465 = vld [vmem:[%s2937 + $0xb4] sm:$0xff]
        %v3466 = vld [vmem:[%s2937 + $0xc4] sm:$0xff]
        %v3467 = vld [vmem:[%s2937 + $0xcc] sm:$0xff]
        %v3468 = vld [vmem:[%s2937 + $0xdc] sm:$0xff]
        %v3469 = vld [vmem:[%s2937 + $0xe4] sm:$0xff]
        %v3470 = vld [vmem:[%s2937 + $0xf4] sm:$0xff]
        %v3471 = vld [vmem:[%s2937 + $0xfc] sm:$0xff]
        %v3472 = vld [vmem:[%s2937 + $0x10c] sm:$0xff]
        %v3473 = vld [vmem:[%s2937 + $0x114] sm:$0xff]
        %v3474 = vld [vmem:[%s2937 + $0x124] sm:$0xff]
        %v3475 = vld [vmem:[%s2937 + $0x12c] sm:$0xff]
        %v3476 = vld [vmem:[%s2937 + $0x13c] sm:$0xff]
        %v3477 = vld [vmem:[%s2937 + $0x144] sm:$0xff]
        %v3478 = vld [vmem:[%s2937 + $0x154] sm:$0xff]
        %v3479 = vld [vmem:[%s2937 + $0x15c] sm:$0xff]
        %v3480 = vld [vmem:[%s2937 + $0x16c] sm:$0xff]
        %v3481 = vld [vmem:[%s2937 + $0x174] sm:$0xff]
        %3514 = vrot.lane.b32.xlu0 %v3450, 64
        %v3515 = vpop.permute.xlu0 %3514
        %3516 = vrot.lane.b32.xlu0 %v3451, 64
        %v3517 = vpop.permute.xlu0 %3516
        %3518 = vrot.lane.b32.xlu0 %v3452, 64
        %v3519 = vpop.permute.xlu0 %3518
        %3520 = vrot.lane.b32.xlu0 %v3453, 64
        %v3521 = vpop.permute.xlu0 %3520
        %3522 = vrot.lane.b32.xlu0 %v3454, 64
        %v3523 = vpop.permute.xlu0 %3522
        %3524 = vrot.lane.b32.xlu0 %v3455, 64
        %v3525 = vpop.permute.xlu0 %3524
        %3526 = vrot.lane.b32.xlu0 %v3456, 64
        %v3527 = vpop.permute.xlu0 %3526
        %3528 = vrot.lane.b32.xlu0 %v3457, 64
        %v3529 = vpop.permute.xlu0 %3528
        %3530 = vrot.lane.b32.xlu0 %v3458, 64
        %v3531 = vpop.permute.xlu0 %3530
        %3532 = vrot.lane.b32.xlu0 %v3459, 64
        %v3533 = vpop.permute.xlu0 %3532
        %3534 = vrot.lane.b32.xlu0 %v3460, 64
        %v3535 = vpop.permute.xlu0 %3534
        %3536 = vrot.lane.b32.xlu0 %v3461, 64
        %v3537 = vpop.permute.xlu0 %3536
        %3538 = vrot.lane.b32.xlu0 %v3462, 64
        %v3539 = vpop.permute.xlu0 %3538
        %3540 = vrot.lane.b32.xlu0 %v3463, 64
        %v3541 = vpop.permute.xlu0 %3540
        %3542 = vrot.lane.b32.xlu0 %v3464, 64
        %v3543 = vpop.permute.xlu0 %3542
        %3544 = vrot.lane.b32.xlu0 %v3465, 64
        %v3545 = vpop.permute.xlu0 %3544
        %3546 = vrot.lane.b32.xlu0 %v3466, 64
        %v3547 = vpop.permute.xlu0 %3546
        %3548 = vrot.lane.b32.xlu0 %v3467, 64
        %v3549 = vpop.permute.xlu0 %3548
        %3550 = vrot.lane.b32.xlu0 %v3468, 64
        %v3551 = vpop.permute.xlu0 %3550
        %3552 = vrot.lane.b32.xlu0 %v3469, 64
        %v3553 = vpop.permute.xlu0 %3552
        %3554 = vrot.lane.b32.xlu0 %v3470, 64
        %v3555 = vpop.permute.xlu0 %3554
        %3556 = vrot.lane.b32.xlu0 %v3471, 64
        %v3557 = vpop.permute.xlu0 %3556
        %3558 = vrot.lane.b32.xlu0 %v3472, 64
        %v3559 = vpop.permute.xlu0 %3558
        %3560 = vrot.lane.b32.xlu0 %v3473, 64
        %v3561 = vpop.permute.xlu0 %3560
        %3562 = vrot.lane.b32.xlu0 %v3474, 64
        %v3563 = vpop.permute.xlu0 %3562
        %3564 = vrot.lane.b32.xlu0 %v3475, 64
        %v3565 = vpop.permute.xlu0 %3564
        %3566 = vrot.lane.b32.xlu0 %v3476, 64
        %v3567 = vpop.permute.xlu0 %3566
        %3568 = vrot.lane.b32.xlu0 %v3477, 64
        %v3569 = vpop.permute.xlu0 %3568
        %3570 = vrot.lane.b32.xlu0 %v3478, 64
        %v3571 = vpop.permute.xlu0 %3570
        %3572 = vrot.lane.b32.xlu0 %v3479, 64
        %v3573 = vpop.permute.xlu0 %3572
        %3574 = vrot.lane.b32.xlu0 %v3480, 64
        %v3575 = vpop.permute.xlu0 %3574
        %3576 = vrot.lane.b32.xlu0 %v3481, 64
        %v3577 = vpop.permute.xlu0 %3576
        %3610 = vst.msk [vmem:[#allocation3 + $0x48] sm:$0xff] %vm1303, %v3515
        %3611 = vst.msk [vmem:[#allocation3 + $0xb0] sm:$0xff] %vm1303, %v3517
        %3612 = vst.msk [vmem:[#allocation3 + $0x118] sm:$0xff] %vm1303, %v3519
        %3613 = vst.msk [vmem:[#allocation3 + $0x180] sm:$0xff] %vm1303, %v3521
        %3614 = vst.msk [vmem:[#allocation3 + $0x1e8] sm:$0xff] %vm1303, %v3523
        %3615 = vst.msk [vmem:[#allocation3 + $0x250] sm:$0xff] %vm1303, %v3525
        %3616 = vst.msk [vmem:[#allocation3 + $0x2b8] sm:$0xff] %vm1303, %v3527
        %3617 = vst.msk [vmem:[#allocation3 + $0x320] sm:$0xff] %vm1303, %v3529
        %3618 = vst.msk [vmem:[#allocation3 + $0x388] sm:$0xff] %vm1303, %v3531
        %3619 = vst.msk [vmem:[#allocation3 + $0x3f0] sm:$0xff] %vm1303, %v3533
        %3620 = vst.msk [vmem:[#allocation3 + $0x458] sm:$0xff] %vm1303, %v3535
        %3621 = vst.msk [vmem:[#allocation3 + $0x4c0] sm:$0xff] %vm1303, %v3537
        %3622 = vst.msk [vmem:[#allocation3 + $0x528] sm:$0xff] %vm1303, %v3539
        %3623 = vst.msk [vmem:[#allocation3 + $0x590] sm:$0xff] %vm1303, %v3541
        %3624 = vst.msk [vmem:[#allocation3 + $0x5f8] sm:$0xff] %vm1303, %v3543
        %3625 = vst.msk [vmem:[#allocation3 + $0x660] sm:$0xff] %vm1303, %v3545
        %3626 = vst.msk [vmem:[#allocation3 + $0x6c8] sm:$0xff] %vm1303, %v3547
        %3627 = vst.msk [vmem:[#allocation3 + $0x730] sm:$0xff] %vm1303, %v3549
        %3628 = vst.msk [vmem:[#allocation3 + $0x798] sm:$0xff] %vm1303, %v3551
        %3629 = vst.msk [vmem:[#allocation3 + $0x800] sm:$0xff] %vm1303, %v3553
        %3630 = vst.msk [vmem:[#allocation3 + $0x868] sm:$0xff] %vm1303, %v3555
        %3631 = vst.msk [vmem:[#allocation3 + $0x8d0] sm:$0xff] %vm1303, %v3557
        %3632 = vst.msk [vmem:[#allocation3 + $0x938] sm:$0xff] %vm1303, %v3559
        %3633 = vst.msk [vmem:[#allocation3 + $0x9a0] sm:$0xff] %vm1303, %v3561
        %3634 = vst.msk [vmem:[#allocation3 + $0xa08] sm:$0xff] %vm1303, %v3563
        %3635 = vst.msk [vmem:[#allocation3 + $0xa70] sm:$0xff] %vm1303, %v3565
        %3636 = vst.msk [vmem:[#allocation3 + $0xad8] sm:$0xff] %vm1303, %v3567
        %3637 = vst.msk [vmem:[#allocation3 + $0xb40] sm:$0xff] %vm1303, %v3569
        %3638 = vst.msk [vmem:[#allocation3 + $0xba8] sm:$0xff] %vm1303, %v3571
        %3639 = vst.msk [vmem:[#allocation3 + $0xc10] sm:$0xff] %vm1303, %v3573
        %3640 = vst.msk [vmem:[#allocation3 + $0xc78] sm:$0xff] %vm1303, %v3575
        %3641 = vst.msk [vmem:[#allocation3 + $0xce0] sm:$0xff] %vm1303, %v3577
        %s3642 = scalar_lea.vmem [#allocation2], 96
        %v3643 = vld [vmem:[%s3642] sm:$0xff]
        %v3644 = vld [vmem:[%s3642 + $0x8] sm:$0xff]
        %v3645 = vld [vmem:[%s3642 + $0x18] sm:$0xff]
        %v3646 = vld [vmem:[%s3642 + $0x20] sm:$0xff]
        %v3647 = vld [vmem:[%s3642 + $0x30] sm:$0xff]
        %v3648 = vld [vmem:[%s3642 + $0x38] sm:$0xff]
        %v3649 = vld [vmem:[%s3642 + $0x48] sm:$0xff]
        %v3650 = vld [vmem:[%s3642 + $0x50] sm:$0xff]
        %v3651 = vld [vmem:[%s3642 + $0x60] sm:$0xff]
        %v3652 = vld [vmem:[%s3642 + $0x68] sm:$0xff]
        %v3653 = vld [vmem:[%s3642 + $0x78] sm:$0xff]
        %v3654 = vld [vmem:[%s3642 + $0x80] sm:$0xff]
        %v3655 = vld [vmem:[%s3642 + $0x90] sm:$0xff]
        %v3656 = vld [vmem:[%s3642 + $0x98] sm:$0xff]
        %v3657 = vld [vmem:[%s3642 + $0xa8] sm:$0xff]
        %v3658 = vld [vmem:[%s3642 + $0xb0] sm:$0xff]
        %v3659 = vld [vmem:[%s3642 + $0xc0] sm:$0xff]
        %v3660 = vld [vmem:[%s3642 + $0xc8] sm:$0xff]
        %v3661 = vld [vmem:[%s3642 + $0xd8] sm:$0xff]
        %v3662 = vld [vmem:[%s3642 + $0xe0] sm:$0xff]
        %v3663 = vld [vmem:[%s3642 + $0xf0] sm:$0xff]
        %v3664 = vld [vmem:[%s3642 + $0xf8] sm:$0xff]
        %v3665 = vld [vmem:[%s3642 + $0x108] sm:$0xff]
        %v3666 = vld [vmem:[%s3642 + $0x110] sm:$0xff]
        %v3667 = vld [vmem:[%s3642 + $0x120] sm:$0xff]
        %v3668 = vld [vmem:[%s3642 + $0x128] sm:$0xff]
        %v3669 = vld [vmem:[%s3642 + $0x138] sm:$0xff]
        %v3670 = vld [vmem:[%s3642 + $0x140] sm:$0xff]
        %v3671 = vld [vmem:[%s3642 + $0x150] sm:$0xff]
        %v3672 = vld [vmem:[%s3642 + $0x158] sm:$0xff]
        %v3673 = vld [vmem:[%s3642 + $0x168] sm:$0xff]
        %v3674 = vld [vmem:[%s3642 + $0x170] sm:$0xff]
        %3675 = vst.msk [vmem:[#allocation3 + $0x50] sm:$0xff] %vm998, %v3643
        %3676 = vst.msk [vmem:[#allocation3 + $0xb8] sm:$0xff] %vm998, %v3644
        %3677 = vst.msk [vmem:[#allocation3 + $0x120] sm:$0xff] %vm998, %v3645
        %3678 = vst.msk [vmem:[#allocation3 + $0x188] sm:$0xff] %vm998, %v3646
        %3679 = vst.msk [vmem:[#allocation3 + $0x1f0] sm:$0xff] %vm998, %v3647
        %3680 = vst.msk [vmem:[#allocation3 + $0x258] sm:$0xff] %vm998, %v3648
        %3681 = vst.msk [vmem:[#allocation3 + $0x2c0] sm:$0xff] %vm998, %v3649
        %3682 = vst.msk [vmem:[#allocation3 + $0x328] sm:$0xff] %vm998, %v3650
        %3683 = vst.msk [vmem:[#allocation3 + $0x390] sm:$0xff] %vm998, %v3651
        %3684 = vst.msk [vmem:[#allocation3 + $0x3f8] sm:$0xff] %vm998, %v3652
        %3685 = vst.msk [vmem:[#allocation3 + $0x460] sm:$0xff] %vm998, %v3653
        %3686 = vst.msk [vmem:[#allocation3 + $0x4c8] sm:$0xff] %vm998, %v3654
        %3687 = vst.msk [vmem:[#allocation3 + $0x530] sm:$0xff] %vm998, %v3655
        %3688 = vst.msk [vmem:[#allocation3 + $0x598] sm:$0xff] %vm998, %v3656
        %3689 = vst.msk [vmem:[#allocation3 + $0x600] sm:$0xff] %vm998, %v3657
        %3690 = vst.msk [vmem:[#allocation3 + $0x668] sm:$0xff] %vm998, %v3658
        %3691 = vst.msk [vmem:[#allocation3 + $0x6d0] sm:$0xff] %vm998, %v3659
        %3692 = vst.msk [vmem:[#allocation3 + $0x738] sm:$0xff] %vm998, %v3660
        %3693 = vst.msk [vmem:[#allocation3 + $0x7a0] sm:$0xff] %vm998, %v3661
        %3694 = vst.msk [vmem:[#allocation3 + $0x808] sm:$0xff] %vm998, %v3662
        %3695 = vst.msk [vmem:[#allocation3 + $0x870] sm:$0xff] %vm998, %v3663
        %3696 = vst.msk [vmem:[#allocation3 + $0x8d8] sm:$0xff] %vm998, %v3664
        %3697 = vst.msk [vmem:[#allocation3 + $0x940] sm:$0xff] %vm998, %v3665
        %3698 = vst.msk [vmem:[#allocation3 + $0x9a8] sm:$0xff] %vm998, %v3666
        %3699 = vst.msk [vmem:[#allocation3 + $0xa10] sm:$0xff] %vm998, %v3667
        %3700 = vst.msk [vmem:[#allocation3 + $0xa78] sm:$0xff] %vm998, %v3668
        %3701 = vst.msk [vmem:[#allocation3 + $0xae0] sm:$0xff] %vm998, %v3669
        %3702 = vst.msk [vmem:[#allocation3 + $0xb48] sm:$0xff] %vm998, %v3670
        %3703 = vst.msk [vmem:[#allocation3 + $0xbb0] sm:$0xff] %vm998, %v3671
        %3704 = vst.msk [vmem:[#allocation3 + $0xc18] sm:$0xff] %vm998, %v3672
        %3705 = vst.msk [vmem:[#allocation3 + $0xc80] sm:$0xff] %vm998, %v3673
        %3706 = vst.msk [vmem:[#allocation3 + $0xce8] sm:$0xff] %vm998, %v3674
        %v3707 = vld [vmem:[%s3642 + $0x1] sm:$0xff]
        %v3708 = vld [vmem:[%s3642 + $0x9] sm:$0xff]
        %v3709 = vld [vmem:[%s3642 + $0x19] sm:$0xff]
        %v3710 = vld [vmem:[%s3642 + $0x21] sm:$0xff]
        %v3711 = vld [vmem:[%s3642 + $0x31] sm:$0xff]
        %v3712 = vld [vmem:[%s3642 + $0x39] sm:$0xff]
        %v3713 = vld [vmem:[%s3642 + $0x49] sm:$0xff]
        %v3714 = vld [vmem:[%s3642 + $0x51] sm:$0xff]
        %v3715 = vld [vmem:[%s3642 + $0x61] sm:$0xff]
        %v3716 = vld [vmem:[%s3642 + $0x69] sm:$0xff]
        %v3717 = vld [vmem:[%s3642 + $0x79] sm:$0xff]
        %v3718 = vld [vmem:[%s3642 + $0x81] sm:$0xff]
        %v3719 = vld [vmem:[%s3642 + $0x91] sm:$0xff]
        %v3720 = vld [vmem:[%s3642 + $0x99] sm:$0xff]
        %v3721 = vld [vmem:[%s3642 + $0xa9] sm:$0xff]
        %v3722 = vld [vmem:[%s3642 + $0xb1] sm:$0xff]
        %v3723 = vld [vmem:[%s3642 + $0xc1] sm:$0xff]
        %v3724 = vld [vmem:[%s3642 + $0xc9] sm:$0xff]
        %v3725 = vld [vmem:[%s3642 + $0xd9] sm:$0xff]
        %v3726 = vld [vmem:[%s3642 + $0xe1] sm:$0xff]
        %v3727 = vld [vmem:[%s3642 + $0xf1] sm:$0xff]
        %v3728 = vld [vmem:[%s3642 + $0xf9] sm:$0xff]
        %v3729 = vld [vmem:[%s3642 + $0x109] sm:$0xff]
        %v3730 = vld [vmem:[%s3642 + $0x111] sm:$0xff]
        %v3731 = vld [vmem:[%s3642 + $0x121] sm:$0xff]
        %v3732 = vld [vmem:[%s3642 + $0x129] sm:$0xff]
        %v3733 = vld [vmem:[%s3642 + $0x139] sm:$0xff]
        %v3734 = vld [vmem:[%s3642 + $0x141] sm:$0xff]
        %v3735 = vld [vmem:[%s3642 + $0x151] sm:$0xff]
        %v3736 = vld [vmem:[%s3642 + $0x159] sm:$0xff]
        %v3737 = vld [vmem:[%s3642 + $0x169] sm:$0xff]
        %v3738 = vld [vmem:[%s3642 + $0x171] sm:$0xff]
        %3771 = vrot.lane.b32.xlu0 %v3707, 64
        %v3772 = vpop.permute.xlu0 %3771
        %3773 = vrot.lane.b32.xlu0 %v3708, 64
        %v3774 = vpop.permute.xlu0 %3773
        %3775 = vrot.lane.b32.xlu0 %v3709, 64
        %v3776 = vpop.permute.xlu0 %3775
        %3777 = vrot.lane.b32.xlu0 %v3710, 64
        %v3778 = vpop.permute.xlu0 %3777
        %3779 = vrot.lane.b32.xlu0 %v3711, 64
        %v3780 = vpop.permute.xlu0 %3779
        %3781 = vrot.lane.b32.xlu0 %v3712, 64
        %v3782 = vpop.permute.xlu0 %3781
        %3783 = vrot.lane.b32.xlu0 %v3713, 64
        %v3784 = vpop.permute.xlu0 %3783
        %3785 = vrot.lane.b32.xlu0 %v3714, 64
        %v3786 = vpop.permute.xlu0 %3785
        %3787 = vrot.lane.b32.xlu0 %v3715, 64
        %v3788 = vpop.permute.xlu0 %3787
        %3789 = vrot.lane.b32.xlu0 %v3716, 64
        %v3790 = vpop.permute.xlu0 %3789
        %3791 = vrot.lane.b32.xlu0 %v3717, 64
        %v3792 = vpop.permute.xlu0 %3791
        %3793 = vrot.lane.b32.xlu0 %v3718, 64
        %v3794 = vpop.permute.xlu0 %3793
        %3795 = vrot.lane.b32.xlu0 %v3719, 64
        %v3796 = vpop.permute.xlu0 %3795
        %3797 = vrot.lane.b32.xlu0 %v3720, 64
        %v3798 = vpop.permute.xlu0 %3797
        %3799 = vrot.lane.b32.xlu0 %v3721, 64
        %v3800 = vpop.permute.xlu0 %3799
        %3801 = vrot.lane.b32.xlu0 %v3722, 64
        %v3802 = vpop.permute.xlu0 %3801
        %3803 = vrot.lane.b32.xlu0 %v3723, 64
        %v3804 = vpop.permute.xlu0 %3803
        %3805 = vrot.lane.b32.xlu0 %v3724, 64
        %v3806 = vpop.permute.xlu0 %3805
        %3807 = vrot.lane.b32.xlu0 %v3725, 64
        %v3808 = vpop.permute.xlu0 %3807
        %3809 = vrot.lane.b32.xlu0 %v3726, 64
        %v3810 = vpop.permute.xlu0 %3809
        %3811 = vrot.lane.b32.xlu0 %v3727, 64
        %v3812 = vpop.permute.xlu0 %3811
        %3813 = vrot.lane.b32.xlu0 %v3728, 64
        %v3814 = vpop.permute.xlu0 %3813
        %3815 = vrot.lane.b32.xlu0 %v3729, 64
        %v3816 = vpop.permute.xlu0 %3815
        %3817 = vrot.lane.b32.xlu0 %v3730, 64
        %v3818 = vpop.permute.xlu0 %3817
        %3819 = vrot.lane.b32.xlu0 %v3731, 64
        %v3820 = vpop.permute.xlu0 %3819
        %3821 = vrot.lane.b32.xlu0 %v3732, 64
        %v3822 = vpop.permute.xlu0 %3821
        %3823 = vrot.lane.b32.xlu0 %v3733, 64
        %v3824 = vpop.permute.xlu0 %3823
        %3825 = vrot.lane.b32.xlu0 %v3734, 64
        %v3826 = vpop.permute.xlu0 %3825
        %3827 = vrot.lane.b32.xlu0 %v3735, 64
        %v3828 = vpop.permute.xlu0 %3827
        %3829 = vrot.lane.b32.xlu0 %v3736, 64
        %v3830 = vpop.permute.xlu0 %3829
        %3831 = vrot.lane.b32.xlu0 %v3737, 64
        %v3832 = vpop.permute.xlu0 %3831
        %3833 = vrot.lane.b32.xlu0 %v3738, 64
        %v3834 = vpop.permute.xlu0 %3833
        %3867 = vst.msk [vmem:[#allocation3 + $0x50] sm:$0xff] %vm1303, %v3772
        %3868 = vst.msk [vmem:[#allocation3 + $0xb8] sm:$0xff] %vm1303, %v3774
        %3869 = vst.msk [vmem:[#allocation3 + $0x120] sm:$0xff] %vm1303, %v3776
        %3870 = vst.msk [vmem:[#allocation3 + $0x188] sm:$0xff] %vm1303, %v3778
        %3871 = vst.msk [vmem:[#allocation3 + $0x1f0] sm:$0xff] %vm1303, %v3780
        %3872 = vst.msk [vmem:[#allocation3 + $0x258] sm:$0xff] %vm1303, %v3782
        %3873 = vst.msk [vmem:[#allocation3 + $0x2c0] sm:$0xff] %vm1303, %v3784
        %3874 = vst.msk [vmem:[#allocation3 + $0x328] sm:$0xff] %vm1303, %v3786
        %3875 = vst.msk [vmem:[#allocation3 + $0x390] sm:$0xff] %vm1303, %v3788
        %3876 = vst.msk [vmem:[#allocation3 + $0x3f8] sm:$0xff] %vm1303, %v3790
        %3877 = vst.msk [vmem:[#allocation3 + $0x460] sm:$0xff] %vm1303, %v3792
        %3878 = vst.msk [vmem:[#allocation3 + $0x4c8] sm:$0xff] %vm1303, %v3794
        %3879 = vst.msk [vmem:[#allocation3 + $0x530] sm:$0xff] %vm1303, %v3796
        %3880 = vst.msk [vmem:[#allocation3 + $0x598] sm:$0xff] %vm1303, %v3798
        %3881 = vst.msk [vmem:[#allocation3 + $0x600] sm:$0xff] %vm1303, %v3800
        %3882 = vst.msk [vmem:[#allocation3 + $0x668] sm:$0xff] %vm1303, %v3802
        %3883 = vst.msk [vmem:[#allocation3 + $0x6d0] sm:$0xff] %vm1303, %v3804
        %3884 = vst.msk [vmem:[#allocation3 + $0x738] sm:$0xff] %vm1303, %v3806
        %3885 = vst.msk [vmem:[#allocation3 + $0x7a0] sm:$0xff] %vm1303, %v3808
        %3886 = vst.msk [vmem:[#allocation3 + $0x808] sm:$0xff] %vm1303, %v3810
        %3887 = vst.msk [vmem:[#allocation3 + $0x870] sm:$0xff] %vm1303, %v3812
        %3888 = vst.msk [vmem:[#allocation3 + $0x8d8] sm:$0xff] %vm1303, %v3814
        %3889 = vst.msk [vmem:[#allocation3 + $0x940] sm:$0xff] %vm1303, %v3816
        %3890 = vst.msk [vmem:[#allocation3 + $0x9a8] sm:$0xff] %vm1303, %v3818
        %3891 = vst.msk [vmem:[#allocation3 + $0xa10] sm:$0xff] %vm1303, %v3820
        %3892 = vst.msk [vmem:[#allocation3 + $0xa78] sm:$0xff] %vm1303, %v3822
        %3893 = vst.msk [vmem:[#allocation3 + $0xae0] sm:$0xff] %vm1303, %v3824
        %3894 = vst.msk [vmem:[#allocation3 + $0xb48] sm:$0xff] %vm1303, %v3826
        %3895 = vst.msk [vmem:[#allocation3 + $0xbb0] sm:$0xff] %vm1303, %v3828
        %3896 = vst.msk [vmem:[#allocation3 + $0xc18] sm:$0xff] %vm1303, %v3830
        %3897 = vst.msk [vmem:[#allocation3 + $0xc80] sm:$0xff] %vm1303, %v3832
        %3898 = vst.msk [vmem:[#allocation3 + $0xce8] sm:$0xff] %vm1303, %v3834
        %v3899 = vld [vmem:[%s3642 + $0x2] sm:$0xff]
        %v3900 = vld [vmem:[%s3642 + $0xa] sm:$0xff]
        %v3901 = vld [vmem:[%s3642 + $0x1a] sm:$0xff]
        %v3902 = vld [vmem:[%s3642 + $0x22] sm:$0xff]
        %v3903 = vld [vmem:[%s3642 + $0x32] sm:$0xff]
        %v3904 = vld [vmem:[%s3642 + $0x3a] sm:$0xff]
        %v3905 = vld [vmem:[%s3642 + $0x4a] sm:$0xff]
        %v3906 = vld [vmem:[%s3642 + $0x52] sm:$0xff]
        %v3907 = vld [vmem:[%s3642 + $0x62] sm:$0xff]
        %v3908 = vld [vmem:[%s3642 + $0x6a] sm:$0xff]
        %v3909 = vld [vmem:[%s3642 + $0x7a] sm:$0xff]
        %v3910 = vld [vmem:[%s3642 + $0x82] sm:$0xff]
        %v3911 = vld [vmem:[%s3642 + $0x92] sm:$0xff]
        %v3912 = vld [vmem:[%s3642 + $0x9a] sm:$0xff]
        %v3913 = vld [vmem:[%s3642 + $0xaa] sm:$0xff]
        %v3914 = vld [vmem:[%s3642 + $0xb2] sm:$0xff]
        %v3915 = vld [vmem:[%s3642 + $0xc2] sm:$0xff]
        %v3916 = vld [vmem:[%s3642 + $0xca] sm:$0xff]
        %v3917 = vld [vmem:[%s3642 + $0xda] sm:$0xff]
        %v3918 = vld [vmem:[%s3642 + $0xe2] sm:$0xff]
        %v3919 = vld [vmem:[%s3642 + $0xf2] sm:$0xff]
        %v3920 = vld [vmem:[%s3642 + $0xfa] sm:$0xff]
        %v3921 = vld [vmem:[%s3642 + $0x10a] sm:$0xff]
        %v3922 = vld [vmem:[%s3642 + $0x112] sm:$0xff]
        %v3923 = vld [vmem:[%s3642 + $0x122] sm:$0xff]
        %v3924 = vld [vmem:[%s3642 + $0x12a] sm:$0xff]
        %v3925 = vld [vmem:[%s3642 + $0x13a] sm:$0xff]
        %v3926 = vld [vmem:[%s3642 + $0x142] sm:$0xff]
        %v3927 = vld [vmem:[%s3642 + $0x152] sm:$0xff]
        %v3928 = vld [vmem:[%s3642 + $0x15a] sm:$0xff]
        %v3929 = vld [vmem:[%s3642 + $0x16a] sm:$0xff]
        %v3930 = vld [vmem:[%s3642 + $0x172] sm:$0xff]
        %3931 = vst.msk [vmem:[#allocation3 + $0x58] sm:$0xff] %vm998, %v3899
        %3932 = vst.msk [vmem:[#allocation3 + $0xc0] sm:$0xff] %vm998, %v3900
        %3933 = vst.msk [vmem:[#allocation3 + $0x128] sm:$0xff] %vm998, %v3901
        %3934 = vst.msk [vmem:[#allocation3 + $0x190] sm:$0xff] %vm998, %v3902
        %3935 = vst.msk [vmem:[#allocation3 + $0x1f8] sm:$0xff] %vm998, %v3903
        %3936 = vst.msk [vmem:[#allocation3 + $0x260] sm:$0xff] %vm998, %v3904
        %3937 = vst.msk [vmem:[#allocation3 + $0x2c8] sm:$0xff] %vm998, %v3905
        %3938 = vst.msk [vmem:[#allocation3 + $0x330] sm:$0xff] %vm998, %v3906
        %3939 = vst.msk [vmem:[#allocation3 + $0x398] sm:$0xff] %vm998, %v3907
        %3940 = vst.msk [vmem:[#allocation3 + $0x400] sm:$0xff] %vm998, %v3908
        %3941 = vst.msk [vmem:[#allocation3 + $0x468] sm:$0xff] %vm998, %v3909
        %3942 = vst.msk [vmem:[#allocation3 + $0x4d0] sm:$0xff] %vm998, %v3910
        %3943 = vst.msk [vmem:[#allocation3 + $0x538] sm:$0xff] %vm998, %v3911
        %3944 = vst.msk [vmem:[#allocation3 + $0x5a0] sm:$0xff] %vm998, %v3912
        %3945 = vst.msk [vmem:[#allocation3 + $0x608] sm:$0xff] %vm998, %v3913
        %3946 = vst.msk [vmem:[#allocation3 + $0x670] sm:$0xff] %vm998, %v3914
        %3947 = vst.msk [vmem:[#allocation3 + $0x6d8] sm:$0xff] %vm998, %v3915
        %3948 = vst.msk [vmem:[#allocation3 + $0x740] sm:$0xff] %vm998, %v3916
        %3949 = vst.msk [vmem:[#allocation3 + $0x7a8] sm:$0xff] %vm998, %v3917
        %3950 = vst.msk [vmem:[#allocation3 + $0x810] sm:$0xff] %vm998, %v3918
        %3951 = vst.msk [vmem:[#allocation3 + $0x878] sm:$0xff] %vm998, %v3919
        %3952 = vst.msk [vmem:[#allocation3 + $0x8e0] sm:$0xff] %vm998, %v3920
        %3953 = vst.msk [vmem:[#allocation3 + $0x948] sm:$0xff] %vm998, %v3921
        %3954 = vst.msk [vmem:[#allocation3 + $0x9b0] sm:$0xff] %vm998, %v3922
        %3955 = vst.msk [vmem:[#allocation3 + $0xa18] sm:$0xff] %vm998, %v3923
        %3956 = vst.msk [vmem:[#allocation3 + $0xa80] sm:$0xff] %vm998, %v3924
        %3957 = vst.msk [vmem:[#allocation3 + $0xae8] sm:$0xff] %vm998, %v3925
        %3958 = vst.msk [vmem:[#allocation3 + $0xb50] sm:$0xff] %vm998, %v3926
        %3959 = vst.msk [vmem:[#allocation3 + $0xbb8] sm:$0xff] %vm998, %v3927
        %3960 = vst.msk [vmem:[#allocation3 + $0xc20] sm:$0xff] %vm998, %v3928
        %3961 = vst.msk [vmem:[#allocation3 + $0xc88] sm:$0xff] %vm998, %v3929
        %3962 = vst.msk [vmem:[#allocation3 + $0xcf0] sm:$0xff] %vm998, %v3930
        %v3963 = vld [vmem:[%s3642 + $0x3] sm:$0xff]
        %v3964 = vld [vmem:[%s3642 + $0xb] sm:$0xff]
        %v3965 = vld [vmem:[%s3642 + $0x1b] sm:$0xff]
        %v3966 = vld [vmem:[%s3642 + $0x23] sm:$0xff]
        %v3967 = vld [vmem:[%s3642 + $0x33] sm:$0xff]
        %v3968 = vld [vmem:[%s3642 + $0x3b] sm:$0xff]
        %v3969 = vld [vmem:[%s3642 + $0x4b] sm:$0xff]
        %v3970 = vld [vmem:[%s3642 + $0x53] sm:$0xff]
        %v3971 = vld [vmem:[%s3642 + $0x63] sm:$0xff]
        %v3972 = vld [vmem:[%s3642 + $0x6b] sm:$0xff]
        %v3973 = vld [vmem:[%s3642 + $0x7b] sm:$0xff]
        %v3974 = vld [vmem:[%s3642 + $0x83] sm:$0xff]
        %v3975 = vld [vmem:[%s3642 + $0x93] sm:$0xff]
        %v3976 = vld [vmem:[%s3642 + $0x9b] sm:$0xff]
        %v3977 = vld [vmem:[%s3642 + $0xab] sm:$0xff]
        %v3978 = vld [vmem:[%s3642 + $0xb3] sm:$0xff]
        %v3979 = vld [vmem:[%s3642 + $0xc3] sm:$0xff]
        %v3980 = vld [vmem:[%s3642 + $0xcb] sm:$0xff]
        %v3981 = vld [vmem:[%s3642 + $0xdb] sm:$0xff]
        %v3982 = vld [vmem:[%s3642 + $0xe3] sm:$0xff]
        %v3983 = vld [vmem:[%s3642 + $0xf3] sm:$0xff]
        %v3984 = vld [vmem:[%s3642 + $0xfb] sm:$0xff]
        %v3985 = vld [vmem:[%s3642 + $0x10b] sm:$0xff]
        %v3986 = vld [vmem:[%s3642 + $0x113] sm:$0xff]
        %v3987 = vld [vmem:[%s3642 + $0x123] sm:$0xff]
        %v3988 = vld [vmem:[%s3642 + $0x12b] sm:$0xff]
        %v3989 = vld [vmem:[%s3642 + $0x13b] sm:$0xff]
        %v3990 = vld [vmem:[%s3642 + $0x143] sm:$0xff]
        %v3991 = vld [vmem:[%s3642 + $0x153] sm:$0xff]
        %v3992 = vld [vmem:[%s3642 + $0x15b] sm:$0xff]
        %v3993 = vld [vmem:[%s3642 + $0x16b] sm:$0xff]
        %v3994 = vld [vmem:[%s3642 + $0x173] sm:$0xff]
        %4027 = vrot.lane.b32.xlu0 %v3963, 64
        %v4028 = vpop.permute.xlu0 %4027
        %4029 = vrot.lane.b32.xlu0 %v3964, 64
        %v4030 = vpop.permute.xlu0 %4029
        %4031 = vrot.lane.b32.xlu0 %v3965, 64
        %v4032 = vpop.permute.xlu0 %4031
        %4033 = vrot.lane.b32.xlu0 %v3966, 64
        %v4034 = vpop.permute.xlu0 %4033
        %4035 = vrot.lane.b32.xlu0 %v3967, 64
        %v4036 = vpop.permute.xlu0 %4035
        %4037 = vrot.lane.b32.xlu0 %v3968, 64
        %v4038 = vpop.permute.xlu0 %4037
        %4039 = vrot.lane.b32.xlu0 %v3969, 64
        %v4040 = vpop.permute.xlu0 %4039
        %4041 = vrot.lane.b32.xlu0 %v3970, 64
        %v4042 = vpop.permute.xlu0 %4041
        %4043 = vrot.lane.b32.xlu0 %v3971, 64
        %v4044 = vpop.permute.xlu0 %4043
        %4045 = vrot.lane.b32.xlu0 %v3972, 64
        %v4046 = vpop.permute.xlu0 %4045
        %4047 = vrot.lane.b32.xlu0 %v3973, 64
        %v4048 = vpop.permute.xlu0 %4047
        %4049 = vrot.lane.b32.xlu0 %v3974, 64
        %v4050 = vpop.permute.xlu0 %4049
        %4051 = vrot.lane.b32.xlu0 %v3975, 64
        %v4052 = vpop.permute.xlu0 %4051
        %4053 = vrot.lane.b32.xlu0 %v3976, 64
        %v4054 = vpop.permute.xlu0 %4053
        %4055 = vrot.lane.b32.xlu0 %v3977, 64
        %v4056 = vpop.permute.xlu0 %4055
        %4057 = vrot.lane.b32.xlu0 %v3978, 64
        %v4058 = vpop.permute.xlu0 %4057
        %4059 = vrot.lane.b32.xlu0 %v3979, 64
        %v4060 = vpop.permute.xlu0 %4059
        %4061 = vrot.lane.b32.xlu0 %v3980, 64
        %v4062 = vpop.permute.xlu0 %4061
        %4063 = vrot.lane.b32.xlu0 %v3981, 64
        %v4064 = vpop.permute.xlu0 %4063
        %4065 = vrot.lane.b32.xlu0 %v3982, 64
        %v4066 = vpop.permute.xlu0 %4065
        %4067 = vrot.lane.b32.xlu0 %v3983, 64
        %v4068 = vpop.permute.xlu0 %4067
        %4069 = vrot.lane.b32.xlu0 %v3984, 64
        %v4070 = vpop.permute.xlu0 %4069
        %4071 = vrot.lane.b32.xlu0 %v3985, 64
        %v4072 = vpop.permute.xlu0 %4071
        %4073 = vrot.lane.b32.xlu0 %v3986, 64
        %v4074 = vpop.permute.xlu0 %4073
        %4075 = vrot.lane.b32.xlu0 %v3987, 64
        %v4076 = vpop.permute.xlu0 %4075
        %4077 = vrot.lane.b32.xlu0 %v3988, 64
        %v4078 = vpop.permute.xlu0 %4077
        %4079 = vrot.lane.b32.xlu0 %v3989, 64
        %v4080 = vpop.permute.xlu0 %4079
        %4081 = vrot.lane.b32.xlu0 %v3990, 64
        %v4082 = vpop.permute.xlu0 %4081
        %4083 = vrot.lane.b32.xlu0 %v3991, 64
        %v4084 = vpop.permute.xlu0 %4083
        %4085 = vrot.lane.b32.xlu0 %v3992, 64
        %v4086 = vpop.permute.xlu0 %4085
        %4087 = vrot.lane.b32.xlu0 %v3993, 64
        %v4088 = vpop.permute.xlu0 %4087
        %4089 = vrot.lane.b32.xlu0 %v3994, 64
        %v4090 = vpop.permute.xlu0 %4089
        %4123 = vst.msk [vmem:[#allocation3 + $0x58] sm:$0xff] %vm1303, %v4028
        %4124 = vst.msk [vmem:[#allocation3 + $0xc0] sm:$0xff] %vm1303, %v4030
        %4125 = vst.msk [vmem:[#allocation3 + $0x128] sm:$0xff] %vm1303, %v4032
        %4126 = vst.msk [vmem:[#allocation3 + $0x190] sm:$0xff] %vm1303, %v4034
        %4127 = vst.msk [vmem:[#allocation3 + $0x1f8] sm:$0xff] %vm1303, %v4036
        %4128 = vst.msk [vmem:[#allocation3 + $0x260] sm:$0xff] %vm1303, %v4038
        %4129 = vst.msk [vmem:[#allocation3 + $0x2c8] sm:$0xff] %vm1303, %v4040
        %4130 = vst.msk [vmem:[#allocation3 + $0x330] sm:$0xff] %vm1303, %v4042
        %4131 = vst.msk [vmem:[#allocation3 + $0x398] sm:$0xff] %vm1303, %v4044
        %4132 = vst.msk [vmem:[#allocation3 + $0x400] sm:$0xff] %vm1303, %v4046
        %4133 = vst.msk [vmem:[#allocation3 + $0x468] sm:$0xff] %vm1303, %v4048
        %4134 = vst.msk [vmem:[#allocation3 + $0x4d0] sm:$0xff] %vm1303, %v4050
        %4135 = vst.msk [vmem:[#allocation3 + $0x538] sm:$0xff] %vm1303, %v4052
        %4136 = vst.msk [vmem:[#allocation3 + $0x5a0] sm:$0xff] %vm1303, %v4054
        %4137 = vst.msk [vmem:[#allocation3 + $0x608] sm:$0xff] %vm1303, %v4056
        %4138 = vst.msk [vmem:[#allocation3 + $0x670] sm:$0xff] %vm1303, %v4058
        %4139 = vst.msk [vmem:[#allocation3 + $0x6d8] sm:$0xff] %vm1303, %v4060
        %4140 = vst.msk [vmem:[#allocation3 + $0x740] sm:$0xff] %vm1303, %v4062
        %4141 = vst.msk [vmem:[#allocation3 + $0x7a8] sm:$0xff] %vm1303, %v4064
        %4142 = vst.msk [vmem:[#allocation3 + $0x810] sm:$0xff] %vm1303, %v4066
        %4143 = vst.msk [vmem:[#allocation3 + $0x878] sm:$0xff] %vm1303, %v4068
        %4144 = vst.msk [vmem:[#allocation3 + $0x8e0] sm:$0xff] %vm1303, %v4070
        %4145 = vst.msk [vmem:[#allocation3 + $0x948] sm:$0xff] %vm1303, %v4072
        %4146 = vst.msk [vmem:[#allocation3 + $0x9b0] sm:$0xff] %vm1303, %v4074
        %4147 = vst.msk [vmem:[#allocation3 + $0xa18] sm:$0xff] %vm1303, %v4076
        %4148 = vst.msk [vmem:[#allocation3 + $0xa80] sm:$0xff] %vm1303, %v4078
        %4149 = vst.msk [vmem:[#allocation3 + $0xae8] sm:$0xff] %vm1303, %v4080
        %4150 = vst.msk [vmem:[#allocation3 + $0xb50] sm:$0xff] %vm1303, %v4082
        %4151 = vst.msk [vmem:[#allocation3 + $0xbb8] sm:$0xff] %vm1303, %v4084
        %4152 = vst.msk [vmem:[#allocation3 + $0xc20] sm:$0xff] %vm1303, %v4086
        %4153 = vst.msk [vmem:[#allocation3 + $0xc88] sm:$0xff] %vm1303, %v4088
        %4154 = vst.msk [vmem:[#allocation3 + $0xcf0] sm:$0xff] %vm1303, %v4090
        %v4155 = vld [vmem:[%s3642 + $0x4] sm:$0xff]
        %v4156 = vld [vmem:[%s3642 + $0xc] sm:$0xff]
        %v4157 = vld [vmem:[%s3642 + $0x1c] sm:$0xff]
        %v4158 = vld [vmem:[%s3642 + $0x24] sm:$0xff]
        %v4159 = vld [vmem:[%s3642 + $0x34] sm:$0xff]
        %v4160 = vld [vmem:[%s3642 + $0x3c] sm:$0xff]
        %v4161 = vld [vmem:[%s3642 + $0x4c] sm:$0xff]
        %v4162 = vld [vmem:[%s3642 + $0x54] sm:$0xff]
        %v4163 = vld [vmem:[%s3642 + $0x64] sm:$0xff]
        %v4164 = vld [vmem:[%s3642 + $0x6c] sm:$0xff]
        %v4165 = vld [vmem:[%s3642 + $0x7c] sm:$0xff]
        %v4166 = vld [vmem:[%s3642 + $0x84] sm:$0xff]
        %v4167 = vld [vmem:[%s3642 + $0x94] sm:$0xff]
        %v4168 = vld [vmem:[%s3642 + $0x9c] sm:$0xff]
        %v4169 = vld [vmem:[%s3642 + $0xac] sm:$0xff]
        %v4170 = vld [vmem:[%s3642 + $0xb4] sm:$0xff]
        %v4171 = vld [vmem:[%s3642 + $0xc4] sm:$0xff]
        %v4172 = vld [vmem:[%s3642 + $0xcc] sm:$0xff]
        %v4173 = vld [vmem:[%s3642 + $0xdc] sm:$0xff]
        %v4174 = vld [vmem:[%s3642 + $0xe4] sm:$0xff]
        %v4175 = vld [vmem:[%s3642 + $0xf4] sm:$0xff]
        %v4176 = vld [vmem:[%s3642 + $0xfc] sm:$0xff]
        %v4177 = vld [vmem:[%s3642 + $0x10c] sm:$0xff]
        %v4178 = vld [vmem:[%s3642 + $0x114] sm:$0xff]
        %v4179 = vld [vmem:[%s3642 + $0x124] sm:$0xff]
        %v4180 = vld [vmem:[%s3642 + $0x12c] sm:$0xff]
        %v4181 = vld [vmem:[%s3642 + $0x13c] sm:$0xff]
        %v4182 = vld [vmem:[%s3642 + $0x144] sm:$0xff]
        %v4183 = vld [vmem:[%s3642 + $0x154] sm:$0xff]
        %v4184 = vld [vmem:[%s3642 + $0x15c] sm:$0xff]
        %v4185 = vld [vmem:[%s3642 + $0x16c] sm:$0xff]
        %v4186 = vld [vmem:[%s3642 + $0x174] sm:$0xff]
        %4187 = vst.msk [vmem:[#allocation3 + $0x60] sm:$0xff] %vm998, %v4155
        %4188 = vst.msk [vmem:[#allocation3 + $0xc8] sm:$0xff] %vm998, %v4156
        %4189 = vst.msk [vmem:[#allocation3 + $0x130] sm:$0xff] %vm998, %v4157
        %4190 = vst.msk [vmem:[#allocation3 + $0x198] sm:$0xff] %vm998, %v4158
        %4191 = vst.msk [vmem:[#allocation3 + $0x200] sm:$0xff] %vm998, %v4159
        %4192 = vst.msk [vmem:[#allocation3 + $0x268] sm:$0xff] %vm998, %v4160
        %4193 = vst.msk [vmem:[#allocation3 + $0x2d0] sm:$0xff] %vm998, %v4161
        %4194 = vst.msk [vmem:[#allocation3 + $0x338] sm:$0xff] %vm998, %v4162
        %4195 = vst.msk [vmem:[#allocation3 + $0x3a0] sm:$0xff] %vm998, %v4163
        %4196 = vst.msk [vmem:[#allocation3 + $0x408] sm:$0xff] %vm998, %v4164
        %4197 = vst.msk [vmem:[#allocation3 + $0x470] sm:$0xff] %vm998, %v4165
        %4198 = vst.msk [vmem:[#allocation3 + $0x4d8] sm:$0xff] %vm998, %v4166
        %4199 = vst.msk [vmem:[#allocation3 + $0x540] sm:$0xff] %vm998, %v4167
        %4200 = vst.msk [vmem:[#allocation3 + $0x5a8] sm:$0xff] %vm998, %v4168
        %4201 = vst.msk [vmem:[#allocation3 + $0x610] sm:$0xff] %vm998, %v4169
        %4202 = vst.msk [vmem:[#allocation3 + $0x678] sm:$0xff] %vm998, %v4170
        %4203 = vst.msk [vmem:[#allocation3 + $0x6e0] sm:$0xff] %vm998, %v4171
        %4204 = vst.msk [vmem:[#allocation3 + $0x748] sm:$0xff] %vm998, %v4172
        %4205 = vst.msk [vmem:[#allocation3 + $0x7b0] sm:$0xff] %vm998, %v4173
        %4206 = vst.msk [vmem:[#allocation3 + $0x818] sm:$0xff] %vm998, %v4174
        %4207 = vst.msk [vmem:[#allocation3 + $0x880] sm:$0xff] %vm998, %v4175
        %4208 = vst.msk [vmem:[#allocation3 + $0x8e8] sm:$0xff] %vm998, %v4176
        %4209 = vst.msk [vmem:[#allocation3 + $0x950] sm:$0xff] %vm998, %v4177
        %4210 = vst.msk [vmem:[#allocation3 + $0x9b8] sm:$0xff] %vm998, %v4178
        %4211 = vst.msk [vmem:[#allocation3 + $0xa20] sm:$0xff] %vm998, %v4179
        %4212 = vst.msk [vmem:[#allocation3 + $0xa88] sm:$0xff] %vm998, %v4180
        %4213 = vst.msk [vmem:[#allocation3 + $0xaf0] sm:$0xff] %vm998, %v4181
        %4214 = vst.msk [vmem:[#allocation3 + $0xb58] sm:$0xff] %vm998, %v4182
        %4215 = vst.msk [vmem:[#allocation3 + $0xbc0] sm:$0xff] %vm998, %v4183
        %4216 = vst.msk [vmem:[#allocation3 + $0xc28] sm:$0xff] %vm998, %v4184
        %4217 = vst.msk [vmem:[#allocation3 + $0xc90] sm:$0xff] %vm998, %v4185
        %4218 = vst.msk [vmem:[#allocation3 + $0xcf8] sm:$0xff] %vm998, %v4186
        %v4219 = vld [vmem:[#allocation3] sm:$0xff]
        %v4220 = vld [vmem:[#allocation3 + $0x8] sm:$0xff]
        %v4221 = vld [vmem:[#allocation3 + $0x10] sm:$0xff]
        %v4222 = vld [vmem:[#allocation3 + $0x18] sm:$0xff]
        %v4223 = vld [vmem:[#allocation3 + $0x20] sm:$0xff]
        %v4224 = vld [vmem:[#allocation3 + $0x28] sm:$0xff]
        %v4225 = vld [vmem:[#allocation3 + $0x30] sm:$0xff]
        %v4226 = vld [vmem:[#allocation3 + $0x38] sm:$0xff]
        %v4227 = vld [vmem:[#allocation3 + $0x40] sm:$0xff]
        %v4228 = vld [vmem:[#allocation3 + $0x48] sm:$0xff]
        %v4229 = vld [vmem:[#allocation3 + $0x50] sm:$0xff]
        %v4230 = vld [vmem:[#allocation3 + $0x58] sm:$0xff]
        %v4231 = vld [vmem:[#allocation3 + $0x60] sm:$0xff]
        %v4232 = vld [vmem:[#allocation3 + $0x68] sm:$0xff]
        %v4233 = vld [vmem:[#allocation3 + $0x70] sm:$0xff]
        %v4234 = vld [vmem:[#allocation3 + $0x78] sm:$0xff]
        %v4235 = vld [vmem:[#allocation3 + $0x80] sm:$0xff]
        %v4236 = vld [vmem:[#allocation3 + $0x88] sm:$0xff]
        %v4237 = vld [vmem:[#allocation3 + $0x90] sm:$0xff]
        %v4238 = vld [vmem:[#allocation3 + $0x98] sm:$0xff]
        %v4239 = vld [vmem:[#allocation3 + $0xa0] sm:$0xff]
        %v4240 = vld [vmem:[#allocation3 + $0xa8] sm:$0xff]
        %v4241 = vld [vmem:[#allocation3 + $0xb0] sm:$0xff]
        %v4242 = vld [vmem:[#allocation3 + $0xb8] sm:$0xff]
        %v4243 = vld [vmem:[#allocation3 + $0xc0] sm:$0xff]
        %v4244 = vld [vmem:[#allocation3 + $0xc8] sm:$0xff]
        %v4245 = vld [vmem:[#allocation3 + $0xd0] sm:$0xff]
        %v4246 = vld [vmem:[#allocation3 + $0xd8] sm:$0xff]
        %v4247 = vld [vmem:[#allocation3 + $0xe0] sm:$0xff]
        %v4248 = vld [vmem:[#allocation3 + $0xe8] sm:$0xff]
        %v4249 = vld [vmem:[#allocation3 + $0xf0] sm:$0xff]
        %v4250 = vld [vmem:[#allocation3 + $0xf8] sm:$0xff]
        %v4251 = vld [vmem:[#allocation3 + $0x100] sm:$0xff]
        %v4252 = vld [vmem:[#allocation3 + $0x108] sm:$0xff]
        %v4253 = vld [vmem:[#allocation3 + $0x110] sm:$0xff]
        %v4254 = vld [vmem:[#allocation3 + $0x118] sm:$0xff]
        %v4255 = vld [vmem:[#allocation3 + $0x120] sm:$0xff]
        %v4256 = vld [vmem:[#allocation3 + $0x128] sm:$0xff]
        %v4257 = vld [vmem:[#allocation3 + $0x130] sm:$0xff]
        %v4258 = vld [vmem:[#allocation3 + $0x138] sm:$0xff]
        %v4259 = vld [vmem:[#allocation3 + $0x140] sm:$0xff]
        %v4260 = vld [vmem:[#allocation3 + $0x148] sm:$0xff]
        %v4261 = vld [vmem:[#allocation3 + $0x150] sm:$0xff]
        %v4262 = vld [vmem:[#allocation3 + $0x158] sm:$0xff]
        %v4263 = vld [vmem:[#allocation3 + $0x160] sm:$0xff]
        %v4264 = vld [vmem:[#allocation3 + $0x168] sm:$0xff]
        %v4265 = vld [vmem:[#allocation3 + $0x170] sm:$0xff]
        %v4266 = vld [vmem:[#allocation3 + $0x178] sm:$0xff]
        %v4267 = vld [vmem:[#allocation3 + $0x180] sm:$0xff]
        %v4268 = vld [vmem:[#allocation3 + $0x188] sm:$0xff]
        %v4269 = vld [vmem:[#allocation3 + $0x190] sm:$0xff]
        %v4270 = vld [vmem:[#allocation3 + $0x198] sm:$0xff]
        %v4271 = vld [vmem:[#allocation3 + $0x1a0] sm:$0xff]
        %v4272 = vld [vmem:[#allocation3 + $0x1a8] sm:$0xff]
        %v4273 = vld [vmem:[#allocation3 + $0x1b0] sm:$0xff]
        %v4274 = vld [vmem:[#allocation3 + $0x1b8] sm:$0xff]
        %v4275 = vld [vmem:[#allocation3 + $0x1c0] sm:$0xff]
        %v4276 = vld [vmem:[#allocation3 + $0x1c8] sm:$0xff]
        %v4277 = vld [vmem:[#allocation3 + $0x1d0] sm:$0xff]
        %v4278 = vld [vmem:[#allocation3 + $0x1d8] sm:$0xff]
        %v4279 = vld [vmem:[#allocation3 + $0x1e0] sm:$0xff]
        %v4280 = vld [vmem:[#allocation3 + $0x1e8] sm:$0xff]
        %v4281 = vld [vmem:[#allocation3 + $0x1f0] sm:$0xff]
        %v4282 = vld [vmem:[#allocation3 + $0x1f8] sm:$0xff]
        %v4283 = vld [vmem:[#allocation3 + $0x200] sm:$0xff]
        %v4284 = vld [vmem:[#allocation3 + $0x208] sm:$0xff]
        %v4285 = vld [vmem:[#allocation3 + $0x210] sm:$0xff]
        %v4286 = vld [vmem:[#allocation3 + $0x218] sm:$0xff]
        %v4287 = vld [vmem:[#allocation3 + $0x220] sm:$0xff]
        %v4288 = vld [vmem:[#allocation3 + $0x228] sm:$0xff]
        %v4289 = vld [vmem:[#allocation3 + $0x230] sm:$0xff]
        %v4290 = vld [vmem:[#allocation3 + $0x238] sm:$0xff]
        %v4291 = vld [vmem:[#allocation3 + $0x240] sm:$0xff]
        %v4292 = vld [vmem:[#allocation3 + $0x248] sm:$0xff]
        %v4293 = vld [vmem:[#allocation3 + $0x250] sm:$0xff]
        %v4294 = vld [vmem:[#allocation3 + $0x258] sm:$0xff]
        %v4295 = vld [vmem:[#allocation3 + $0x260] sm:$0xff]
        %v4296 = vld [vmem:[#allocation3 + $0x268] sm:$0xff]
        %v4297 = vld [vmem:[#allocation3 + $0x270] sm:$0xff]
        %v4298 = vld [vmem:[#allocation3 + $0x278] sm:$0xff]
        %v4299 = vld [vmem:[#allocation3 + $0x280] sm:$0xff]
        %v4300 = vld [vmem:[#allocation3 + $0x288] sm:$0xff]
        %v4301 = vld [vmem:[#allocation3 + $0x290] sm:$0xff]
        %v4302 = vld [vmem:[#allocation3 + $0x298] sm:$0xff]
        %v4303 = vld [vmem:[#allocation3 + $0x2a0] sm:$0xff]
        %v4304 = vld [vmem:[#allocation3 + $0x2a8] sm:$0xff]
        %v4305 = vld [vmem:[#allocation3 + $0x2b0] sm:$0xff]
        %v4306 = vld [vmem:[#allocation3 + $0x2b8] sm:$0xff]
        %v4307 = vld [vmem:[#allocation3 + $0x2c0] sm:$0xff]
        %v4308 = vld [vmem:[#allocation3 + $0x2c8] sm:$0xff]
        %v4309 = vld [vmem:[#allocation3 + $0x2d0] sm:$0xff]
        %v4310 = vld [vmem:[#allocation3 + $0x2d8] sm:$0xff]
        %v4311 = vld [vmem:[#allocation3 + $0x2e0] sm:$0xff]
        %v4312 = vld [vmem:[#allocation3 + $0x2e8] sm:$0xff]
        %v4313 = vld [vmem:[#allocation3 + $0x2f0] sm:$0xff]
        %v4314 = vld [vmem:[#allocation3 + $0x2f8] sm:$0xff]
        %v4315 = vld [vmem:[#allocation3 + $0x300] sm:$0xff]
        %v4316 = vld [vmem:[#allocation3 + $0x308] sm:$0xff]
        %v4317 = vld [vmem:[#allocation3 + $0x310] sm:$0xff]
        %v4318 = vld [vmem:[#allocation3 + $0x318] sm:$0xff]
        %v4319 = vld [vmem:[#allocation3 + $0x320] sm:$0xff]
        %v4320 = vld [vmem:[#allocation3 + $0x328] sm:$0xff]
        %v4321 = vld [vmem:[#allocation3 + $0x330] sm:$0xff]
        %v4322 = vld [vmem:[#allocation3 + $0x338] sm:$0xff]
        %v4323 = vld [vmem:[#allocation3 + $0x340] sm:$0xff]
        %v4324 = vld [vmem:[#allocation3 + $0x348] sm:$0xff]
        %v4325 = vld [vmem:[#allocation3 + $0x350] sm:$0xff]
        %v4326 = vld [vmem:[#allocation3 + $0x358] sm:$0xff]
        %v4327 = vld [vmem:[#allocation3 + $0x360] sm:$0xff]
        %v4328 = vld [vmem:[#allocation3 + $0x368] sm:$0xff]
        %v4329 = vld [vmem:[#allocation3 + $0x370] sm:$0xff]
        %v4330 = vld [vmem:[#allocation3 + $0x378] sm:$0xff]
        %v4331 = vld [vmem:[#allocation3 + $0x380] sm:$0xff]
        %v4332 = vld [vmem:[#allocation3 + $0x388] sm:$0xff]
        %v4333 = vld [vmem:[#allocation3 + $0x390] sm:$0xff]
        %v4334 = vld [vmem:[#allocation3 + $0x398] sm:$0xff]
        %v4335 = vld [vmem:[#allocation3 + $0x3a0] sm:$0xff]
        %v4336 = vld [vmem:[#allocation3 + $0x3a8] sm:$0xff]
        %v4337 = vld [vmem:[#allocation3 + $0x3b0] sm:$0xff]
        %v4338 = vld [vmem:[#allocation3 + $0x3b8] sm:$0xff]
        %v4339 = vld [vmem:[#allocation3 + $0x3c0] sm:$0xff]
        %v4340 = vld [vmem:[#allocation3 + $0x3c8] sm:$0xff]
        %v4341 = vld [vmem:[#allocation3 + $0x3d0] sm:$0xff]
        %v4342 = vld [vmem:[#allocation3 + $0x3d8] sm:$0xff]
        %v4343 = vld [vmem:[#allocation3 + $0x3e0] sm:$0xff]
        %v4344 = vld [vmem:[#allocation3 + $0x3e8] sm:$0xff]
        %v4345 = vld [vmem:[#allocation3 + $0x3f0] sm:$0xff]
        %v4346 = vld [vmem:[#allocation3 + $0x3f8] sm:$0xff]
        %v4347 = vld [vmem:[#allocation3 + $0x400] sm:$0xff]
        %v4348 = vld [vmem:[#allocation3 + $0x408] sm:$0xff]
        %v4349 = vld [vmem:[#allocation3 + $0x410] sm:$0xff]
        %v4350 = vld [vmem:[#allocation3 + $0x418] sm:$0xff]
        %v4351 = vld [vmem:[#allocation3 + $0x420] sm:$0xff]
        %v4352 = vld [vmem:[#allocation3 + $0x428] sm:$0xff]
        %v4353 = vld [vmem:[#allocation3 + $0x430] sm:$0xff]
        %v4354 = vld [vmem:[#allocation3 + $0x438] sm:$0xff]
        %v4355 = vld [vmem:[#allocation3 + $0x440] sm:$0xff]
        %v4356 = vld [vmem:[#allocation3 + $0x448] sm:$0xff]
        %v4357 = vld [vmem:[#allocation3 + $0x450] sm:$0xff]
        %v4358 = vld [vmem:[#allocation3 + $0x458] sm:$0xff]
        %v4359 = vld [vmem:[#allocation3 + $0x460] sm:$0xff]
        %v4360 = vld [vmem:[#allocation3 + $0x468] sm:$0xff]
        %v4361 = vld [vmem:[#allocation3 + $0x470] sm:$0xff]
        %v4362 = vld [vmem:[#allocation3 + $0x478] sm:$0xff]
        %v4363 = vld [vmem:[#allocation3 + $0x480] sm:$0xff]
        %v4364 = vld [vmem:[#allocation3 + $0x488] sm:$0xff]
        %v4365 = vld [vmem:[#allocation3 + $0x490] sm:$0xff]
        %v4366 = vld [vmem:[#allocation3 + $0x498] sm:$0xff]
        %v4367 = vld [vmem:[#allocation3 + $0x4a0] sm:$0xff]
        %v4368 = vld [vmem:[#allocation3 + $0x4a8] sm:$0xff]
        %v4369 = vld [vmem:[#allocation3 + $0x4b0] sm:$0xff]
        %v4370 = vld [vmem:[#allocation3 + $0x4b8] sm:$0xff]
        %v4371 = vld [vmem:[#allocation3 + $0x4c0] sm:$0xff]
        %v4372 = vld [vmem:[#allocation3 + $0x4c8] sm:$0xff]
        %v4373 = vld [vmem:[#allocation3 + $0x4d0] sm:$0xff]
        %v4374 = vld [vmem:[#allocation3 + $0x4d8] sm:$0xff]
        %v4375 = vld [vmem:[#allocation3 + $0x4e0] sm:$0xff]
        %v4376 = vld [vmem:[#allocation3 + $0x4e8] sm:$0xff]
        %v4377 = vld [vmem:[#allocation3 + $0x4f0] sm:$0xff]
        %v4378 = vld [vmem:[#allocation3 + $0x4f8] sm:$0xff]
        %v4379 = vld [vmem:[#allocation3 + $0x500] sm:$0xff]
        %v4380 = vld [vmem:[#allocation3 + $0x508] sm:$0xff]
        %v4381 = vld [vmem:[#allocation3 + $0x510] sm:$0xff]
        %v4382 = vld [vmem:[#allocation3 + $0x518] sm:$0xff]
        %v4383 = vld [vmem:[#allocation3 + $0x520] sm:$0xff]
        %v4384 = vld [vmem:[#allocation3 + $0x528] sm:$0xff]
        %v4385 = vld [vmem:[#allocation3 + $0x530] sm:$0xff]
        %v4386 = vld [vmem:[#allocation3 + $0x538] sm:$0xff]
        %v4387 = vld [vmem:[#allocation3 + $0x540] sm:$0xff]
        %v4388 = vld [vmem:[#allocation3 + $0x548] sm:$0xff]
        %v4389 = vld [vmem:[#allocation3 + $0x550] sm:$0xff]
        %v4390 = vld [vmem:[#allocation3 + $0x558] sm:$0xff]
        %v4391 = vld [vmem:[#allocation3 + $0x560] sm:$0xff]
        %v4392 = vld [vmem:[#allocation3 + $0x568] sm:$0xff]
        %v4393 = vld [vmem:[#allocation3 + $0x570] sm:$0xff]
        %v4394 = vld [vmem:[#allocation3 + $0x578] sm:$0xff]
        %v4395 = vld [vmem:[#allocation3 + $0x580] sm:$0xff]
        %v4396 = vld [vmem:[#allocation3 + $0x588] sm:$0xff]
        %v4397 = vld [vmem:[#allocation3 + $0x590] sm:$0xff]
        %v4398 = vld [vmem:[#allocation3 + $0x598] sm:$0xff]
        %v4399 = vld [vmem:[#allocation3 + $0x5a0] sm:$0xff]
        %v4400 = vld [vmem:[#allocation3 + $0x5a8] sm:$0xff]
        %v4401 = vld [vmem:[#allocation3 + $0x5b0] sm:$0xff]
        %v4402 = vld [vmem:[#allocation3 + $0x5b8] sm:$0xff]
        %v4403 = vld [vmem:[#allocation3 + $0x5c0] sm:$0xff]
        %v4404 = vld [vmem:[#allocation3 + $0x5c8] sm:$0xff]
        %v4405 = vld [vmem:[#allocation3 + $0x5d0] sm:$0xff]
        %v4406 = vld [vmem:[#allocation3 + $0x5d8] sm:$0xff]
        %v4407 = vld [vmem:[#allocation3 + $0x5e0] sm:$0xff]
        %v4408 = vld [vmem:[#allocation3 + $0x5e8] sm:$0xff]
        %v4409 = vld [vmem:[#allocation3 + $0x5f0] sm:$0xff]
        %v4410 = vld [vmem:[#allocation3 + $0x5f8] sm:$0xff]
        %v4411 = vld [vmem:[#allocation3 + $0x600] sm:$0xff]
        %v4412 = vld [vmem:[#allocation3 + $0x608] sm:$0xff]
        %v4413 = vld [vmem:[#allocation3 + $0x610] sm:$0xff]
        %v4414 = vld [vmem:[#allocation3 + $0x618] sm:$0xff]
        %v4415 = vld [vmem:[#allocation3 + $0x620] sm:$0xff]
        %v4416 = vld [vmem:[#allocation3 + $0x628] sm:$0xff]
        %v4417 = vld [vmem:[#allocation3 + $0x630] sm:$0xff]
        %v4418 = vld [vmem:[#allocation3 + $0x638] sm:$0xff]
        %v4419 = vld [vmem:[#allocation3 + $0x640] sm:$0xff]
        %v4420 = vld [vmem:[#allocation3 + $0x648] sm:$0xff]
        %v4421 = vld [vmem:[#allocation3 + $0x650] sm:$0xff]
        %v4422 = vld [vmem:[#allocation3 + $0x658] sm:$0xff]
        %v4423 = vld [vmem:[#allocation3 + $0x660] sm:$0xff]
        %v4424 = vld [vmem:[#allocation3 + $0x668] sm:$0xff]
        %v4425 = vld [vmem:[#allocation3 + $0x670] sm:$0xff]
        %v4426 = vld [vmem:[#allocation3 + $0x678] sm:$0xff]
        %v4427 = vld [vmem:[#allocation3 + $0x680] sm:$0xff]
        %v4428 = vld [vmem:[#allocation3 + $0x688] sm:$0xff]
        %v4429 = vld [vmem:[#allocation3 + $0x690] sm:$0xff]
        %v4430 = vld [vmem:[#allocation3 + $0x698] sm:$0xff]
        %v4431 = vld [vmem:[#allocation3 + $0x6a0] sm:$0xff]
        %v4432 = vld [vmem:[#allocation3 + $0x6a8] sm:$0xff]
        %v4433 = vld [vmem:[#allocation3 + $0x6b0] sm:$0xff]
        %v4434 = vld [vmem:[#allocation3 + $0x6b8] sm:$0xff]
        %v4435 = vld [vmem:[#allocation3 + $0x6c0] sm:$0xff]
        %v4436 = vld [vmem:[#allocation3 + $0x6c8] sm:$0xff]
        %v4437 = vld [vmem:[#allocation3 + $0x6d0] sm:$0xff]
        %v4438 = vld [vmem:[#allocation3 + $0x6d8] sm:$0xff]
        %v4439 = vld [vmem:[#allocation3 + $0x6e0] sm:$0xff]
        %v4440 = vld [vmem:[#allocation3 + $0x6e8] sm:$0xff]
        %v4441 = vld [vmem:[#allocation3 + $0x6f0] sm:$0xff]
        %v4442 = vld [vmem:[#allocation3 + $0x6f8] sm:$0xff]
        %v4443 = vld [vmem:[#allocation3 + $0x700] sm:$0xff]
        %v4444 = vld [vmem:[#allocation3 + $0x708] sm:$0xff]
        %v4445 = vld [vmem:[#allocation3 + $0x710] sm:$0xff]
        %v4446 = vld [vmem:[#allocation3 + $0x718] sm:$0xff]
        %v4447 = vld [vmem:[#allocation3 + $0x720] sm:$0xff]
        %v4448 = vld [vmem:[#allocation3 + $0x728] sm:$0xff]
        %v4449 = vld [vmem:[#allocation3 + $0x730] sm:$0xff]
        %v4450 = vld [vmem:[#allocation3 + $0x738] sm:$0xff]
        %v4451 = vld [vmem:[#allocation3 + $0x740] sm:$0xff]
        %v4452 = vld [vmem:[#allocation3 + $0x748] sm:$0xff]
        %v4453 = vld [vmem:[#allocation3 + $0x750] sm:$0xff]
        %v4454 = vld [vmem:[#allocation3 + $0x758] sm:$0xff]
        %v4455 = vld [vmem:[#allocation3 + $0x760] sm:$0xff]
        %v4456 = vld [vmem:[#allocation3 + $0x768] sm:$0xff]
        %v4457 = vld [vmem:[#allocation3 + $0x770] sm:$0xff]
        %v4458 = vld [vmem:[#allocation3 + $0x778] sm:$0xff]
        %v4459 = vld [vmem:[#allocation3 + $0x780] sm:$0xff]
        %v4460 = vld [vmem:[#allocation3 + $0x788] sm:$0xff]
        %v4461 = vld [vmem:[#allocation3 + $0x790] sm:$0xff]
        %v4462 = vld [vmem:[#allocation3 + $0x798] sm:$0xff]
        %v4463 = vld [vmem:[#allocation3 + $0x7a0] sm:$0xff]
        %v4464 = vld [vmem:[#allocation3 + $0x7a8] sm:$0xff]
        %v4465 = vld [vmem:[#allocation3 + $0x7b0] sm:$0xff]
        %v4466 = vld [vmem:[#allocation3 + $0x7b8] sm:$0xff]
        %v4467 = vld [vmem:[#allocation3 + $0x7c0] sm:$0xff]
        %v4468 = vld [vmem:[#allocation3 + $0x7c8] sm:$0xff]
        %v4469 = vld [vmem:[#allocation3 + $0x7d0] sm:$0xff]
        %v4470 = vld [vmem:[#allocation3 + $0x7d8] sm:$0xff]
        %v4471 = vld [vmem:[#allocation3 + $0x7e0] sm:$0xff]
        %v4472 = vld [vmem:[#allocation3 + $0x7e8] sm:$0xff]
        %v4473 = vld [vmem:[#allocation3 + $0x7f0] sm:$0xff]
        %v4474 = vld [vmem:[#allocation3 + $0x7f8] sm:$0xff]
        %v4475 = vld [vmem:[#allocation3 + $0x800] sm:$0xff]
        %v4476 = vld [vmem:[#allocation3 + $0x808] sm:$0xff]
        %v4477 = vld [vmem:[#allocation3 + $0x810] sm:$0xff]
        %v4478 = vld [vmem:[#allocation3 + $0x818] sm:$0xff]
        %v4479 = vld [vmem:[#allocation3 + $0x820] sm:$0xff]
        %v4480 = vld [vmem:[#allocation3 + $0x828] sm:$0xff]
        %v4481 = vld [vmem:[#allocation3 + $0x830] sm:$0xff]
        %v4482 = vld [vmem:[#allocation3 + $0x838] sm:$0xff]
        %v4483 = vld [vmem:[#allocation3 + $0x840] sm:$0xff]
        %v4484 = vld [vmem:[#allocation3 + $0x848] sm:$0xff]
        %v4485 = vld [vmem:[#allocation3 + $0x850] sm:$0xff]
        %v4486 = vld [vmem:[#allocation3 + $0x858] sm:$0xff]
        %v4487 = vld [vmem:[#allocation3 + $0x860] sm:$0xff]
        %v4488 = vld [vmem:[#allocation3 + $0x868] sm:$0xff]
        %v4489 = vld [vmem:[#allocation3 + $0x870] sm:$0xff]
        %v4490 = vld [vmem:[#allocation3 + $0x878] sm:$0xff]
        %v4491 = vld [vmem:[#allocation3 + $0x880] sm:$0xff]
        %v4492 = vld [vmem:[#allocation3 + $0x888] sm:$0xff]
        %v4493 = vld [vmem:[#allocation3 + $0x890] sm:$0xff]
        %v4494 = vld [vmem:[#allocation3 + $0x898] sm:$0xff]
        %v4495 = vld [vmem:[#allocation3 + $0x8a0] sm:$0xff]
        %v4496 = vld [vmem:[#allocation3 + $0x8a8] sm:$0xff]
        %v4497 = vld [vmem:[#allocation3 + $0x8b0] sm:$0xff]
        %v4498 = vld [vmem:[#allocation3 + $0x8b8] sm:$0xff]
        %v4499 = vld [vmem:[#allocation3 + $0x8c0] sm:$0xff]
        %v4500 = vld [vmem:[#allocation3 + $0x8c8] sm:$0xff]
        %v4501 = vld [vmem:[#allocation3 + $0x8d0] sm:$0xff]
        %v4502 = vld [vmem:[#allocation3 + $0x8d8] sm:$0xff]
        %v4503 = vld [vmem:[#allocation3 + $0x8e0] sm:$0xff]
        %v4504 = vld [vmem:[#allocation3 + $0x8e8] sm:$0xff]
        %v4505 = vld [vmem:[#allocation3 + $0x8f0] sm:$0xff]
        %v4506 = vld [vmem:[#allocation3 + $0x8f8] sm:$0xff]
        %v4507 = vld [vmem:[#allocation3 + $0x900] sm:$0xff]
        %v4508 = vld [vmem:[#allocation3 + $0x908] sm:$0xff]
        %v4509 = vld [vmem:[#allocation3 + $0x910] sm:$0xff]
        %v4510 = vld [vmem:[#allocation3 + $0x918] sm:$0xff]
        %v4511 = vld [vmem:[#allocation3 + $0x920] sm:$0xff]
        %v4512 = vld [vmem:[#allocation3 + $0x928] sm:$0xff]
        %v4513 = vld [vmem:[#allocation3 + $0x930] sm:$0xff]
        %v4514 = vld [vmem:[#allocation3 + $0x938] sm:$0xff]
        %v4515 = vld [vmem:[#allocation3 + $0x940] sm:$0xff]
        %v4516 = vld [vmem:[#allocation3 + $0x948] sm:$0xff]
        %v4517 = vld [vmem:[#allocation3 + $0x950] sm:$0xff]
        %v4518 = vld [vmem:[#allocation3 + $0x958] sm:$0xff]
        %v4519 = vld [vmem:[#allocation3 + $0x960] sm:$0xff]
        %v4520 = vld [vmem:[#allocation3 + $0x968] sm:$0xff]
        %v4521 = vld [vmem:[#allocation3 + $0x970] sm:$0xff]
        %v4522 = vld [vmem:[#allocation3 + $0x978] sm:$0xff]
        %v4523 = vld [vmem:[#allocation3 + $0x980] sm:$0xff]
        %v4524 = vld [vmem:[#allocation3 + $0x988] sm:$0xff]
        %v4525 = vld [vmem:[#allocation3 + $0x990] sm:$0xff]
        %v4526 = vld [vmem:[#allocation3 + $0x998] sm:$0xff]
        %v4527 = vld [vmem:[#allocation3 + $0x9a0] sm:$0xff]
        %v4528 = vld [vmem:[#allocation3 + $0x9a8] sm:$0xff]
        %v4529 = vld [vmem:[#allocation3 + $0x9b0] sm:$0xff]
        %v4530 = vld [vmem:[#allocation3 + $0x9b8] sm:$0xff]
        %v4531 = vld [vmem:[#allocation3 + $0x9c0] sm:$0xff]
        %v4532 = vld [vmem:[#allocation3 + $0x9c8] sm:$0xff]
        %v4533 = vld [vmem:[#allocation3 + $0x9d0] sm:$0xff]
        %v4534 = vld [vmem:[#allocation3 + $0x9d8] sm:$0xff]
        %v4535 = vld [vmem:[#allocation3 + $0x9e0] sm:$0xff]
        %v4536 = vld [vmem:[#allocation3 + $0x9e8] sm:$0xff]
        %v4537 = vld [vmem:[#allocation3 + $0x9f0] sm:$0xff]
        %v4538 = vld [vmem:[#allocation3 + $0x9f8] sm:$0xff]
        %v4539 = vld [vmem:[#allocation3 + $0xa00] sm:$0xff]
        %v4540 = vld [vmem:[#allocation3 + $0xa08] sm:$0xff]
        %v4541 = vld [vmem:[#allocation3 + $0xa10] sm:$0xff]
        %v4542 = vld [vmem:[#allocation3 + $0xa18] sm:$0xff]
        %v4543 = vld [vmem:[#allocation3 + $0xa20] sm:$0xff]
        %v4544 = vld [vmem:[#allocation3 + $0xa28] sm:$0xff]
        %v4545 = vld [vmem:[#allocation3 + $0xa30] sm:$0xff]
        %v4546 = vld [vmem:[#allocation3 + $0xa38] sm:$0xff]
        %v4547 = vld [vmem:[#allocation3 + $0xa40] sm:$0xff]
        %v4548 = vld [vmem:[#allocation3 + $0xa48] sm:$0xff]
        %v4549 = vld [vmem:[#allocation3 + $0xa50] sm:$0xff]
        %v4550 = vld [vmem:[#allocation3 + $0xa58] sm:$0xff]
        %v4551 = vld [vmem:[#allocation3 + $0xa60] sm:$0xff]
        %v4552 = vld [vmem:[#allocation3 + $0xa68] sm:$0xff]
        %v4553 = vld [vmem:[#allocation3 + $0xa70] sm:$0xff]
        %v4554 = vld [vmem:[#allocation3 + $0xa78] sm:$0xff]
        %v4555 = vld [vmem:[#allocation3 + $0xa80] sm:$0xff]
        %v4556 = vld [vmem:[#allocation3 + $0xa88] sm:$0xff]
        %v4557 = vld [vmem:[#allocation3 + $0xa90] sm:$0xff]
        %v4558 = vld [vmem:[#allocation3 + $0xa98] sm:$0xff]
        %v4559 = vld [vmem:[#allocation3 + $0xaa0] sm:$0xff]
        %v4560 = vld [vmem:[#allocation3 + $0xaa8] sm:$0xff]
        %v4561 = vld [vmem:[#allocation3 + $0xab0] sm:$0xff]
        %v4562 = vld [vmem:[#allocation3 + $0xab8] sm:$0xff]
        %v4563 = vld [vmem:[#allocation3 + $0xac0] sm:$0xff]
        %v4564 = vld [vmem:[#allocation3 + $0xac8] sm:$0xff]
        %v4565 = vld [vmem:[#allocation3 + $0xad0] sm:$0xff]
        %v4566 = vld [vmem:[#allocation3 + $0xad8] sm:$0xff]
        %v4567 = vld [vmem:[#allocation3 + $0xae0] sm:$0xff]
        %v4568 = vld [vmem:[#allocation3 + $0xae8] sm:$0xff]
        %v4569 = vld [vmem:[#allocation3 + $0xaf0] sm:$0xff]
        %v4570 = vld [vmem:[#allocation3 + $0xaf8] sm:$0xff]
        %v4571 = vld [vmem:[#allocation3 + $0xb00] sm:$0xff]
        %v4572 = vld [vmem:[#allocation3 + $0xb08] sm:$0xff]
        %v4573 = vld [vmem:[#allocation3 + $0xb10] sm:$0xff]
        %v4574 = vld [vmem:[#allocation3 + $0xb18] sm:$0xff]
        %v4575 = vld [vmem:[#allocation3 + $0xb20] sm:$0xff]
        %v4576 = vld [vmem:[#allocation3 + $0xb28] sm:$0xff]
        %v4577 = vld [vmem:[#allocation3 + $0xb30] sm:$0xff]
        %v4578 = vld [vmem:[#allocation3 + $0xb38] sm:$0xff]
        %v4579 = vld [vmem:[#allocation3 + $0xb40] sm:$0xff]
        %v4580 = vld [vmem:[#allocation3 + $0xb48] sm:$0xff]
        %v4581 = vld [vmem:[#allocation3 + $0xb50] sm:$0xff]
        %v4582 = vld [vmem:[#allocation3 + $0xb58] sm:$0xff]
        %v4583 = vld [vmem:[#allocation3 + $0xb60] sm:$0xff]
        %v4584 = vld [vmem:[#allocation3 + $0xb68] sm:$0xff]
        %v4585 = vld [vmem:[#allocation3 + $0xb70] sm:$0xff]
        %v4586 = vld [vmem:[#allocation3 + $0xb78] sm:$0xff]
        %v4587 = vld [vmem:[#allocation3 + $0xb80] sm:$0xff]
        %v4588 = vld [vmem:[#allocation3 + $0xb88] sm:$0xff]
        %v4589 = vld [vmem:[#allocation3 + $0xb90] sm:$0xff]
        %v4590 = vld [vmem:[#allocation3 + $0xb98] sm:$0xff]
        %v4591 = vld [vmem:[#allocation3 + $0xba0] sm:$0xff]
        %v4592 = vld [vmem:[#allocation3 + $0xba8] sm:$0xff]
        %v4593 = vld [vmem:[#allocation3 + $0xbb0] sm:$0xff]
        %v4594 = vld [vmem:[#allocation3 + $0xbb8] sm:$0xff]
        %v4595 = vld [vmem:[#allocation3 + $0xbc0] sm:$0xff]
        %v4596 = vld [vmem:[#allocation3 + $0xbc8] sm:$0xff]
        %v4597 = vld [vmem:[#allocation3 + $0xbd0] sm:$0xff]
        %v4598 = vld [vmem:[#allocation3 + $0xbd8] sm:$0xff]
        %v4599 = vld [vmem:[#allocation3 + $0xbe0] sm:$0xff]
        %v4600 = vld [vmem:[#allocation3 + $0xbe8] sm:$0xff]
        %v4601 = vld [vmem:[#allocation3 + $0xbf0] sm:$0xff]
        %v4602 = vld [vmem:[#allocation3 + $0xbf8] sm:$0xff]
        %v4603 = vld [vmem:[#allocation3 + $0xc00] sm:$0xff]
        %v4604 = vld [vmem:[#allocation3 + $0xc08] sm:$0xff]
        %v4605 = vld [vmem:[#allocation3 + $0xc10] sm:$0xff]
        %v4606 = vld [vmem:[#allocation3 + $0xc18] sm:$0xff]
        %v4607 = vld [vmem:[#allocation3 + $0xc20] sm:$0xff]
        %v4608 = vld [vmem:[#allocation3 + $0xc28] sm:$0xff]
        %v4609 = vld [vmem:[#allocation3 + $0xc30] sm:$0xff]
        %v4610 = vld [vmem:[#allocation3 + $0xc38] sm:$0xff]
        %v4611 = vld [vmem:[#allocation3 + $0xc40] sm:$0xff]
        %v4612 = vld [vmem:[#allocation3 + $0xc48] sm:$0xff]
        %v4613 = vld [vmem:[#allocation3 + $0xc50] sm:$0xff]
        %v4614 = vld [vmem:[#allocation3 + $0xc58] sm:$0xff]
        %v4615 = vld [vmem:[#allocation3 + $0xc60] sm:$0xff]
        %v4616 = vld [vmem:[#allocation3 + $0xc68] sm:$0xff]
        %v4617 = vld [vmem:[#allocation3 + $0xc70] sm:$0xff]
        %v4618 = vld [vmem:[#allocation3 + $0xc78] sm:$0xff]
        %v4619 = vld [vmem:[#allocation3 + $0xc80] sm:$0xff]
        %v4620 = vld [vmem:[#allocation3 + $0xc88] sm:$0xff]
        %v4621 = vld [vmem:[#allocation3 + $0xc90] sm:$0xff]
        %v4622 = vld [vmem:[#allocation3 + $0xc98] sm:$0xff]
        %v4623 = vld [vmem:[#allocation3 + $0xca0] sm:$0xff]
        %v4624 = vld [vmem:[#allocation3 + $0xca8] sm:$0xff]
        %v4625 = vld [vmem:[#allocation3 + $0xcb0] sm:$0xff]
        %v4626 = vld [vmem:[#allocation3 + $0xcb8] sm:$0xff]
        %v4627 = vld [vmem:[#allocation3 + $0xcc0] sm:$0xff]
        %v4628 = vld [vmem:[#allocation3 + $0xcc8] sm:$0xff]
        %v4629 = vld [vmem:[#allocation3 + $0xcd0] sm:$0xff]
        %v4630 = vld [vmem:[#allocation3 + $0xcd8] sm:$0xff]
        %v4631 = vld [vmem:[#allocation3 + $0xce0] sm:$0xff]
        %v4632 = vld [vmem:[#allocation3 + $0xce8] sm:$0xff]
        %v4633 = vld [vmem:[#allocation3 + $0xcf0] sm:$0xff]
        %v4634 = vld [vmem:[#allocation3 + $0xcf8] sm:$0xff]
        %v4635 = vld [vmem:[#allocation4] sm:$0xff]
        %v4636 = vld [vmem:[#allocation4 + $0x8] sm:$0xff]
        %v4637 = vld [vmem:[#allocation4 + $0x10] sm:$0xff]
        %v4638 = vld [vmem:[#allocation4 + $0x18] sm:$0xff]
        %v4639 = vld [vmem:[#allocation4 + $0x20] sm:$0xff]
        %v4640 = vld [vmem:[#allocation4 + $0x28] sm:$0xff]
        %v4641 = vld [vmem:[#allocation4 + $0x30] sm:$0xff]
        %v4642 = vld [vmem:[#allocation4 + $0x38] sm:$0xff]
        %v4643 = vld [vmem:[#allocation4 + $0x40] sm:$0xff]
        %v4644 = vld [vmem:[#allocation4 + $0x48] sm:$0xff]
        %v4645 = vld [vmem:[#allocation4 + $0x50] sm:$0xff]
        %v4646 = vld [vmem:[#allocation4 + $0x58] sm:$0xff]
        %v4647 = vld [vmem:[#allocation4 + $0x60] sm:$0xff]
        %v4648 = vld [vmem:[#allocation4 + $0x68] sm:$0xff]
        %v4649 = vld [vmem:[#allocation4 + $0x70] sm:$0xff]
        %v4650 = vld [vmem:[#allocation4 + $0x78] sm:$0xff]
        %v4651 = vld [vmem:[#allocation4 + $0x80] sm:$0xff]
        %v4652 = vld [vmem:[#allocation4 + $0x88] sm:$0xff]
        %v4653 = vld [vmem:[#allocation4 + $0x90] sm:$0xff]
        %v4654 = vld [vmem:[#allocation4 + $0x98] sm:$0xff]
        %v4655 = vld [vmem:[#allocation4 + $0xa0] sm:$0xff]
        %v4656 = vld [vmem:[#allocation4 + $0xa8] sm:$0xff]
        %v4657 = vld [vmem:[#allocation4 + $0xb0] sm:$0xff]
        %v4658 = vld [vmem:[#allocation4 + $0xb8] sm:$0xff]
        %v4659 = vld [vmem:[#allocation4 + $0xc0] sm:$0xff]
        %v4660 = vld [vmem:[#allocation4 + $0xc8] sm:$0xff]
        %v4661 = vld [vmem:[#allocation4 + $0xd0] sm:$0xff]
        %v4662 = vld [vmem:[#allocation4 + $0xd8] sm:$0xff]
        %v4663 = vld [vmem:[#allocation4 + $0xe0] sm:$0xff]
        %v4664 = vld [vmem:[#allocation4 + $0xe8] sm:$0xff]
        %v4665 = vld [vmem:[#allocation4 + $0xf0] sm:$0xff]
        %v4666 = vld [vmem:[#allocation4 + $0xf8] sm:$0xff]
        %v4667 = vld [vmem:[#allocation4 + $0x100] sm:$0xff]
        %v4668 = vld [vmem:[#allocation4 + $0x108] sm:$0xff]
        %v4669 = vld [vmem:[#allocation4 + $0x110] sm:$0xff]
        %v4670 = vld [vmem:[#allocation4 + $0x118] sm:$0xff]
        %v4671 = vld [vmem:[#allocation4 + $0x120] sm:$0xff]
        %v4672 = vld [vmem:[#allocation4 + $0x128] sm:$0xff]
        %v4673 = vld [vmem:[#allocation4 + $0x130] sm:$0xff]
        %v4674 = vld [vmem:[#allocation4 + $0x138] sm:$0xff]
        %v4675 = vld [vmem:[#allocation4 + $0x140] sm:$0xff]
        %v4676 = vld [vmem:[#allocation4 + $0x148] sm:$0xff]
        %v4677 = vld [vmem:[#allocation4 + $0x150] sm:$0xff]
        %v4678 = vld [vmem:[#allocation4 + $0x158] sm:$0xff]
        %v4679 = vld [vmem:[#allocation4 + $0x160] sm:$0xff]
        %v4680 = vld [vmem:[#allocation4 + $0x168] sm:$0xff]
        %v4681 = vld [vmem:[#allocation4 + $0x170] sm:$0xff]
        %v4682 = vld [vmem:[#allocation4 + $0x178] sm:$0xff]
        %v4683 = vld [vmem:[#allocation4 + $0x180] sm:$0xff]
        %v4684 = vld [vmem:[#allocation4 + $0x188] sm:$0xff]
        %v4685 = vld [vmem:[#allocation4 + $0x190] sm:$0xff]
        %v4686 = vld [vmem:[#allocation4 + $0x198] sm:$0xff]
        %v4687 = vld [vmem:[#allocation4 + $0x1a0] sm:$0xff]
        %v4688 = vld [vmem:[#allocation4 + $0x1a8] sm:$0xff]
        %v4689 = vld [vmem:[#allocation4 + $0x1b0] sm:$0xff]
        %v4690 = vld [vmem:[#allocation4 + $0x1b8] sm:$0xff]
        %v4691 = vld [vmem:[#allocation4 + $0x1c0] sm:$0xff]
        %v4692 = vld [vmem:[#allocation4 + $0x1c8] sm:$0xff]
        %v4693 = vld [vmem:[#allocation4 + $0x1d0] sm:$0xff]
        %v4694 = vld [vmem:[#allocation4 + $0x1d8] sm:$0xff]
        %v4695 = vld [vmem:[#allocation4 + $0x1e0] sm:$0xff]
        %v4696 = vld [vmem:[#allocation4 + $0x1e8] sm:$0xff]
        %v4697 = vld [vmem:[#allocation4 + $0x1f0] sm:$0xff]
        %v4698 = vld [vmem:[#allocation4 + $0x1f8] sm:$0xff]
        %v4699 = vld [vmem:[#allocation4 + $0x200] sm:$0xff]
        %v4700 = vld [vmem:[#allocation4 + $0x208] sm:$0xff]
        %v4701 = vld [vmem:[#allocation4 + $0x210] sm:$0xff]
        %v4702 = vld [vmem:[#allocation4 + $0x218] sm:$0xff]
        %v4703 = vld [vmem:[#allocation4 + $0x220] sm:$0xff]
        %v4704 = vld [vmem:[#allocation4 + $0x228] sm:$0xff]
        %v4705 = vld [vmem:[#allocation4 + $0x230] sm:$0xff]
        %v4706 = vld [vmem:[#allocation4 + $0x238] sm:$0xff]
        %v4707 = vld [vmem:[#allocation4 + $0x240] sm:$0xff]
        %v4708 = vld [vmem:[#allocation4 + $0x248] sm:$0xff]
        %v4709 = vld [vmem:[#allocation4 + $0x250] sm:$0xff]
        %v4710 = vld [vmem:[#allocation4 + $0x258] sm:$0xff]
        %v4711 = vld [vmem:[#allocation4 + $0x260] sm:$0xff]
        %v4712 = vld [vmem:[#allocation4 + $0x268] sm:$0xff]
        %v4713 = vld [vmem:[#allocation4 + $0x270] sm:$0xff]
        %v4714 = vld [vmem:[#allocation4 + $0x278] sm:$0xff]
        %v4715 = vld [vmem:[#allocation4 + $0x280] sm:$0xff]
        %v4716 = vld [vmem:[#allocation4 + $0x288] sm:$0xff]
        %v4717 = vld [vmem:[#allocation4 + $0x290] sm:$0xff]
        %v4718 = vld [vmem:[#allocation4 + $0x298] sm:$0xff]
        %v4719 = vld [vmem:[#allocation4 + $0x2a0] sm:$0xff]
        %v4720 = vld [vmem:[#allocation4 + $0x2a8] sm:$0xff]
        %v4721 = vld [vmem:[#allocation4 + $0x2b0] sm:$0xff]
        %v4722 = vld [vmem:[#allocation4 + $0x2b8] sm:$0xff]
        %v4723 = vld [vmem:[#allocation4 + $0x2c0] sm:$0xff]
        %v4724 = vld [vmem:[#allocation4 + $0x2c8] sm:$0xff]
        %v4725 = vld [vmem:[#allocation4 + $0x2d0] sm:$0xff]
        %v4726 = vld [vmem:[#allocation4 + $0x2d8] sm:$0xff]
        %v4727 = vld [vmem:[#allocation4 + $0x2e0] sm:$0xff]
        %v4728 = vld [vmem:[#allocation4 + $0x2e8] sm:$0xff]
        %v4729 = vld [vmem:[#allocation4 + $0x2f0] sm:$0xff]
        %v4730 = vld [vmem:[#allocation4 + $0x2f8] sm:$0xff]
        %v4731 = vld [vmem:[#allocation4 + $0x300] sm:$0xff]
        %v4732 = vld [vmem:[#allocation4 + $0x308] sm:$0xff]
        %v4733 = vld [vmem:[#allocation4 + $0x310] sm:$0xff]
        %v4734 = vld [vmem:[#allocation4 + $0x318] sm:$0xff]
        %v4735 = vld [vmem:[#allocation4 + $0x320] sm:$0xff]
        %v4736 = vld [vmem:[#allocation4 + $0x328] sm:$0xff]
        %v4737 = vld [vmem:[#allocation4 + $0x330] sm:$0xff]
        %v4738 = vld [vmem:[#allocation4 + $0x338] sm:$0xff]
        %v4739 = vld [vmem:[#allocation4 + $0x340] sm:$0xff]
        %v4740 = vld [vmem:[#allocation4 + $0x348] sm:$0xff]
        %v4741 = vld [vmem:[#allocation4 + $0x350] sm:$0xff]
        %v4742 = vld [vmem:[#allocation4 + $0x358] sm:$0xff]
        %v4743 = vld [vmem:[#allocation4 + $0x360] sm:$0xff]
        %v4744 = vld [vmem:[#allocation4 + $0x368] sm:$0xff]
        %v4745 = vld [vmem:[#allocation4 + $0x370] sm:$0xff]
        %v4746 = vld [vmem:[#allocation4 + $0x378] sm:$0xff]
        %v4747 = vld [vmem:[#allocation4 + $0x380] sm:$0xff]
        %v4748 = vld [vmem:[#allocation4 + $0x388] sm:$0xff]
        %v4749 = vld [vmem:[#allocation4 + $0x390] sm:$0xff]
        %v4750 = vld [vmem:[#allocation4 + $0x398] sm:$0xff]
        %v4751 = vld [vmem:[#allocation4 + $0x3a0] sm:$0xff]
        %v4752 = vld [vmem:[#allocation4 + $0x3a8] sm:$0xff]
        %v4753 = vld [vmem:[#allocation4 + $0x3b0] sm:$0xff]
        %v4754 = vld [vmem:[#allocation4 + $0x3b8] sm:$0xff]
        %v4755 = vld [vmem:[#allocation4 + $0x3c0] sm:$0xff]
        %v4756 = vld [vmem:[#allocation4 + $0x3c8] sm:$0xff]
        %v4757 = vld [vmem:[#allocation4 + $0x3d0] sm:$0xff]
        %v4758 = vld [vmem:[#allocation4 + $0x3d8] sm:$0xff]
        %v4759 = vld [vmem:[#allocation4 + $0x3e0] sm:$0xff]
        %v4760 = vld [vmem:[#allocation4 + $0x3e8] sm:$0xff]
        %v4761 = vld [vmem:[#allocation4 + $0x3f0] sm:$0xff]
        %v4762 = vld [vmem:[#allocation4 + $0x3f8] sm:$0xff]
        %v4763 = vld [vmem:[#allocation4 + $0x400] sm:$0xff]
        %v4764 = vld [vmem:[#allocation4 + $0x408] sm:$0xff]
        %v4765 = vld [vmem:[#allocation4 + $0x410] sm:$0xff]
        %v4766 = vld [vmem:[#allocation4 + $0x418] sm:$0xff]
        %v4767 = vld [vmem:[#allocation4 + $0x420] sm:$0xff]
        %v4768 = vld [vmem:[#allocation4 + $0x428] sm:$0xff]
        %v4769 = vld [vmem:[#allocation4 + $0x430] sm:$0xff]
        %v4770 = vld [vmem:[#allocation4 + $0x438] sm:$0xff]
        %v4771 = vld [vmem:[#allocation4 + $0x440] sm:$0xff]
        %v4772 = vld [vmem:[#allocation4 + $0x448] sm:$0xff]
        %v4773 = vld [vmem:[#allocation4 + $0x450] sm:$0xff]
        %v4774 = vld [vmem:[#allocation4 + $0x458] sm:$0xff]
        %v4775 = vld [vmem:[#allocation4 + $0x460] sm:$0xff]
        %v4776 = vld [vmem:[#allocation4 + $0x468] sm:$0xff]
        %v4777 = vld [vmem:[#allocation4 + $0x470] sm:$0xff]
        %v4778 = vld [vmem:[#allocation4 + $0x478] sm:$0xff]
        %v4779 = vld [vmem:[#allocation4 + $0x480] sm:$0xff]
        %v4780 = vld [vmem:[#allocation4 + $0x488] sm:$0xff]
        %v4781 = vld [vmem:[#allocation4 + $0x490] sm:$0xff]
        %v4782 = vld [vmem:[#allocation4 + $0x498] sm:$0xff]
        %v4783 = vld [vmem:[#allocation4 + $0x4a0] sm:$0xff]
        %v4784 = vld [vmem:[#allocation4 + $0x4a8] sm:$0xff]
        %v4785 = vld [vmem:[#allocation4 + $0x4b0] sm:$0xff]
        %v4786 = vld [vmem:[#allocation4 + $0x4b8] sm:$0xff]
        %v4787 = vld [vmem:[#allocation4 + $0x4c0] sm:$0xff]
        %v4788 = vld [vmem:[#allocation4 + $0x4c8] sm:$0xff]
        %v4789 = vld [vmem:[#allocation4 + $0x4d0] sm:$0xff]
        %v4790 = vld [vmem:[#allocation4 + $0x4d8] sm:$0xff]
        %v4791 = vld [vmem:[#allocation4 + $0x4e0] sm:$0xff]
        %v4792 = vld [vmem:[#allocation4 + $0x4e8] sm:$0xff]
        %v4793 = vld [vmem:[#allocation4 + $0x4f0] sm:$0xff]
        %v4794 = vld [vmem:[#allocation4 + $0x4f8] sm:$0xff]
        %v4795 = vld [vmem:[#allocation4 + $0x500] sm:$0xff]
        %v4796 = vld [vmem:[#allocation4 + $0x508] sm:$0xff]
        %v4797 = vld [vmem:[#allocation4 + $0x510] sm:$0xff]
        %v4798 = vld [vmem:[#allocation4 + $0x518] sm:$0xff]
        %v4799 = vld [vmem:[#allocation4 + $0x520] sm:$0xff]
        %v4800 = vld [vmem:[#allocation4 + $0x528] sm:$0xff]
        %v4801 = vld [vmem:[#allocation4 + $0x530] sm:$0xff]
        %v4802 = vld [vmem:[#allocation4 + $0x538] sm:$0xff]
        %v4803 = vld [vmem:[#allocation4 + $0x540] sm:$0xff]
        %v4804 = vld [vmem:[#allocation4 + $0x548] sm:$0xff]
        %v4805 = vld [vmem:[#allocation4 + $0x550] sm:$0xff]
        %v4806 = vld [vmem:[#allocation4 + $0x558] sm:$0xff]
        %v4807 = vld [vmem:[#allocation4 + $0x560] sm:$0xff]
        %v4808 = vld [vmem:[#allocation4 + $0x568] sm:$0xff]
        %v4809 = vld [vmem:[#allocation4 + $0x570] sm:$0xff]
        %v4810 = vld [vmem:[#allocation4 + $0x578] sm:$0xff]
        %v4811 = vld [vmem:[#allocation4 + $0x580] sm:$0xff]
        %v4812 = vld [vmem:[#allocation4 + $0x588] sm:$0xff]
        %v4813 = vld [vmem:[#allocation4 + $0x590] sm:$0xff]
        %v4814 = vld [vmem:[#allocation4 + $0x598] sm:$0xff]
        %v4815 = vld [vmem:[#allocation4 + $0x5a0] sm:$0xff]
        %v4816 = vld [vmem:[#allocation4 + $0x5a8] sm:$0xff]
        %v4817 = vld [vmem:[#allocation4 + $0x5b0] sm:$0xff]
        %v4818 = vld [vmem:[#allocation4 + $0x5b8] sm:$0xff]
        %v4819 = vld [vmem:[#allocation4 + $0x5c0] sm:$0xff]
        %v4820 = vld [vmem:[#allocation4 + $0x5c8] sm:$0xff]
        %v4821 = vld [vmem:[#allocation4 + $0x5d0] sm:$0xff]
        %v4822 = vld [vmem:[#allocation4 + $0x5d8] sm:$0xff]
        %v4823 = vld [vmem:[#allocation4 + $0x5e0] sm:$0xff]
        %v4824 = vld [vmem:[#allocation4 + $0x5e8] sm:$0xff]
        %v4825 = vld [vmem:[#allocation4 + $0x5f0] sm:$0xff]
        %v4826 = vld [vmem:[#allocation4 + $0x5f8] sm:$0xff]
        %v4827 = vld [vmem:[#allocation4 + $0x600] sm:$0xff]
        %v4828 = vld [vmem:[#allocation4 + $0x608] sm:$0xff]
        %v4829 = vld [vmem:[#allocation4 + $0x610] sm:$0xff]
        %v4830 = vld [vmem:[#allocation4 + $0x618] sm:$0xff]
        %v4831 = vld [vmem:[#allocation4 + $0x620] sm:$0xff]
        %v4832 = vld [vmem:[#allocation4 + $0x628] sm:$0xff]
        %v4833 = vld [vmem:[#allocation4 + $0x630] sm:$0xff]
        %v4834 = vld [vmem:[#allocation4 + $0x638] sm:$0xff]
        %v4835 = vld [vmem:[#allocation7] sm:$0x1]
        %v4837 = vperm.slane %v4835, 0
        %v4840 = vsel %vm998, %v4231, 0
        %v4843 = vsel %vm998, %v4244, 0
        %v4846 = vsel %vm998, %v4257, 0
        %v4849 = vsel %vm998, %v4270, 0
        %v4852 = vsel %vm998, %v4283, 0
        %v4855 = vsel %vm998, %v4296, 0
        %v4858 = vsel %vm998, %v4309, 0
        %v4861 = vsel %vm998, %v4322, 0
        %v4864 = vsel %vm998, %v4335, 0
        %v4867 = vsel %vm998, %v4348, 0
        %v4870 = vsel %vm998, %v4361, 0
        %v4873 = vsel %vm998, %v4374, 0
        %v4876 = vsel %vm998, %v4387, 0
        %v4879 = vsel %vm998, %v4400, 0
        %v4882 = vsel %vm998, %v4413, 0
        %v4885 = vsel %vm998, %v4426, 0
        %v4888 = vsel %vm998, %v4439, 0
        %v4891 = vsel %vm998, %v4452, 0
        %v4894 = vsel %vm998, %v4465, 0
        %v4897 = vsel %vm998, %v4478, 0
        %v4900 = vsel %vm998, %v4491, 0
        %v4903 = vsel %vm998, %v4504, 0
        %v4906 = vsel %vm998, %v4517, 0
        %v4909 = vsel %vm998, %v4530, 0
        %v4912 = vsel %vm998, %v4543, 0
        %v4915 = vsel %vm998, %v4556, 0
        %v4918 = vsel %vm998, %v4569, 0
        %v4921 = vsel %vm998, %v4582, 0
        %v4924 = vsel %vm998, %v4595, 0
        %v4927 = vsel %vm998, %v4608, 0
        %v4930 = vsel %vm998, %v4621, 0
        %v4933 = vsel %vm998, %v4634, 0
        %4935 = vmatpush.msra.mxu0 %v4650
        %4936 = vmatpush.msra.mxu0 %v4649
        %4937 = vmatpush.msra.mxu0 %v4648
        %4938 = vmatpush.msra.mxu0 %v4647
        %4939 = vmatpush.msra.mxu0 %v4646
        %4940 = vmatpush.msra.mxu0 %v4645
        %4941 = vmatpush.msra.mxu0 %v4644
        %4942 = vmatpush.msra.mxu0 %v4643
        %4943 = vmatpush.msra.mxu0 %v4642
        %4944 = vmatpush.msra.mxu0 %v4641
        %4945 = vmatpush.msra.mxu0 %v4640
        %4946 = vmatpush.msra.mxu0 %v4639
        %4947 = vmatpush.msra.mxu0 %v4638
        %4948 = vmatpush.msra.mxu0 %v4637
        %4949 = vmatpush.msra.mxu0 %v4636
        %4950 = vmatpush.msra.mxu0 %v4635
        %4951 = vmatmul.f32.gmra.mxu0 %v4219
        %v4952 = vpop.f32.mrf.mxu0
        %v4953 = vadd.f32 %v4837, %v4952
        %4954 = vmatmul.f32.gmra.mxu0 %v4232
        %v4955 = vpop.f32.mrf.mxu0
        %v4956 = vadd.f32 %v4837, %v4955
        %4957 = vmatmul.f32.gmra.mxu0 %v4245
        %v4958 = vpop.f32.mrf.mxu0
        %v4959 = vadd.f32 %v4837, %v4958
        %4960 = vmatmul.f32.gmra.mxu0 %v4258
        %v4961 = vpop.f32.mrf.mxu0
        %v4962 = vadd.f32 %v4837, %v4961
        %4963 = vmatmul.f32.gmra.mxu0 %v4271
        %v4964 = vpop.f32.mrf.mxu0
        %v4965 = vadd.f32 %v4837, %v4964
        %4966 = vmatmul.f32.gmra.mxu0 %v4284
        %v4967 = vpop.f32.mrf.mxu0
        %v4968 = vadd.f32 %v4837, %v4967
        %4969 = vmatmul.f32.gmra.mxu0 %v4297
        %v4970 = vpop.f32.mrf.mxu0
        %v4971 = vadd.f32 %v4837, %v4970
        %4972 = vmatmul.f32.gmra.mxu0 %v4310
        %v4973 = vpop.f32.mrf.mxu0
        %v4974 = vadd.f32 %v4837, %v4973
        %4975 = vmatmul.f32.gmra.mxu0 %v4323
        %v4976 = vpop.f32.mrf.mxu0
        %v4977 = vadd.f32 %v4837, %v4976
        %4978 = vmatmul.f32.gmra.mxu0 %v4336
        %v4979 = vpop.f32.mrf.mxu0
        %v4980 = vadd.f32 %v4837, %v4979
        %4981 = vmatmul.f32.gmra.mxu0 %v4349
        %v4982 = vpop.f32.mrf.mxu0
        %v4983 = vadd.f32 %v4837, %v4982
        %4984 = vmatmul.f32.gmra.mxu0 %v4362
        %v4985 = vpop.f32.mrf.mxu0
        %v4986 = vadd.f32 %v4837, %v4985
        %4987 = vmatmul.f32.gmra.mxu0 %v4375
        %v4988 = vpop.f32.mrf.mxu0
        %v4989 = vadd.f32 %v4837, %v4988
        %4990 = vmatmul.f32.gmra.mxu0 %v4388
        %v4991 = vpop.f32.mrf.mxu0
        %v4992 = vadd.f32 %v4837, %v4991
        %4993 = vmatmul.f32.gmra.mxu0 %v4401
        %v4994 = vpop.f32.mrf.mxu0
        %v4995 = vadd.f32 %v4837, %v4994
        %4996 = vmatmul.f32.gmra.mxu0 %v4414
        %v4997 = vpop.f32.mrf.mxu0
        %v4998 = vadd.f32 %v4837, %v4997
        %4999 = vmatmul.f32.gmra.mxu0 %v4427
        %v5000 = vpop.f32.mrf.mxu0
        %v5001 = vadd.f32 %v4837, %v5000
        %5002 = vmatmul.f32.gmra.mxu0 %v4440
        %v5003 = vpop.f32.mrf.mxu0
        %v5004 = vadd.f32 %v4837, %v5003
        %5005 = vmatmul.f32.gmra.mxu0 %v4453
        %v5006 = vpop.f32.mrf.mxu0
        %v5007 = vadd.f32 %v4837, %v5006
        %5008 = vmatmul.f32.gmra.mxu0 %v4466
        %v5009 = vpop.f32.mrf.mxu0
        %v5010 = vadd.f32 %v4837, %v5009
        %5011 = vmatmul.f32.gmra.mxu0 %v4479
        %v5012 = vpop.f32.mrf.mxu0
        %v5013 = vadd.f32 %v4837, %v5012
        %5014 = vmatmul.f32.gmra.mxu0 %v4492
        %v5015 = vpop.f32.mrf.mxu0
        %v5016 = vadd.f32 %v4837, %v5015
        %5017 = vmatmul.f32.gmra.mxu0 %v4505
        %v5018 = vpop.f32.mrf.mxu0
        %v5019 = vadd.f32 %v4837, %v5018
        %5020 = vmatmul.f32.gmra.mxu0 %v4518
        %v5021 = vpop.f32.mrf.mxu0
        %v5022 = vadd.f32 %v4837, %v5021
        %5023 = vmatmul.f32.gmra.mxu0 %v4531
        %v5024 = vpop.f32.mrf.mxu0
        %v5025 = vadd.f32 %v4837, %v5024
        %5026 = vmatmul.f32.gmra.mxu0 %v4544
        %v5027 = vpop.f32.mrf.mxu0
        %v5028 = vadd.f32 %v4837, %v5027
        %5029 = vmatmul.f32.gmra.mxu0 %v4557
        %v5030 = vpop.f32.mrf.mxu0
        %v5031 = vadd.f32 %v4837, %v5030
        %5032 = vmatmul.f32.gmra.mxu0 %v4570
        %v5033 = vpop.f32.mrf.mxu0
        %v5034 = vadd.f32 %v4837, %v5033
        %5035 = vmatmul.f32.gmra.mxu0 %v4583
        %v5036 = vpop.f32.mrf.mxu0
        %v5037 = vadd.f32 %v4837, %v5036
        %5038 = vmatmul.f32.gmra.mxu0 %v4596
        %v5039 = vpop.f32.mrf.mxu0
        %v5040 = vadd.f32 %v4837, %v5039
        %5041 = vmatmul.f32.gmra.mxu0 %v4609
        %v5042 = vpop.f32.mrf.mxu0
        %v5043 = vadd.f32 %v4837, %v5042
        %5044 = vmatmul.f32.gmra.mxu0 %v4622
        %v5045 = vpop.f32.mrf.mxu0
        %v5046 = vadd.f32 %v4837, %v5045
        %5047 = vdwg.mxu0
        %5048 = vmatpush.msra.mxu0 %v4666
        %5049 = vmatpush.msra.mxu0 %v4665
        %5050 = vmatpush.msra.mxu0 %v4664
        %5051 = vmatpush.msra.mxu0 %v4663
        %5052 = vmatpush.msra.mxu0 %v4662
        %5053 = vmatpush.msra.mxu0 %v4661
        %5054 = vmatpush.msra.mxu0 %v4660
        %5055 = vmatpush.msra.mxu0 %v4659
        %5056 = vmatpush.msra.mxu0 %v4658
        %5057 = vmatpush.msra.mxu0 %v4657
        %5058 = vmatpush.msra.mxu0 %v4656
        %5059 = vmatpush.msra.mxu0 %v4655
        %5060 = vmatpush.msra.mxu0 %v4654
        %5061 = vmatpush.msra.mxu0 %v4653
        %5062 = vmatpush.msra.mxu0 %v4652
        %5063 = vmatpush.msra.mxu0 %v4651
        %5064 = vmatmul.f32.gmra.mxu0 %v4220
        %v5065 = vpop.f32.mrf.mxu0
        %v5066 = vadd.f32 %v4953, %v5065
        %5067 = vmatmul.f32.gmra.mxu0 %v4233
        %v5068 = vpop.f32.mrf.mxu0
        %v5069 = vadd.f32 %v4956, %v5068
        %5070 = vmatmul.f32.gmra.mxu0 %v4246
        %v5071 = vpop.f32.mrf.mxu0
        %v5072 = vadd.f32 %v4959, %v5071
        %5073 = vmatmul.f32.gmra.mxu0 %v4259
        %v5074 = vpop.f32.mrf.mxu0
        %v5075 = vadd.f32 %v4962, %v5074
        %5076 = vmatmul.f32.gmra.mxu0 %v4272
        %v5077 = vpop.f32.mrf.mxu0
        %v5078 = vadd.f32 %v4965, %v5077
        %5079 = vmatmul.f32.gmra.mxu0 %v4285
        %v5080 = vpop.f32.mrf.mxu0
        %v5081 = vadd.f32 %v4968, %v5080
        %5082 = vmatmul.f32.gmra.mxu0 %v4298
        %v5083 = vpop.f32.mrf.mxu0
        %v5084 = vadd.f32 %v4971, %v5083
        %5085 = vmatmul.f32.gmra.mxu0 %v4311
        %v5086 = vpop.f32.mrf.mxu0
        %v5087 = vadd.f32 %v4974, %v5086
        %5088 = vmatmul.f32.gmra.mxu0 %v4324
        %v5089 = vpop.f32.mrf.mxu0
        %v5090 = vadd.f32 %v4977, %v5089
        %5091 = vmatmul.f32.gmra.mxu0 %v4337
        %v5092 = vpop.f32.mrf.mxu0
        %v5093 = vadd.f32 %v4980, %v5092
        %5094 = vmatmul.f32.gmra.mxu0 %v4350
        %v5095 = vpop.f32.mrf.mxu0
        %v5096 = vadd.f32 %v4983, %v5095
        %5097 = vmatmul.f32.gmra.mxu0 %v4363
        %v5098 = vpop.f32.mrf.mxu0
        %v5099 = vadd.f32 %v4986, %v5098
        %5100 = vmatmul.f32.gmra.mxu0 %v4376
        %v5101 = vpop.f32.mrf.mxu0
        %v5102 = vadd.f32 %v4989, %v5101
        %5103 = vmatmul.f32.gmra.mxu0 %v4389
        %v5104 = vpop.f32.mrf.mxu0
        %v5105 = vadd.f32 %v4992, %v5104
        %5106 = vmatmul.f32.gmra.mxu0 %v4402
        %v5107 = vpop.f32.mrf.mxu0
        %v5108 = vadd.f32 %v4995, %v5107
        %5109 = vmatmul.f32.gmra.mxu0 %v4415
        %v5110 = vpop.f32.mrf.mxu0
        %v5111 = vadd.f32 %v4998, %v5110
        %5112 = vmatmul.f32.gmra.mxu0 %v4428
        %v5113 = vpop.f32.mrf.mxu0
        %v5114 = vadd.f32 %v5001, %v5113
        %5115 = vmatmul.f32.gmra.mxu0 %v4441
        %v5116 = vpop.f32.mrf.mxu0
        %v5117 = vadd.f32 %v5004, %v5116
        %5118 = vmatmul.f32.gmra.mxu0 %v4454
        %v5119 = vpop.f32.mrf.mxu0
        %v5120 = vadd.f32 %v5007, %v5119
        %5121 = vmatmul.f32.gmra.mxu0 %v4467
        %v5122 = vpop.f32.mrf.mxu0
        %v5123 = vadd.f32 %v5010, %v5122
        %5124 = vmatmul.f32.gmra.mxu0 %v4480
        %v5125 = vpop.f32.mrf.mxu0
        %v5126 = vadd.f32 %v5013, %v5125
        %5127 = vmatmul.f32.gmra.mxu0 %v4493
        %v5128 = vpop.f32.mrf.mxu0
        %v5129 = vadd.f32 %v5016, %v5128
        %5130 = vmatmul.f32.gmra.mxu0 %v4506
        %v5131 = vpop.f32.mrf.mxu0
        %v5132 = vadd.f32 %v5019, %v5131
        %5133 = vmatmul.f32.gmra.mxu0 %v4519
        %v5134 = vpop.f32.mrf.mxu0
        %v5135 = vadd.f32 %v5022, %v5134
        %5136 = vmatmul.f32.gmra.mxu0 %v4532
        %v5137 = vpop.f32.mrf.mxu0
        %v5138 = vadd.f32 %v5025, %v5137
        %5139 = vmatmul.f32.gmra.mxu0 %v4545
        %v5140 = vpop.f32.mrf.mxu0
        %v5141 = vadd.f32 %v5028, %v5140
        %5142 = vmatmul.f32.gmra.mxu0 %v4558
        %v5143 = vpop.f32.mrf.mxu0
        %v5144 = vadd.f32 %v5031, %v5143
        %5145 = vmatmul.f32.gmra.mxu0 %v4571
        %v5146 = vpop.f32.mrf.mxu0
        %v5147 = vadd.f32 %v5034, %v5146
        %5148 = vmatmul.f32.gmra.mxu0 %v4584
        %v5149 = vpop.f32.mrf.mxu0
        %v5150 = vadd.f32 %v5037, %v5149
        %5151 = vmatmul.f32.gmra.mxu0 %v4597
        %v5152 = vpop.f32.mrf.mxu0
        %v5153 = vadd.f32 %v5040, %v5152
        %5154 = vmatmul.f32.gmra.mxu0 %v4610
        %v5155 = vpop.f32.mrf.mxu0
        %v5156 = vadd.f32 %v5043, %v5155
        %5157 = vmatmul.f32.gmra.mxu0 %v4623
        %v5158 = vpop.f32.mrf.mxu0
        %v5159 = vadd.f32 %v5046, %v5158
        %5160 = vdwg.mxu0
        %5161 = vmatpush.msra.mxu0 %v4682
        %5162 = vmatpush.msra.mxu0 %v4681
        %5163 = vmatpush.msra.mxu0 %v4680
        %5164 = vmatpush.msra.mxu0 %v4679
        %5165 = vmatpush.msra.mxu0 %v4678
        %5166 = vmatpush.msra.mxu0 %v4677
        %5167 = vmatpush.msra.mxu0 %v4676
        %5168 = vmatpush.msra.mxu0 %v4675
        %5169 = vmatpush.msra.mxu0 %v4674
        %5170 = vmatpush.msra.mxu0 %v4673
        %5171 = vmatpush.msra.mxu0 %v4672
        %5172 = vmatpush.msra.mxu0 %v4671
        %5173 = vmatpush.msra.mxu0 %v4670
        %5174 = vmatpush.msra.mxu0 %v4669
        %5175 = vmatpush.msra.mxu0 %v4668
        %5176 = vmatpush.msra.mxu0 %v4667
        %5177 = vmatmul.f32.gmra.mxu0 %v4221
        %v5178 = vpop.f32.mrf.mxu0
        %v5179 = vadd.f32 %v5066, %v5178
        %5180 = vmatmul.f32.gmra.mxu0 %v4234
        %v5181 = vpop.f32.mrf.mxu0
        %v5182 = vadd.f32 %v5069, %v5181
        %5183 = vmatmul.f32.gmra.mxu0 %v4247
        %v5184 = vpop.f32.mrf.mxu0
        %v5185 = vadd.f32 %v5072, %v5184
        %5186 = vmatmul.f32.gmra.mxu0 %v4260
        %v5187 = vpop.f32.mrf.mxu0
        %v5188 = vadd.f32 %v5075, %v5187
        %5189 = vmatmul.f32.gmra.mxu0 %v4273
        %v5190 = vpop.f32.mrf.mxu0
        %v5191 = vadd.f32 %v5078, %v5190
        %5192 = vmatmul.f32.gmra.mxu0 %v4286
        %v5193 = vpop.f32.mrf.mxu0
        %v5194 = vadd.f32 %v5081, %v5193
        %5195 = vmatmul.f32.gmra.mxu0 %v4299
        %v5196 = vpop.f32.mrf.mxu0
        %v5197 = vadd.f32 %v5084, %v5196
        %5198 = vmatmul.f32.gmra.mxu0 %v4312
        %v5199 = vpop.f32.mrf.mxu0
        %v5200 = vadd.f32 %v5087, %v5199
        %5201 = vmatmul.f32.gmra.mxu0 %v4325
        %v5202 = vpop.f32.mrf.mxu0
        %v5203 = vadd.f32 %v5090, %v5202
        %5204 = vmatmul.f32.gmra.mxu0 %v4338
        %v5205 = vpop.f32.mrf.mxu0
        %v5206 = vadd.f32 %v5093, %v5205
        %5207 = vmatmul.f32.gmra.mxu0 %v4351
        %v5208 = vpop.f32.mrf.mxu0
        %v5209 = vadd.f32 %v5096, %v5208
        %5210 = vmatmul.f32.gmra.mxu0 %v4364
        %v5211 = vpop.f32.mrf.mxu0
        %v5212 = vadd.f32 %v5099, %v5211
        %5213 = vmatmul.f32.gmra.mxu0 %v4377
        %v5214 = vpop.f32.mrf.mxu0
        %v5215 = vadd.f32 %v5102, %v5214
        %5216 = vmatmul.f32.gmra.mxu0 %v4390
        %v5217 = vpop.f32.mrf.mxu0
        %v5218 = vadd.f32 %v5105, %v5217
        %5219 = vmatmul.f32.gmra.mxu0 %v4403
        %v5220 = vpop.f32.mrf.mxu0
        %v5221 = vadd.f32 %v5108, %v5220
        %5222 = vmatmul.f32.gmra.mxu0 %v4416
        %v5223 = vpop.f32.mrf.mxu0
        %v5224 = vadd.f32 %v5111, %v5223
        %5225 = vmatmul.f32.gmra.mxu0 %v4429
        %v5226 = vpop.f32.mrf.mxu0
        %v5227 = vadd.f32 %v5114, %v5226
        %5228 = vmatmul.f32.gmra.mxu0 %v4442
        %v5229 = vpop.f32.mrf.mxu0
        %v5230 = vadd.f32 %v5117, %v5229
        %5231 = vmatmul.f32.gmra.mxu0 %v4455
        %v5232 = vpop.f32.mrf.mxu0
        %v5233 = vadd.f32 %v5120, %v5232
        %5234 = vmatmul.f32.gmra.mxu0 %v4468
        %v5235 = vpop.f32.mrf.mxu0
        %v5236 = vadd.f32 %v5123, %v5235
        %5237 = vmatmul.f32.gmra.mxu0 %v4481
        %v5238 = vpop.f32.mrf.mxu0
        %v5239 = vadd.f32 %v5126, %v5238
        %5240 = vmatmul.f32.gmra.mxu0 %v4494
        %v5241 = vpop.f32.mrf.mxu0
        %v5242 = vadd.f32 %v5129, %v5241
        %5243 = vmatmul.f32.gmra.mxu0 %v4507
        %v5244 = vpop.f32.mrf.mxu0
        %v5245 = vadd.f32 %v5132, %v5244
        %5246 = vmatmul.f32.gmra.mxu0 %v4520
        %v5247 = vpop.f32.mrf.mxu0
        %v5248 = vadd.f32 %v5135, %v5247
        %5249 = vmatmul.f32.gmra.mxu0 %v4533
        %v5250 = vpop.f32.mrf.mxu0
        %v5251 = vadd.f32 %v5138, %v5250
        %5252 = vmatmul.f32.gmra.mxu0 %v4546
        %v5253 = vpop.f32.mrf.mxu0
        %v5254 = vadd.f32 %v5141, %v5253
        %5255 = vmatmul.f32.gmra.mxu0 %v4559
        %v5256 = vpop.f32.mrf.mxu0
        %v5257 = vadd.f32 %v5144, %v5256
        %5258 = vmatmul.f32.gmra.mxu0 %v4572
        %v5259 = vpop.f32.mrf.mxu0
        %v5260 = vadd.f32 %v5147, %v5259
        %5261 = vmatmul.f32.gmra.mxu0 %v4585
        %v5262 = vpop.f32.mrf.mxu0
        %v5263 = vadd.f32 %v5150, %v5262
        %5264 = vmatmul.f32.gmra.mxu0 %v4598
        %v5265 = vpop.f32.mrf.mxu0
        %v5266 = vadd.f32 %v5153, %v5265
        %5267 = vmatmul.f32.gmra.mxu0 %v4611
        %v5268 = vpop.f32.mrf.mxu0
        %v5269 = vadd.f32 %v5156, %v5268
        %5270 = vmatmul.f32.gmra.mxu0 %v4624
        %v5271 = vpop.f32.mrf.mxu0
        %v5272 = vadd.f32 %v5159, %v5271
        %5273 = vdwg.mxu0
        %5274 = vmatpush.msra.mxu0 %v4698
        %5275 = vmatpush.msra.mxu0 %v4697
        %5276 = vmatpush.msra.mxu0 %v4696
        %5277 = vmatpush.msra.mxu0 %v4695
        %5278 = vmatpush.msra.mxu0 %v4694
        %5279 = vmatpush.msra.mxu0 %v4693
        %5280 = vmatpush.msra.mxu0 %v4692
        %5281 = vmatpush.msra.mxu0 %v4691
        %5282 = vmatpush.msra.mxu0 %v4690
        %5283 = vmatpush.msra.mxu0 %v4689
        %5284 = vmatpush.msra.mxu0 %v4688
        %5285 = vmatpush.msra.mxu0 %v4687
        %5286 = vmatpush.msra.mxu0 %v4686
        %5287 = vmatpush.msra.mxu0 %v4685
        %5288 = vmatpush.msra.mxu0 %v4684
        %5289 = vmatpush.msra.mxu0 %v4683
        %5290 = vmatmul.f32.gmra.mxu0 %v4222
        %v5291 = vpop.f32.mrf.mxu0
        %v5292 = vadd.f32 %v5179, %v5291
        %5293 = vmatmul.f32.gmra.mxu0 %v4235
        %v5294 = vpop.f32.mrf.mxu0
        %v5295 = vadd.f32 %v5182, %v5294
        %5296 = vmatmul.f32.gmra.mxu0 %v4248
        %v5297 = vpop.f32.mrf.mxu0
        %v5298 = vadd.f32 %v5185, %v5297
        %5299 = vmatmul.f32.gmra.mxu0 %v4261
        %v5300 = vpop.f32.mrf.mxu0
        %v5301 = vadd.f32 %v5188, %v5300
        %5302 = vmatmul.f32.gmra.mxu0 %v4274
        %v5303 = vpop.f32.mrf.mxu0
        %v5304 = vadd.f32 %v5191, %v5303
        %5305 = vmatmul.f32.gmra.mxu0 %v4287
        %v5306 = vpop.f32.mrf.mxu0
        %v5307 = vadd.f32 %v5194, %v5306
        %5308 = vmatmul.f32.gmra.mxu0 %v4300
        %v5309 = vpop.f32.mrf.mxu0
        %v5310 = vadd.f32 %v5197, %v5309
        %5311 = vmatmul.f32.gmra.mxu0 %v4313
        %v5312 = vpop.f32.mrf.mxu0
        %v5313 = vadd.f32 %v5200, %v5312
        %5314 = vmatmul.f32.gmra.mxu0 %v4326
        %v5315 = vpop.f32.mrf.mxu0
        %v5316 = vadd.f32 %v5203, %v5315
        %5317 = vmatmul.f32.gmra.mxu0 %v4339
        %v5318 = vpop.f32.mrf.mxu0
        %v5319 = vadd.f32 %v5206, %v5318
        %5320 = vmatmul.f32.gmra.mxu0 %v4352
        %v5321 = vpop.f32.mrf.mxu0
        %v5322 = vadd.f32 %v5209, %v5321
        %5323 = vmatmul.f32.gmra.mxu0 %v4365
        %v5324 = vpop.f32.mrf.mxu0
        %v5325 = vadd.f32 %v5212, %v5324
        %5326 = vmatmul.f32.gmra.mxu0 %v4378
        %v5327 = vpop.f32.mrf.mxu0
        %v5328 = vadd.f32 %v5215, %v5327
        %5329 = vmatmul.f32.gmra.mxu0 %v4391
        %v5330 = vpop.f32.mrf.mxu0
        %v5331 = vadd.f32 %v5218, %v5330
        %5332 = vmatmul.f32.gmra.mxu0 %v4404
        %v5333 = vpop.f32.mrf.mxu0
        %v5334 = vadd.f32 %v5221, %v5333
        %5335 = vmatmul.f32.gmra.mxu0 %v4417
        %v5336 = vpop.f32.mrf.mxu0
        %v5337 = vadd.f32 %v5224, %v5336
        %5338 = vmatmul.f32.gmra.mxu0 %v4430
        %v5339 = vpop.f32.mrf.mxu0
        %v5340 = vadd.f32 %v5227, %v5339
        %5341 = vmatmul.f32.gmra.mxu0 %v4443
        %v5342 = vpop.f32.mrf.mxu0
        %v5343 = vadd.f32 %v5230, %v5342
        %5344 = vmatmul.f32.gmra.mxu0 %v4456
        %v5345 = vpop.f32.mrf.mxu0
        %v5346 = vadd.f32 %v5233, %v5345
        %5347 = vmatmul.f32.gmra.mxu0 %v4469
        %v5348 = vpop.f32.mrf.mxu0
        %v5349 = vadd.f32 %v5236, %v5348
        %5350 = vmatmul.f32.gmra.mxu0 %v4482
        %v5351 = vpop.f32.mrf.mxu0
        %v5352 = vadd.f32 %v5239, %v5351
        %5353 = vmatmul.f32.gmra.mxu0 %v4495
        %v5354 = vpop.f32.mrf.mxu0
        %v5355 = vadd.f32 %v5242, %v5354
        %5356 = vmatmul.f32.gmra.mxu0 %v4508
        %v5357 = vpop.f32.mrf.mxu0
        %v5358 = vadd.f32 %v5245, %v5357
        %5359 = vmatmul.f32.gmra.mxu0 %v4521
        %v5360 = vpop.f32.mrf.mxu0
        %v5361 = vadd.f32 %v5248, %v5360
        %5362 = vmatmul.f32.gmra.mxu0 %v4534
        %v5363 = vpop.f32.mrf.mxu0
        %v5364 = vadd.f32 %v5251, %v5363
        %5365 = vmatmul.f32.gmra.mxu0 %v4547
        %v5366 = vpop.f32.mrf.mxu0
        %v5367 = vadd.f32 %v5254, %v5366
        %5368 = vmatmul.f32.gmra.mxu0 %v4560
        %v5369 = vpop.f32.mrf.mxu0
        %v5370 = vadd.f32 %v5257, %v5369
        %5371 = vmatmul.f32.gmra.mxu0 %v4573
        %v5372 = vpop.f32.mrf.mxu0
        %v5373 = vadd.f32 %v5260, %v5372
        %5374 = vmatmul.f32.gmra.mxu0 %v4586
        %v5375 = vpop.f32.mrf.mxu0
        %v5376 = vadd.f32 %v5263, %v5375
        %5377 = vmatmul.f32.gmra.mxu0 %v4599
        %v5378 = vpop.f32.mrf.mxu0
        %v5379 = vadd.f32 %v5266, %v5378
        %5380 = vmatmul.f32.gmra.mxu0 %v4612
        %v5381 = vpop.f32.mrf.mxu0
        %v5382 = vadd.f32 %v5269, %v5381
        %5383 = vmatmul.f32.gmra.mxu0 %v4625
        %v5384 = vpop.f32.mrf.mxu0
        %v5385 = vadd.f32 %v5272, %v5384
        %5386 = vdwg.mxu0
        %5387 = vmatpush.msra.mxu0 %v4714
        %5388 = vmatpush.msra.mxu0 %v4713
        %5389 = vmatpush.msra.mxu0 %v4712
        %5390 = vmatpush.msra.mxu0 %v4711
        %5391 = vmatpush.msra.mxu0 %v4710
        %5392 = vmatpush.msra.mxu0 %v4709
        %5393 = vmatpush.msra.mxu0 %v4708
        %5394 = vmatpush.msra.mxu0 %v4707
        %5395 = vmatpush.msra.mxu0 %v4706
        %5396 = vmatpush.msra.mxu0 %v4705
        %5397 = vmatpush.msra.mxu0 %v4704
        %5398 = vmatpush.msra.mxu0 %v4703
        %5399 = vmatpush.msra.mxu0 %v4702
        %5400 = vmatpush.msra.mxu0 %v4701
        %5401 = vmatpush.msra.mxu0 %v4700
        %5402 = vmatpush.msra.mxu0 %v4699
        %5403 = vmatmul.f32.gmra.mxu0 %v4223
        %v5404 = vpop.f32.mrf.mxu0
        %v5405 = vadd.f32 %v5292, %v5404
        %5406 = vmatmul.f32.gmra.mxu0 %v4236
        %v5407 = vpop.f32.mrf.mxu0
        %v5408 = vadd.f32 %v5295, %v5407
        %5409 = vmatmul.f32.gmra.mxu0 %v4249
        %v5410 = vpop.f32.mrf.mxu0
        %v5411 = vadd.f32 %v5298, %v5410
        %5412 = vmatmul.f32.gmra.mxu0 %v4262
        %v5413 = vpop.f32.mrf.mxu0
        %v5414 = vadd.f32 %v5301, %v5413
        %5415 = vmatmul.f32.gmra.mxu0 %v4275
        %v5416 = vpop.f32.mrf.mxu0
        %v5417 = vadd.f32 %v5304, %v5416
        %5418 = vmatmul.f32.gmra.mxu0 %v4288
        %v5419 = vpop.f32.mrf.mxu0
        %v5420 = vadd.f32 %v5307, %v5419
        %5421 = vmatmul.f32.gmra.mxu0 %v4301
        %v5422 = vpop.f32.mrf.mxu0
        %v5423 = vadd.f32 %v5310, %v5422
        %5424 = vmatmul.f32.gmra.mxu0 %v4314
        %v5425 = vpop.f32.mrf.mxu0
        %v5426 = vadd.f32 %v5313, %v5425
        %5427 = vmatmul.f32.gmra.mxu0 %v4327
        %v5428 = vpop.f32.mrf.mxu0
        %v5429 = vadd.f32 %v5316, %v5428
        %5430 = vmatmul.f32.gmra.mxu0 %v4340
        %v5431 = vpop.f32.mrf.mxu0
        %v5432 = vadd.f32 %v5319, %v5431
        %5433 = vmatmul.f32.gmra.mxu0 %v4353
        %v5434 = vpop.f32.mrf.mxu0
        %v5435 = vadd.f32 %v5322, %v5434
        %5436 = vmatmul.f32.gmra.mxu0 %v4366
        %v5437 = vpop.f32.mrf.mxu0
        %v5438 = vadd.f32 %v5325, %v5437
        %5439 = vmatmul.f32.gmra.mxu0 %v4379
        %v5440 = vpop.f32.mrf.mxu0
        %v5441 = vadd.f32 %v5328, %v5440
        %5442 = vmatmul.f32.gmra.mxu0 %v4392
        %v5443 = vpop.f32.mrf.mxu0
        %v5444 = vadd.f32 %v5331, %v5443
        %5445 = vmatmul.f32.gmra.mxu0 %v4405
        %v5446 = vpop.f32.mrf.mxu0
        %v5447 = vadd.f32 %v5334, %v5446
        %5448 = vmatmul.f32.gmra.mxu0 %v4418
        %v5449 = vpop.f32.mrf.mxu0
        %v5450 = vadd.f32 %v5337, %v5449
        %5451 = vmatmul.f32.gmra.mxu0 %v4431
        %v5452 = vpop.f32.mrf.mxu0
        %v5453 = vadd.f32 %v5340, %v5452
        %5454 = vmatmul.f32.gmra.mxu0 %v4444
        %v5455 = vpop.f32.mrf.mxu0
        %v5456 = vadd.f32 %v5343, %v5455
        %5457 = vmatmul.f32.gmra.mxu0 %v4457
        %v5458 = vpop.f32.mrf.mxu0
        %v5459 = vadd.f32 %v5346, %v5458
        %5460 = vmatmul.f32.gmra.mxu0 %v4470
        %v5461 = vpop.f32.mrf.mxu0
        %v5462 = vadd.f32 %v5349, %v5461
        %5463 = vmatmul.f32.gmra.mxu0 %v4483
        %v5464 = vpop.f32.mrf.mxu0
        %v5465 = vadd.f32 %v5352, %v5464
        %5466 = vmatmul.f32.gmra.mxu0 %v4496
        %v5467 = vpop.f32.mrf.mxu0
        %v5468 = vadd.f32 %v5355, %v5467
        %5469 = vmatmul.f32.gmra.mxu0 %v4509
        %v5470 = vpop.f32.mrf.mxu0
        %v5471 = vadd.f32 %v5358, %v5470
        %5472 = vmatmul.f32.gmra.mxu0 %v4522
        %v5473 = vpop.f32.mrf.mxu0
        %v5474 = vadd.f32 %v5361, %v5473
        %5475 = vmatmul.f32.gmra.mxu0 %v4535
        %v5476 = vpop.f32.mrf.mxu0
        %v5477 = vadd.f32 %v5364, %v5476
        %5478 = vmatmul.f32.gmra.mxu0 %v4548
        %v5479 = vpop.f32.mrf.mxu0
        %v5480 = vadd.f32 %v5367, %v5479
        %5481 = vmatmul.f32.gmra.mxu0 %v4561
        %v5482 = vpop.f32.mrf.mxu0
        %v5483 = vadd.f32 %v5370, %v5482
        %5484 = vmatmul.f32.gmra.mxu0 %v4574
        %v5485 = vpop.f32.mrf.mxu0
        %v5486 = vadd.f32 %v5373, %v5485
        %5487 = vmatmul.f32.gmra.mxu0 %v4587
        %v5488 = vpop.f32.mrf.mxu0
        %v5489 = vadd.f32 %v5376, %v5488
        %5490 = vmatmul.f32.gmra.mxu0 %v4600
        %v5491 = vpop.f32.mrf.mxu0
        %v5492 = vadd.f32 %v5379, %v5491
        %5493 = vmatmul.f32.gmra.mxu0 %v4613
        %v5494 = vpop.f32.mrf.mxu0
        %v5495 = vadd.f32 %v5382, %v5494
        %5496 = vmatmul.f32.gmra.mxu0 %v4626
        %v5497 = vpop.f32.mrf.mxu0
        %v5498 = vadd.f32 %v5385, %v5497
        %5499 = vdwg.mxu0
        %5500 = vmatpush.msra.mxu0 %v4730
        %5501 = vmatpush.msra.mxu0 %v4729
        %5502 = vmatpush.msra.mxu0 %v4728
        %5503 = vmatpush.msra.mxu0 %v4727
        %5504 = vmatpush.msra.mxu0 %v4726
        %5505 = vmatpush.msra.mxu0 %v4725
        %5506 = vmatpush.msra.mxu0 %v4724
        %5507 = vmatpush.msra.mxu0 %v4723
        %5508 = vmatpush.msra.mxu0 %v4722
        %5509 = vmatpush.msra.mxu0 %v4721
        %5510 = vmatpush.msra.mxu0 %v4720
        %5511 = vmatpush.msra.mxu0 %v4719
        %5512 = vmatpush.msra.mxu0 %v4718
        %5513 = vmatpush.msra.mxu0 %v4717
        %5514 = vmatpush.msra.mxu0 %v4716
        %5515 = vmatpush.msra.mxu0 %v4715
        %5516 = vmatmul.f32.gmra.mxu0 %v4224
        %v5517 = vpop.f32.mrf.mxu0
        %v5518 = vadd.f32 %v5405, %v5517
        %5519 = vmatmul.f32.gmra.mxu0 %v4237
        %v5520 = vpop.f32.mrf.mxu0
        %v5521 = vadd.f32 %v5408, %v5520
        %5522 = vmatmul.f32.gmra.mxu0 %v4250
        %v5523 = vpop.f32.mrf.mxu0
        %v5524 = vadd.f32 %v5411, %v5523
        %5525 = vmatmul.f32.gmra.mxu0 %v4263
        %v5526 = vpop.f32.mrf.mxu0
        %v5527 = vadd.f32 %v5414, %v5526
        %5528 = vmatmul.f32.gmra.mxu0 %v4276
        %v5529 = vpop.f32.mrf.mxu0
        %v5530 = vadd.f32 %v5417, %v5529
        %5531 = vmatmul.f32.gmra.mxu0 %v4289
        %v5532 = vpop.f32.mrf.mxu0
        %v5533 = vadd.f32 %v5420, %v5532
        %5534 = vmatmul.f32.gmra.mxu0 %v4302
        %v5535 = vpop.f32.mrf.mxu0
        %v5536 = vadd.f32 %v5423, %v5535
        %5537 = vmatmul.f32.gmra.mxu0 %v4315
        %v5538 = vpop.f32.mrf.mxu0
        %v5539 = vadd.f32 %v5426, %v5538
        %5540 = vmatmul.f32.gmra.mxu0 %v4328
        %v5541 = vpop.f32.mrf.mxu0
        %v5542 = vadd.f32 %v5429, %v5541
        %5543 = vmatmul.f32.gmra.mxu0 %v4341
        %v5544 = vpop.f32.mrf.mxu0
        %v5545 = vadd.f32 %v5432, %v5544
        %5546 = vmatmul.f32.gmra.mxu0 %v4354
        %v5547 = vpop.f32.mrf.mxu0
        %v5548 = vadd.f32 %v5435, %v5547
        %5549 = vmatmul.f32.gmra.mxu0 %v4367
        %v5550 = vpop.f32.mrf.mxu0
        %v5551 = vadd.f32 %v5438, %v5550
        %5552 = vmatmul.f32.gmra.mxu0 %v4380
        %v5553 = vpop.f32.mrf.mxu0
        %v5554 = vadd.f32 %v5441, %v5553
        %5555 = vmatmul.f32.gmra.mxu0 %v4393
        %v5556 = vpop.f32.mrf.mxu0
        %v5557 = vadd.f32 %v5444, %v5556
        %5558 = vmatmul.f32.gmra.mxu0 %v4406
        %v5559 = vpop.f32.mrf.mxu0
        %v5560 = vadd.f32 %v5447, %v5559
        %5561 = vmatmul.f32.gmra.mxu0 %v4419
        %v5562 = vpop.f32.mrf.mxu0
        %v5563 = vadd.f32 %v5450, %v5562
        %5564 = vmatmul.f32.gmra.mxu0 %v4432
        %v5565 = vpop.f32.mrf.mxu0
        %v5566 = vadd.f32 %v5453, %v5565
        %5567 = vmatmul.f32.gmra.mxu0 %v4445
        %v5568 = vpop.f32.mrf.mxu0
        %v5569 = vadd.f32 %v5456, %v5568
        %5570 = vmatmul.f32.gmra.mxu0 %v4458
        %v5571 = vpop.f32.mrf.mxu0
        %v5572 = vadd.f32 %v5459, %v5571
        %5573 = vmatmul.f32.gmra.mxu0 %v4471
        %v5574 = vpop.f32.mrf.mxu0
        %v5575 = vadd.f32 %v5462, %v5574
        %5576 = vmatmul.f32.gmra.mxu0 %v4484
        %v5577 = vpop.f32.mrf.mxu0
        %v5578 = vadd.f32 %v5465, %v5577
        %5579 = vmatmul.f32.gmra.mxu0 %v4497
        %v5580 = vpop.f32.mrf.mxu0
        %v5581 = vadd.f32 %v5468, %v5580
        %5582 = vmatmul.f32.gmra.mxu0 %v4510
        %v5583 = vpop.f32.mrf.mxu0
        %v5584 = vadd.f32 %v5471, %v5583
        %5585 = vmatmul.f32.gmra.mxu0 %v4523
        %v5586 = vpop.f32.mrf.mxu0
        %v5587 = vadd.f32 %v5474, %v5586
        %5588 = vmatmul.f32.gmra.mxu0 %v4536
        %v5589 = vpop.f32.mrf.mxu0
        %v5590 = vadd.f32 %v5477, %v5589
        %5591 = vmatmul.f32.gmra.mxu0 %v4549
        %v5592 = vpop.f32.mrf.mxu0
        %v5593 = vadd.f32 %v5480, %v5592
        %5594 = vmatmul.f32.gmra.mxu0 %v4562
        %v5595 = vpop.f32.mrf.mxu0
        %v5596 = vadd.f32 %v5483, %v5595
        %5597 = vmatmul.f32.gmra.mxu0 %v4575
        %v5598 = vpop.f32.mrf.mxu0
        %v5599 = vadd.f32 %v5486, %v5598
        %5600 = vmatmul.f32.gmra.mxu0 %v4588
        %v5601 = vpop.f32.mrf.mxu0
        %v5602 = vadd.f32 %v5489, %v5601
        %5603 = vmatmul.f32.gmra.mxu0 %v4601
        %v5604 = vpop.f32.mrf.mxu0
        %v5605 = vadd.f32 %v5492, %v5604
        %5606 = vmatmul.f32.gmra.mxu0 %v4614
        %v5607 = vpop.f32.mrf.mxu0
        %v5608 = vadd.f32 %v5495, %v5607
        %5609 = vmatmul.f32.gmra.mxu0 %v4627
        %v5610 = vpop.f32.mrf.mxu0
        %v5611 = vadd.f32 %v5498, %v5610
        %5612 = vdwg.mxu0
        %5613 = vmatpush.msra.mxu0 %v4746
        %5614 = vmatpush.msra.mxu0 %v4745
        %5615 = vmatpush.msra.mxu0 %v4744
        %5616 = vmatpush.msra.mxu0 %v4743
        %5617 = vmatpush.msra.mxu0 %v4742
        %5618 = vmatpush.msra.mxu0 %v4741
        %5619 = vmatpush.msra.mxu0 %v4740
        %5620 = vmatpush.msra.mxu0 %v4739
        %5621 = vmatpush.msra.mxu0 %v4738
        %5622 = vmatpush.msra.mxu0 %v4737
        %5623 = vmatpush.msra.mxu0 %v4736
        %5624 = vmatpush.msra.mxu0 %v4735
        %5625 = vmatpush.msra.mxu0 %v4734
        %5626 = vmatpush.msra.mxu0 %v4733
        %5627 = vmatpush.msra.mxu0 %v4732
        %5628 = vmatpush.msra.mxu0 %v4731
        %5629 = vmatmul.f32.gmra.mxu0 %v4225
        %v5630 = vpop.f32.mrf.mxu0
        %v5631 = vadd.f32 %v5518, %v5630
        %5632 = vmatmul.f32.gmra.mxu0 %v4238
        %v5633 = vpop.f32.mrf.mxu0
        %v5634 = vadd.f32 %v5521, %v5633
        %5635 = vmatmul.f32.gmra.mxu0 %v4251
        %v5636 = vpop.f32.mrf.mxu0
        %v5637 = vadd.f32 %v5524, %v5636
        %5638 = vmatmul.f32.gmra.mxu0 %v4264
        %v5639 = vpop.f32.mrf.mxu0
        %v5640 = vadd.f32 %v5527, %v5639
        %5641 = vmatmul.f32.gmra.mxu0 %v4277
        %v5642 = vpop.f32.mrf.mxu0
        %v5643 = vadd.f32 %v5530, %v5642
        %5644 = vmatmul.f32.gmra.mxu0 %v4290
        %v5645 = vpop.f32.mrf.mxu0
        %v5646 = vadd.f32 %v5533, %v5645
        %5647 = vmatmul.f32.gmra.mxu0 %v4303
        %v5648 = vpop.f32.mrf.mxu0
        %v5649 = vadd.f32 %v5536, %v5648
        %5650 = vmatmul.f32.gmra.mxu0 %v4316
        %v5651 = vpop.f32.mrf.mxu0
        %v5652 = vadd.f32 %v5539, %v5651
        %5653 = vmatmul.f32.gmra.mxu0 %v4329
        %v5654 = vpop.f32.mrf.mxu0
        %v5655 = vadd.f32 %v5542, %v5654
        %5656 = vmatmul.f32.gmra.mxu0 %v4342
        %v5657 = vpop.f32.mrf.mxu0
        %v5658 = vadd.f32 %v5545, %v5657
        %5659 = vmatmul.f32.gmra.mxu0 %v4355
        %v5660 = vpop.f32.mrf.mxu0
        %v5661 = vadd.f32 %v5548, %v5660
        %5662 = vmatmul.f32.gmra.mxu0 %v4368
        %v5663 = vpop.f32.mrf.mxu0
        %v5664 = vadd.f32 %v5551, %v5663
        %5665 = vmatmul.f32.gmra.mxu0 %v4381
        %v5666 = vpop.f32.mrf.mxu0
        %v5667 = vadd.f32 %v5554, %v5666
        %5668 = vmatmul.f32.gmra.mxu0 %v4394
        %v5669 = vpop.f32.mrf.mxu0
        %v5670 = vadd.f32 %v5557, %v5669
        %5671 = vmatmul.f32.gmra.mxu0 %v4407
        %v5672 = vpop.f32.mrf.mxu0
        %v5673 = vadd.f32 %v5560, %v5672
        %5674 = vmatmul.f32.gmra.mxu0 %v4420
        %v5675 = vpop.f32.mrf.mxu0
        %v5676 = vadd.f32 %v5563, %v5675
        %5677 = vmatmul.f32.gmra.mxu0 %v4433
        %v5678 = vpop.f32.mrf.mxu0
        %v5679 = vadd.f32 %v5566, %v5678
        %5680 = vmatmul.f32.gmra.mxu0 %v4446
        %v5681 = vpop.f32.mrf.mxu0
        %v5682 = vadd.f32 %v5569, %v5681
        %5683 = vmatmul.f32.gmra.mxu0 %v4459
        %v5684 = vpop.f32.mrf.mxu0
        %v5685 = vadd.f32 %v5572, %v5684
        %5686 = vmatmul.f32.gmra.mxu0 %v4472
        %v5687 = vpop.f32.mrf.mxu0
        %v5688 = vadd.f32 %v5575, %v5687
        %5689 = vmatmul.f32.gmra.mxu0 %v4485
        %v5690 = vpop.f32.mrf.mxu0
        %v5691 = vadd.f32 %v5578, %v5690
        %5692 = vmatmul.f32.gmra.mxu0 %v4498
        %v5693 = vpop.f32.mrf.mxu0
        %v5694 = vadd.f32 %v5581, %v5693
        %5695 = vmatmul.f32.gmra.mxu0 %v4511
        %v5696 = vpop.f32.mrf.mxu0
        %v5697 = vadd.f32 %v5584, %v5696
        %5698 = vmatmul.f32.gmra.mxu0 %v4524
        %v5699 = vpop.f32.mrf.mxu0
        %v5700 = vadd.f32 %v5587, %v5699
        %5701 = vmatmul.f32.gmra.mxu0 %v4537
        %v5702 = vpop.f32.mrf.mxu0
        %v5703 = vadd.f32 %v5590, %v5702
        %5704 = vmatmul.f32.gmra.mxu0 %v4550
        %v5705 = vpop.f32.mrf.mxu0
        %v5706 = vadd.f32 %v5593, %v5705
        %5707 = vmatmul.f32.gmra.mxu0 %v4563
        %v5708 = vpop.f32.mrf.mxu0
        %v5709 = vadd.f32 %v5596, %v5708
        %5710 = vmatmul.f32.gmra.mxu0 %v4576
        %v5711 = vpop.f32.mrf.mxu0
        %v5712 = vadd.f32 %v5599, %v5711
        %5713 = vmatmul.f32.gmra.mxu0 %v4589
        %v5714 = vpop.f32.mrf.mxu0
        %v5715 = vadd.f32 %v5602, %v5714
        %5716 = vmatmul.f32.gmra.mxu0 %v4602
        %v5717 = vpop.f32.mrf.mxu0
        %v5718 = vadd.f32 %v5605, %v5717
        %5719 = vmatmul.f32.gmra.mxu0 %v4615
        %v5720 = vpop.f32.mrf.mxu0
        %v5721 = vadd.f32 %v5608, %v5720
        %5722 = vmatmul.f32.gmra.mxu0 %v4628
        %v5723 = vpop.f32.mrf.mxu0
        %v5724 = vadd.f32 %v5611, %v5723
        %5725 = vdwg.mxu0
        %5726 = vmatpush.msra.mxu0 %v4762
        %5727 = vmatpush.msra.mxu0 %v4761
        %5728 = vmatpush.msra.mxu0 %v4760
        %5729 = vmatpush.msra.mxu0 %v4759
        %5730 = vmatpush.msra.mxu0 %v4758
        %5731 = vmatpush.msra.mxu0 %v4757
        %5732 = vmatpush.msra.mxu0 %v4756
        %5733 = vmatpush.msra.mxu0 %v4755
        %5734 = vmatpush.msra.mxu0 %v4754
        %5735 = vmatpush.msra.mxu0 %v4753
        %5736 = vmatpush.msra.mxu0 %v4752
        %5737 = vmatpush.msra.mxu0 %v4751
        %5738 = vmatpush.msra.mxu0 %v4750
        %5739 = vmatpush.msra.mxu0 %v4749
        %5740 = vmatpush.msra.mxu0 %v4748
        %5741 = vmatpush.msra.mxu0 %v4747
        %5742 = vmatmul.f32.gmra.mxu0 %v4226
        %v5743 = vpop.f32.mrf.mxu0
        %v5744 = vadd.f32 %v5631, %v5743
        %5745 = vmatmul.f32.gmra.mxu0 %v4239
        %v5746 = vpop.f32.mrf.mxu0
        %v5747 = vadd.f32 %v5634, %v5746
        %5748 = vmatmul.f32.gmra.mxu0 %v4252
        %v5749 = vpop.f32.mrf.mxu0
        %v5750 = vadd.f32 %v5637, %v5749
        %5751 = vmatmul.f32.gmra.mxu0 %v4265
        %v5752 = vpop.f32.mrf.mxu0
        %v5753 = vadd.f32 %v5640, %v5752
        %5754 = vmatmul.f32.gmra.mxu0 %v4278
        %v5755 = vpop.f32.mrf.mxu0
        %v5756 = vadd.f32 %v5643, %v5755
        %5757 = vmatmul.f32.gmra.mxu0 %v4291
        %v5758 = vpop.f32.mrf.mxu0
        %v5759 = vadd.f32 %v5646, %v5758
        %5760 = vmatmul.f32.gmra.mxu0 %v4304
        %v5761 = vpop.f32.mrf.mxu0
        %v5762 = vadd.f32 %v5649, %v5761
        %5763 = vmatmul.f32.gmra.mxu0 %v4317
        %v5764 = vpop.f32.mrf.mxu0
        %v5765 = vadd.f32 %v5652, %v5764
        %5766 = vmatmul.f32.gmra.mxu0 %v4330
        %v5767 = vpop.f32.mrf.mxu0
        %v5768 = vadd.f32 %v5655, %v5767
        %5769 = vmatmul.f32.gmra.mxu0 %v4343
        %v5770 = vpop.f32.mrf.mxu0
        %v5771 = vadd.f32 %v5658, %v5770
        %5772 = vmatmul.f32.gmra.mxu0 %v4356
        %v5773 = vpop.f32.mrf.mxu0
        %v5774 = vadd.f32 %v5661, %v5773
        %5775 = vmatmul.f32.gmra.mxu0 %v4369
        %v5776 = vpop.f32.mrf.mxu0
        %v5777 = vadd.f32 %v5664, %v5776
        %5778 = vmatmul.f32.gmra.mxu0 %v4382
        %v5779 = vpop.f32.mrf.mxu0
        %v5780 = vadd.f32 %v5667, %v5779
        %5781 = vmatmul.f32.gmra.mxu0 %v4395
        %v5782 = vpop.f32.mrf.mxu0
        %v5783 = vadd.f32 %v5670, %v5782
        %5784 = vmatmul.f32.gmra.mxu0 %v4408
        %v5785 = vpop.f32.mrf.mxu0
        %v5786 = vadd.f32 %v5673, %v5785
        %5787 = vmatmul.f32.gmra.mxu0 %v4421
        %v5788 = vpop.f32.mrf.mxu0
        %v5789 = vadd.f32 %v5676, %v5788
        %5790 = vmatmul.f32.gmra.mxu0 %v4434
        %v5791 = vpop.f32.mrf.mxu0
        %v5792 = vadd.f32 %v5679, %v5791
        %5793 = vmatmul.f32.gmra.mxu0 %v4447
        %v5794 = vpop.f32.mrf.mxu0
        %v5795 = vadd.f32 %v5682, %v5794
        %5796 = vmatmul.f32.gmra.mxu0 %v4460
        %v5797 = vpop.f32.mrf.mxu0
        %v5798 = vadd.f32 %v5685, %v5797
        %5799 = vmatmul.f32.gmra.mxu0 %v4473
        %v5800 = vpop.f32.mrf.mxu0
        %v5801 = vadd.f32 %v5688, %v5800
        %5802 = vmatmul.f32.gmra.mxu0 %v4486
        %v5803 = vpop.f32.mrf.mxu0
        %v5804 = vadd.f32 %v5691, %v5803
        %5805 = vmatmul.f32.gmra.mxu0 %v4499
        %v5806 = vpop.f32.mrf.mxu0
        %v5807 = vadd.f32 %v5694, %v5806
        %5808 = vmatmul.f32.gmra.mxu0 %v4512
        %v5809 = vpop.f32.mrf.mxu0
        %v5810 = vadd.f32 %v5697, %v5809
        %5811 = vmatmul.f32.gmra.mxu0 %v4525
        %v5812 = vpop.f32.mrf.mxu0
        %v5813 = vadd.f32 %v5700, %v5812
        %5814 = vmatmul.f32.gmra.mxu0 %v4538
        %v5815 = vpop.f32.mrf.mxu0
        %v5816 = vadd.f32 %v5703, %v5815
        %5817 = vmatmul.f32.gmra.mxu0 %v4551
        %v5818 = vpop.f32.mrf.mxu0
        %v5819 = vadd.f32 %v5706, %v5818
        %5820 = vmatmul.f32.gmra.mxu0 %v4564
        %v5821 = vpop.f32.mrf.mxu0
        %v5822 = vadd.f32 %v5709, %v5821
        %5823 = vmatmul.f32.gmra.mxu0 %v4577
        %v5824 = vpop.f32.mrf.mxu0
        %v5825 = vadd.f32 %v5712, %v5824
        %5826 = vmatmul.f32.gmra.mxu0 %v4590
        %v5827 = vpop.f32.mrf.mxu0
        %v5828 = vadd.f32 %v5715, %v5827
        %5829 = vmatmul.f32.gmra.mxu0 %v4603
        %v5830 = vpop.f32.mrf.mxu0
        %v5831 = vadd.f32 %v5718, %v5830
        %5832 = vmatmul.f32.gmra.mxu0 %v4616
        %v5833 = vpop.f32.mrf.mxu0
        %v5834 = vadd.f32 %v5721, %v5833
        %5835 = vmatmul.f32.gmra.mxu0 %v4629
        %v5836 = vpop.f32.mrf.mxu0
        %v5837 = vadd.f32 %v5724, %v5836
        %5838 = vdwg.mxu0
        %5839 = vmatpush.msra.mxu0 %v4778
        %5840 = vmatpush.msra.mxu0 %v4777
        %5841 = vmatpush.msra.mxu0 %v4776
        %5842 = vmatpush.msra.mxu0 %v4775
        %5843 = vmatpush.msra.mxu0 %v4774
        %5844 = vmatpush.msra.mxu0 %v4773
        %5845 = vmatpush.msra.mxu0 %v4772
        %5846 = vmatpush.msra.mxu0 %v4771
        %5847 = vmatpush.msra.mxu0 %v4770
        %5848 = vmatpush.msra.mxu0 %v4769
        %5849 = vmatpush.msra.mxu0 %v4768
        %5850 = vmatpush.msra.mxu0 %v4767
        %5851 = vmatpush.msra.mxu0 %v4766
        %5852 = vmatpush.msra.mxu0 %v4765
        %5853 = vmatpush.msra.mxu0 %v4764
        %5854 = vmatpush.msra.mxu0 %v4763
        %5855 = vmatmul.f32.gmra.mxu0 %v4227
        %v5856 = vpop.f32.mrf.mxu0
        %v5857 = vadd.f32 %v5744, %v5856
        %5858 = vmatmul.f32.gmra.mxu0 %v4240
        %v5859 = vpop.f32.mrf.mxu0
        %v5860 = vadd.f32 %v5747, %v5859
        %5861 = vmatmul.f32.gmra.mxu0 %v4253
        %v5862 = vpop.f32.mrf.mxu0
        %v5863 = vadd.f32 %v5750, %v5862
        %5864 = vmatmul.f32.gmra.mxu0 %v4266
        %v5865 = vpop.f32.mrf.mxu0
        %v5866 = vadd.f32 %v5753, %v5865
        %5867 = vmatmul.f32.gmra.mxu0 %v4279
        %v5868 = vpop.f32.mrf.mxu0
        %v5869 = vadd.f32 %v5756, %v5868
        %5870 = vmatmul.f32.gmra.mxu0 %v4292
        %v5871 = vpop.f32.mrf.mxu0
        %v5872 = vadd.f32 %v5759, %v5871
        %5873 = vmatmul.f32.gmra.mxu0 %v4305
        %v5874 = vpop.f32.mrf.mxu0
        %v5875 = vadd.f32 %v5762, %v5874
        %5876 = vmatmul.f32.gmra.mxu0 %v4318
        %v5877 = vpop.f32.mrf.mxu0
        %v5878 = vadd.f32 %v5765, %v5877
        %5879 = vmatmul.f32.gmra.mxu0 %v4331
        %v5880 = vpop.f32.mrf.mxu0
        %v5881 = vadd.f32 %v5768, %v5880
        %5882 = vmatmul.f32.gmra.mxu0 %v4344
        %v5883 = vpop.f32.mrf.mxu0
        %v5884 = vadd.f32 %v5771, %v5883
        %5885 = vmatmul.f32.gmra.mxu0 %v4357
        %v5886 = vpop.f32.mrf.mxu0
        %v5887 = vadd.f32 %v5774, %v5886
        %5888 = vmatmul.f32.gmra.mxu0 %v4370
        %v5889 = vpop.f32.mrf.mxu0
        %v5890 = vadd.f32 %v5777, %v5889
        %5891 = vmatmul.f32.gmra.mxu0 %v4383
        %v5892 = vpop.f32.mrf.mxu0
        %v5893 = vadd.f32 %v5780, %v5892
        %5894 = vmatmul.f32.gmra.mxu0 %v4396
        %v5895 = vpop.f32.mrf.mxu0
        %v5896 = vadd.f32 %v5783, %v5895
        %5897 = vmatmul.f32.gmra.mxu0 %v4409
        %v5898 = vpop.f32.mrf.mxu0
        %v5899 = vadd.f32 %v5786, %v5898
        %5900 = vmatmul.f32.gmra.mxu0 %v4422
        %v5901 = vpop.f32.mrf.mxu0
        %v5902 = vadd.f32 %v5789, %v5901
        %5903 = vmatmul.f32.gmra.mxu0 %v4435
        %v5904 = vpop.f32.mrf.mxu0
        %v5905 = vadd.f32 %v5792, %v5904
        %5906 = vmatmul.f32.gmra.mxu0 %v4448
        %v5907 = vpop.f32.mrf.mxu0
        %v5908 = vadd.f32 %v5795, %v5907
        %5909 = vmatmul.f32.gmra.mxu0 %v4461
        %v5910 = vpop.f32.mrf.mxu0
        %v5911 = vadd.f32 %v5798, %v5910
        %5912 = vmatmul.f32.gmra.mxu0 %v4474
        %v5913 = vpop.f32.mrf.mxu0
        %v5914 = vadd.f32 %v5801, %v5913
        %5915 = vmatmul.f32.gmra.mxu0 %v4487
        %v5916 = vpop.f32.mrf.mxu0
        %v5917 = vadd.f32 %v5804, %v5916
        %5918 = vmatmul.f32.gmra.mxu0 %v4500
        %v5919 = vpop.f32.mrf.mxu0
        %v5920 = vadd.f32 %v5807, %v5919
        %5921 = vmatmul.f32.gmra.mxu0 %v4513
        %v5922 = vpop.f32.mrf.mxu0
        %v5923 = vadd.f32 %v5810, %v5922
        %5924 = vmatmul.f32.gmra.mxu0 %v4526
        %v5925 = vpop.f32.mrf.mxu0
        %v5926 = vadd.f32 %v5813, %v5925
        %5927 = vmatmul.f32.gmra.mxu0 %v4539
        %v5928 = vpop.f32.mrf.mxu0
        %v5929 = vadd.f32 %v5816, %v5928
        %5930 = vmatmul.f32.gmra.mxu0 %v4552
        %v5931 = vpop.f32.mrf.mxu0
        %v5932 = vadd.f32 %v5819, %v5931
        %5933 = vmatmul.f32.gmra.mxu0 %v4565
        %v5934 = vpop.f32.mrf.mxu0
        %v5935 = vadd.f32 %v5822, %v5934
        %5936 = vmatmul.f32.gmra.mxu0 %v4578
        %v5937 = vpop.f32.mrf.mxu0
        %v5938 = vadd.f32 %v5825, %v5937
        %5939 = vmatmul.f32.gmra.mxu0 %v4591
        %v5940 = vpop.f32.mrf.mxu0
        %v5941 = vadd.f32 %v5828, %v5940
        %5942 = vmatmul.f32.gmra.mxu0 %v4604
        %v5943 = vpop.f32.mrf.mxu0
        %v5944 = vadd.f32 %v5831, %v5943
        %5945 = vmatmul.f32.gmra.mxu0 %v4617
        %v5946 = vpop.f32.mrf.mxu0
        %v5947 = vadd.f32 %v5834, %v5946
        %5948 = vmatmul.f32.gmra.mxu0 %v4630
        %v5949 = vpop.f32.mrf.mxu0
        %v5950 = vadd.f32 %v5837, %v5949
        %5951 = vdwg.mxu0
        %5952 = vmatpush.msra.mxu0 %v4794
        %5953 = vmatpush.msra.mxu0 %v4793
        %5954 = vmatpush.msra.mxu0 %v4792
        %5955 = vmatpush.msra.mxu0 %v4791
        %5956 = vmatpush.msra.mxu0 %v4790
        %5957 = vmatpush.msra.mxu0 %v4789
        %5958 = vmatpush.msra.mxu0 %v4788
        %5959 = vmatpush.msra.mxu0 %v4787
        %5960 = vmatpush.msra.mxu0 %v4786
        %5961 = vmatpush.msra.mxu0 %v4785
        %5962 = vmatpush.msra.mxu0 %v4784
        %5963 = vmatpush.msra.mxu0 %v4783
        %5964 = vmatpush.msra.mxu0 %v4782
        %5965 = vmatpush.msra.mxu0 %v4781
        %5966 = vmatpush.msra.mxu0 %v4780
        %5967 = vmatpush.msra.mxu0 %v4779
        %5968 = vmatmul.f32.gmra.mxu0 %v4228
        %v5969 = vpop.f32.mrf.mxu0
        %v5970 = vadd.f32 %v5857, %v5969
        %5971 = vmatmul.f32.gmra.mxu0 %v4241
        %v5972 = vpop.f32.mrf.mxu0
        %v5973 = vadd.f32 %v5860, %v5972
        %5974 = vmatmul.f32.gmra.mxu0 %v4254
        %v5975 = vpop.f32.mrf.mxu0
        %v5976 = vadd.f32 %v5863, %v5975
        %5977 = vmatmul.f32.gmra.mxu0 %v4267
        %v5978 = vpop.f32.mrf.mxu0
        %v5979 = vadd.f32 %v5866, %v5978
        %5980 = vmatmul.f32.gmra.mxu0 %v4280
        %v5981 = vpop.f32.mrf.mxu0
        %v5982 = vadd.f32 %v5869, %v5981
        %5983 = vmatmul.f32.gmra.mxu0 %v4293
        %v5984 = vpop.f32.mrf.mxu0
        %v5985 = vadd.f32 %v5872, %v5984
        %5986 = vmatmul.f32.gmra.mxu0 %v4306
        %v5987 = vpop.f32.mrf.mxu0
        %v5988 = vadd.f32 %v5875, %v5987
        %5989 = vmatmul.f32.gmra.mxu0 %v4319
        %v5990 = vpop.f32.mrf.mxu0
        %v5991 = vadd.f32 %v5878, %v5990
        %5992 = vmatmul.f32.gmra.mxu0 %v4332
        %v5993 = vpop.f32.mrf.mxu0
        %v5994 = vadd.f32 %v5881, %v5993
        %5995 = vmatmul.f32.gmra.mxu0 %v4345
        %v5996 = vpop.f32.mrf.mxu0
        %v5997 = vadd.f32 %v5884, %v5996
        %5998 = vmatmul.f32.gmra.mxu0 %v4358
        %v5999 = vpop.f32.mrf.mxu0
        %v6000 = vadd.f32 %v5887, %v5999
        %6001 = vmatmul.f32.gmra.mxu0 %v4371
        %v6002 = vpop.f32.mrf.mxu0
        %v6003 = vadd.f32 %v5890, %v6002
        %6004 = vmatmul.f32.gmra.mxu0 %v4384
        %v6005 = vpop.f32.mrf.mxu0
        %v6006 = vadd.f32 %v5893, %v6005
        %6007 = vmatmul.f32.gmra.mxu0 %v4397
        %v6008 = vpop.f32.mrf.mxu0
        %v6009 = vadd.f32 %v5896, %v6008
        %6010 = vmatmul.f32.gmra.mxu0 %v4410
        %v6011 = vpop.f32.mrf.mxu0
        %v6012 = vadd.f32 %v5899, %v6011
        %6013 = vmatmul.f32.gmra.mxu0 %v4423
        %v6014 = vpop.f32.mrf.mxu0
        %v6015 = vadd.f32 %v5902, %v6014
        %6016 = vmatmul.f32.gmra.mxu0 %v4436
        %v6017 = vpop.f32.mrf.mxu0
        %v6018 = vadd.f32 %v5905, %v6017
        %6019 = vmatmul.f32.gmra.mxu0 %v4449
        %v6020 = vpop.f32.mrf.mxu0
        %v6021 = vadd.f32 %v5908, %v6020
        %6022 = vmatmul.f32.gmra.mxu0 %v4462
        %v6023 = vpop.f32.mrf.mxu0
        %v6024 = vadd.f32 %v5911, %v6023
        %6025 = vmatmul.f32.gmra.mxu0 %v4475
        %v6026 = vpop.f32.mrf.mxu0
        %v6027 = vadd.f32 %v5914, %v6026
        %6028 = vmatmul.f32.gmra.mxu0 %v4488
        %v6029 = vpop.f32.mrf.mxu0
        %v6030 = vadd.f32 %v5917, %v6029
        %6031 = vmatmul.f32.gmra.mxu0 %v4501
        %v6032 = vpop.f32.mrf.mxu0
        %v6033 = vadd.f32 %v5920, %v6032
        %6034 = vmatmul.f32.gmra.mxu0 %v4514
        %v6035 = vpop.f32.mrf.mxu0
        %v6036 = vadd.f32 %v5923, %v6035
        %6037 = vmatmul.f32.gmra.mxu0 %v4527
        %v6038 = vpop.f32.mrf.mxu0
        %v6039 = vadd.f32 %v5926, %v6038
        %6040 = vmatmul.f32.gmra.mxu0 %v4540
        %v6041 = vpop.f32.mrf.mxu0
        %v6042 = vadd.f32 %v5929, %v6041
        %6043 = vmatmul.f32.gmra.mxu0 %v4553
        %v6044 = vpop.f32.mrf.mxu0
        %v6045 = vadd.f32 %v5932, %v6044
        %6046 = vmatmul.f32.gmra.mxu0 %v4566
        %v6047 = vpop.f32.mrf.mxu0
        %v6048 = vadd.f32 %v5935, %v6047
        %6049 = vmatmul.f32.gmra.mxu0 %v4579
        %v6050 = vpop.f32.mrf.mxu0
        %v6051 = vadd.f32 %v5938, %v6050
        %6052 = vmatmul.f32.gmra.mxu0 %v4592
        %v6053 = vpop.f32.mrf.mxu0
        %v6054 = vadd.f32 %v5941, %v6053
        %6055 = vmatmul.f32.gmra.mxu0 %v4605
        %v6056 = vpop.f32.mrf.mxu0
        %v6057 = vadd.f32 %v5944, %v6056
        %6058 = vmatmul.f32.gmra.mxu0 %v4618
        %v6059 = vpop.f32.mrf.mxu0
        %v6060 = vadd.f32 %v5947, %v6059
        %6061 = vmatmul.f32.gmra.mxu0 %v4631
        %v6062 = vpop.f32.mrf.mxu0
        %v6063 = vadd.f32 %v5950, %v6062
        %6064 = vdwg.mxu0
        %6065 = vmatpush.msra.mxu0 %v4810
        %6066 = vmatpush.msra.mxu0 %v4809
        %6067 = vmatpush.msra.mxu0 %v4808
        %6068 = vmatpush.msra.mxu0 %v4807
        %6069 = vmatpush.msra.mxu0 %v4806
        %6070 = vmatpush.msra.mxu0 %v4805
        %6071 = vmatpush.msra.mxu0 %v4804
        %6072 = vmatpush.msra.mxu0 %v4803
        %6073 = vmatpush.msra.mxu0 %v4802
        %6074 = vmatpush.msra.mxu0 %v4801
        %6075 = vmatpush.msra.mxu0 %v4800
        %6076 = vmatpush.msra.mxu0 %v4799
        %6077 = vmatpush.msra.mxu0 %v4798
        %6078 = vmatpush.msra.mxu0 %v4797
        %6079 = vmatpush.msra.mxu0 %v4796
        %6080 = vmatpush.msra.mxu0 %v4795
        %6081 = vmatmul.f32.gmra.mxu0 %v4229
        %v6082 = vpop.f32.mrf.mxu0
        %v6083 = vadd.f32 %v5970, %v6082
        %6084 = vmatmul.f32.gmra.mxu0 %v4242
        %v6085 = vpop.f32.mrf.mxu0
        %v6086 = vadd.f32 %v5973, %v6085
        %6087 = vmatmul.f32.gmra.mxu0 %v4255
        %v6088 = vpop.f32.mrf.mxu0
        %v6089 = vadd.f32 %v5976, %v6088
        %6090 = vmatmul.f32.gmra.mxu0 %v4268
        %v6091 = vpop.f32.mrf.mxu0
        %v6092 = vadd.f32 %v5979, %v6091
        %6093 = vmatmul.f32.gmra.mxu0 %v4281
        %v6094 = vpop.f32.mrf.mxu0
        %v6095 = vadd.f32 %v5982, %v6094
        %6096 = vmatmul.f32.gmra.mxu0 %v4294
        %v6097 = vpop.f32.mrf.mxu0
        %v6098 = vadd.f32 %v5985, %v6097
        %6099 = vmatmul.f32.gmra.mxu0 %v4307
        %v6100 = vpop.f32.mrf.mxu0
        %v6101 = vadd.f32 %v5988, %v6100
        %6102 = vmatmul.f32.gmra.mxu0 %v4320
        %v6103 = vpop.f32.mrf.mxu0
        %v6104 = vadd.f32 %v5991, %v6103
        %6105 = vmatmul.f32.gmra.mxu0 %v4333
        %v6106 = vpop.f32.mrf.mxu0
        %v6107 = vadd.f32 %v5994, %v6106
        %6108 = vmatmul.f32.gmra.mxu0 %v4346
        %v6109 = vpop.f32.mrf.mxu0
        %v6110 = vadd.f32 %v5997, %v6109
        %6111 = vmatmul.f32.gmra.mxu0 %v4359
        %v6112 = vpop.f32.mrf.mxu0
        %v6113 = vadd.f32 %v6000, %v6112
        %6114 = vmatmul.f32.gmra.mxu0 %v4372
        %v6115 = vpop.f32.mrf.mxu0
        %v6116 = vadd.f32 %v6003, %v6115
        %6117 = vmatmul.f32.gmra.mxu0 %v4385
        %v6118 = vpop.f32.mrf.mxu0
        %v6119 = vadd.f32 %v6006, %v6118
        %6120 = vmatmul.f32.gmra.mxu0 %v4398
        %v6121 = vpop.f32.mrf.mxu0
        %v6122 = vadd.f32 %v6009, %v6121
        %6123 = vmatmul.f32.gmra.mxu0 %v4411
        %v6124 = vpop.f32.mrf.mxu0
        %v6125 = vadd.f32 %v6012, %v6124
        %6126 = vmatmul.f32.gmra.mxu0 %v4424
        %v6127 = vpop.f32.mrf.mxu0
        %v6128 = vadd.f32 %v6015, %v6127
        %6129 = vmatmul.f32.gmra.mxu0 %v4437
        %v6130 = vpop.f32.mrf.mxu0
        %v6131 = vadd.f32 %v6018, %v6130
        %6132 = vmatmul.f32.gmra.mxu0 %v4450
        %v6133 = vpop.f32.mrf.mxu0
        %v6134 = vadd.f32 %v6021, %v6133
        %6135 = vmatmul.f32.gmra.mxu0 %v4463
        %v6136 = vpop.f32.mrf.mxu0
        %v6137 = vadd.f32 %v6024, %v6136
        %6138 = vmatmul.f32.gmra.mxu0 %v4476
        %v6139 = vpop.f32.mrf.mxu0
        %v6140 = vadd.f32 %v6027, %v6139
        %6141 = vmatmul.f32.gmra.mxu0 %v4489
        %v6142 = vpop.f32.mrf.mxu0
        %v6143 = vadd.f32 %v6030, %v6142
        %6144 = vmatmul.f32.gmra.mxu0 %v4502
        %v6145 = vpop.f32.mrf.mxu0
        %v6146 = vadd.f32 %v6033, %v6145
        %6147 = vmatmul.f32.gmra.mxu0 %v4515
        %v6148 = vpop.f32.mrf.mxu0
        %v6149 = vadd.f32 %v6036, %v6148
        %6150 = vmatmul.f32.gmra.mxu0 %v4528
        %v6151 = vpop.f32.mrf.mxu0
        %v6152 = vadd.f32 %v6039, %v6151
        %6153 = vmatmul.f32.gmra.mxu0 %v4541
        %v6154 = vpop.f32.mrf.mxu0
        %v6155 = vadd.f32 %v6042, %v6154
        %6156 = vmatmul.f32.gmra.mxu0 %v4554
        %v6157 = vpop.f32.mrf.mxu0
        %v6158 = vadd.f32 %v6045, %v6157
        %6159 = vmatmul.f32.gmra.mxu0 %v4567
        %v6160 = vpop.f32.mrf.mxu0
        %v6161 = vadd.f32 %v6048, %v6160
        %6162 = vmatmul.f32.gmra.mxu0 %v4580
        %v6163 = vpop.f32.mrf.mxu0
        %v6164 = vadd.f32 %v6051, %v6163
        %6165 = vmatmul.f32.gmra.mxu0 %v4593
        %v6166 = vpop.f32.mrf.mxu0
        %v6167 = vadd.f32 %v6054, %v6166
        %6168 = vmatmul.f32.gmra.mxu0 %v4606
        %v6169 = vpop.f32.mrf.mxu0
        %v6170 = vadd.f32 %v6057, %v6169
        %6171 = vmatmul.f32.gmra.mxu0 %v4619
        %v6172 = vpop.f32.mrf.mxu0
        %v6173 = vadd.f32 %v6060, %v6172
        %6174 = vmatmul.f32.gmra.mxu0 %v4632
        %v6175 = vpop.f32.mrf.mxu0
        %v6176 = vadd.f32 %v6063, %v6175
        %6177 = vdwg.mxu0
        %6178 = vmatpush.msra.mxu0 %v4826
        %6179 = vmatpush.msra.mxu0 %v4825
        %6180 = vmatpush.msra.mxu0 %v4824
        %6181 = vmatpush.msra.mxu0 %v4823
        %6182 = vmatpush.msra.mxu0 %v4822
        %6183 = vmatpush.msra.mxu0 %v4821
        %6184 = vmatpush.msra.mxu0 %v4820
        %6185 = vmatpush.msra.mxu0 %v4819
        %6186 = vmatpush.msra.mxu0 %v4818
        %6187 = vmatpush.msra.mxu0 %v4817
        %6188 = vmatpush.msra.mxu0 %v4816
        %6189 = vmatpush.msra.mxu0 %v4815
        %6190 = vmatpush.msra.mxu0 %v4814
        %6191 = vmatpush.msra.mxu0 %v4813
        %6192 = vmatpush.msra.mxu0 %v4812
        %6193 = vmatpush.msra.mxu0 %v4811
        %6194 = vmatmul.f32.gmra.mxu0 %v4230
        %v6195 = vpop.f32.mrf.mxu0
        %v6196 = vadd.f32 %v6083, %v6195
        %6197 = vmatmul.f32.gmra.mxu0 %v4243
        %v6198 = vpop.f32.mrf.mxu0
        %v6199 = vadd.f32 %v6086, %v6198
        %6200 = vmatmul.f32.gmra.mxu0 %v4256
        %v6201 = vpop.f32.mrf.mxu0
        %v6202 = vadd.f32 %v6089, %v6201
        %6203 = vmatmul.f32.gmra.mxu0 %v4269
        %v6204 = vpop.f32.mrf.mxu0
        %v6205 = vadd.f32 %v6092, %v6204
        %6206 = vmatmul.f32.gmra.mxu0 %v4282
        %v6207 = vpop.f32.mrf.mxu0
        %v6208 = vadd.f32 %v6095, %v6207
        %6209 = vmatmul.f32.gmra.mxu0 %v4295
        %v6210 = vpop.f32.mrf.mxu0
        %v6211 = vadd.f32 %v6098, %v6210
        %6212 = vmatmul.f32.gmra.mxu0 %v4308
        %v6213 = vpop.f32.mrf.mxu0
        %v6214 = vadd.f32 %v6101, %v6213
        %6215 = vmatmul.f32.gmra.mxu0 %v4321
        %v6216 = vpop.f32.mrf.mxu0
        %v6217 = vadd.f32 %v6104, %v6216
        %6218 = vmatmul.f32.gmra.mxu0 %v4334
        %v6219 = vpop.f32.mrf.mxu0
        %v6220 = vadd.f32 %v6107, %v6219
        %6221 = vmatmul.f32.gmra.mxu0 %v4347
        %v6222 = vpop.f32.mrf.mxu0
        %v6223 = vadd.f32 %v6110, %v6222
        %6224 = vmatmul.f32.gmra.mxu0 %v4360
        %v6225 = vpop.f32.mrf.mxu0
        %v6226 = vadd.f32 %v6113, %v6225
        %6227 = vmatmul.f32.gmra.mxu0 %v4373
        %v6228 = vpop.f32.mrf.mxu0
        %v6229 = vadd.f32 %v6116, %v6228
        %6230 = vmatmul.f32.gmra.mxu0 %v4386
        %v6231 = vpop.f32.mrf.mxu0
        %v6232 = vadd.f32 %v6119, %v6231
        %6233 = vmatmul.f32.gmra.mxu0 %v4399
        %v6234 = vpop.f32.mrf.mxu0
        %v6235 = vadd.f32 %v6122, %v6234
        %6236 = vmatmul.f32.gmra.mxu0 %v4412
        %v6237 = vpop.f32.mrf.mxu0
        %v6238 = vadd.f32 %v6125, %v6237
        %6239 = vmatmul.f32.gmra.mxu0 %v4425
        %v6240 = vpop.f32.mrf.mxu0
        %v6241 = vadd.f32 %v6128, %v6240
        %6242 = vmatmul.f32.gmra.mxu0 %v4438
        %v6243 = vpop.f32.mrf.mxu0
        %v6244 = vadd.f32 %v6131, %v6243
        %6245 = vmatmul.f32.gmra.mxu0 %v4451
        %v6246 = vpop.f32.mrf.mxu0
        %v6247 = vadd.f32 %v6134, %v6246
        %6248 = vmatmul.f32.gmra.mxu0 %v4464
        %v6249 = vpop.f32.mrf.mxu0
        %v6250 = vadd.f32 %v6137, %v6249
        %6251 = vmatmul.f32.gmra.mxu0 %v4477
        %v6252 = vpop.f32.mrf.mxu0
        %v6253 = vadd.f32 %v6140, %v6252
        %6254 = vmatmul.f32.gmra.mxu0 %v4490
        %v6255 = vpop.f32.mrf.mxu0
        %v6256 = vadd.f32 %v6143, %v6255
        %6257 = vmatmul.f32.gmra.mxu0 %v4503
        %v6258 = vpop.f32.mrf.mxu0
        %v6259 = vadd.f32 %v6146, %v6258
        %6260 = vmatmul.f32.gmra.mxu0 %v4516
        %v6261 = vpop.f32.mrf.mxu0
        %v6262 = vadd.f32 %v6149, %v6261
        %6263 = vmatmul.f32.gmra.mxu0 %v4529
        %v6264 = vpop.f32.mrf.mxu0
        %v6265 = vadd.f32 %v6152, %v6264
        %6266 = vmatmul.f32.gmra.mxu0 %v4542
        %v6267 = vpop.f32.mrf.mxu0
        %v6268 = vadd.f32 %v6155, %v6267
        %6269 = vmatmul.f32.gmra.mxu0 %v4555
        %v6270 = vpop.f32.mrf.mxu0
        %v6271 = vadd.f32 %v6158, %v6270
        %6272 = vmatmul.f32.gmra.mxu0 %v4568
        %v6273 = vpop.f32.mrf.mxu0
        %v6274 = vadd.f32 %v6161, %v6273
        %6275 = vmatmul.f32.gmra.mxu0 %v4581
        %v6276 = vpop.f32.mrf.mxu0
        %v6277 = vadd.f32 %v6164, %v6276
        %6278 = vmatmul.f32.gmra.mxu0 %v4594
        %v6279 = vpop.f32.mrf.mxu0
        %v6280 = vadd.f32 %v6167, %v6279
        %6281 = vmatmul.f32.gmra.mxu0 %v4607
        %v6282 = vpop.f32.mrf.mxu0
        %v6283 = vadd.f32 %v6170, %v6282
        %6284 = vmatmul.f32.gmra.mxu0 %v4620
        %v6285 = vpop.f32.mrf.mxu0
        %v6286 = vadd.f32 %v6173, %v6285
        %6287 = vmatmul.f32.gmra.mxu0 %v4633
        %v6288 = vpop.f32.mrf.mxu0
        %v6289 = vadd.f32 %v6176, %v6288
        %6290 = vdwg.mxu0
        %6291 = vmatpush.msra.mxu0 0.0
        %6292 = vmatpush.msra.mxu0 0.0
        %6293 = vmatpush.msra.mxu0 0.0
        %6294 = vmatpush.msra.mxu0 0.0
        %6295 = vmatpush.msra.mxu0 0.0
        %6296 = vmatpush.msra.mxu0 0.0
        %6297 = vmatpush.msra.mxu0 0.0
        %6298 = vmatpush.msra.mxu0 0.0
        %6299 = vmatpush.msra.mxu0 %v4834
        %6300 = vmatpush.msra.mxu0 %v4833
        %6301 = vmatpush.msra.mxu0 %v4832
        %6302 = vmatpush.msra.mxu0 %v4831
        %6303 = vmatpush.msra.mxu0 %v4830
        %6304 = vmatpush.msra.mxu0 %v4829
        %6305 = vmatpush.msra.mxu0 %v4828
        %6306 = vmatpush.msra.mxu0 %v4827
        %6307 = vmatmul.f32.gmra.mxu0 %v4840
        %v6308 = vpop.f32.mrf.mxu0
        %v6309 = vadd.f32 %v6196, %v6308
        %6310 = vmatmul.f32.gmra.mxu0 %v4843
        %v6311 = vpop.f32.mrf.mxu0
        %v6312 = vadd.f32 %v6199, %v6311
        %6313 = vmatmul.f32.gmra.mxu0 %v4846
        %v6314 = vpop.f32.mrf.mxu0
        %v6315 = vadd.f32 %v6202, %v6314
        %6316 = vmatmul.f32.gmra.mxu0 %v4849
        %v6317 = vpop.f32.mrf.mxu0
        %v6318 = vadd.f32 %v6205, %v6317
        %6319 = vmatmul.f32.gmra.mxu0 %v4852
        %v6320 = vpop.f32.mrf.mxu0
        %v6321 = vadd.f32 %v6208, %v6320
        %6322 = vmatmul.f32.gmra.mxu0 %v4855
        %v6323 = vpop.f32.mrf.mxu0
        %v6324 = vadd.f32 %v6211, %v6323
        %6325 = vmatmul.f32.gmra.mxu0 %v4858
        %v6326 = vpop.f32.mrf.mxu0
        %v6327 = vadd.f32 %v6214, %v6326
        %6328 = vmatmul.f32.gmra.mxu0 %v4861
        %v6329 = vpop.f32.mrf.mxu0
        %v6330 = vadd.f32 %v6217, %v6329
        %6331 = vmatmul.f32.gmra.mxu0 %v4864
        %v6332 = vpop.f32.mrf.mxu0
        %v6333 = vadd.f32 %v6220, %v6332
        %6334 = vmatmul.f32.gmra.mxu0 %v4867
        %v6335 = vpop.f32.mrf.mxu0
        %v6336 = vadd.f32 %v6223, %v6335
        %6337 = vmatmul.f32.gmra.mxu0 %v4870
        %v6338 = vpop.f32.mrf.mxu0
        %v6339 = vadd.f32 %v6226, %v6338
        %6340 = vmatmul.f32.gmra.mxu0 %v4873
        %v6341 = vpop.f32.mrf.mxu0
        %v6342 = vadd.f32 %v6229, %v6341
        %6343 = vmatmul.f32.gmra.mxu0 %v4876
        %v6344 = vpop.f32.mrf.mxu0
        %v6345 = vadd.f32 %v6232, %v6344
        %6346 = vmatmul.f32.gmra.mxu0 %v4879
        %v6347 = vpop.f32.mrf.mxu0
        %v6348 = vadd.f32 %v6235, %v6347
        %6349 = vmatmul.f32.gmra.mxu0 %v4882
        %v6350 = vpop.f32.mrf.mxu0
        %v6351 = vadd.f32 %v6238, %v6350
        %6352 = vmatmul.f32.gmra.mxu0 %v4885
        %v6353 = vpop.f32.mrf.mxu0
        %v6354 = vadd.f32 %v6241, %v6353
        %6355 = vmatmul.f32.gmra.mxu0 %v4888
        %v6356 = vpop.f32.mrf.mxu0
        %v6357 = vadd.f32 %v6244, %v6356
        %6358 = vmatmul.f32.gmra.mxu0 %v4891
        %v6359 = vpop.f32.mrf.mxu0
        %v6360 = vadd.f32 %v6247, %v6359
        %6361 = vmatmul.f32.gmra.mxu0 %v4894
        %v6362 = vpop.f32.mrf.mxu0
        %v6363 = vadd.f32 %v6250, %v6362
        %6364 = vmatmul.f32.gmra.mxu0 %v4897
        %v6365 = vpop.f32.mrf.mxu0
        %v6366 = vadd.f32 %v6253, %v6365
        %6367 = vmatmul.f32.gmra.mxu0 %v4900
        %v6368 = vpop.f32.mrf.mxu0
        %v6369 = vadd.f32 %v6256, %v6368
        %6370 = vmatmul.f32.gmra.mxu0 %v4903
        %v6371 = vpop.f32.mrf.mxu0
        %v6372 = vadd.f32 %v6259, %v6371
        %6373 = vmatmul.f32.gmra.mxu0 %v4906
        %v6374 = vpop.f32.mrf.mxu0
        %v6375 = vadd.f32 %v6262, %v6374
        %6376 = vmatmul.f32.gmra.mxu0 %v4909
        %v6377 = vpop.f32.mrf.mxu0
        %v6378 = vadd.f32 %v6265, %v6377
        %6379 = vmatmul.f32.gmra.mxu0 %v4912
        %v6380 = vpop.f32.mrf.mxu0
        %v6381 = vadd.f32 %v6268, %v6380
        %6382 = vmatmul.f32.gmra.mxu0 %v4915
        %v6383 = vpop.f32.mrf.mxu0
        %v6384 = vadd.f32 %v6271, %v6383
        %6385 = vmatmul.f32.gmra.mxu0 %v4918
        %v6386 = vpop.f32.mrf.mxu0
        %v6387 = vadd.f32 %v6274, %v6386
        %6388 = vmatmul.f32.gmra.mxu0 %v4921
        %v6389 = vpop.f32.mrf.mxu0
        %v6390 = vadd.f32 %v6277, %v6389
        %6391 = vmatmul.f32.gmra.mxu0 %v4924
        %v6392 = vpop.f32.mrf.mxu0
        %v6393 = vadd.f32 %v6280, %v6392
        %6394 = vmatmul.f32.gmra.mxu0 %v4927
        %v6395 = vpop.f32.mrf.mxu0
        %v6396 = vadd.f32 %v6283, %v6395
        %6397 = vmatmul.f32.gmra.mxu0 %v4930
        %v6398 = vpop.f32.mrf.mxu0
        %v6399 = vadd.f32 %v6286, %v6398
        %6400 = vmatmul.f32.gmra.mxu0 %v4933
        %v6401 = vpop.f32.mrf.mxu0
        %v6402 = vadd.f32 %v6289, %v6401
        %6403 = vdwg.mxu0
        %v6404 = vmax.f32 %v6309, 0.0
        %v6405 = vmax.f32 %v6312, 0.0
        %v6406 = vmax.f32 %v6315, 0.0
        %v6407 = vmax.f32 %v6318, 0.0
        %v6408 = vmax.f32 %v6321, 0.0
        %v6409 = vmax.f32 %v6324, 0.0
        %v6410 = vmax.f32 %v6327, 0.0
        %v6411 = vmax.f32 %v6330, 0.0
        %v6412 = vmax.f32 %v6333, 0.0
        %v6413 = vmax.f32 %v6336, 0.0
        %v6414 = vmax.f32 %v6339, 0.0
        %v6415 = vmax.f32 %v6342, 0.0
        %v6416 = vmax.f32 %v6345, 0.0
        %v6417 = vmax.f32 %v6348, 0.0
        %v6418 = vmax.f32 %v6351, 0.0
        %v6419 = vmax.f32 %v6354, 0.0
        %v6420 = vmax.f32 %v6357, 0.0
        %v6421 = vmax.f32 %v6360, 0.0
        %v6422 = vmax.f32 %v6363, 0.0
        %v6423 = vmax.f32 %v6366, 0.0
        %v6424 = vmax.f32 %v6369, 0.0
        %v6425 = vmax.f32 %v6372, 0.0
        %v6426 = vmax.f32 %v6375, 0.0
        %v6427 = vmax.f32 %v6378, 0.0
        %v6428 = vmax.f32 %v6381, 0.0
        %v6429 = vmax.f32 %v6384, 0.0
        %v6430 = vmax.f32 %v6387, 0.0
        %v6431 = vmax.f32 %v6390, 0.0
        %v6432 = vmax.f32 %v6393, 0.0
        %v6433 = vmax.f32 %v6396, 0.0
        %v6434 = vmax.f32 %v6399, 0.0
        %v6435 = vmax.f32 %v6402, 0.0
        %v6436 = vld [vmem:[%s5] sm:$0xff]
        %v6437 = vld [vmem:[%s5 + $0x8] sm:$0xff]
        %v6438 = vld [vmem:[%s5 + $0x10] sm:$0xff]
        %v6439 = vld [vmem:[%s5 + $0x18] sm:$0xff]
        %v6440 = vld [vmem:[%s5 + $0x20] sm:$0xff]
        %v6441 = vld [vmem:[%s5 + $0x28] sm:$0xff]
        %v6442 = vld [vmem:[%s5 + $0x30] sm:$0xff]
        %v6443 = vld [vmem:[%s5 + $0x38] sm:$0xff]
        %v6444 = vld [vmem:[%s5 + $0x40] sm:$0xff]
        %v6445 = vld [vmem:[%s5 + $0x48] sm:$0xff]
        %v6446 = vld [vmem:[%s5 + $0x50] sm:$0xff]
        %v6447 = vld [vmem:[%s5 + $0x58] sm:$0xff]
        %v6448 = vld [vmem:[%s5 + $0x60] sm:$0xff]
        %v6449 = vld [vmem:[%s5 + $0x68] sm:$0xff]
        %v6450 = vld [vmem:[%s5 + $0x70] sm:$0xff]
        %v6451 = vld [vmem:[%s5 + $0x78] sm:$0xff]
        %v6452 = vld [vmem:[%s5 + $0x80] sm:$0xff]
        %v6453 = vld [vmem:[%s5 + $0x88] sm:$0xff]
        %v6454 = vld [vmem:[%s5 + $0x90] sm:$0xff]
        %v6455 = vld [vmem:[%s5 + $0x98] sm:$0xff]
        %v6456 = vld [vmem:[%s5 + $0xa0] sm:$0xff]
        %v6457 = vld [vmem:[%s5 + $0xa8] sm:$0xff]
        %v6458 = vld [vmem:[%s5 + $0xb0] sm:$0xff]
        %v6459 = vld [vmem:[%s5 + $0xb8] sm:$0xff]
        %v6460 = vld [vmem:[%s5 + $0xc0] sm:$0xff]
        %v6461 = vld [vmem:[%s5 + $0xc8] sm:$0xff]
        %v6462 = vld [vmem:[%s5 + $0xd0] sm:$0xff]
        %v6463 = vld [vmem:[%s5 + $0xd8] sm:$0xff]
        %v6464 = vld [vmem:[%s5 + $0xe0] sm:$0xff]
        %v6465 = vld [vmem:[%s5 + $0xe8] sm:$0xff]
        %v6466 = vld [vmem:[%s5 + $0xf0] sm:$0xff]
        %v6467 = vld [vmem:[%s5 + $0xf8] sm:$0xff]
        %v6468 = vld [vmem:[%s5 + $0x100] sm:$0xff]
        %v6469 = vld [vmem:[%s5 + $0x108] sm:$0xff]
        %v6470 = vld [vmem:[%s5 + $0x110] sm:$0xff]
        %v6471 = vld [vmem:[%s5 + $0x118] sm:$0xff]
        %v6472 = vld [vmem:[%s5 + $0x120] sm:$0xff]
        %v6473 = vld [vmem:[%s5 + $0x128] sm:$0xff]
        %v6474 = vld [vmem:[%s5 + $0x130] sm:$0xff]
        %v6475 = vld [vmem:[%s5 + $0x138] sm:$0xff]
        %v6476 = vld [vmem:[%s5 + $0x140] sm:$0xff]
        %v6477 = vld [vmem:[%s5 + $0x148] sm:$0xff]
        %v6478 = vld [vmem:[%s5 + $0x150] sm:$0xff]
        %v6479 = vld [vmem:[%s5 + $0x158] sm:$0xff]
        %v6480 = vld [vmem:[%s5 + $0x160] sm:$0xff]
        %v6481 = vld [vmem:[%s5 + $0x168] sm:$0xff]
        %v6482 = vld [vmem:[%s5 + $0x170] sm:$0xff]
        %v6483 = vld [vmem:[%s5 + $0x178] sm:$0xff]
        %v6484 = vld [vmem:[%s5 + $0x180] sm:$0xff]
        %v6485 = vld [vmem:[%s5 + $0x188] sm:$0xff]
        %v6486 = vld [vmem:[%s5 + $0x190] sm:$0xff]
        %v6487 = vld [vmem:[%s5 + $0x198] sm:$0xff]
        %v6488 = vld [vmem:[%s5 + $0x1a0] sm:$0xff]
        %v6489 = vld [vmem:[%s5 + $0x1a8] sm:$0xff]
        %v6490 = vld [vmem:[%s5 + $0x1b0] sm:$0xff]
        %v6491 = vld [vmem:[%s5 + $0x1b8] sm:$0xff]
        %v6492 = vld [vmem:[%s5 + $0x1c0] sm:$0xff]
        %v6493 = vld [vmem:[%s5 + $0x1c8] sm:$0xff]
        %v6494 = vld [vmem:[%s5 + $0x1d0] sm:$0xff]
        %v6495 = vld [vmem:[%s5 + $0x1d8] sm:$0xff]
        %v6496 = vld [vmem:[%s5 + $0x1e0] sm:$0xff]
        %v6497 = vld [vmem:[%s5 + $0x1e8] sm:$0xff]
        %v6498 = vld [vmem:[%s5 + $0x1f0] sm:$0xff]
        %v6499 = vld [vmem:[%s5 + $0x1f8] sm:$0xff]
        %6500 = vmatpush.msra.mxu0 %v6466
        %6501 = vmatpush.msra.mxu0 %v6464
        %6502 = vmatpush.msra.mxu0 %v6462
        %6503 = vmatpush.msra.mxu0 %v6460
        %6504 = vmatpush.msra.mxu0 %v6458
        %6505 = vmatpush.msra.mxu0 %v6456
        %6506 = vmatpush.msra.mxu0 %v6454
        %6507 = vmatpush.msra.mxu0 %v6452
        %6508 = vmatpush.msra.mxu0 %v6450
        %6509 = vmatpush.msra.mxu0 %v6448
        %6510 = vmatpush.msra.mxu0 %v6446
        %6511 = vmatpush.msra.mxu0 %v6444
        %6512 = vmatpush.msra.mxu0 %v6442
        %6513 = vmatpush.msra.mxu0 %v6440
        %6514 = vmatpush.msra.mxu0 %v6438
        %6515 = vmatpush.msra.mxu0 %v6436
        %6516 = vmatmul.f32.gmra.mxu0 %v934
        %v6517 = vpop.f32.mrf.mxu0
        %v6518 = vadd.f32 %v613, %v6517
        %6519 = vmatmul.f32.gmra.mxu0 %v935
        %v6520 = vpop.f32.mrf.mxu0
        %v6521 = vadd.f32 %v616, %v6520
        %6522 = vmatmul.f32.gmra.mxu0 %v936
        %v6523 = vpop.f32.mrf.mxu0
        %v6524 = vadd.f32 %v619, %v6523
        %6525 = vmatmul.f32.gmra.mxu0 %v937
        %v6526 = vpop.f32.mrf.mxu0
        %v6527 = vadd.f32 %v622, %v6526
        %6528 = vmatmul.f32.gmra.mxu0 %v938
        %v6529 = vpop.f32.mrf.mxu0
        %v6530 = vadd.f32 %v625, %v6529
        %6531 = vmatmul.f32.gmra.mxu0 %v939
        %v6532 = vpop.f32.mrf.mxu0
        %v6533 = vadd.f32 %v628, %v6532
        %6534 = vmatmul.f32.gmra.mxu0 %v940
        %v6535 = vpop.f32.mrf.mxu0
        %v6536 = vadd.f32 %v631, %v6535
        %6537 = vmatmul.f32.gmra.mxu0 %v941
        %v6538 = vpop.f32.mrf.mxu0
        %v6539 = vadd.f32 %v634, %v6538
        %6540 = vmatmul.f32.gmra.mxu0 %v942
        %v6541 = vpop.f32.mrf.mxu0
        %v6542 = vadd.f32 %v637, %v6541
        %6543 = vmatmul.f32.gmra.mxu0 %v943
        %v6544 = vpop.f32.mrf.mxu0
        %v6545 = vadd.f32 %v640, %v6544
        %6546 = vmatmul.f32.gmra.mxu0 %v944
        %v6547 = vpop.f32.mrf.mxu0
        %v6548 = vadd.f32 %v643, %v6547
        %6549 = vmatmul.f32.gmra.mxu0 %v945
        %v6550 = vpop.f32.mrf.mxu0
        %v6551 = vadd.f32 %v646, %v6550
        %6552 = vmatmul.f32.gmra.mxu0 %v946
        %v6553 = vpop.f32.mrf.mxu0
        %v6554 = vadd.f32 %v649, %v6553
        %6555 = vmatmul.f32.gmra.mxu0 %v947
        %v6556 = vpop.f32.mrf.mxu0
        %v6557 = vadd.f32 %v652, %v6556
        %6558 = vmatmul.f32.gmra.mxu0 %v948
        %v6559 = vpop.f32.mrf.mxu0
        %v6560 = vadd.f32 %v655, %v6559
        %6561 = vmatmul.f32.gmra.mxu0 %v949
        %v6562 = vpop.f32.mrf.mxu0
        %v6563 = vadd.f32 %v658, %v6562
        %6564 = vmatmul.f32.gmra.mxu0 %v950
        %v6565 = vpop.f32.mrf.mxu0
        %v6566 = vadd.f32 %v661, %v6565
        %6567 = vmatmul.f32.gmra.mxu0 %v951
        %v6568 = vpop.f32.mrf.mxu0
        %v6569 = vadd.f32 %v664, %v6568
        %6570 = vmatmul.f32.gmra.mxu0 %v952
        %v6571 = vpop.f32.mrf.mxu0
        %v6572 = vadd.f32 %v667, %v6571
        %6573 = vmatmul.f32.gmra.mxu0 %v953
        %v6574 = vpop.f32.mrf.mxu0
        %v6575 = vadd.f32 %v670, %v6574
        %6576 = vmatmul.f32.gmra.mxu0 %v954
        %v6577 = vpop.f32.mrf.mxu0
        %v6578 = vadd.f32 %v673, %v6577
        %6579 = vmatmul.f32.gmra.mxu0 %v955
        %v6580 = vpop.f32.mrf.mxu0
        %v6581 = vadd.f32 %v676, %v6580
        %6582 = vmatmul.f32.gmra.mxu0 %v956
        %v6583 = vpop.f32.mrf.mxu0
        %v6584 = vadd.f32 %v679, %v6583
        %6585 = vmatmul.f32.gmra.mxu0 %v957
        %v6586 = vpop.f32.mrf.mxu0
        %v6587 = vadd.f32 %v682, %v6586
        %6588 = vmatmul.f32.gmra.mxu0 %v958
        %v6589 = vpop.f32.mrf.mxu0
        %v6590 = vadd.f32 %v685, %v6589
        %6591 = vmatmul.f32.gmra.mxu0 %v959
        %v6592 = vpop.f32.mrf.mxu0
        %v6593 = vadd.f32 %v688, %v6592
        %6594 = vmatmul.f32.gmra.mxu0 %v960
        %v6595 = vpop.f32.mrf.mxu0
        %v6596 = vadd.f32 %v691, %v6595
        %6597 = vmatmul.f32.gmra.mxu0 %v961
        %v6598 = vpop.f32.mrf.mxu0
        %v6599 = vadd.f32 %v694, %v6598
        %6600 = vmatmul.f32.gmra.mxu0 %v962
        %v6601 = vpop.f32.mrf.mxu0
        %v6602 = vadd.f32 %v697, %v6601
        %6603 = vmatmul.f32.gmra.mxu0 %v963
        %v6604 = vpop.f32.mrf.mxu0
        %v6605 = vadd.f32 %v700, %v6604
        %6606 = vmatmul.f32.gmra.mxu0 %v964
        %v6607 = vpop.f32.mrf.mxu0
        %v6608 = vadd.f32 %v703, %v6607
        %6609 = vmatmul.f32.gmra.mxu0 %v965
        %v6610 = vpop.f32.mrf.mxu0
        %v6611 = vadd.f32 %v706, %v6610
        %6612 = vdwg.mxu0
        %6613 = vmatpush.msra.mxu0 %v6498
        %6614 = vmatpush.msra.mxu0 %v6496
        %6615 = vmatpush.msra.mxu0 %v6494
        %6616 = vmatpush.msra.mxu0 %v6492
        %6617 = vmatpush.msra.mxu0 %v6490
        %6618 = vmatpush.msra.mxu0 %v6488
        %6619 = vmatpush.msra.mxu0 %v6486
        %6620 = vmatpush.msra.mxu0 %v6484
        %6621 = vmatpush.msra.mxu0 %v6482
        %6622 = vmatpush.msra.mxu0 %v6480
        %6623 = vmatpush.msra.mxu0 %v6478
        %6624 = vmatpush.msra.mxu0 %v6476
        %6625 = vmatpush.msra.mxu0 %v6474
        %6626 = vmatpush.msra.mxu0 %v6472
        %6627 = vmatpush.msra.mxu0 %v6470
        %6628 = vmatpush.msra.mxu0 %v6468
        %6629 = vmatmul.f32.gmra.mxu0 %v6404
        %v6630 = vpop.f32.mrf.mxu0
        %v6631 = vadd.f32 %v6518, %v6630
        %6632 = vmatmul.f32.gmra.mxu0 %v6405
        %v6633 = vpop.f32.mrf.mxu0
        %v6634 = vadd.f32 %v6521, %v6633
        %6635 = vmatmul.f32.gmra.mxu0 %v6406
        %v6636 = vpop.f32.mrf.mxu0
        %v6637 = vadd.f32 %v6524, %v6636
        %6638 = vmatmul.f32.gmra.mxu0 %v6407
        %v6639 = vpop.f32.mrf.mxu0
        %v6640 = vadd.f32 %v6527, %v6639
        %6641 = vmatmul.f32.gmra.mxu0 %v6408
        %v6642 = vpop.f32.mrf.mxu0
        %v6643 = vadd.f32 %v6530, %v6642
        %6644 = vmatmul.f32.gmra.mxu0 %v6409
        %v6645 = vpop.f32.mrf.mxu0
        %v6646 = vadd.f32 %v6533, %v6645
        %6647 = vmatmul.f32.gmra.mxu0 %v6410
        %v6648 = vpop.f32.mrf.mxu0
        %v6649 = vadd.f32 %v6536, %v6648
        %6650 = vmatmul.f32.gmra.mxu0 %v6411
        %v6651 = vpop.f32.mrf.mxu0
        %v6652 = vadd.f32 %v6539, %v6651
        %6653 = vmatmul.f32.gmra.mxu0 %v6412
        %v6654 = vpop.f32.mrf.mxu0
        %v6655 = vadd.f32 %v6542, %v6654
        %6656 = vmatmul.f32.gmra.mxu0 %v6413
        %v6657 = vpop.f32.mrf.mxu0
        %v6658 = vadd.f32 %v6545, %v6657
        %6659 = vmatmul.f32.gmra.mxu0 %v6414
        %v6660 = vpop.f32.mrf.mxu0
        %v6661 = vadd.f32 %v6548, %v6660
        %6662 = vmatmul.f32.gmra.mxu0 %v6415
        %v6663 = vpop.f32.mrf.mxu0
        %v6664 = vadd.f32 %v6551, %v6663
        %6665 = vmatmul.f32.gmra.mxu0 %v6416
        %v6666 = vpop.f32.mrf.mxu0
        %v6667 = vadd.f32 %v6554, %v6666
        %6668 = vmatmul.f32.gmra.mxu0 %v6417
        %v6669 = vpop.f32.mrf.mxu0
        %v6670 = vadd.f32 %v6557, %v6669
        %6671 = vmatmul.f32.gmra.mxu0 %v6418
        %v6672 = vpop.f32.mrf.mxu0
        %v6673 = vadd.f32 %v6560, %v6672
        %6674 = vmatmul.f32.gmra.mxu0 %v6419
        %v6675 = vpop.f32.mrf.mxu0
        %v6676 = vadd.f32 %v6563, %v6675
        %6677 = vmatmul.f32.gmra.mxu0 %v6420
        %v6678 = vpop.f32.mrf.mxu0
        %v6679 = vadd.f32 %v6566, %v6678
        %6680 = vmatmul.f32.gmra.mxu0 %v6421
        %v6681 = vpop.f32.mrf.mxu0
        %v6682 = vadd.f32 %v6569, %v6681
        %6683 = vmatmul.f32.gmra.mxu0 %v6422
        %v6684 = vpop.f32.mrf.mxu0
        %v6685 = vadd.f32 %v6572, %v6684
        %6686 = vmatmul.f32.gmra.mxu0 %v6423
        %v6687 = vpop.f32.mrf.mxu0
        %v6688 = vadd.f32 %v6575, %v6687
        %6689 = vmatmul.f32.gmra.mxu0 %v6424
        %v6690 = vpop.f32.mrf.mxu0
        %v6691 = vadd.f32 %v6578, %v6690
        %6692 = vmatmul.f32.gmra.mxu0 %v6425
        %v6693 = vpop.f32.mrf.mxu0
        %v6694 = vadd.f32 %v6581, %v6693
        %6695 = vmatmul.f32.gmra.mxu0 %v6426
        %v6696 = vpop.f32.mrf.mxu0
        %v6697 = vadd.f32 %v6584, %v6696
        %6698 = vmatmul.f32.gmra.mxu0 %v6427
        %v6699 = vpop.f32.mrf.mxu0
        %v6700 = vadd.f32 %v6587, %v6699
        %6701 = vmatmul.f32.gmra.mxu0 %v6428
        %v6702 = vpop.f32.mrf.mxu0
        %v6703 = vadd.f32 %v6590, %v6702
        %6704 = vmatmul.f32.gmra.mxu0 %v6429
        %v6705 = vpop.f32.mrf.mxu0
        %v6706 = vadd.f32 %v6593, %v6705
        %6707 = vmatmul.f32.gmra.mxu0 %v6430
        %v6708 = vpop.f32.mrf.mxu0
        %v6709 = vadd.f32 %v6596, %v6708
        %6710 = vmatmul.f32.gmra.mxu0 %v6431
        %v6711 = vpop.f32.mrf.mxu0
        %v6712 = vadd.f32 %v6599, %v6711
        %6713 = vmatmul.f32.gmra.mxu0 %v6432
        %v6714 = vpop.f32.mrf.mxu0
        %v6715 = vadd.f32 %v6602, %v6714
        %6716 = vmatmul.f32.gmra.mxu0 %v6433
        %v6717 = vpop.f32.mrf.mxu0
        %v6718 = vadd.f32 %v6605, %v6717
        %6719 = vmatmul.f32.gmra.mxu0 %v6434
        %v6720 = vpop.f32.mrf.mxu0
        %v6721 = vadd.f32 %v6608, %v6720
        %6722 = vmatmul.f32.gmra.mxu0 %v6435
        %v6723 = vpop.f32.mrf.mxu0
        %v6724 = vadd.f32 %v6611, %v6723
        %6725 = vdwg.mxu0
        %6726 = vmatpush.msra.mxu0 %v6467
        %6727 = vmatpush.msra.mxu0 %v6465
        %6728 = vmatpush.msra.mxu0 %v6463
        %6729 = vmatpush.msra.mxu0 %v6461
        %6730 = vmatpush.msra.mxu0 %v6459
        %6731 = vmatpush.msra.mxu0 %v6457
        %6732 = vmatpush.msra.mxu0 %v6455
        %6733 = vmatpush.msra.mxu0 %v6453
        %6734 = vmatpush.msra.mxu0 %v6451
        %6735 = vmatpush.msra.mxu0 %v6449
        %6736 = vmatpush.msra.mxu0 %v6447
        %6737 = vmatpush.msra.mxu0 %v6445
        %6738 = vmatpush.msra.mxu0 %v6443
        %6739 = vmatpush.msra.mxu0 %v6441
        %6740 = vmatpush.msra.mxu0 %v6439
        %6741 = vmatpush.msra.mxu0 %v6437
        %6742 = vmatmul.f32.gmra.mxu0 %v934
        %v6743 = vpop.f32.mrf.mxu0
        %v6744 = vadd.f32 %v726, %v6743
        %6745 = vmatmul.f32.gmra.mxu0 %v935
        %v6746 = vpop.f32.mrf.mxu0
        %v6747 = vadd.f32 %v729, %v6746
        %6748 = vmatmul.f32.gmra.mxu0 %v936
        %v6749 = vpop.f32.mrf.mxu0
        %v6750 = vadd.f32 %v732, %v6749
        %6751 = vmatmul.f32.gmra.mxu0 %v937
        %v6752 = vpop.f32.mrf.mxu0
        %v6753 = vadd.f32 %v735, %v6752
        %6754 = vmatmul.f32.gmra.mxu0 %v938
        %v6755 = vpop.f32.mrf.mxu0
        %v6756 = vadd.f32 %v738, %v6755
        %6757 = vmatmul.f32.gmra.mxu0 %v939
        %v6758 = vpop.f32.mrf.mxu0
        %v6759 = vadd.f32 %v741, %v6758
        %6760 = vmatmul.f32.gmra.mxu0 %v940
        %v6761 = vpop.f32.mrf.mxu0
        %v6762 = vadd.f32 %v744, %v6761
        %6763 = vmatmul.f32.gmra.mxu0 %v941
        %v6764 = vpop.f32.mrf.mxu0
        %v6765 = vadd.f32 %v747, %v6764
        %6766 = vmatmul.f32.gmra.mxu0 %v942
        %v6767 = vpop.f32.mrf.mxu0
        %v6768 = vadd.f32 %v750, %v6767
        %6769 = vmatmul.f32.gmra.mxu0 %v943
        %v6770 = vpop.f32.mrf.mxu0
        %v6771 = vadd.f32 %v753, %v6770
        %6772 = vmatmul.f32.gmra.mxu0 %v944
        %v6773 = vpop.f32.mrf.mxu0
        %v6774 = vadd.f32 %v756, %v6773
        %6775 = vmatmul.f32.gmra.mxu0 %v945
        %v6776 = vpop.f32.mrf.mxu0
        %v6777 = vadd.f32 %v759, %v6776
        %6778 = vmatmul.f32.gmra.mxu0 %v946
        %v6779 = vpop.f32.mrf.mxu0
        %v6780 = vadd.f32 %v762, %v6779
        %6781 = vmatmul.f32.gmra.mxu0 %v947
        %v6782 = vpop.f32.mrf.mxu0
        %v6783 = vadd.f32 %v765, %v6782
        %6784 = vmatmul.f32.gmra.mxu0 %v948
        %v6785 = vpop.f32.mrf.mxu0
        %v6786 = vadd.f32 %v768, %v6785
        %6787 = vmatmul.f32.gmra.mxu0 %v949
        %v6788 = vpop.f32.mrf.mxu0
        %v6789 = vadd.f32 %v771, %v6788
        %6790 = vmatmul.f32.gmra.mxu0 %v950
        %v6791 = vpop.f32.mrf.mxu0
        %v6792 = vadd.f32 %v774, %v6791
        %6793 = vmatmul.f32.gmra.mxu0 %v951
        %v6794 = vpop.f32.mrf.mxu0
        %v6795 = vadd.f32 %v777, %v6794
        %6796 = vmatmul.f32.gmra.mxu0 %v952
        %v6797 = vpop.f32.mrf.mxu0
        %v6798 = vadd.f32 %v780, %v6797
        %6799 = vmatmul.f32.gmra.mxu0 %v953
        %v6800 = vpop.f32.mrf.mxu0
        %v6801 = vadd.f32 %v783, %v6800
        %6802 = vmatmul.f32.gmra.mxu0 %v954
        %v6803 = vpop.f32.mrf.mxu0
        %v6804 = vadd.f32 %v786, %v6803
        %6805 = vmatmul.f32.gmra.mxu0 %v955
        %v6806 = vpop.f32.mrf.mxu0
        %v6807 = vadd.f32 %v789, %v6806
        %6808 = vmatmul.f32.gmra.mxu0 %v956
        %v6809 = vpop.f32.mrf.mxu0
        %v6810 = vadd.f32 %v792, %v6809
        %6811 = vmatmul.f32.gmra.mxu0 %v957
        %v6812 = vpop.f32.mrf.mxu0
        %v6813 = vadd.f32 %v795, %v6812
        %6814 = vmatmul.f32.gmra.mxu0 %v958
        %v6815 = vpop.f32.mrf.mxu0
        %v6816 = vadd.f32 %v798, %v6815
        %6817 = vmatmul.f32.gmra.mxu0 %v959
        %v6818 = vpop.f32.mrf.mxu0
        %v6819 = vadd.f32 %v801, %v6818
        %6820 = vmatmul.f32.gmra.mxu0 %v960
        %v6821 = vpop.f32.mrf.mxu0
        %v6822 = vadd.f32 %v804, %v6821
        %6823 = vmatmul.f32.gmra.mxu0 %v961
        %v6824 = vpop.f32.mrf.mxu0
        %v6825 = vadd.f32 %v807, %v6824
        %6826 = vmatmul.f32.gmra.mxu0 %v962
        %v6827 = vpop.f32.mrf.mxu0
        %v6828 = vadd.f32 %v810, %v6827
        %6829 = vmatmul.f32.gmra.mxu0 %v963
        %v6830 = vpop.f32.mrf.mxu0
        %v6831 = vadd.f32 %v813, %v6830
        %6832 = vmatmul.f32.gmra.mxu0 %v964
        %v6833 = vpop.f32.mrf.mxu0
        %v6834 = vadd.f32 %v816, %v6833
        %6835 = vmatmul.f32.gmra.mxu0 %v965
        %v6836 = vpop.f32.mrf.mxu0
        %v6837 = vadd.f32 %v819, %v6836
        %6838 = vdwg.mxu0
        %6839 = vmatpush.msra.mxu0 %v6499
        %6840 = vmatpush.msra.mxu0 %v6497
        %6841 = vmatpush.msra.mxu0 %v6495
        %6842 = vmatpush.msra.mxu0 %v6493
        %6843 = vmatpush.msra.mxu0 %v6491
        %6844 = vmatpush.msra.mxu0 %v6489
        %6845 = vmatpush.msra.mxu0 %v6487
        %6846 = vmatpush.msra.mxu0 %v6485
        %6847 = vmatpush.msra.mxu0 %v6483
        %6848 = vmatpush.msra.mxu0 %v6481
        %6849 = vmatpush.msra.mxu0 %v6479
        %6850 = vmatpush.msra.mxu0 %v6477
        %6851 = vmatpush.msra.mxu0 %v6475
        %6852 = vmatpush.msra.mxu0 %v6473
        %6853 = vmatpush.msra.mxu0 %v6471
        %6854 = vmatpush.msra.mxu0 %v6469
        %6855 = vmatmul.f32.gmra.mxu0 %v6404
        %v6856 = vpop.f32.mrf.mxu0
        %v6857 = vadd.f32 %v6744, %v6856
        %6858 = vmatmul.f32.gmra.mxu0 %v6405
        %v6859 = vpop.f32.mrf.mxu0
        %v6860 = vadd.f32 %v6747, %v6859
        %6861 = vmatmul.f32.gmra.mxu0 %v6406
        %v6862 = vpop.f32.mrf.mxu0
        %v6863 = vadd.f32 %v6750, %v6862
        %6864 = vmatmul.f32.gmra.mxu0 %v6407
        %v6865 = vpop.f32.mrf.mxu0
        %v6866 = vadd.f32 %v6753, %v6865
        %6867 = vmatmul.f32.gmra.mxu0 %v6408
        %v6868 = vpop.f32.mrf.mxu0
        %v6869 = vadd.f32 %v6756, %v6868
        %6870 = vmatmul.f32.gmra.mxu0 %v6409
        %v6871 = vpop.f32.mrf.mxu0
        %v6872 = vadd.f32 %v6759, %v6871
        %6873 = vmatmul.f32.gmra.mxu0 %v6410
        %v6874 = vpop.f32.mrf.mxu0
        %v6875 = vadd.f32 %v6762, %v6874
        %6876 = vmatmul.f32.gmra.mxu0 %v6411
        %v6877 = vpop.f32.mrf.mxu0
        %v6878 = vadd.f32 %v6765, %v6877
        %6879 = vmatmul.f32.gmra.mxu0 %v6412
        %v6880 = vpop.f32.mrf.mxu0
        %v6881 = vadd.f32 %v6768, %v6880
        %6882 = vmatmul.f32.gmra.mxu0 %v6413
        %v6883 = vpop.f32.mrf.mxu0
        %v6884 = vadd.f32 %v6771, %v6883
        %6885 = vmatmul.f32.gmra.mxu0 %v6414
        %v6886 = vpop.f32.mrf.mxu0
        %v6887 = vadd.f32 %v6774, %v6886
        %6888 = vmatmul.f32.gmra.mxu0 %v6415
        %v6889 = vpop.f32.mrf.mxu0
        %v6890 = vadd.f32 %v6777, %v6889
        %6891 = vmatmul.f32.gmra.mxu0 %v6416
        %v6892 = vpop.f32.mrf.mxu0
        %v6893 = vadd.f32 %v6780, %v6892
        %6894 = vmatmul.f32.gmra.mxu0 %v6417
        %v6895 = vpop.f32.mrf.mxu0
        %v6896 = vadd.f32 %v6783, %v6895
        %6897 = vmatmul.f32.gmra.mxu0 %v6418
        %v6898 = vpop.f32.mrf.mxu0
        %v6899 = vadd.f32 %v6786, %v6898
        %6900 = vmatmul.f32.gmra.mxu0 %v6419
        %v6901 = vpop.f32.mrf.mxu0
        %v6902 = vadd.f32 %v6789, %v6901
        %6903 = vmatmul.f32.gmra.mxu0 %v6420
        %v6904 = vpop.f32.mrf.mxu0
        %v6905 = vadd.f32 %v6792, %v6904
        %6906 = vmatmul.f32.gmra.mxu0 %v6421
        %v6907 = vpop.f32.mrf.mxu0
        %v6908 = vadd.f32 %v6795, %v6907
        %6909 = vmatmul.f32.gmra.mxu0 %v6422
        %v6910 = vpop.f32.mrf.mxu0
        %v6911 = vadd.f32 %v6798, %v6910
        %6912 = vmatmul.f32.gmra.mxu0 %v6423
        %v6913 = vpop.f32.mrf.mxu0
        %v6914 = vadd.f32 %v6801, %v6913
        %6915 = vmatmul.f32.gmra.mxu0 %v6424
        %v6916 = vpop.f32.mrf.mxu0
        %v6917 = vadd.f32 %v6804, %v6916
        %6918 = vmatmul.f32.gmra.mxu0 %v6425
        %v6919 = vpop.f32.mrf.mxu0
        %v6920 = vadd.f32 %v6807, %v6919
        %6921 = vmatmul.f32.gmra.mxu0 %v6426
        %v6922 = vpop.f32.mrf.mxu0
        %v6923 = vadd.f32 %v6810, %v6922
        %6924 = vmatmul.f32.gmra.mxu0 %v6427
        %v6925 = vpop.f32.mrf.mxu0
        %v6926 = vadd.f32 %v6813, %v6925
        %6927 = vmatmul.f32.gmra.mxu0 %v6428
        %v6928 = vpop.f32.mrf.mxu0
        %v6929 = vadd.f32 %v6816, %v6928
        %6930 = vmatmul.f32.gmra.mxu0 %v6429
        %v6931 = vpop.f32.mrf.mxu0
        %v6932 = vadd.f32 %v6819, %v6931
        %6933 = vmatmul.f32.gmra.mxu0 %v6430
        %v6934 = vpop.f32.mrf.mxu0
        %v6935 = vadd.f32 %v6822, %v6934
        %6936 = vmatmul.f32.gmra.mxu0 %v6431
        %v6937 = vpop.f32.mrf.mxu0
        %v6938 = vadd.f32 %v6825, %v6937
        %6939 = vmatmul.f32.gmra.mxu0 %v6432
        %v6940 = vpop.f32.mrf.mxu0
        %v6941 = vadd.f32 %v6828, %v6940
        %6942 = vmatmul.f32.gmra.mxu0 %v6433
        %v6943 = vpop.f32.mrf.mxu0
        %v6944 = vadd.f32 %v6831, %v6943
        %6945 = vmatmul.f32.gmra.mxu0 %v6434
        %v6946 = vpop.f32.mrf.mxu0
        %v6947 = vadd.f32 %v6834, %v6946
        %6948 = vmatmul.f32.gmra.mxu0 %v6435
        %v6949 = vpop.f32.mrf.mxu0
        %v6950 = vadd.f32 %v6837, %v6949
        %6951 = vdwg.mxu0
        %v6952 = vld [vmem:[#allocation9] sm:$0x3]
        %v6954 = vperm.slane %v6952, 0
        %v6955 = vperm.slane %v6952, 1
        %v6958 = vadd.f32 %v6631, %v6954
        %v6959 = vadd.f32 %v6857, %v6955
        %v6960 = vadd.f32 %v6634, %v6954
        %v6961 = vadd.f32 %v6860, %v6955
        %v6962 = vadd.f32 %v6637, %v6954
        %v6963 = vadd.f32 %v6863, %v6955
        %v6964 = vadd.f32 %v6640, %v6954
        %v6965 = vadd.f32 %v6866, %v6955
        %v6966 = vadd.f32 %v6643, %v6954
        %v6967 = vadd.f32 %v6869, %v6955
        %v6968 = vadd.f32 %v6646, %v6954
        %v6969 = vadd.f32 %v6872, %v6955
        %v6970 = vadd.f32 %v6649, %v6954
        %v6971 = vadd.f32 %v6875, %v6955
        %v6972 = vadd.f32 %v6652, %v6954
        %v6973 = vadd.f32 %v6878, %v6955
        %v6974 = vadd.f32 %v6655, %v6954
        %v6975 = vadd.f32 %v6881, %v6955
        %v6976 = vadd.f32 %v6658, %v6954
        %v6977 = vadd.f32 %v6884, %v6955
        %v6978 = vadd.f32 %v6661, %v6954
        %v6979 = vadd.f32 %v6887, %v6955
        %v6980 = vadd.f32 %v6664, %v6954
        %v6981 = vadd.f32 %v6890, %v6955
        %v6982 = vadd.f32 %v6667, %v6954
        %v6983 = vadd.f32 %v6893, %v6955
        %v6984 = vadd.f32 %v6670, %v6954
        %v6985 = vadd.f32 %v6896, %v6955
        %v6986 = vadd.f32 %v6673, %v6954
        %v6987 = vadd.f32 %v6899, %v6955
        %v6988 = vadd.f32 %v6676, %v6954
        %v6989 = vadd.f32 %v6902, %v6955
        %v6990 = vadd.f32 %v6679, %v6954
        %v6991 = vadd.f32 %v6905, %v6955
        %v6992 = vadd.f32 %v6682, %v6954
        %v6993 = vadd.f32 %v6908, %v6955
        %v6994 = vadd.f32 %v6685, %v6954
        %v6995 = vadd.f32 %v6911, %v6955
        %v6996 = vadd.f32 %v6688, %v6954
        %v6997 = vadd.f32 %v6914, %v6955
        %v6998 = vadd.f32 %v6691, %v6954
        %v6999 = vadd.f32 %v6917, %v6955
        %v7000 = vadd.f32 %v6694, %v6954
        %v7001 = vadd.f32 %v6920, %v6955
        %v7002 = vadd.f32 %v6697, %v6954
        %v7003 = vadd.f32 %v6923, %v6955
        %v7004 = vadd.f32 %v6700, %v6954
        %v7005 = vadd.f32 %v6926, %v6955
        %v7006 = vadd.f32 %v6703, %v6954
        %v7007 = vadd.f32 %v6929, %v6955
        %v7008 = vadd.f32 %v6706, %v6954
        %v7009 = vadd.f32 %v6932, %v6955
        %v7010 = vadd.f32 %v6709, %v6954
        %v7011 = vadd.f32 %v6935, %v6955
        %v7012 = vadd.f32 %v6712, %v6954
        %v7013 = vadd.f32 %v6938, %v6955
        %v7014 = vadd.f32 %v6715, %v6954
        %v7015 = vadd.f32 %v6941, %v6955
        %v7016 = vadd.f32 %v6718, %v6954
        %v7017 = vadd.f32 %v6944, %v6955
        %v7018 = vadd.f32 %v6721, %v6954
        %v7019 = vadd.f32 %v6947, %v6955
        %v7020 = vadd.f32 %v6724, %v6954
        %v7021 = vadd.f32 %v6950, %v6955
        %v7022 = vmax.f32 %v6958, 0.0
        %v7023 = vmax.f32 %v6959, 0.0
        %v7024 = vmax.f32 %v6960, 0.0
        %v7025 = vmax.f32 %v6961, 0.0
        %v7026 = vmax.f32 %v6962, 0.0
        %v7027 = vmax.f32 %v6963, 0.0
        %v7028 = vmax.f32 %v6964, 0.0
        %v7029 = vmax.f32 %v6965, 0.0
        %v7030 = vmax.f32 %v6966, 0.0
        %v7031 = vmax.f32 %v6967, 0.0
        %v7032 = vmax.f32 %v6968, 0.0
        %v7033 = vmax.f32 %v6969, 0.0
        %v7034 = vmax.f32 %v6970, 0.0
        %v7035 = vmax.f32 %v6971, 0.0
        %v7036 = vmax.f32 %v6972, 0.0
        %v7037 = vmax.f32 %v6973, 0.0
        %v7038 = vmax.f32 %v6974, 0.0
        %v7039 = vmax.f32 %v6975, 0.0
        %v7040 = vmax.f32 %v6976, 0.0
        %v7041 = vmax.f32 %v6977, 0.0
        %v7042 = vmax.f32 %v6978, 0.0
        %v7043 = vmax.f32 %v6979, 0.0
        %v7044 = vmax.f32 %v6980, 0.0
        %v7045 = vmax.f32 %v6981, 0.0
        %v7046 = vmax.f32 %v6982, 0.0
        %v7047 = vmax.f32 %v6983, 0.0
        %v7048 = vmax.f32 %v6984, 0.0
        %v7049 = vmax.f32 %v6985, 0.0
        %v7050 = vmax.f32 %v6986, 0.0
        %v7051 = vmax.f32 %v6987, 0.0
        %v7052 = vmax.f32 %v6988, 0.0
        %v7053 = vmax.f32 %v6989, 0.0
        %v7054 = vmax.f32 %v6990, 0.0
        %v7055 = vmax.f32 %v6991, 0.0
        %v7056 = vmax.f32 %v6992, 0.0
        %v7057 = vmax.f32 %v6993, 0.0
        %v7058 = vmax.f32 %v6994, 0.0
        %v7059 = vmax.f32 %v6995, 0.0
        %v7060 = vmax.f32 %v6996, 0.0
        %v7061 = vmax.f32 %v6997, 0.0
        %v7062 = vmax.f32 %v6998, 0.0
        %v7063 = vmax.f32 %v6999, 0.0
        %v7064 = vmax.f32 %v7000, 0.0
        %v7065 = vmax.f32 %v7001, 0.0
        %v7066 = vmax.f32 %v7002, 0.0
        %v7067 = vmax.f32 %v7003, 0.0
        %v7068 = vmax.f32 %v7004, 0.0
        %v7069 = vmax.f32 %v7005, 0.0
        %v7070 = vmax.f32 %v7006, 0.0
        %v7071 = vmax.f32 %v7007, 0.0
        %v7072 = vmax.f32 %v7008, 0.0
        %v7073 = vmax.f32 %v7009, 0.0
        %v7074 = vmax.f32 %v7010, 0.0
        %v7075 = vmax.f32 %v7011, 0.0
        %v7076 = vmax.f32 %v7012, 0.0
        %v7077 = vmax.f32 %v7013, 0.0
        %v7078 = vmax.f32 %v7014, 0.0
        %v7079 = vmax.f32 %v7015, 0.0
        %v7080 = vmax.f32 %v7016, 0.0
        %v7081 = vmax.f32 %v7017, 0.0
        %v7082 = vmax.f32 %v7018, 0.0
        %v7083 = vmax.f32 %v7019, 0.0
        %v7084 = vmax.f32 %v7020, 0.0
        %v7085 = vmax.f32 %v7021, 0.0
        %7086 = vst [vmem:[%s317] sm:$0xff] %v7022
        %7087 = vst [vmem:[%s317 + $0x8] sm:$0xff] %v7023
        %7088 = vst [vmem:[%s317 + $0x10] sm:$0xff] %v7024
        %7089 = vst [vmem:[%s317 + $0x18] sm:$0xff] %v7025
        %7090 = vst [vmem:[%s317 + $0x20] sm:$0xff] %v7026
        %7091 = vst [vmem:[%s317 + $0x28] sm:$0xff] %v7027
        %7092 = vst [vmem:[%s317 + $0x30] sm:$0xff] %v7028
        %7093 = vst [vmem:[%s317 + $0x38] sm:$0xff] %v7029
        %7094 = vst [vmem:[%s317 + $0x40] sm:$0xff] %v7030
        %7095 = vst [vmem:[%s317 + $0x48] sm:$0xff] %v7031
        %7096 = vst [vmem:[%s317 + $0x50] sm:$0xff] %v7032
        %7097 = vst [vmem:[%s317 + $0x58] sm:$0xff] %v7033
        %7098 = vst [vmem:[%s317 + $0x60] sm:$0xff] %v7034
        %7099 = vst [vmem:[%s317 + $0x68] sm:$0xff] %v7035
        %7100 = vst [vmem:[%s317 + $0x70] sm:$0xff] %v7036
        %7101 = vst [vmem:[%s317 + $0x78] sm:$0xff] %v7037
        %7102 = vst [vmem:[%s317 + $0x80] sm:$0xff] %v7038
        %7103 = vst [vmem:[%s317 + $0x88] sm:$0xff] %v7039
        %7104 = vst [vmem:[%s317 + $0x90] sm:$0xff] %v7040
        %7105 = vst [vmem:[%s317 + $0x98] sm:$0xff] %v7041
        %7106 = vst [vmem:[%s317 + $0xa0] sm:$0xff] %v7042
        %7107 = vst [vmem:[%s317 + $0xa8] sm:$0xff] %v7043
        %7108 = vst [vmem:[%s317 + $0xb0] sm:$0xff] %v7044
        %7109 = vst [vmem:[%s317 + $0xb8] sm:$0xff] %v7045
        %7110 = vst [vmem:[%s317 + $0xc0] sm:$0xff] %v7046
        %7111 = vst [vmem:[%s317 + $0xc8] sm:$0xff] %v7047
        %7112 = vst [vmem:[%s317 + $0xd0] sm:$0xff] %v7048
        %7113 = vst [vmem:[%s317 + $0xd8] sm:$0xff] %v7049
        %7114 = vst [vmem:[%s317 + $0xe0] sm:$0xff] %v7050
        %7115 = vst [vmem:[%s317 + $0xe8] sm:$0xff] %v7051
        %7116 = vst [vmem:[%s317 + $0xf0] sm:$0xff] %v7052
        %7117 = vst [vmem:[%s317 + $0xf8] sm:$0xff] %v7053
        %7118 = vst [vmem:[%s317 + $0x100] sm:$0xff] %v7054
        %7119 = vst [vmem:[%s317 + $0x108] sm:$0xff] %v7055
        %7120 = vst [vmem:[%s317 + $0x110] sm:$0xff] %v7056
        %7121 = vst [vmem:[%s317 + $0x118] sm:$0xff] %v7057
        %7122 = vst [vmem:[%s317 + $0x120] sm:$0xff] %v7058
        %7123 = vst [vmem:[%s317 + $0x128] sm:$0xff] %v7059
        %7124 = vst [vmem:[%s317 + $0x130] sm:$0xff] %v7060
        %7125 = vst [vmem:[%s317 + $0x138] sm:$0xff] %v7061
        %7126 = vst [vmem:[%s317 + $0x140] sm:$0xff] %v7062
        %7127 = vst [vmem:[%s317 + $0x148] sm:$0xff] %v7063
        %7128 = vst [vmem:[%s317 + $0x150] sm:$0xff] %v7064
        %7129 = vst [vmem:[%s317 + $0x158] sm:$0xff] %v7065
        %7130 = vst [vmem:[%s317 + $0x160] sm:$0xff] %v7066
        %7131 = vst [vmem:[%s317 + $0x168] sm:$0xff] %v7067
        %7132 = vst [vmem:[%s317 + $0x170] sm:$0xff] %v7068
        %7133 = vst [vmem:[%s317 + $0x178] sm:$0xff] %v7069
        %7134 = vst [vmem:[%s317 + $0x180] sm:$0xff] %v7070
        %7135 = vst [vmem:[%s317 + $0x188] sm:$0xff] %v7071
        %7136 = vst [vmem:[%s317 + $0x190] sm:$0xff] %v7072
        %7137 = vst [vmem:[%s317 + $0x198] sm:$0xff] %v7073
        %7138 = vst [vmem:[%s317 + $0x1a0] sm:$0xff] %v7074
        %7139 = vst [vmem:[%s317 + $0x1a8] sm:$0xff] %v7075
        %7140 = vst [vmem:[%s317 + $0x1b0] sm:$0xff] %v7076
        %7141 = vst [vmem:[%s317 + $0x1b8] sm:$0xff] %v7077
        %7142 = vst [vmem:[%s317 + $0x1c0] sm:$0xff] %v7078
        %7143 = vst [vmem:[%s317 + $0x1c8] sm:$0xff] %v7079
        %7144 = vst [vmem:[%s317 + $0x1d0] sm:$0xff] %v7080
        %7145 = vst [vmem:[%s317 + $0x1d8] sm:$0xff] %v7081
        %7146 = vst [vmem:[%s317 + $0x1e0] sm:$0xff] %v7082
        %7147 = vst [vmem:[%s317 + $0x1e8] sm:$0xff] %v7083
        %7148 = vst [vmem:[%s317 + $0x1f0] sm:$0xff] %v7084
        %7149 = vst [vmem:[%s317 + $0x1f8] sm:$0xff] %v7085
        %s7150 = sand.u32 %s183, 1
        %s7151 = scalar_lea.sflag [#allocation6], %s7150
        %s7152 = sand.u32 %s183, 1
        %s7153 = smul.addr %s7152, 512
        %s7154 = scalar_lea.vmem [#allocation10], %s7153
        // Predicated region
        $region61: #{tpu_custom_call.1} parent=47 // pred_check
          %p7155 = pneg %p193
        $region62: #{tpu_custom_call.1} parent=47 // pred_check_branch
          %7157 = sbr.rel (%p7155) target = $region64
        $region63: #{tpu_custom_call.1} parent=47 // pred_region
          %7159 = vsyncadd %s7151, 0
          %s7160 = smul.addr %s23, 64
          %s7161 = smul.addr %s7160, 8
          %s7162 = scalar_lea.hbm %s7, %s7161
          %s7163 = sshll.u32 %s7154, 4
          %s7164 = int_to_ptr.vmem [resolvable:$true] %s7163
          %s7165 = sshll.u32 %s7162, 4
          %s7166 = int_to_ptr.hbm [resolvable:$true] %s7165
          %7171 = dma.vmem_to_hbm [thread:$0]  %s7164, 8192, %s7166, %s7151, 256, 256, 16
        $region64: #{tpu_custom_call.1} parent=47 // pred_fallthru
          _
      $region48: #{tpu_custom_call.1} parent=5 // pred_fallthru
        _
      %p7172 = scmp.le.s32.totalorder 2, %s18
      // Predicated region
      $region65: #{tpu_custom_call.1} parent=5 // pred_check
        %p7173 = pneg %p7172
      $region66: #{tpu_custom_call.1} parent=5 // pred_check_branch
        %7175 = sbr.rel (%p7173) target = $region68
      $region67: #{tpu_custom_call.1} parent=5 // pred_region
        %s7176 = ssub.s32 %s18, 2
        // Predicated region
        $region69: #{tpu_custom_call.1} parent=67 // pred_check
          %p7177 = pneg %p199
        $region70: #{tpu_custom_call.1} parent=67 // pred_check_branch
          %7179 = sbr.rel (%p7177) target = $region72
        $region71: #{tpu_custom_call.1} parent=67 // pred_region
          %s7180 = sand.u32 %s184, 1
          %s7181 = scalar_lea.sflag [#allocation6], %s7180
          %s7182 = sand.u32 %s184, 1
          %s7183 = smul.addr %s7182, 512
          %s7184 = scalar_lea.vmem [#allocation10], %s7183
          %7186 = dma.done %s7181, 8192
        $region72: #{tpu_custom_call.1} parent=67 // pred_fallthru
          _
      $region68: #{tpu_custom_call.1} parent=5 // pred_fallthru
        _
    $region6: #{tpu_custom_call.1} parent=1 // loop_footer
      %s22 = sadd.s32 1, %s18
    $region7: #{tpu_custom_call.1} parent=1 // loop_footer_branch
      %17 = sbr.rel target = $region3
    $region8: #{tpu_custom_call.1} parent=1 // loop_exit
      _
    %7187 = vsyncpa [#allocation5], 1
    %s7188 = scalar_lea.sflag [#allocation5], 1
    %7189 = vsyncpa %s7188, 1
    %7190 = vsyncpa [#allocation8], 1
    %7191 = vsyncpa [#allocation6], 1
    %s7192 = scalar_lea.sflag [#allocation6], 1
    %7193 = vsyncpa %s7192, 1

</llo_original>
